<compile_context>
chip_gen: v7x
topology: tpu7x:2x2x1
jax: 0.10.0
libtpu: 0.0.40
codegen_flags: <defaults>
</compile_context>

<pallas_src>
import functools

import numpy as np
import jax
import jax.numpy as jnp
from jax.experimental import pallas as pl
from jax.experimental.pallas import tpu as pltpu


def _round_up(n, m):
    return (n + m - 1) // m * m


def fold_bn(gamma, beta, mean, var, eps=1e-5):
    scale = gamma / jnp.sqrt(var + eps)
    return scale, beta - mean * scale


# ---------------------------------------------------------------------------
# Pallas kernel: `block_n` images (one grid step) per invocation.
#   x_ref  : (block_n, HW, Cp)  flattened NHWC images, f32 (channels padded)
#   bm_ref : (4, M, 1)          boundary masks [row dy=-1, row dy=+1,
#                                               col dx=-1, col dx=+1], bf16 0/1
#   w1     : (Cp, Wp)   1x1 conv, BN1 scale folded, bf16
#   b1     : (1, Wp)    BN1 bias, f32
#   w2     : (9*Wp, Wp) 3x3 conv taps stacked on the contraction dim, bf16
#   b2     : (1, Wp)    BN2 bias, f32
#   w3     : (Wp, Cp)   1x1 conv, BN3 scale folded, bf16
#   b3     : (1, Cp)    BN3 bias, f32
#   o_ref  : (block_n, HW, Cp)  output
# ---------------------------------------------------------------------------
def bottleneck_kernel(x_ref, bm_ref, w1_ref, b1_ref, w2_ref, b2_ref,
                      w3_ref, b3_ref, o_ref, *, W):
    bn, HW, cp = x_ref.shape
    M = bn * HW
    wp = w1_ref.shape[1]

    x = x_ref[...].reshape(M, cp)                              # (M, Cp) f32

    # ---- conv1 (1x1) + bn1 + relu  (bf16 MXU, f32 accumulate) -------------
    h1 = jnp.dot(x.astype(jnp.bfloat16), w1_ref[...],
                 preferred_element_type=jnp.float32)
    h1 = jnp.maximum(h1 + b1_ref[...], 0.0)                    # (M, Wp) f32

    # ---- conv2 (3x3, stride 1, pad 1) + bn2 + relu ------------------------
    # Zero-padding semantics via destination-indexed factorized masks
    # (precomputed on the host: no integer division / iota in the kernel).
    def masked(a, i):                     # a: (M, Wp) f32, mask i in {0..3}
        return a * bm_ref[i].astype(jnp.float32)

    # Column-shifted, column-masked copies of h1, shared across the 3 dy.
    # pltpu.roll(h, (-s) % M)[p] == h[p + s]  (sublane XLU rotation).
    g = {0: h1}
    for dx, mi in ((-1, 2), (1, 3)):
        g[dx] = masked(pltpu.roll(h1, shift=(-dx) % M, axis=0), mi)

    def tap(dy, dx):                      # -> (M, Wp) bf16 (tap for (dy, dx))
        t = g[dx]
        if dy != 0:
            t = pltpu.roll(t, shift=(-dy * W) % M, axis=0)
            t = masked(t, 0 if dy < 0 else 1)
        return t.astype(jnp.bfloat16)

    # 9 taps contracted as 4 pairs (K = 2*Wp, fills the 256-deep v6e/v7x MXU)
    # + 1 single, accumulated in f32 against static slices of the packed
    # weight -- no 9-wide lane concat, at most 2 taps live at a time.
    offsets = [(dy, dx) for dy in (-1, 0, 1) for dx in (-1, 0, 1)]
    groups = ((0, 1), (2, 3), (4, 5), (6, 7), (8,))
    h2 = None
    for grp in groups:
        parts = [tap(*offsets[t]) for t in grp]
        lhs = parts[0] if len(parts) == 1 else jnp.concatenate(parts, axis=1)
        rhs = w2_ref[grp[0] * wp:(grp[-1] + 1) * wp, :]
        d = jnp.dot(lhs, rhs, preferred_element_type=jnp.float32)
        h2 = d if h2 is None else h2 + d
    h2 = jnp.maximum(h2 + b2_ref[...], 0.0)                    # (M, Wp) f32

    # ---- conv3 (1x1) + bn3 + identity add + relu (residual stays f32) -----
    h3 = jnp.dot(h2.astype(jnp.bfloat16), w3_ref[...],
                 preferred_element_type=jnp.float32)
    y = jnp.maximum(h3 + b3_ref[...] + x, 0.0)
    o_ref[...] = y.reshape(o_ref.shape).astype(o_ref.dtype)


# ---------------------------------------------------------------------------
# One-time packing: BN folding, channel padding, 3x3 tap stacking, masks.
# ---------------------------------------------------------------------------
def pack_bottleneck_params(p, H, W, eps=1e-5, lane=128):
    width, Cin = p["w1"].shape[0], p["w1"].shape[1]
    Cout = p["w3"].shape[0]
    Cp = _round_up(Cin, lane)       # padded in/out channels (lane-dense)
    Wp = _round_up(width, lane)     # padded bottleneck width
    HW = H * W

    s1, b1 = fold_bn(p["g1"], p["be1"], p["m1"], p["v1"], eps)
    s2, b2 = fold_bn(p["g2"], p["be2"], p["m2"], p["v2"], eps)
    s3, b3 = fold_bn(p["g3"], p["be3"], p["m3"], p["v3"], eps)

    # 1x1 convs: OIHW (out,in,1,1) -> (in,out); fold BN scale; pad; bf16.
    w1 = p["w1"][:, :, 0, 0].T * s1[None, :]
    w1 = jnp.pad(w1, ((0, Cp - Cin), (0, Wp - width))).astype(jnp.bfloat16)
    w3 = p["w3"][:, :, 0, 0].T * s3[None, :]
    w3 = jnp.pad(w3, ((0, Wp - width), (0, Cp - Cout))).astype(jnp.bfloat16)

    # 3x3 conv: OIHW -> (kh, kw, in, out); fold BN scale; pad channel dims;
    # stack the 9 taps on the contraction dim -> (9*Wp, Wp).
    w2 = jnp.transpose(p["w2"], (2, 3, 1, 0)) * s2[None, None, None, :]
    w2 = jnp.pad(w2, ((0, 0), (0, 0), (0, Wp - width), (0, Wp - width)))
    w2 = w2.reshape(9 * Wp, Wp).astype(jnp.bfloat16)

    b1p = jnp.pad(b1, (0, Wp - width)).reshape(1, Wp).astype(jnp.float32)
    b2p = jnp.pad(b2, (0, Wp - width)).reshape(1, Wp).astype(jnp.float32)
    b3p = jnp.pad(b3, (0, Cp - Cout)).reshape(1, Cp).astype(jnp.float32)

    # Factorized per-destination boundary masks (static in H, W):
    #   [row ok for dy=-1, row ok for dy=+1, col ok for dx=-1, col ok for dx=+1]
    pos = np.arange(HW, dtype=np.int64)
    row, col = pos // W, pos % W
    bmask = np.stack([row >= 1, row <= H - 2, col >= 1, col <= W - 2])
    bmask = jnp.asarray(bmask.astype(np.float32).reshape(4, HW, 1),
                        dtype=jnp.bfloat16)

    return dict(H=H, W=W, Cin=Cin, Cout=Cout, Cp=Cp, Wp=Wp,
                w1=w1, b1=b1p, w2=w2, b2=b2p, w3=w3, b3=b3p, bmask=bmask)


def _auto_block_n(N, HW, target_rows=512):
    """Images per grid step so the matmul M-dim keeps the MXU streaming
    (small-HW stages: 7x7 / 14x14 need several images per step)."""
    best = 1
    for d in range(1, N + 1):
        if N % d == 0 and d * HW <= max(target_rows, HW):
            best = d
    return best


def _vmem_limit_bytes():
    """~3/4 of physical VMEM: ~96 MiB on v5e/v6e (128 MiB), 48 MiB on v7x."""
    try:
        cap = pltpu.get_tpu_info().vmem_capacity_bytes
        return min(96 * 1024 * 1024, (cap * 3) // 4)
    except Exception:
        return 48 * 1024 * 1024   # conservative: safe on every generation


# ---------------------------------------------------------------------------
# Flat-layout entry point: x_flat is (N, HW, Cp) f32, params already packed.
# ---------------------------------------------------------------------------
def bottleneck_flat(x_flat, pk, *, block_n=None, out_dtype=jnp.float32):
    N, HW, Cp = x_flat.shape
    W, Wp = pk["W"], pk["Wp"]
    assert HW == pk["H"] * pk["W"] and Cp == pk["Cp"]
    if block_n is None:
        block_n = _auto_block_n(N, HW)
    assert N % block_n == 0, "block_n must divide the batch"
    M = block_n * HW

    # Per-destination masks, tiled to the block's M = block_n*HW rows.
    bmask = pk["bmask"] if block_n == 1 else jnp.tile(pk["bmask"], (1, block_n, 1))

    kernel = functools.partial(bottleneck_kernel, W=W)
    args = (x_flat, bmask, pk["w1"], pk["b1"], pk["w2"], pk["b2"],
            pk["w3"], pk["b3"])

    def build(single_buffer_consts):
        def const_spec(shape):
            # Constant operands: same block every grid step -> single-buffer
            # them (halves their VMEM footprint; they are DMA'd once).
            if single_buffer_consts:
                return pl.BlockSpec(shape, lambda n: (0,) * len(shape),
                                    pipeline_mode=pl.Buffered(1))
            return pl.BlockSpec(shape, lambda n: (0,) * len(shape))

        return pl.pallas_call(
            kernel,
            out_shape=jax.ShapeDtypeStruct((N, HW, Cp), out_dtype),
            grid_spec=pltpu.PrefetchScalarGridSpec(
                num_scalar_prefetch=0,
                grid=(N // block_n,),
                in_specs=[
                    pl.BlockSpec((block_n, HW, Cp), lambda n: (n, 0, 0)),  # x
                    const_spec((4, M, 1)),          # boundary masks
                    const_spec((Cp, Wp)),           # w1
                    const_spec((1, Wp)),            # b1
                    const_spec((9 * Wp, Wp)),       # w2 (tap-stacked)
                    const_spec((1, Wp)),            # b2
                    const_spec((Wp, Cp)),           # w3
                    const_spec((1, Cp)),            # b3
                ],
                out_specs=pl.BlockSpec((block_n, HW, Cp), lambda n: (n, 0, 0)),
            ),
            compiler_params=pltpu.CompilerParams(
                dimension_semantics=("parallel",),   # batch axis -> both TCs
                vmem_limit_bytes=_vmem_limit_bytes(),
            ),
        )

    try:
        return build(single_buffer_consts=True)(*args)
    except Exception:
        # pl.Buffered(1) single-buffering not supported by this JAX build:
        # fall back to default (double-buffered) specs -- functionally equal.
        return build(single_buffer_consts=False)(*args)


# ---------------------------------------------------------------------------
# NCHW ingress/egress wrapper (a full network should stay in the padded
# (N, HW, Cp) layout and convert only once at its boundaries).
# ---------------------------------------------------------------------------
def bottleneck_forward(x_nchw, p, *, block_n=None, out_dtype=jnp.float32,
                       eps=1e-5):
    N, Cin, H, W = x_nchw.shape
    pk = pack_bottleneck_params(p, H, W, eps=eps)
    assert Cin == pk["Cin"] == pk["Cout"], \
        "identity shortcut requires inplanes == planes*expansion"
    # TODO(synk): stride>1 / downsample sub-module not implemented here.
    Cp, Cout = pk["Cp"], pk["Cout"]

    x_flat = jnp.transpose(x_nchw, (0, 2, 3, 1)).reshape(N, H * W, Cin)
    x_flat = jnp.pad(x_flat, ((0, 0), (0, 0), (0, Cp - Cin))).astype(jnp.float32)

    out_flat = bottleneck_flat(x_flat, pk, block_n=block_n, out_dtype=out_dtype)

    out = out_flat[:, :, :Cout].reshape(N, H, W, Cout)
    return jnp.transpose(out, (0, 3, 1, 2))


# ---------------------------------------------------------------------------
# References.
# ---------------------------------------------------------------------------
def bottleneck_ref_f32(x_nchw, p, eps=1e-5):
    """Faithful f32 forward of the PyTorch module (inference BN)."""
    x = jnp.transpose(x_nchw, (0, 2, 3, 1)).astype(jnp.float32)

    def bn(y, g, b, m, v):
        return (y - m) / jnp.sqrt(v + eps) * g + b

    h = jnp.einsum("nhwc,co->nhwo", x, p["w1"][:, :, 0, 0].T)
    h = jax.nn.relu(bn(h, p["g1"], p["be1"], p["m1"], p["v1"]))
    w2_hwio = jnp.transpose(p["w2"], (2, 3, 1, 0))
    h = jax.lax.conv_general_dilated(
        h, w2_hwio, (1, 1), ((1, 1), (1, 1)),
        dimension_numbers=("NHWC", "HWIO", "NHWC"))
    h = jax.nn.relu(bn(h, p["g2"], p["be2"], p["m2"], p["v2"]))
    h = jnp.einsum("nhwo,oc->nhwc", h, p["w3"][:, :, 0, 0].T)
    h = bn(h, p["g3"], p["be3"], p["m3"], p["v3"])
    return jnp.transpose(jax.nn.relu(h + x), (0, 3, 1, 2))


def bottleneck_ref_bf16(x_nchw, p, eps=1e-5):
    """Mirrors the kernel's precision choices (BN folded into bf16 weights,
    bf16 matmul inputs, f32 accumulate / bias / relu / residual) with an
    independent conv implementation — tight structural check."""
    x = jnp.transpose(x_nchw, (0, 2, 3, 1)).astype(jnp.float32)
    s1, b1 = fold_bn(p["g1"], p["be1"], p["m1"], p["v1"], eps)
    s2, b2 = fold_bn(p["g2"], p["be2"], p["m2"], p["v2"], eps)
    s3, b3 = fold_bn(p["g3"], p["be3"], p["m3"], p["v3"], eps)

    w1 = (p["w1"][:, :, 0, 0].T * s1[None, :]).astype(jnp.bfloat16)
    w2 = (jnp.transpose(p["w2"], (2, 3, 1, 0)) * s2[None, None, None, :]
          ).astype(jnp.bfloat16)
    w3 = (p["w3"][:, :, 0, 0].T * s3[None, :]).astype(jnp.bfloat16)

    h = jnp.einsum("nhwc,co->nhwo", x.astype(jnp.bfloat16), w1,
                   preferred_element_type=jnp.float32)
    h = jax.nn.relu(h + b1)
    h = jax.lax.conv_general_dilated(
        h.astype(jnp.bfloat16), w2, (1, 1), ((1, 1), (1, 1)),
        dimension_numbers=("NHWC", "HWIO", "NHWC"),
        preferred_element_type=jnp.float32)
    h = jax.nn.relu(h + b2)
    h = jnp.einsum("nhwo,oc->nhwc", h.astype(jnp.bfloat16), w3,
                   preferred_element_type=jnp.float32)
    return jnp.transpose(jax.nn.relu(h + b3 + x), (0, 3, 1, 2))


if __name__ == "__main__":
    key = jax.random.PRNGKey(0)
    N, H, W = 2, 16, 16
    planes = 4
    base_width = 64
    width = int(planes * (base_width / 64.0))        # 4
    inplanes = planes * 4                            # 16 (expansion = 4)
    Cout = planes * 4                                # 16

    ks = jax.random.split(key, 16)
    wscale = 0.15
    p = {
        # conv weights in PyTorch OIHW layout
        "w1": wscale * jax.random.normal(ks[0], (width, inplanes, 1, 1), jnp.float32),
        "w2": wscale * jax.random.normal(ks[1], (width, width, 3, 3), jnp.float32),
        "w3": wscale * jax.random.normal(ks[2], (Cout, width, 1, 1), jnp.float32),
        # BatchNorm (inference / running stats)
        "g1": 1.0 + 0.1 * jax.random.normal(ks[3], (width,), jnp.float32),
        "be1": 0.1 * jax.random.normal(ks[4], (width,), jnp.float32),
        "m1": 0.1 * jax.random.normal(ks[5], (width,), jnp.float32),
        "v1": jax.random.uniform(ks[6], (width,), jnp.float32, 0.5, 1.5),
        "g2": 1.0 + 0.1 * jax.random.normal(ks[7], (width,), jnp.float32),
        "be2": 0.1 * jax.random.normal(ks[8], (width,), jnp.float32),
        "m2": 0.1 * jax.random.normal(ks[9], (width,), jnp.float32),
        "v2": jax.random.uniform(ks[10], (width,), jnp.float32, 0.5, 1.5),
        "g3": 1.0 + 0.1 * jax.random.normal(ks[11], (Cout,), jnp.float32),
        "be3": 0.1 * jax.random.normal(ks[12], (Cout,), jnp.float32),
        "m3": 0.1 * jax.random.normal(ks[13], (Cout,), jnp.float32),
        "v3": jax.random.uniform(ks[14], (Cout,), jnp.float32, 0.5, 1.5),
    }
    x = jax.random.normal(ks[15], (N, inplanes, H, W), jnp.float32)

    ref_bf16 = bottleneck_ref_bf16(x, p)
    ref_f32 = bottleneck_ref_f32(x, p)

    # Exercise both the per-image grid (block_n=1, grid=2) and the
    # multi-image-per-step blocking (block_n=2, grid=1, M=512).
    for bn_blk in (1, 2):
        out = bottleneck_forward(x, p, block_n=bn_blk)
        jax.block_until_ready(out)
        # Tight structural check vs. a precision-matched JAX reference.
        np.testing.assert_allclose(np.asarray(out), np.asarray(ref_bf16),
                                   atol=2e-3, rtol=2e-3)
        # Fidelity check vs. the full-f32 PyTorch-equivalent forward.
        np.testing.assert_allclose(np.asarray(out), np.asarray(ref_f32),
                                   atol=5e-2, rtol=5e-2)

    print("KERNEL_OK")
</pallas_src>

<mosaic_0001>
module attributes {stable_mosaic.version = 11 : i64} {
  func.func @bottleneck_kernel(%arg0: i32, %arg1: memref<1x256x128xf32, #tpu.memory_space<vmem>>, %arg2: memref<4x256x1xbf16, #tpu.memory_space<vmem>>, %arg3: memref<128x128xbf16, #tpu.memory_space<vmem>>, %arg4: memref<1x128xf32, #tpu.memory_space<vmem>>, %arg5: memref<1152x128xbf16, #tpu.memory_space<vmem>>, %arg6: memref<1x128xf32, #tpu.memory_space<vmem>>, %arg7: memref<128x128xbf16, #tpu.memory_space<vmem>>, %arg8: memref<1x128xf32, #tpu.memory_space<vmem>>, %arg9: memref<1x256x128xf32, #tpu.memory_space<vmem>>) attributes {dimension_semantics = [#tpu.dimension_semantics<parallel>], iteration_bounds = array<i64: 2>, scalar_prefetch = 0 : i64, scratch_operands = 0 : i64, tpu.core_type = #tpu.core_type<tc>, window_params = [{transform_indices = @transform_0, window_bounds = array<i64: 1, 256, 128>}, {pipeline_mode = #tpu.pipeline_mode<synchronous>, transform_indices = @transform_1, window_bounds = array<i64: 4, 256, 1>}, {pipeline_mode = #tpu.pipeline_mode<synchronous>, transform_indices = @transform_2, window_bounds = array<i64: 128, 128>}, {pipeline_mode = #tpu.pipeline_mode<synchronous>, transform_indices = @transform_3, window_bounds = array<i64: 1, 128>}, {pipeline_mode = #tpu.pipeline_mode<synchronous>, transform_indices = @transform_4, window_bounds = array<i64: 1152, 128>}, {pipeline_mode = #tpu.pipeline_mode<synchronous>, transform_indices = @transform_5, window_bounds = array<i64: 1, 128>}, {pipeline_mode = #tpu.pipeline_mode<synchronous>, transform_indices = @transform_6, window_bounds = array<i64: 128, 128>}, {pipeline_mode = #tpu.pipeline_mode<synchronous>, transform_indices = @transform_7, window_bounds = array<i64: 1, 128>}, {transform_indices = @transform_8, window_bounds = array<i64: 1, 256, 128>}]} {
    %c0 = arith.constant 0 : index
    %c0_0 = arith.constant 0 : index
    %c0_1 = arith.constant 0 : index
    %0 = vector.load %arg1[%c0, %c0_0, %c0_1] : memref<1x256x128xf32, #tpu.memory_space<vmem>>, vector<1x256x128xf32>
    %1 = vector.shape_cast %0 : vector<1x256x128xf32> to vector<256x128xf32>
    %2 = arith.truncf %1 : vector<256x128xf32> to vector<256x128xbf16>
    %c0_2 = arith.constant 0 : index
    %c0_3 = arith.constant 0 : index
    %3 = vector.load %arg3[%c0_2, %c0_3] : memref<128x128xbf16, #tpu.memory_space<vmem>>, vector<128x128xbf16>
    %cst = arith.constant dense<0.000000e+00> : vector<256x128xf32>
    %4 = tpu.matmul %2, %3, %cst {dimension_numbers = #tpu.dot_dimension_numbers<[1], [0], [0], [1], [0, 0, 1, 1], [], []>} : vector<256x128xbf16>, vector<128x128xbf16>, vector<256x128xf32> -> vector<256x128xf32>
    %c0_4 = arith.constant 0 : index
    %c0_5 = arith.constant 0 : index
    %5 = vector.load %arg4[%c0_4, %c0_5] : memref<1x128xf32, #tpu.memory_space<vmem>>, vector<1x128xf32>
    %6 = vector.broadcast %5 : vector<1x128xf32> to vector<256x128xf32>
    %7 = arith.addf %4, %6 : vector<256x128xf32>
    %cst_6 = arith.constant 0.000000e+00 : f32
    %8 = vector.broadcast %cst_6 : f32 to vector<256x128xf32>
    %9 = arith.maximumf %7, %8 : vector<256x128xf32>
    %c1_i32 = arith.constant 1 : i32
    %10 = tpu.dynamic_rotate %9 by %c1_i32 dim 0 : vector<256x128xf32>, i32 -> vector<256x128xf32>
    %c2 = arith.constant 2 : index
    %c0_7 = arith.constant 0 : index
    %c0_8 = arith.constant 0 : index
    %11 = vector.load %arg2[%c2, %c0_7, %c0_8] : memref<4x256x1xbf16, #tpu.memory_space<vmem>>, vector<1x256x1xbf16>
    %12 = vector.shape_cast %11 : vector<1x256x1xbf16> to vector<256x1xbf16>
    %13 = arith.extf %12 : vector<256x1xbf16> to vector<256x1xf32>
    %14 = vector.broadcast %13 : vector<256x1xf32> to vector<256x128xf32>
    %15 = arith.mulf %10, %14 : vector<256x128xf32>
    %c255_i32 = arith.constant 255 : i32
    %16 = tpu.dynamic_rotate %9 by %c255_i32 dim 0 : vector<256x128xf32>, i32 -> vector<256x128xf32>
    %c3 = arith.constant 3 : index
    %c0_9 = arith.constant 0 : index
    %c0_10 = arith.constant 0 : index
    %17 = vector.load %arg2[%c3, %c0_9, %c0_10] : memref<4x256x1xbf16, #tpu.memory_space<vmem>>, vector<1x256x1xbf16>
    %18 = vector.shape_cast %17 : vector<1x256x1xbf16> to vector<256x1xbf16>
    %19 = arith.extf %18 : vector<256x1xbf16> to vector<256x1xf32>
    %20 = vector.broadcast %19 : vector<256x1xf32> to vector<256x128xf32>
    %21 = arith.mulf %16, %20 : vector<256x128xf32>
    %c16_i32 = arith.constant 16 : i32
    %22 = tpu.dynamic_rotate %15 by %c16_i32 dim 0 : vector<256x128xf32>, i32 -> vector<256x128xf32>
    %c0_11 = arith.constant 0 : index
    %c0_12 = arith.constant 0 : index
    %c0_13 = arith.constant 0 : index
    %23 = vector.load %arg2[%c0_11, %c0_12, %c0_13] : memref<4x256x1xbf16, #tpu.memory_space<vmem>>, vector<1x256x1xbf16>
    %24 = vector.shape_cast %23 : vector<1x256x1xbf16> to vector<256x1xbf16>
    %25 = arith.extf %24 : vector<256x1xbf16> to vector<256x1xf32>
    %26 = vector.broadcast %25 : vector<256x1xf32> to vector<256x128xf32>
    %27 = arith.mulf %22, %26 : vector<256x128xf32>
    %28 = arith.truncf %27 : vector<256x128xf32> to vector<256x128xbf16>
    %c16_i32_14 = arith.constant 16 : i32
    %29 = tpu.dynamic_rotate %9 by %c16_i32_14 dim 0 : vector<256x128xf32>, i32 -> vector<256x128xf32>
    %c0_15 = arith.constant 0 : index
    %c0_16 = arith.constant 0 : index
    %c0_17 = arith.constant 0 : index
    %30 = vector.load %arg2[%c0_15, %c0_16, %c0_17] : memref<4x256x1xbf16, #tpu.memory_space<vmem>>, vector<1x256x1xbf16>
    %31 = vector.shape_cast %30 : vector<1x256x1xbf16> to vector<256x1xbf16>
    %32 = arith.extf %31 : vector<256x1xbf16> to vector<256x1xf32>
    %33 = vector.broadcast %32 : vector<256x1xf32> to vector<256x128xf32>
    %34 = arith.mulf %29, %33 : vector<256x128xf32>
    %35 = arith.truncf %34 : vector<256x128xf32> to vector<256x128xbf16>
    %36 = tpu.concatenate %28, %35 in 1 : vector<256x128xbf16>, vector<256x128xbf16> -> vector<256x256xbf16>
    %c0_18 = arith.constant 0 : index
    %c0_19 = arith.constant 0 : index
    %37 = vector.load %arg5[%c0_18, %c0_19] : memref<1152x128xbf16, #tpu.memory_space<vmem>>, vector<256x128xbf16>
    %cst_20 = arith.constant dense<0.000000e+00> : vector<256x128xf32>
    %38 = tpu.matmul %36, %37, %cst_20 {dimension_numbers = #tpu.dot_dimension_numbers<[1], [0], [0], [1], [0, 0, 1, 1], [], []>} : vector<256x256xbf16>, vector<256x128xbf16>, vector<256x128xf32> -> vector<256x128xf32>
    %c16_i32_21 = arith.constant 16 : i32
    %39 = tpu.dynamic_rotate %21 by %c16_i32_21 dim 0 : vector<256x128xf32>, i32 -> vector<256x128xf32>
    %c0_22 = arith.constant 0 : index
    %c0_23 = arith.constant 0 : index
    %c0_24 = arith.constant 0 : index
    %40 = vector.load %arg2[%c0_22, %c0_23, %c0_24] : memref<4x256x1xbf16, #tpu.memory_space<vmem>>, vector<1x256x1xbf16>
    %41 = vector.shape_cast %40 : vector<1x256x1xbf16> to vector<256x1xbf16>
    %42 = arith.extf %41 : vector<256x1xbf16> to vector<256x1xf32>
    %43 = vector.broadcast %42 : vector<256x1xf32> to vector<256x128xf32>
    %44 = arith.mulf %39, %43 : vector<256x128xf32>
    %45 = arith.truncf %44 : vector<256x128xf32> to vector<256x128xbf16>
    %46 = arith.truncf %15 : vector<256x128xf32> to vector<256x128xbf16>
    %47 = tpu.concatenate %45, %46 in 1 : vector<256x128xbf16>, vector<256x128xbf16> -> vector<256x256xbf16>
    %c256 = arith.constant 256 : index
    %c0_25 = arith.constant 0 : index
    %48 = vector.load %arg5[%c256, %c0_25] : memref<1152x128xbf16, #tpu.memory_space<vmem>>, vector<256x128xbf16>
    %cst_26 = arith.constant dense<0.000000e+00> : vector<256x128xf32>
    %49 = tpu.matmul %47, %48, %cst_26 {dimension_numbers = #tpu.dot_dimension_numbers<[1], [0], [0], [1], [0, 0, 1, 1], [], []>} : vector<256x256xbf16>, vector<256x128xbf16>, vector<256x128xf32> -> vector<256x128xf32>
    %50 = arith.addf %38, %49 : vector<256x128xf32>
    %51 = arith.truncf %9 : vector<256x128xf32> to vector<256x128xbf16>
    %52 = arith.truncf %21 : vector<256x128xf32> to vector<256x128xbf16>
    %53 = tpu.concatenate %51, %52 in 1 : vector<256x128xbf16>, vector<256x128xbf16> -> vector<256x256xbf16>
    %c512 = arith.constant 512 : index
    %c0_27 = arith.constant 0 : index
    %54 = vector.load %arg5[%c512, %c0_27] : memref<1152x128xbf16, #tpu.memory_space<vmem>>, vector<256x128xbf16>
    %cst_28 = arith.constant dense<0.000000e+00> : vector<256x128xf32>
    %55 = tpu.matmul %53, %54, %cst_28 {dimension_numbers = #tpu.dot_dimension_numbers<[1], [0], [0], [1], [0, 0, 1, 1], [], []>} : vector<256x256xbf16>, vector<256x128xbf16>, vector<256x128xf32> -> vector<256x128xf32>
    %56 = arith.addf %50, %55 : vector<256x128xf32>
    %c240_i32 = arith.constant 240 : i32
    %57 = tpu.dynamic_rotate %15 by %c240_i32 dim 0 : vector<256x128xf32>, i32 -> vector<256x128xf32>
    %c1 = arith.constant 1 : index
    %c0_29 = arith.constant 0 : index
    %c0_30 = arith.constant 0 : index
    %58 = vector.load %arg2[%c1, %c0_29, %c0_30] : memref<4x256x1xbf16, #tpu.memory_space<vmem>>, vector<1x256x1xbf16>
    %59 = vector.shape_cast %58 : vector<1x256x1xbf16> to vector<256x1xbf16>
    %60 = arith.extf %59 : vector<256x1xbf16> to vector<256x1xf32>
    %61 = vector.broadcast %60 : vector<256x1xf32> to vector<256x128xf32>
    %62 = arith.mulf %57, %61 : vector<256x128xf32>
    %63 = arith.truncf %62 : vector<256x128xf32> to vector<256x128xbf16>
    %c240_i32_31 = arith.constant 240 : i32
    %64 = tpu.dynamic_rotate %9 by %c240_i32_31 dim 0 : vector<256x128xf32>, i32 -> vector<256x128xf32>
    %c1_32 = arith.constant 1 : index
    %c0_33 = arith.constant 0 : index
    %c0_34 = arith.constant 0 : index
    %65 = vector.load %arg2[%c1_32, %c0_33, %c0_34] : memref<4x256x1xbf16, #tpu.memory_space<vmem>>, vector<1x256x1xbf16>
    %66 = vector.shape_cast %65 : vector<1x256x1xbf16> to vector<256x1xbf16>
    %67 = arith.extf %66 : vector<256x1xbf16> to vector<256x1xf32>
    %68 = vector.broadcast %67 : vector<256x1xf32> to vector<256x128xf32>
    %69 = arith.mulf %64, %68 : vector<256x128xf32>
    %70 = arith.truncf %69 : vector<256x128xf32> to vector<256x128xbf16>
    %71 = tpu.concatenate %63, %70 in 1 : vector<256x128xbf16>, vector<256x128xbf16> -> vector<256x256xbf16>
    %c768 = arith.constant 768 : index
    %c0_35 = arith.constant 0 : index
    %72 = vector.load %arg5[%c768, %c0_35] : memref<1152x128xbf16, #tpu.memory_space<vmem>>, vector<256x128xbf16>
    %cst_36 = arith.constant dense<0.000000e+00> : vector<256x128xf32>
    %73 = tpu.matmul %71, %72, %cst_36 {dimension_numbers = #tpu.dot_dimension_numbers<[1], [0], [0], [1], [0, 0, 1, 1], [], []>} : vector<256x256xbf16>, vector<256x128xbf16>, vector<256x128xf32> -> vector<256x128xf32>
    %74 = arith.addf %56, %73 : vector<256x128xf32>
    %c240_i32_37 = arith.constant 240 : i32
    %75 = tpu.dynamic_rotate %21 by %c240_i32_37 dim 0 : vector<256x128xf32>, i32 -> vector<256x128xf32>
    %c1_38 = arith.constant 1 : index
    %c0_39 = arith.constant 0 : index
    %c0_40 = arith.constant 0 : index
    %76 = vector.load %arg2[%c1_38, %c0_39, %c0_40] : memref<4x256x1xbf16, #tpu.memory_space<vmem>>, vector<1x256x1xbf16>
    %77 = vector.shape_cast %76 : vector<1x256x1xbf16> to vector<256x1xbf16>
    %78 = arith.extf %77 : vector<256x1xbf16> to vector<256x1xf32>
    %79 = vector.broadcast %78 : vector<256x1xf32> to vector<256x128xf32>
    %80 = arith.mulf %75, %79 : vector<256x128xf32>
    %81 = arith.truncf %80 : vector<256x128xf32> to vector<256x128xbf16>
    %c1024 = arith.constant 1024 : index
    %c0_41 = arith.constant 0 : index
    %82 = vector.load %arg5[%c1024, %c0_41] : memref<1152x128xbf16, #tpu.memory_space<vmem>>, vector<128x128xbf16>
    %cst_42 = arith.constant dense<0.000000e+00> : vector<256x128xf32>
    %83 = tpu.matmul %81, %82, %cst_42 {dimension_numbers = #tpu.dot_dimension_numbers<[1], [0], [0], [1], [0, 0, 1, 1], [], []>} : vector<256x128xbf16>, vector<128x128xbf16>, vector<256x128xf32> -> vector<256x128xf32>
    %84 = arith.addf %74, %83 : vector<256x128xf32>
    %c0_43 = arith.constant 0 : index
    %c0_44 = arith.constant 0 : index
    %85 = vector.load %arg6[%c0_43, %c0_44] : memref<1x128xf32, #tpu.memory_space<vmem>>, vector<1x128xf32>
    %86 = vector.broadcast %85 : vector<1x128xf32> to vector<256x128xf32>
    %87 = arith.addf %84, %86 : vector<256x128xf32>
    %cst_45 = arith.constant 0.000000e+00 : f32
    %88 = vector.broadcast %cst_45 : f32 to vector<256x128xf32>
    %89 = arith.maximumf %87, %88 : vector<256x128xf32>
    %90 = arith.truncf %89 : vector<256x128xf32> to vector<256x128xbf16>
    %c0_46 = arith.constant 0 : index
    %c0_47 = arith.constant 0 : index
    %91 = vector.load %arg7[%c0_46, %c0_47] : memref<128x128xbf16, #tpu.memory_space<vmem>>, vector<128x128xbf16>
    %cst_48 = arith.constant dense<0.000000e+00> : vector<256x128xf32>
    %92 = tpu.matmul %90, %91, %cst_48 {dimension_numbers = #tpu.dot_dimension_numbers<[1], [0], [0], [1], [0, 0, 1, 1], [], []>} : vector<256x128xbf16>, vector<128x128xbf16>, vector<256x128xf32> -> vector<256x128xf32>
    %c0_49 = arith.constant 0 : index
    %c0_50 = arith.constant 0 : index
    %93 = vector.load %arg8[%c0_49, %c0_50] : memref<1x128xf32, #tpu.memory_space<vmem>>, vector<1x128xf32>
    %94 = vector.broadcast %93 : vector<1x128xf32> to vector<256x128xf32>
    %95 = arith.addf %92, %94 : vector<256x128xf32>
    %96 = arith.addf %95, %1 : vector<256x128xf32>
    %cst_51 = arith.constant 0.000000e+00 : f32
    %97 = vector.broadcast %cst_51 : f32 to vector<256x128xf32>
    %98 = arith.maximumf %96, %97 : vector<256x128xf32>
    %99 = vector.shape_cast %98 : vector<256x128xf32> to vector<1x256x128xf32>
    %c0_52 = arith.constant 0 : index
    %c0_53 = arith.constant 0 : index
    %c0_54 = arith.constant 0 : index
    %100 = vector.load %arg9[%c0_52, %c0_53, %c0_54] : memref<1x256x128xf32, #tpu.memory_space<vmem>>, vector<1x256x128xf32>
    tpu.vector_store %arg9[%c0_52, %c0_53, %c0_54], %99 {strides = array<i32>} : memref<1x256x128xf32, #tpu.memory_space<vmem>>, vector<1x256x128xf32>,
    return
  }
  func.func @transform_0(%arg0: i32) -> (i32, i32, i32) {
    %c0_i32 = arith.constant 0 : i32
    %c0_i32_0 = arith.constant 0 : i32
    %c0_i32_1 = arith.constant 0 : i32
    return %arg0, %c0_i32, %c0_i32_0 : i32, i32, i32
  }
  func.func @transform_1(%arg0: i32) -> (i32, i32, i32) {
    %c0_i32 = arith.constant 0 : i32
    %c0_i32_0 = arith.constant 0 : i32
    %c0_i32_1 = arith.constant 0 : i32
    %c0_i32_2 = arith.constant 0 : i32
    return %c0_i32, %c0_i32_0, %c0_i32_1 : i32, i32, i32
  }
  func.func @transform_2(%arg0: i32) -> (i32, i32) {
    %c0_i32 = arith.constant 0 : i32
    %c0_i32_0 = arith.constant 0 : i32
    %c0_i32_1 = arith.constant 0 : i32
    return %c0_i32, %c0_i32_0 : i32, i32
  }
  func.func @transform_3(%arg0: i32) -> (i32, i32) {
    %c0_i32 = arith.constant 0 : i32
    %c0_i32_0 = arith.constant 0 : i32
    %c0_i32_1 = arith.constant 0 : i32
    return %c0_i32, %c0_i32_0 : i32, i32
  }
  func.func @transform_4(%arg0: i32) -> (i32, i32) {
    %c0_i32 = arith.constant 0 : i32
    %c0_i32_0 = arith.constant 0 : i32
    %c0_i32_1 = arith.constant 0 : i32
    return %c0_i32, %c0_i32_0 : i32, i32
  }
  func.func @transform_5(%arg0: i32) -> (i32, i32) {
    %c0_i32 = arith.constant 0 : i32
    %c0_i32_0 = arith.constant 0 : i32
    %c0_i32_1 = arith.constant 0 : i32
    return %c0_i32, %c0_i32_0 : i32, i32
  }
  func.func @transform_6(%arg0: i32) -> (i32, i32) {
    %c0_i32 = arith.constant 0 : i32
    %c0_i32_0 = arith.constant 0 : i32
    %c0_i32_1 = arith.constant 0 : i32
    return %c0_i32, %c0_i32_0 : i32, i32
  }
  func.func @transform_7(%arg0: i32) -> (i32, i32) {
    %c0_i32 = arith.constant 0 : i32
    %c0_i32_0 = arith.constant 0 : i32
    %c0_i32_1 = arith.constant 0 : i32
    return %c0_i32, %c0_i32_0 : i32, i32
  }
  func.func @transform_8(%arg0: i32) -> (i32, i32, i32) {
    %c0_i32 = arith.constant 0 : i32
    %c0_i32_0 = arith.constant 0 : i32
    %c0_i32_1 = arith.constant 0 : i32
    return %arg0, %c0_i32, %c0_i32_0 : i32, i32, i32
  }
}

module attributes {stable_mosaic.version = 11 : i64} {
  func.func @bottleneck_kernel(%arg0: i32, %arg1: memref<1x256x128xf32, #tpu.memory_space<vmem>>, %arg2: memref<4x256x1xbf16, #tpu.memory_space<vmem>>, %arg3: memref<128x128xbf16, #tpu.memory_space<vmem>>, %arg4: memref<1x128xf32, #tpu.memory_space<vmem>>, %arg5: memref<1152x128xbf16, #tpu.memory_space<vmem>>, %arg6: memref<1x128xf32, #tpu.memory_space<vmem>>, %arg7: memref<128x128xbf16, #tpu.memory_space<vmem>>, %arg8: memref<1x128xf32, #tpu.memory_space<vmem>>, %arg9: memref<1x256x128xf32, #tpu.memory_space<vmem>>) attributes {dimension_semantics = [#tpu.dimension_semantics<parallel>], iteration_bounds = array<i64: 2>, scalar_prefetch = 0 : i64, scratch_operands = 0 : i64, tpu.core_type = #tpu.core_type<tc>, window_params = [{transform_indices = @transform_0, window_bounds = array<i64: 1, 256, 128>}, {pipeline_mode = #tpu.pipeline_mode<synchronous>, transform_indices = @transform_1, window_bounds = array<i64: 4, 256, 1>}, {pipeline_mode = #tpu.pipeline_mode<synchronous>, transform_indices = @transform_2, window_bounds = array<i64: 128, 128>}, {pipeline_mode = #tpu.pipeline_mode<synchronous>, transform_indices = @transform_3, window_bounds = array<i64: 1, 128>}, {pipeline_mode = #tpu.pipeline_mode<synchronous>, transform_indices = @transform_4, window_bounds = array<i64: 1152, 128>}, {pipeline_mode = #tpu.pipeline_mode<synchronous>, transform_indices = @transform_5, window_bounds = array<i64: 1, 128>}, {pipeline_mode = #tpu.pipeline_mode<synchronous>, transform_indices = @transform_6, window_bounds = array<i64: 128, 128>}, {pipeline_mode = #tpu.pipeline_mode<synchronous>, transform_indices = @transform_7, window_bounds = array<i64: 1, 128>}, {transform_indices = @transform_8, window_bounds = array<i64: 1, 256, 128>}]} {
    %c0 = arith.constant 0 : index
    %c0_0 = arith.constant 0 : index
    %c0_1 = arith.constant 0 : index
    %0 = vector.load %arg1[%c0, %c0_0, %c0_1] : memref<1x256x128xf32, #tpu.memory_space<vmem>>, vector<1x256x128xf32>
    %1 = vector.shape_cast %0 : vector<1x256x128xf32> to vector<256x128xf32>
    %2 = arith.truncf %1 : vector<256x128xf32> to vector<256x128xbf16>
    %c0_2 = arith.constant 0 : index
    %c0_3 = arith.constant 0 : index
    %3 = vector.load %arg3[%c0_2, %c0_3] : memref<128x128xbf16, #tpu.memory_space<vmem>>, vector<128x128xbf16>
    %cst = arith.constant dense<0.000000e+00> : vector<256x128xf32>
    %4 = tpu.matmul %2, %3, %cst {dimension_numbers = #tpu.dot_dimension_numbers<[1], [0], [0], [1], [0, 0, 1, 1], [], []>} : vector<256x128xbf16>, vector<128x128xbf16>, vector<256x128xf32> -> vector<256x128xf32>
    %c0_4 = arith.constant 0 : index
    %c0_5 = arith.constant 0 : index
    %5 = vector.load %arg4[%c0_4, %c0_5] : memref<1x128xf32, #tpu.memory_space<vmem>>, vector<1x128xf32>
    %6 = vector.broadcast %5 : vector<1x128xf32> to vector<256x128xf32>
    %7 = arith.addf %4, %6 : vector<256x128xf32>
    %cst_6 = arith.constant 0.000000e+00 : f32
    %8 = vector.broadcast %cst_6 : f32 to vector<256x128xf32>
    %9 = arith.maximumf %7, %8 : vector<256x128xf32>
    %c1_i32 = arith.constant 1 : i32
    %10 = tpu.dynamic_rotate %9 by %c1_i32 dim 0 : vector<256x128xf32>, i32 -> vector<256x128xf32>
    %c2 = arith.constant 2 : index
    %c0_7 = arith.constant 0 : index
    %c0_8 = arith.constant 0 : index
    %11 = vector.load %arg2[%c2, %c0_7, %c0_8] : memref<4x256x1xbf16, #tpu.memory_space<vmem>>, vector<1x256x1xbf16>
    %12 = vector.shape_cast %11 : vector<1x256x1xbf16> to vector<256x1xbf16>
    %13 = arith.extf %12 : vector<256x1xbf16> to vector<256x1xf32>
    %14 = vector.broadcast %13 : vector<256x1xf32> to vector<256x128xf32>
    %15 = arith.mulf %10, %14 : vector<256x128xf32>
    %c255_i32 = arith.constant 255 : i32
    %16 = tpu.dynamic_rotate %9 by %c255_i32 dim 0 : vector<256x128xf32>, i32 -> vector<256x128xf32>
    %c3 = arith.constant 3 : index
    %c0_9 = arith.constant 0 : index
    %c0_10 = arith.constant 0 : index
    %17 = vector.load %arg2[%c3, %c0_9, %c0_10] : memref<4x256x1xbf16, #tpu.memory_space<vmem>>, vector<1x256x1xbf16>
    %18 = vector.shape_cast %17 : vector<1x256x1xbf16> to vector<256x1xbf16>
    %19 = arith.extf %18 : vector<256x1xbf16> to vector<256x1xf32>
    %20 = vector.broadcast %19 : vector<256x1xf32> to vector<256x128xf32>
    %21 = arith.mulf %16, %20 : vector<256x128xf32>
    %c16_i32 = arith.constant 16 : i32
    %22 = tpu.dynamic_rotate %15 by %c16_i32 dim 0 : vector<256x128xf32>, i32 -> vector<256x128xf32>
    %c0_11 = arith.constant 0 : index
    %c0_12 = arith.constant 0 : index
    %c0_13 = arith.constant 0 : index
    %23 = vector.load %arg2[%c0_11, %c0_12, %c0_13] : memref<4x256x1xbf16, #tpu.memory_space<vmem>>, vector<1x256x1xbf16>
    %24 = vector.shape_cast %23 : vector<1x256x1xbf16> to vector<256x1xbf16>
    %25 = arith.extf %24 : vector<256x1xbf16> to vector<256x1xf32>
    %26 = vector.broadcast %25 : vector<256x1xf32> to vector<256x128xf32>
    %27 = arith.mulf %22, %26 : vector<256x128xf32>
    %28 = arith.truncf %27 : vector<256x128xf32> to vector<256x128xbf16>
    %c16_i32_14 = arith.constant 16 : i32
    %29 = tpu.dynamic_rotate %9 by %c16_i32_14 dim 0 : vector<256x128xf32>, i32 -> vector<256x128xf32>
    %c0_15 = arith.constant 0 : index
    %c0_16 = arith.constant 0 : index
    %c0_17 = arith.constant 0 : index
    %30 = vector.load %arg2[%c0_15, %c0_16, %c0_17] : memref<4x256x1xbf16, #tpu.memory_space<vmem>>, vector<1x256x1xbf16>
    %31 = vector.shape_cast %30 : vector<1x256x1xbf16> to vector<256x1xbf16>
    %32 = arith.extf %31 : vector<256x1xbf16> to vector<256x1xf32>
    %33 = vector.broadcast %32 : vector<256x1xf32> to vector<256x128xf32>
    %34 = arith.mulf %29, %33 : vector<256x128xf32>
    %35 = arith.truncf %34 : vector<256x128xf32> to vector<256x128xbf16>
    %36 = tpu.concatenate %28, %35 in 1 : vector<256x128xbf16>, vector<256x128xbf16> -> vector<256x256xbf16>
    %c0_18 = arith.constant 0 : index
    %c0_19 = arith.constant 0 : index
    %37 = vector.load %arg5[%c0_18, %c0_19] : memref<1152x128xbf16, #tpu.memory_space<vmem>>, vector<256x128xbf16>
    %cst_20 = arith.constant dense<0.000000e+00> : vector<256x128xf32>
    %38 = tpu.matmul %36, %37, %cst_20 {dimension_numbers = #tpu.dot_dimension_numbers<[1], [0], [0], [1], [0, 0, 1, 1], [], []>} : vector<256x256xbf16>, vector<256x128xbf16>, vector<256x128xf32> -> vector<256x128xf32>
    %c16_i32_21 = arith.constant 16 : i32
    %39 = tpu.dynamic_rotate %21 by %c16_i32_21 dim 0 : vector<256x128xf32>, i32 -> vector<256x128xf32>
    %c0_22 = arith.constant 0 : index
    %c0_23 = arith.constant 0 : index
    %c0_24 = arith.constant 0 : index
    %40 = vector.load %arg2[%c0_22, %c0_23, %c0_24] : memref<4x256x1xbf16, #tpu.memory_space<vmem>>, vector<1x256x1xbf16>
    %41 = vector.shape_cast %40 : vector<1x256x1xbf16> to vector<256x1xbf16>
    %42 = arith.extf %41 : vector<256x1xbf16> to vector<256x1xf32>
    %43 = vector.broadcast %42 : vector<256x1xf32> to vector<256x128xf32>
    %44 = arith.mulf %39, %43 : vector<256x128xf32>
    %45 = arith.truncf %44 : vector<256x128xf32> to vector<256x128xbf16>
    %46 = arith.truncf %15 : vector<256x128xf32> to vector<256x128xbf16>
    %47 = tpu.concatenate %45, %46 in 1 : vector<256x128xbf16>, vector<256x128xbf16> -> vector<256x256xbf16>
    %c256 = arith.constant 256 : index
    %c0_25 = arith.constant 0 : index
    %48 = vector.load %arg5[%c256, %c0_25] : memref<1152x128xbf16, #tpu.memory_space<vmem>>, vector<256x128xbf16>
    %cst_26 = arith.constant dense<0.000000e+00> : vector<256x128xf32>
    %49 = tpu.matmul %47, %48, %cst_26 {dimension_numbers = #tpu.dot_dimension_numbers<[1], [0], [0], [1], [0, 0, 1, 1], [], []>} : vector<256x256xbf16>, vector<256x128xbf16>, vector<256x128xf32> -> vector<256x128xf32>
    %50 = arith.addf %38, %49 : vector<256x128xf32>
    %51 = arith.truncf %9 : vector<256x128xf32> to vector<256x128xbf16>
    %52 = arith.truncf %21 : vector<256x128xf32> to vector<256x128xbf16>
    %53 = tpu.concatenate %51, %52 in 1 : vector<256x128xbf16>, vector<256x128xbf16> -> vector<256x256xbf16>
    %c512 = arith.constant 512 : index
    %c0_27 = arith.constant 0 : index
    %54 = vector.load %arg5[%c512, %c0_27] : memref<1152x128xbf16, #tpu.memory_space<vmem>>, vector<256x128xbf16>
    %cst_28 = arith.constant dense<0.000000e+00> : vector<256x128xf32>
    %55 = tpu.matmul %53, %54, %cst_28 {dimension_numbers = #tpu.dot_dimension_numbers<[1], [0], [0], [1], [0, 0, 1, 1], [], []>} : vector<256x256xbf16>, vector<256x128xbf16>, vector<256x128xf32> -> vector<256x128xf32>
    %56 = arith.addf %50, %55 : vector<256x128xf32>
    %c240_i32 = arith.constant 240 : i32
    %57 = tpu.dynamic_rotate %15 by %c240_i32 dim 0 : vector<256x128xf32>, i32 -> vector<256x128xf32>
    %c1 = arith.constant 1 : index
    %c0_29 = arith.constant 0 : index
    %c0_30 = arith.constant 0 : index
    %58 = vector.load %arg2[%c1, %c0_29, %c0_30] : memref<4x256x1xbf16, #tpu.memory_space<vmem>>, vector<1x256x1xbf16>
    %59 = vector.shape_cast %58 : vector<1x256x1xbf16> to vector<256x1xbf16>
    %60 = arith.extf %59 : vector<256x1xbf16> to vector<256x1xf32>
    %61 = vector.broadcast %60 : vector<256x1xf32> to vector<256x128xf32>
    %62 = arith.mulf %57, %61 : vector<256x128xf32>
    %63 = arith.truncf %62 : vector<256x128xf32> to vector<256x128xbf16>
    %c240_i32_31 = arith.constant 240 : i32
    %64 = tpu.dynamic_rotate %9 by %c240_i32_31 dim 0 : vector<256x128xf32>, i32 -> vector<256x128xf32>
    %c1_32 = arith.constant 1 : index
    %c0_33 = arith.constant 0 : index
    %c0_34 = arith.constant 0 : index
    %65 = vector.load %arg2[%c1_32, %c0_33, %c0_34] : memref<4x256x1xbf16, #tpu.memory_space<vmem>>, vector<1x256x1xbf16>
    %66 = vector.shape_cast %65 : vector<1x256x1xbf16> to vector<256x1xbf16>
    %67 = arith.extf %66 : vector<256x1xbf16> to vector<256x1xf32>
    %68 = vector.broadcast %67 : vector<256x1xf32> to vector<256x128xf32>
    %69 = arith.mulf %64, %68 : vector<256x128xf32>
    %70 = arith.truncf %69 : vector<256x128xf32> to vector<256x128xbf16>
    %71 = tpu.concatenate %63, %70 in 1 : vector<256x128xbf16>, vector<256x128xbf16> -> vector<256x256xbf16>
    %c768 = arith.constant 768 : index
    %c0_35 = arith.constant 0 : index
    %72 = vector.load %arg5[%c768, %c0_35] : memref<1152x128xbf16, #tpu.memory_space<vmem>>, vector<256x128xbf16>
    %cst_36 = arith.constant dense<0.000000e+00> : vector<256x128xf32>
    %73 = tpu.matmul %71, %72, %cst_36 {dimension_numbers = #tpu.dot_dimension_numbers<[1], [0], [0], [1], [0, 0, 1, 1], [], []>} : vector<256x256xbf16>, vector<256x128xbf16>, vector<256x128xf32> -> vector<256x128xf32>
    %74 = arith.addf %56, %73 : vector<256x128xf32>
    %c240_i32_37 = arith.constant 240 : i32
    %75 = tpu.dynamic_rotate %21 by %c240_i32_37 dim 0 : vector<256x128xf32>, i32 -> vector<256x128xf32>
    %c1_38 = arith.constant 1 : index
    %c0_39 = arith.constant 0 : index
    %c0_40 = arith.constant 0 : index
    %76 = vector.load %arg2[%c1_38, %c0_39, %c0_40] : memref<4x256x1xbf16, #tpu.memory_space<vmem>>, vector<1x256x1xbf16>
    %77 = vector.shape_cast %76 : vector<1x256x1xbf16> to vector<256x1xbf16>
    %78 = arith.extf %77 : vector<256x1xbf16> to vector<256x1xf32>
    %79 = vector.broadcast %78 : vector<256x1xf32> to vector<256x128xf32>
    %80 = arith.mulf %75, %79 : vector<256x128xf32>
    %81 = arith.truncf %80 : vector<256x128xf32> to vector<256x128xbf16>
    %c1024 = arith.constant 1024 : index
    %c0_41 = arith.constant 0 : index
    %82 = vector.load %arg5[%c1024, %c0_41] : memref<1152x128xbf16, #tpu.memory_space<vmem>>, vector<128x128xbf16>
    %cst_42 = arith.constant dense<0.000000e+00> : vector<256x128xf32>
    %83 = tpu.matmul %81, %82, %cst_42 {dimension_numbers = #tpu.dot_dimension_numbers<[1], [0], [0], [1], [0, 0, 1, 1], [], []>} : vector<256x128xbf16>, vector<128x128xbf16>, vector<256x128xf32> -> vector<256x128xf32>
    %84 = arith.addf %74, %83 : vector<256x128xf32>
    %c0_43 = arith.constant 0 : index
    %c0_44 = arith.constant 0 : index
    %85 = vector.load %arg6[%c0_43, %c0_44] : memref<1x128xf32, #tpu.memory_space<vmem>>, vector<1x128xf32>
    %86 = vector.broadcast %85 : vector<1x128xf32> to vector<256x128xf32>
    %87 = arith.addf %84, %86 : vector<256x128xf32>
    %cst_45 = arith.constant 0.000000e+00 : f32
    %88 = vector.broadcast %cst_45 : f32 to vector<256x128xf32>
    %89 = arith.maximumf %87, %88 : vector<256x128xf32>
    %90 = arith.truncf %89 : vector<256x128xf32> to vector<256x128xbf16>
    %c0_46 = arith.constant 0 : index
    %c0_47 = arith.constant 0 : index
    %91 = vector.load %arg7[%c0_46, %c0_47] : memref<128x128xbf16, #tpu.memory_space<vmem>>, vector<128x128xbf16>
    %cst_48 = arith.constant dense<0.000000e+00> : vector<256x128xf32>
    %92 = tpu.matmul %90, %91, %cst_48 {dimension_numbers = #tpu.dot_dimension_numbers<[1], [0], [0], [1], [0, 0, 1, 1], [], []>} : vector<256x128xbf16>, vector<128x128xbf16>, vector<256x128xf32> -> vector<256x128xf32>
    %c0_49 = arith.constant 0 : index
    %c0_50 = arith.constant 0 : index
    %93 = vector.load %arg8[%c0_49, %c0_50] : memref<1x128xf32, #tpu.memory_space<vmem>>, vector<1x128xf32>
    %94 = vector.broadcast %93 : vector<1x128xf32> to vector<256x128xf32>
    %95 = arith.addf %92, %94 : vector<256x128xf32>
    %96 = arith.addf %95, %1 : vector<256x128xf32>
    %cst_51 = arith.constant 0.000000e+00 : f32
    %97 = vector.broadcast %cst_51 : f32 to vector<256x128xf32>
    %98 = arith.maximumf %96, %97 : vector<256x128xf32>
    %99 = vector.shape_cast %98 : vector<256x128xf32> to vector<1x256x128xf32>
    %c0_52 = arith.constant 0 : index
    %c0_53 = arith.constant 0 : index
    %c0_54 = arith.constant 0 : index
    %100 = vector.load %arg9[%c0_52, %c0_53, %c0_54] : memref<1x256x128xf32, #tpu.memory_space<vmem>>, vector<1x256x128xf32>
    tpu.vector_store %arg9[%c0_52, %c0_53, %c0_54], %99 {strides = array<i32>} : memref<1x256x128xf32, #tpu.memory_space<vmem>>, vector<1x256x128xf32>,
    return
  }
  func.func @transform_0(%arg0: i32) -> (i32, i32, i32) {
    %c0_i32 = arith.constant 0 : i32
    %c0_i32_0 = arith.constant 0 : i32
    %c0_i32_1 = arith.constant 0 : i32
    return %arg0, %c0_i32, %c0_i32_0 : i32, i32, i32
  }
  func.func @transform_1(%arg0: i32) -> (i32, i32, i32) {
    %c0_i32 = arith.constant 0 : i32
    %c0_i32_0 = arith.constant 0 : i32
    %c0_i32_1 = arith.constant 0 : i32
    %c0_i32_2 = arith.constant 0 : i32
    return %c0_i32, %c0_i32_0, %c0_i32_1 : i32, i32, i32
  }
  func.func @transform_2(%arg0: i32) -> (i32, i32) {
    %c0_i32 = arith.constant 0 : i32
    %c0_i32_0 = arith.constant 0 : i32
    %c0_i32_1 = arith.constant 0 : i32
    return %c0_i32, %c0_i32_0 : i32, i32
  }
  func.func @transform_3(%arg0: i32) -> (i32, i32) {
    %c0_i32 = arith.constant 0 : i32
    %c0_i32_0 = arith.constant 0 : i32
    %c0_i32_1 = arith.constant 0 : i32
    return %c0_i32, %c0_i32_0 : i32, i32
  }
  func.func @transform_4(%arg0: i32) -> (i32, i32) {
    %c0_i32 = arith.constant 0 : i32
    %c0_i32_0 = arith.constant 0 : i32
    %c0_i32_1 = arith.constant 0 : i32
    return %c0_i32, %c0_i32_0 : i32, i32
  }
  func.func @transform_5(%arg0: i32) -> (i32, i32) {
    %c0_i32 = arith.constant 0 : i32
    %c0_i32_0 = arith.constant 0 : i32
    %c0_i32_1 = arith.constant 0 : i32
    return %c0_i32, %c0_i32_0 : i32, i32
  }
  func.func @transform_6(%arg0: i32) -> (i32, i32) {
    %c0_i32 = arith.constant 0 : i32
    %c0_i32_0 = arith.constant 0 : i32
    %c0_i32_1 = arith.constant 0 : i32
    return %c0_i32, %c0_i32_0 : i32, i32
  }
  func.func @transform_7(%arg0: i32) -> (i32, i32) {
    %c0_i32 = arith.constant 0 : i32
    %c0_i32_0 = arith.constant 0 : i32
    %c0_i32_1 = arith.constant 0 : i32
    return %c0_i32, %c0_i32_0 : i32, i32
  }
  func.func @transform_8(%arg0: i32) -> (i32, i32, i32) {
    %c0_i32 = arith.constant 0 : i32
    %c0_i32_0 = arith.constant 0 : i32
    %c0_i32_1 = arith.constant 0 : i32
    return %arg0, %c0_i32, %c0_i32_0 : i32, i32, i32
  }
}

</mosaic_0001>

<llo_original>
// kernel: tpu_custom_call.1
$region0: #{tpu_custom_call.1}
  #allocation0 [shape = 'u32[]', space=smem, size = 0x4, offset = 0x4, fixed_abs, tag = 'smem constant byte address 0x4 - core index']
  #allocation1 [shape = 'u32[144,128]{1,0:T(1,128)}', space=vmem, size = 0x12000, scoped, tag = 'internal scratch']
  %s0 = inlined_call_operand.vmem [shape: f32[2,256,128], index: 0, kind: input, shape index: {}]
  %s1 = inlined_call_operand.vmem [shape: bf16[4,256,1], index: 1, kind: input, shape index: {}]
  %s2 = inlined_call_operand.hbm [shape: bf16[128,128], index: 2, kind: input, shape index: {}]
  %s3 = inlined_call_operand.vmem [shape: f32[1,128], index: 3, kind: input, shape index: {}]
  %s4 = inlined_call_operand.hbm [shape: bf16[1152,128], index: 4, kind: input, shape index: {}]
  %s5 = inlined_call_operand.vmem [shape: f32[1,128], index: 5, kind: input, shape index: {}]
  %s6 = inlined_call_operand.hbm [shape: bf16[128,128], index: 6, kind: input, shape index: {}]
  %s7 = inlined_call_operand.vmem [shape: f32[1,128], index: 7, kind: input, shape index: {}]
  %s8 = inlined_call_operand.hbm [shape: f32[2,256,128], index: 8, kind: output, shape index: {}]
  %s9 = sld [smem:[#allocation0]]
  $region77: #{tpu_custom_call.1} parent=0
    _
  %s11 = ssub.s32 1, %s9
  %s12 = scalar_select 0, %s11, %s9
  $region1: #{tpu_custom_call.1} parent=0
    #allocation2 [shape = 'u8[32768]{0}', space=vmem, size = 0x8000, scoped, tag = 'input window, operand 2, single buffered']
    #allocation3 [shape = 's32[2]{0}', space=sflag, size = 0x8, scoped, tag = 'scoped memory for tpu_custom_call.1']
    #allocation4 [shape = 's32[2]{0}', space=sflag, size = 0x8, scoped, tag = 'scoped memory for tpu_custom_call.1']
    #allocation5 [shape = 'u8[294912]{0}', space=vmem, size = 0x48000, scoped, tag = 'input window, operand 4, single buffered']
    #allocation6 [shape = 's32[1]{0}', space=sflag, size = 0x4, scoped, tag = 'scoped memory for tpu_custom_call.1']
    #allocation7 [shape = 'u8[32768]{0}', space=vmem, size = 0x8000, scoped, tag = 'input window, operand 6, single buffered']
    #allocation8 [shape = 'u8[262144]{0}', space=vmem, size = 0x40000, scoped, tag = 'output window, operand 0']
    %13 = vsyncpa [#allocation3], 0
    %14 = vsyncpa [#allocation6], 0
    %15 = vsyncpa [#allocation4], 0
    %s16 = scalar_lea.sflag [#allocation4], 1
    %17 = vsyncpa %s16, 0
    loop: start=0, step=1, limit=4
    $region2: #{tpu_custom_call.1} parent=1 // loop_pre_header
      _
    $region3: #{tpu_custom_call.1} parent=1 // loop_header
      %s19 = sphi 0, %s23
      %p20 = scmp.ge.s32.totalorder %s19, 4
      %s29 = sphi 0, %s31
      %s32 = sphi 0, %s29
      %s33 = sphi 0, %s32
      %s49 = sphi 0, %s33
      %s53 = sphi 0, %s53
      %s55 = sphi 0, %s53
      %s56 = sphi 0, %s55
      %s70 = sphi 0, %s56
      %s74 = sphi 0, %s74
      %s76 = sphi 0, %s74
      %s77 = sphi 0, %s76
      %s91 = sphi 0, %s77
      %s95 = sphi 0, %s95
      %s97 = sphi 0, %s95
      %s98 = sphi 0, %s97
      %s112 = sphi 0, %s98
      %s116 = sphi 0, %s116
      %s118 = sphi 0, %s116
      %s119 = sphi 0, %s118
      %s133 = sphi 0, %s119
      %s137 = sphi 0, %s137
      %s139 = sphi 0, %s137
      %s140 = sphi 0, %s139
      %s154 = sphi 0, %s140
      %s158 = sphi 0, %s158
      %s160 = sphi 0, %s158
      %s161 = sphi 0, %s160
      %s175 = sphi 0, %s161
      %s179 = sphi 0, %s179
      %s181 = sphi 0, %s179
      %s182 = sphi 0, %s181
      %s196 = sphi 0, %s182
      %s202 = sphi 0, %s204
      %s205 = sphi 0, %s202
      %s206 = sphi 0, %s205
      %s222 = sphi 0, %s206
    $region4: #{tpu_custom_call.1} parent=1 // loop_header_branch
      %22 = sbr.rel (%p20) target = $region8
    $region5: #{tpu_custom_call.1} parent=1 // loop_body
      %s24 = ssub.s32 %s19, 1
      %s25 = ssub.s32 %s19, 2
      %s26 = sadd.s32 %s19, 1
      %s27 = ssub.s32 %s19, %s26
      %p28 = scmp.eq.s32.totalorder %s27, 0
      %s30 = sadd.s32 %s29, 1
      %s31 = scalar_select %p28, %s29, %s30
      %p34 = pneg %p28
      %p35 = scmp.eq.s32.totalorder %s19, 1
      %p36 = por %p34, %p35
      %p37 = scmp.ne.s32.totalorder %s29, %s32
      %p38 = scmp.eq.s32.totalorder %s19, 0
      %p39 = por %p37, %p38
      %p40 = scmp.ne.s32.totalorder %s29, %s32
      %p41 = scmp.eq.s32.totalorder %s24, 1
      %p42 = por %p40, %p41
      %p43 = scmp.ne.s32.totalorder %s32, %s33
      %p44 = scmp.eq.s32.totalorder %s24, 0
      %p45 = por %p43, %p44
      %p46 = scmp.ne.s32.totalorder %s32, %s33
      %p47 = scmp.eq.s32.totalorder %s25, 1
      %p48 = por %p46, %p47
      %p50 = scmp.ne.s32.totalorder %s33, %s49
      %p51 = scmp.eq.s32.totalorder %s25, 0
      %p52 = por %p50, %p51
      %s54 = sadd.s32 %s53, 1
      %p57 = scmp.eq.s32.totalorder %s19, 1
      %p58 = scmp.ne.s32.totalorder %s53, %s55
      %p59 = scmp.eq.s32.totalorder %s19, 0
      %p60 = por %p58, %p59
      %p61 = scmp.ne.s32.totalorder %s53, %s55
      %p62 = scmp.eq.s32.totalorder %s24, 1
      %p63 = por %p61, %p62
      %p64 = scmp.ne.s32.totalorder %s55, %s56
      %p65 = scmp.eq.s32.totalorder %s24, 0
      %p66 = por %p64, %p65
      %p67 = scmp.ne.s32.totalorder %s55, %s56
      %p68 = scmp.eq.s32.totalorder %s25, 1
      %p69 = por %p67, %p68
      %p71 = scmp.ne.s32.totalorder %s56, %s70
      %p72 = scmp.eq.s32.totalorder %s25, 0
      %p73 = por %p71, %p72
      %s75 = sadd.s32 %s74, 1
      %p78 = scmp.eq.s32.totalorder %s19, 1
      %p79 = scmp.ne.s32.totalorder %s74, %s76
      %p80 = scmp.eq.s32.totalorder %s19, 0
      %p81 = por %p79, %p80
      %p82 = scmp.ne.s32.totalorder %s74, %s76
      %p83 = scmp.eq.s32.totalorder %s24, 1
      %p84 = por %p82, %p83
      %p85 = scmp.ne.s32.totalorder %s76, %s77
      %p86 = scmp.eq.s32.totalorder %s24, 0
      %p87 = por %p85, %p86
      %p88 = scmp.ne.s32.totalorder %s76, %s77
      %p89 = scmp.eq.s32.totalorder %s25, 1
      %p90 = por %p88, %p89
      %p92 = scmp.ne.s32.totalorder %s77, %s91
      %p93 = scmp.eq.s32.totalorder %s25, 0
      %p94 = por %p92, %p93
      %s96 = sadd.s32 %s95, 1
      %p99 = scmp.eq.s32.totalorder %s19, 1
      %p100 = scmp.ne.s32.totalorder %s95, %s97
      %p101 = scmp.eq.s32.totalorder %s19, 0
      %p102 = por %p100, %p101
      %p103 = scmp.ne.s32.totalorder %s95, %s97
      %p104 = scmp.eq.s32.totalorder %s24, 1
      %p105 = por %p103, %p104
      %p106 = scmp.ne.s32.totalorder %s97, %s98
      %p107 = scmp.eq.s32.totalorder %s24, 0
      %p108 = por %p106, %p107
      %p109 = scmp.ne.s32.totalorder %s97, %s98
      %p110 = scmp.eq.s32.totalorder %s25, 1
      %p111 = por %p109, %p110
      %p113 = scmp.ne.s32.totalorder %s98, %s112
      %p114 = scmp.eq.s32.totalorder %s25, 0
      %p115 = por %p113, %p114
      %s117 = sadd.s32 %s116, 1
      %p120 = scmp.eq.s32.totalorder %s19, 1
      %p121 = scmp.ne.s32.totalorder %s116, %s118
      %p122 = scmp.eq.s32.totalorder %s19, 0
      %p123 = por %p121, %p122
      %p124 = scmp.ne.s32.totalorder %s116, %s118
      %p125 = scmp.eq.s32.totalorder %s24, 1
      %p126 = por %p124, %p125
      %p127 = scmp.ne.s32.totalorder %s118, %s119
      %p128 = scmp.eq.s32.totalorder %s24, 0
      %p129 = por %p127, %p128
      %p130 = scmp.ne.s32.totalorder %s118, %s119
      %p131 = scmp.eq.s32.totalorder %s25, 1
      %p132 = por %p130, %p131
      %p134 = scmp.ne.s32.totalorder %s119, %s133
      %p135 = scmp.eq.s32.totalorder %s25, 0
      %p136 = por %p134, %p135
      %s138 = sadd.s32 %s137, 1
      %p141 = scmp.eq.s32.totalorder %s19, 1
      %p142 = scmp.ne.s32.totalorder %s137, %s139
      %p143 = scmp.eq.s32.totalorder %s19, 0
      %p144 = por %p142, %p143
      %p145 = scmp.ne.s32.totalorder %s137, %s139
      %p146 = scmp.eq.s32.totalorder %s24, 1
      %p147 = por %p145, %p146
      %p148 = scmp.ne.s32.totalorder %s139, %s140
      %p149 = scmp.eq.s32.totalorder %s24, 0
      %p150 = por %p148, %p149
      %p151 = scmp.ne.s32.totalorder %s139, %s140
      %p152 = scmp.eq.s32.totalorder %s25, 1
      %p153 = por %p151, %p152
      %p155 = scmp.ne.s32.totalorder %s140, %s154
      %p156 = scmp.eq.s32.totalorder %s25, 0
      %p157 = por %p155, %p156
      %s159 = sadd.s32 %s158, 1
      %p162 = scmp.eq.s32.totalorder %s19, 1
      %p163 = scmp.ne.s32.totalorder %s158, %s160
      %p164 = scmp.eq.s32.totalorder %s19, 0
      %p165 = por %p163, %p164
      %p166 = scmp.ne.s32.totalorder %s158, %s160
      %p167 = scmp.eq.s32.totalorder %s24, 1
      %p168 = por %p166, %p167
      %p169 = scmp.ne.s32.totalorder %s160, %s161
      %p170 = scmp.eq.s32.totalorder %s24, 0
      %p171 = por %p169, %p170
      %p172 = scmp.ne.s32.totalorder %s160, %s161
      %p173 = scmp.eq.s32.totalorder %s25, 1
      %p174 = por %p172, %p173
      %p176 = scmp.ne.s32.totalorder %s161, %s175
      %p177 = scmp.eq.s32.totalorder %s25, 0
      %p178 = por %p176, %p177
      %s180 = sadd.s32 %s179, 1
      %p183 = scmp.eq.s32.totalorder %s19, 1
      %p184 = scmp.ne.s32.totalorder %s179, %s181
      %p185 = scmp.eq.s32.totalorder %s19, 0
      %p186 = por %p184, %p185
      %p187 = scmp.ne.s32.totalorder %s179, %s181
      %p188 = scmp.eq.s32.totalorder %s24, 1
      %p189 = por %p187, %p188
      %p190 = scmp.ne.s32.totalorder %s181, %s182
      %p191 = scmp.eq.s32.totalorder %s24, 0
      %p192 = por %p190, %p191
      %p193 = scmp.ne.s32.totalorder %s181, %s182
      %p194 = scmp.eq.s32.totalorder %s25, 1
      %p195 = por %p193, %p194
      %p197 = scmp.ne.s32.totalorder %s182, %s196
      %p198 = scmp.eq.s32.totalorder %s25, 0
      %p199 = por %p197, %p198
      %s200 = ssub.s32 %s19, %s26
      %p201 = scmp.eq.s32.totalorder %s200, 0
      %s203 = sadd.s32 %s202, 1
      %s204 = scalar_select %p201, %s202, %s203
      %p207 = pneg %p201
      %p208 = scmp.eq.s32.totalorder %s19, 1
      %p209 = por %p207, %p208
      %p210 = scmp.ne.s32.totalorder %s202, %s205
      %p211 = scmp.eq.s32.totalorder %s19, 0
      %p212 = por %p210, %p211
      %p213 = scmp.ne.s32.totalorder %s202, %s205
      %p214 = scmp.eq.s32.totalorder %s24, 1
      %p215 = por %p213, %p214
      %p216 = scmp.ne.s32.totalorder %s205, %s206
      %p217 = scmp.eq.s32.totalorder %s24, 0
      %p218 = por %p216, %p217
      %p219 = scmp.ne.s32.totalorder %s205, %s206
      %p220 = scmp.eq.s32.totalorder %s25, 1
      %p221 = por %p219, %p220
      %p223 = scmp.ne.s32.totalorder %s206, %s222
      %p224 = scmp.eq.s32.totalorder %s25, 0
      %p225 = por %p223, %p224
      %p226 = scmp.le.s32.totalorder 1, %s19
      %p227 = scmp.lt.s32.totalorder %s19, 3
      %p228 = pnand %p226, %p227
      %p229 = pneg %p228
      // Predicated region
      $region9: #{tpu_custom_call.1} parent=5 // pred_check
        _
      $region10: #{tpu_custom_call.1} parent=5 // pred_check_branch
        %231 = sbr.rel (%p228) target = $region12
      $region11: #{tpu_custom_call.1} parent=5 // pred_region
        %s232 = ssub.s32 %s19, 1
        // Predicated region
        $region13: #{tpu_custom_call.1} parent=11 // pred_check
          %p233 = pneg %p66
        $region14: #{tpu_custom_call.1} parent=11 // pred_check_branch
          %235 = sbr.rel (%p233) target = $region16
        $region15: #{tpu_custom_call.1} parent=11 // pred_region
          _
        $region16: #{tpu_custom_call.1} parent=11 // pred_fallthru
          _
        // Predicated region
        $region17: #{tpu_custom_call.1} parent=11 // pred_check
          %p236 = pneg %p87
        $region18: #{tpu_custom_call.1} parent=11 // pred_check_branch
          %238 = sbr.rel (%p236) target = $region20
        $region19: #{tpu_custom_call.1} parent=11 // pred_region
          %s240 = ssub.s32 1024, 1024
          %241 = vsyncadd [#allocation3], %s240
          %s242 = sshll.u32 [#allocation2], 4
          %s243 = int_to_ptr.vmem [resolvable:$true] %s242
          %248 = dma.hbm_to_vmem [thread:$0]  %s2, 1024, %s243, [#allocation3], 64, 64, 4
        $region20: #{tpu_custom_call.1} parent=11 // pred_fallthru
          _
        // Predicated region
        $region21: #{tpu_custom_call.1} parent=11 // pred_check
          %p249 = pneg %p108
        $region22: #{tpu_custom_call.1} parent=11 // pred_check_branch
          %251 = sbr.rel (%p249) target = $region24
        $region23: #{tpu_custom_call.1} parent=11 // pred_region
          _
        $region24: #{tpu_custom_call.1} parent=11 // pred_fallthru
          _
        // Predicated region
        $region25: #{tpu_custom_call.1} parent=11 // pred_check
          %p252 = pneg %p129
        $region26: #{tpu_custom_call.1} parent=11 // pred_check_branch
          %254 = sbr.rel (%p252) target = $region28
        $region27: #{tpu_custom_call.1} parent=11 // pred_region
          %s256 = ssub.s32 9216, 9216
          %257 = vsyncadd [#allocation6], %s256
          %s258 = sshll.u32 [#allocation5], 4
          %s259 = int_to_ptr.vmem [resolvable:$true] %s258
          %264 = dma.hbm_to_vmem [thread:$0]  %s4, 9216, %s259, [#allocation6], 64, 64, 4
        $region28: #{tpu_custom_call.1} parent=11 // pred_fallthru
          _
        // Predicated region
        $region29: #{tpu_custom_call.1} parent=11 // pred_check
          %p265 = pneg %p150
        $region30: #{tpu_custom_call.1} parent=11 // pred_check_branch
          %267 = sbr.rel (%p265) target = $region32
        $region31: #{tpu_custom_call.1} parent=11 // pred_region
          _
        $region32: #{tpu_custom_call.1} parent=11 // pred_fallthru
          _
        // Predicated region
        $region33: #{tpu_custom_call.1} parent=11 // pred_check
          %p268 = pneg %p171
        $region34: #{tpu_custom_call.1} parent=11 // pred_check_branch
          %270 = sbr.rel (%p268) target = $region36
        $region35: #{tpu_custom_call.1} parent=11 // pred_region
          %s272 = ssub.s32 1024, 1024
          %273 = vsyncadd [#allocation6], %s272
          %s274 = sshll.u32 [#allocation7], 4
          %s275 = int_to_ptr.vmem [resolvable:$true] %s274
          %280 = dma.hbm_to_vmem [thread:$0]  %s6, 1024, %s275, [#allocation6], 64, 64, 4
        $region36: #{tpu_custom_call.1} parent=11 // pred_fallthru
          _
        // Predicated region
        $region37: #{tpu_custom_call.1} parent=11 // pred_check
          %p281 = pneg %p192
        $region38: #{tpu_custom_call.1} parent=11 // pred_check_branch
          %283 = sbr.rel (%p281) target = $region40
        $region39: #{tpu_custom_call.1} parent=11 // pred_region
          _
        $region40: #{tpu_custom_call.1} parent=11 // pred_fallthru
          _
      $region12: #{tpu_custom_call.1} parent=5 // pred_fallthru
        _
      %p284 = scmp.lt.s32.totalorder %s19, 2
      // Predicated region
      $region41: #{tpu_custom_call.1} parent=5 // pred_check
        %p285 = pneg %p284
      $region42: #{tpu_custom_call.1} parent=5 // pred_check_branch
        %287 = sbr.rel (%p285) target = $region44
      $region43: #{tpu_custom_call.1} parent=5 // pred_region
        // Predicated region
        $region45: #{tpu_custom_call.1} parent=43 // pred_check
          %p288 = pneg %p39
        $region46: #{tpu_custom_call.1} parent=43 // pred_check_branch
          %290 = sbr.rel (%p288) target = $region48
        $region47: #{tpu_custom_call.1} parent=43 // pred_region
          %p291 = scmp.lt.s32.totalorder %s19, 1
          %s292 = scalar_select %p291, %s19, 1
          %s293 = smul.addr %s292, 32
          %s294 = smul.addr %s293, 8
          %s295 = scalar_lea.vmem %s0, %s294
        $region48: #{tpu_custom_call.1} parent=43 // pred_fallthru
          _
      $region44: #{tpu_custom_call.1} parent=5 // pred_fallthru
        _
      %p296 = scmp.le.s32.totalorder 1, %s19
      %p297 = scmp.lt.s32.totalorder %s19, 3
      %p298 = pnand %p296, %p297
      %p299 = pneg %p298
      // Predicated region
      $region49: #{tpu_custom_call.1} parent=5 // pred_check
        _
      $region50: #{tpu_custom_call.1} parent=5 // pred_check_branch
        %301 = sbr.rel (%p298) target = $region52
      $region51: #{tpu_custom_call.1} parent=5 // pred_region
        %s302 = ssub.s32 %s19, 1
        // Predicated region
        $region53: #{tpu_custom_call.1} parent=51 // pred_check
          %p303 = pneg %p87
        $region54: #{tpu_custom_call.1} parent=51 // pred_check_branch
          %305 = sbr.rel (%p303) target = $region56
        $region55: #{tpu_custom_call.1} parent=51 // pred_region
          %306 = dma.done [#allocation3], 1024
        $region56: #{tpu_custom_call.1} parent=51 // pred_fallthru
          _
        // Predicated region
        $region57: #{tpu_custom_call.1} parent=51 // pred_check
          %p307 = pneg %p129
        $region58: #{tpu_custom_call.1} parent=51 // pred_check_branch
          %309 = sbr.rel (%p307) target = $region60
        $region59: #{tpu_custom_call.1} parent=51 // pred_region
          %310 = dma.done [#allocation6], 9216
        $region60: #{tpu_custom_call.1} parent=51 // pred_fallthru
          _
        // Predicated region
        $region61: #{tpu_custom_call.1} parent=51 // pred_check
          %p311 = pneg %p171
        $region62: #{tpu_custom_call.1} parent=51 // pred_check_branch
          %313 = sbr.rel (%p311) target = $region64
        $region63: #{tpu_custom_call.1} parent=51 // pred_region
          %314 = dma.done [#allocation6], 1024
        $region64: #{tpu_custom_call.1} parent=51 // pred_fallthru
          _
        %p315 = scmp.lt.s32.totalorder %s24, 1
        %s316 = scalar_select %p315, %s24, 1
        %s317 = smul.addr %s316, 32
        %s318 = smul.addr %s317, 8
        %s319 = scalar_lea.vmem %s0, %s318
        %p320 = pneg %p45
        %p321 = pneg %p42
        %p322 = pneg %p66
        %p323 = pneg %p63
        %p324 = pneg %p87
        %p325 = pneg %p84
        %p326 = pneg %p108
        %p327 = pneg %p105
        %p328 = pneg %p129
        %p329 = pneg %p126
        %p330 = pneg %p150
        %p331 = pneg %p147
        %p332 = pneg %p171
        %p333 = pneg %p168
        %p334 = pneg %p192
        %p335 = pneg %p189
        %p336 = pneg %p218
        %p337 = pneg %p215
        %s338 = sand.u32 %s205, 1
        %s339 = scalar_lea.sflag [#allocation4], %s338
        %s340 = sand.u32 %s205, 1
        %s341 = smul.addr %s340, 256
        %s342 = scalar_lea.vmem [#allocation8], %s341
        %p343 = scmp.lt.s32.totalorder %s24, 1
        %s344 = scalar_select %p343, %s24, 1
        %s345 = smul.addr %s344, 32
        %s346 = smul.addr %s345, 8
        %s347 = scalar_lea.vmem %s0, %s346
        %v349 = vld [vmem:[%s347] sm:$0xff]
        %v350 = vld [vmem:[%s347 + $0x8] sm:$0xff]
        %v351 = vld [vmem:[%s347 + $0x10] sm:$0xff]
        %v352 = vld [vmem:[%s347 + $0x18] sm:$0xff]
        %v353 = vld [vmem:[%s347 + $0x20] sm:$0xff]
        %v354 = vld [vmem:[%s347 + $0x28] sm:$0xff]
        %v355 = vld [vmem:[%s347 + $0x30] sm:$0xff]
        %v356 = vld [vmem:[%s347 + $0x38] sm:$0xff]
        %v357 = vld [vmem:[%s347 + $0x40] sm:$0xff]
        %v358 = vld [vmem:[%s347 + $0x48] sm:$0xff]
        %v359 = vld [vmem:[%s347 + $0x50] sm:$0xff]
        %v360 = vld [vmem:[%s347 + $0x58] sm:$0xff]
        %v361 = vld [vmem:[%s347 + $0x60] sm:$0xff]
        %v362 = vld [vmem:[%s347 + $0x68] sm:$0xff]
        %v363 = vld [vmem:[%s347 + $0x70] sm:$0xff]
        %v364 = vld [vmem:[%s347 + $0x78] sm:$0xff]
        %v365 = vld [vmem:[%s347 + $0x80] sm:$0xff]
        %v366 = vld [vmem:[%s347 + $0x88] sm:$0xff]
        %v367 = vld [vmem:[%s347 + $0x90] sm:$0xff]
        %v368 = vld [vmem:[%s347 + $0x98] sm:$0xff]
        %v369 = vld [vmem:[%s347 + $0xa0] sm:$0xff]
        %v370 = vld [vmem:[%s347 + $0xa8] sm:$0xff]
        %v371 = vld [vmem:[%s347 + $0xb0] sm:$0xff]
        %v372 = vld [vmem:[%s347 + $0xb8] sm:$0xff]
        %v373 = vld [vmem:[%s347 + $0xc0] sm:$0xff]
        %v374 = vld [vmem:[%s347 + $0xc8] sm:$0xff]
        %v375 = vld [vmem:[%s347 + $0xd0] sm:$0xff]
        %v376 = vld [vmem:[%s347 + $0xd8] sm:$0xff]
        %v377 = vld [vmem:[%s347 + $0xe0] sm:$0xff]
        %v378 = vld [vmem:[%s347 + $0xe8] sm:$0xff]
        %v379 = vld [vmem:[%s347 + $0xf0] sm:$0xff]
        %v380 = vld [vmem:[%s347 + $0xf8] sm:$0xff]
        %v381 = vpack.c.bf16 %v350, %v349
        %v382 = vpack.c.bf16 %v352, %v351
        %v383 = vpack.c.bf16 %v354, %v353
        %v384 = vpack.c.bf16 %v356, %v355
        %v385 = vpack.c.bf16 %v358, %v357
        %v386 = vpack.c.bf16 %v360, %v359
        %v387 = vpack.c.bf16 %v362, %v361
        %v388 = vpack.c.bf16 %v364, %v363
        %v389 = vpack.c.bf16 %v366, %v365
        %v390 = vpack.c.bf16 %v368, %v367
        %v391 = vpack.c.bf16 %v370, %v369
        %v392 = vpack.c.bf16 %v372, %v371
        %v393 = vpack.c.bf16 %v374, %v373
        %v394 = vpack.c.bf16 %v376, %v375
        %v395 = vpack.c.bf16 %v378, %v377
        %v396 = vpack.c.bf16 %v380, %v379
        %v397 = vld [vmem:[#allocation2] sm:$0xf]
        %v398 = vld [vmem:[#allocation2 + $0x4] sm:$0xf]
        %v399 = vld [vmem:[#allocation2 + $0x8] sm:$0xf]
        %v400 = vld [vmem:[#allocation2 + $0xc] sm:$0xf]
        %v401 = vld [vmem:[#allocation2 + $0x10] sm:$0xf]
        %v402 = vld [vmem:[#allocation2 + $0x14] sm:$0xf]
        %v403 = vld [vmem:[#allocation2 + $0x18] sm:$0xf]
        %v404 = vld [vmem:[#allocation2 + $0x1c] sm:$0xf]
        %v405 = vld [vmem:[#allocation2 + $0x20] sm:$0xf]
        %v406 = vld [vmem:[#allocation2 + $0x24] sm:$0xf]
        %v407 = vld [vmem:[#allocation2 + $0x28] sm:$0xf]
        %v408 = vld [vmem:[#allocation2 + $0x2c] sm:$0xf]
        %v409 = vld [vmem:[#allocation2 + $0x30] sm:$0xf]
        %v410 = vld [vmem:[#allocation2 + $0x34] sm:$0xf]
        %v411 = vld [vmem:[#allocation2 + $0x38] sm:$0xf]
        %v412 = vld [vmem:[#allocation2 + $0x3c] sm:$0xf]
        %v413 = vld [vmem:[%s3] sm:$0x1]
        %v415 = vlaneseq
        %v416 = vshrl.u32 %v415, 7
        %v417 = vsub.s32 0, %v416
        %v418 = vrot.slane %v413, %v417
        %v436 = vunpack.c.l.b16 %v397
        %v437 = vunpack.c.l.b16 %v398
        %v438 = vunpack.c.l.b16 %v399
        %v439 = vunpack.c.l.b16 %v400
        %v440 = vunpack.c.l.b16 %v401
        %v441 = vunpack.c.l.b16 %v402
        %v442 = vunpack.c.l.b16 %v403
        %v443 = vunpack.c.l.b16 %v404
        %v444 = vunpack.c.l.b16 %v405
        %v445 = vunpack.c.l.b16 %v406
        %v446 = vunpack.c.l.b16 %v407
        %v447 = vunpack.c.l.b16 %v408
        %v448 = vunpack.c.l.b16 %v409
        %v449 = vunpack.c.l.b16 %v410
        %v450 = vunpack.c.l.b16 %v411
        %v451 = vunpack.c.l.b16 %v412
        %v452 = vpack.c.b16 %v437, %v436
        %v453 = vpack.c.b16 %v439, %v438
        %v454 = vpack.c.b16 %v441, %v440
        %v455 = vpack.c.b16 %v443, %v442
        %v456 = vpack.c.b16 %v445, %v444
        %v457 = vpack.c.b16 %v447, %v446
        %v458 = vpack.c.b16 %v449, %v448
        %v459 = vpack.c.b16 %v451, %v450
        %468 = vmatprep.subr.bf16.mxu0 0
        %469 = vmatpush1.bf16.msra.mxu0 %v452
        %470 = vmatprep.subr.bf16.mxu0 0
        %471 = vmatpush1.bf16.msra.mxu0 %v453
        %472 = vmatprep.subr.bf16.mxu0 0
        %473 = vmatpush1.bf16.msra.mxu0 %v454
        %474 = vmatprep.subr.bf16.mxu0 0
        %475 = vmatpush1.bf16.msra.mxu0 %v455
        %476 = vmatprep.subr.bf16.mxu0 0
        %477 = vmatpush1.bf16.msra.mxu0 %v456
        %478 = vmatprep.subr.bf16.mxu0 0
        %479 = vmatpush1.bf16.msra.mxu0 %v457
        %480 = vmatprep.subr.bf16.mxu0 0
        %481 = vmatpush1.bf16.msra.mxu0 %v458
        %482 = vmatprep.subr.bf16.mxu0 0
        %483 = vmatpush1.bf16.msra.mxu0 %v459
        %484 = vmatprep.subr.bf16.mxu0 0
        %485 = vmatpush1.bf16.msra.mxu0 0
        %486 = vmatprep.subr.bf16.mxu0 0
        %487 = vmatpush1.bf16.msra.mxu0 0
        %488 = vmatprep.subr.bf16.mxu0 0
        %489 = vmatpush1.bf16.msra.mxu0 0
        %490 = vmatprep.subr.bf16.mxu0 0
        %491 = vmatpush1.bf16.msra.mxu0 0
        %492 = vmatprep.subr.bf16.mxu0 0
        %493 = vmatpush1.bf16.msra.mxu0 0
        %494 = vmatprep.subr.bf16.mxu0 0
        %495 = vmatpush1.bf16.msra.mxu0 0
        %496 = vmatprep.subr.bf16.mxu0 0
        %497 = vmatpush1.bf16.msra.mxu0 0
        %498 = vmatprep.subr.bf16.mxu0 0
        %499 = vmatpush1.bf16.msra.mxu0 0
        %500 = vmatprep.mubr.bf16.mxu0 0
        %501 = vmatmul.mubr.bf16.gmra.mrb[0].mxu0 %v381
        %v502 = vpop.f32.mrb[0].mxu0
        %v503 = vadd.f32 %v418, %v502
        %v504 = vpop.f32.mrb[0].mxu0
        %v505 = vpop.f32.mrb[0].mxu0
        %v506 = vadd.f32 %v418, %v505
        %v507 = vpop.f32.mrb[0].mxu0
        %508 = vmatprep.mubr.bf16.mxu0 0
        %509 = vmatmul.mubr.bf16.gmra.mrb[0].mxu0 %v382
        %v510 = vpop.f32.mrb[0].mxu0
        %v511 = vadd.f32 %v418, %v510
        %v512 = vpop.f32.mrb[0].mxu0
        %v513 = vpop.f32.mrb[0].mxu0
        %v514 = vadd.f32 %v418, %v513
        %v515 = vpop.f32.mrb[0].mxu0
        %516 = vmatprep.mubr.bf16.mxu0 0
        %517 = vmatmul.mubr.bf16.gmra.mrb[0].mxu0 %v383
        %v518 = vpop.f32.mrb[0].mxu0
        %v519 = vadd.f32 %v418, %v518
        %v520 = vpop.f32.mrb[0].mxu0
        %v521 = vpop.f32.mrb[0].mxu0
        %v522 = vadd.f32 %v418, %v521
        %v523 = vpop.f32.mrb[0].mxu0
        %524 = vmatprep.mubr.bf16.mxu0 0
        %525 = vmatmul.mubr.bf16.gmra.mrb[0].mxu0 %v384
        %v526 = vpop.f32.mrb[0].mxu0
        %v527 = vadd.f32 %v418, %v526
        %v528 = vpop.f32.mrb[0].mxu0
        %v529 = vpop.f32.mrb[0].mxu0
        %v530 = vadd.f32 %v418, %v529
        %v531 = vpop.f32.mrb[0].mxu0
        %532 = vmatprep.mubr.bf16.mxu0 0
        %533 = vmatmul.mubr.bf16.gmra.mrb[0].mxu0 %v385
        %v534 = vpop.f32.mrb[0].mxu0
        %v535 = vadd.f32 %v418, %v534
        %v536 = vpop.f32.mrb[0].mxu0
        %v537 = vpop.f32.mrb[0].mxu0
        %v538 = vadd.f32 %v418, %v537
        %v539 = vpop.f32.mrb[0].mxu0
        %540 = vmatprep.mubr.bf16.mxu0 0
        %541 = vmatmul.mubr.bf16.gmra.mrb[0].mxu0 %v386
        %v542 = vpop.f32.mrb[0].mxu0
        %v543 = vadd.f32 %v418, %v542
        %v544 = vpop.f32.mrb[0].mxu0
        %v545 = vpop.f32.mrb[0].mxu0
        %v546 = vadd.f32 %v418, %v545
        %v547 = vpop.f32.mrb[0].mxu0
        %548 = vmatprep.mubr.bf16.mxu0 0
        %549 = vmatmul.mubr.bf16.gmra.mrb[0].mxu0 %v387
        %v550 = vpop.f32.mrb[0].mxu0
        %v551 = vadd.f32 %v418, %v550
        %v552 = vpop.f32.mrb[0].mxu0
        %v553 = vpop.f32.mrb[0].mxu0
        %v554 = vadd.f32 %v418, %v553
        %v555 = vpop.f32.mrb[0].mxu0
        %556 = vmatprep.mubr.bf16.mxu0 0
        %557 = vmatmul.mubr.bf16.gmra.mrb[0].mxu0 %v388
        %v558 = vpop.f32.mrb[0].mxu0
        %v559 = vadd.f32 %v418, %v558
        %v560 = vpop.f32.mrb[0].mxu0
        %v561 = vpop.f32.mrb[0].mxu0
        %v562 = vadd.f32 %v418, %v561
        %v563 = vpop.f32.mrb[0].mxu0
        %564 = vmatprep.mubr.bf16.mxu0 0
        %565 = vmatmul.mubr.bf16.gmra.mrb[0].mxu0 %v389
        %v566 = vpop.f32.mrb[0].mxu0
        %v567 = vadd.f32 %v418, %v566
        %v568 = vpop.f32.mrb[0].mxu0
        %v569 = vpop.f32.mrb[0].mxu0
        %v570 = vadd.f32 %v418, %v569
        %v571 = vpop.f32.mrb[0].mxu0
        %572 = vmatprep.mubr.bf16.mxu0 0
        %573 = vmatmul.mubr.bf16.gmra.mrb[0].mxu0 %v390
        %v574 = vpop.f32.mrb[0].mxu0
        %v575 = vadd.f32 %v418, %v574
        %v576 = vpop.f32.mrb[0].mxu0
        %v577 = vpop.f32.mrb[0].mxu0
        %v578 = vadd.f32 %v418, %v577
        %v579 = vpop.f32.mrb[0].mxu0
        %580 = vmatprep.mubr.bf16.mxu0 0
        %581 = vmatmul.mubr.bf16.gmra.mrb[0].mxu0 %v391
        %v582 = vpop.f32.mrb[0].mxu0
        %v583 = vadd.f32 %v418, %v582
        %v584 = vpop.f32.mrb[0].mxu0
        %v585 = vpop.f32.mrb[0].mxu0
        %v586 = vadd.f32 %v418, %v585
        %v587 = vpop.f32.mrb[0].mxu0
        %588 = vmatprep.mubr.bf16.mxu0 0
        %589 = vmatmul.mubr.bf16.gmra.mrb[0].mxu0 %v392
        %v590 = vpop.f32.mrb[0].mxu0
        %v591 = vadd.f32 %v418, %v590
        %v592 = vpop.f32.mrb[0].mxu0
        %v593 = vpop.f32.mrb[0].mxu0
        %v594 = vadd.f32 %v418, %v593
        %v595 = vpop.f32.mrb[0].mxu0
        %596 = vmatprep.mubr.bf16.mxu0 0
        %597 = vmatmul.mubr.bf16.gmra.mrb[0].mxu0 %v393
        %v598 = vpop.f32.mrb[0].mxu0
        %v599 = vadd.f32 %v418, %v598
        %v600 = vpop.f32.mrb[0].mxu0
        %v601 = vpop.f32.mrb[0].mxu0
        %v602 = vadd.f32 %v418, %v601
        %v603 = vpop.f32.mrb[0].mxu0
        %604 = vmatprep.mubr.bf16.mxu0 0
        %605 = vmatmul.mubr.bf16.gmra.mrb[0].mxu0 %v394
        %v606 = vpop.f32.mrb[0].mxu0
        %v607 = vadd.f32 %v418, %v606
        %v608 = vpop.f32.mrb[0].mxu0
        %v609 = vpop.f32.mrb[0].mxu0
        %v610 = vadd.f32 %v418, %v609
        %v611 = vpop.f32.mrb[0].mxu0
        %612 = vmatprep.mubr.bf16.mxu0 0
        %613 = vmatmul.mubr.bf16.gmra.mrb[0].mxu0 %v395
        %v614 = vpop.f32.mrb[0].mxu0
        %v615 = vadd.f32 %v418, %v614
        %v616 = vpop.f32.mrb[0].mxu0
        %v617 = vpop.f32.mrb[0].mxu0
        %v618 = vadd.f32 %v418, %v617
        %v619 = vpop.f32.mrb[0].mxu0
        %620 = vmatprep.mubr.bf16.mxu0 0
        %621 = vmatmul.mubr.bf16.gmra.mrb[0].mxu0 %v396
        %v622 = vpop.f32.mrb[0].mxu0
        %v623 = vadd.f32 %v418, %v622
        %v624 = vpop.f32.mrb[0].mxu0
        %v625 = vpop.f32.mrb[0].mxu0
        %v626 = vadd.f32 %v418, %v625
        %v627 = vpop.f32.mrb[0].mxu0
        %628 = vdwg.mxu0
        %v629 = vmax.f32 %v503, 0.0
        %v630 = vmax.f32 %v506, 0.0
        %v631 = vmax.f32 %v511, 0.0
        %v632 = vmax.f32 %v514, 0.0
        %v633 = vmax.f32 %v519, 0.0
        %v634 = vmax.f32 %v522, 0.0
        %v635 = vmax.f32 %v527, 0.0
        %v636 = vmax.f32 %v530, 0.0
        %v637 = vmax.f32 %v535, 0.0
        %v638 = vmax.f32 %v538, 0.0
        %v639 = vmax.f32 %v543, 0.0
        %v640 = vmax.f32 %v546, 0.0
        %v641 = vmax.f32 %v551, 0.0
        %v642 = vmax.f32 %v554, 0.0
        %v643 = vmax.f32 %v559, 0.0
        %v644 = vmax.f32 %v562, 0.0
        %v645 = vmax.f32 %v567, 0.0
        %v646 = vmax.f32 %v570, 0.0
        %v647 = vmax.f32 %v575, 0.0
        %v648 = vmax.f32 %v578, 0.0
        %v649 = vmax.f32 %v583, 0.0
        %v650 = vmax.f32 %v586, 0.0
        %v651 = vmax.f32 %v591, 0.0
        %v652 = vmax.f32 %v594, 0.0
        %v653 = vmax.f32 %v599, 0.0
        %v654 = vmax.f32 %v602, 0.0
        %v655 = vmax.f32 %v607, 0.0
        %v656 = vmax.f32 %v610, 0.0
        %v657 = vmax.f32 %v615, 0.0
        %v658 = vmax.f32 %v618, 0.0
        %v659 = vmax.f32 %v623, 0.0
        %v660 = vmax.f32 %v626, 0.0
        %v661 = vrot.slane %v629, 7
        %v662 = vrot.slane %v630, 7
        %v663 = vrot.slane %v631, 7
        %v664 = vrot.slane %v632, 7
        %v665 = vrot.slane %v633, 7
        %v666 = vrot.slane %v634, 7
        %v667 = vrot.slane %v635, 7
        %v668 = vrot.slane %v636, 7
        %v669 = vrot.slane %v637, 7
        %v670 = vrot.slane %v638, 7
        %v671 = vrot.slane %v639, 7
        %v672 = vrot.slane %v640, 7
        %v673 = vrot.slane %v641, 7
        %v674 = vrot.slane %v642, 7
        %v675 = vrot.slane %v643, 7
        %v676 = vrot.slane %v644, 7
        %v677 = vrot.slane %v645, 7
        %v678 = vrot.slane %v646, 7
        %v679 = vrot.slane %v647, 7
        %v680 = vrot.slane %v648, 7
        %v681 = vrot.slane %v649, 7
        %v682 = vrot.slane %v650, 7
        %v683 = vrot.slane %v651, 7
        %v684 = vrot.slane %v652, 7
        %v685 = vrot.slane %v653, 7
        %v686 = vrot.slane %v654, 7
        %v687 = vrot.slane %v655, 7
        %v688 = vrot.slane %v656, 7
        %v689 = vrot.slane %v657, 7
        %v690 = vrot.slane %v658, 7
        %v691 = vrot.slane %v659, 7
        %v692 = vrot.slane %v660, 7
        %v693 = vlaneseq
        %v694 = vshrl.u32 %v693, 7
        %vm695 = vcmp.lt.s32.totalorder %v694, 1
        %v696 = vsel %vm695, %v691, %v692
        %v697 = vsel %vm695, %v690, %v691
        %v698 = vsel %vm695, %v689, %v690
        %v699 = vsel %vm695, %v688, %v689
        %v700 = vsel %vm695, %v687, %v688
        %v701 = vsel %vm695, %v686, %v687
        %v702 = vsel %vm695, %v685, %v686
        %v703 = vsel %vm695, %v684, %v685
        %v704 = vsel %vm695, %v683, %v684
        %v705 = vsel %vm695, %v682, %v683
        %v706 = vsel %vm695, %v681, %v682
        %v707 = vsel %vm695, %v680, %v681
        %v708 = vsel %vm695, %v679, %v680
        %v709 = vsel %vm695, %v678, %v679
        %v710 = vsel %vm695, %v677, %v678
        %v711 = vsel %vm695, %v676, %v677
        %v712 = vsel %vm695, %v675, %v676
        %v713 = vsel %vm695, %v674, %v675
        %v714 = vsel %vm695, %v673, %v674
        %v715 = vsel %vm695, %v672, %v673
        %v716 = vsel %vm695, %v671, %v672
        %v717 = vsel %vm695, %v670, %v671
        %v718 = vsel %vm695, %v669, %v670
        %v719 = vsel %vm695, %v668, %v669
        %v720 = vsel %vm695, %v667, %v668
        %v721 = vsel %vm695, %v666, %v667
        %v722 = vsel %vm695, %v665, %v666
        %v723 = vsel %vm695, %v664, %v665
        %v724 = vsel %vm695, %v663, %v664
        %v725 = vsel %vm695, %v662, %v663
        %v726 = vsel %vm695, %v661, %v662
        %v727 = vsel %vm695, %v692, %v661
        %s728 = scalar_lea.vmem %s1, 256
        %v729 = vld [vmem:[%s728] sm:$0xf]
        %v730 = vld [vmem:[%s728 + $0x4] sm:$0xf]
        %v731 = vld [vmem:[%s728 + $0x8] sm:$0xf]
        %v732 = vld [vmem:[%s728 + $0xc] sm:$0xf]
        %v733 = vld [vmem:[%s728 + $0x10] sm:$0xf]
        %v734 = vld [vmem:[%s728 + $0x14] sm:$0xf]
        %v735 = vld [vmem:[%s728 + $0x18] sm:$0xf]
        %v736 = vld [vmem:[%s728 + $0x1c] sm:$0xf]
        %v737 = vld [vmem:[%s728 + $0x20] sm:$0xf]
        %v738 = vld [vmem:[%s728 + $0x24] sm:$0xf]
        %v739 = vld [vmem:[%s728 + $0x28] sm:$0xf]
        %v740 = vld [vmem:[%s728 + $0x2c] sm:$0xf]
        %v741 = vld [vmem:[%s728 + $0x30] sm:$0xf]
        %v742 = vld [vmem:[%s728 + $0x34] sm:$0xf]
        %v743 = vld [vmem:[%s728 + $0x38] sm:$0xf]
        %v744 = vld [vmem:[%s728 + $0x3c] sm:$0xf]
        %v745 = vld [vmem:[%s728 + $0x40] sm:$0xf]
        %v746 = vld [vmem:[%s728 + $0x44] sm:$0xf]
        %v747 = vld [vmem:[%s728 + $0x48] sm:$0xf]
        %v748 = vld [vmem:[%s728 + $0x4c] sm:$0xf]
        %v749 = vld [vmem:[%s728 + $0x50] sm:$0xf]
        %v750 = vld [vmem:[%s728 + $0x54] sm:$0xf]
        %v751 = vld [vmem:[%s728 + $0x58] sm:$0xf]
        %v752 = vld [vmem:[%s728 + $0x5c] sm:$0xf]
        %v753 = vld [vmem:[%s728 + $0x60] sm:$0xf]
        %v754 = vld [vmem:[%s728 + $0x64] sm:$0xf]
        %v755 = vld [vmem:[%s728 + $0x68] sm:$0xf]
        %v756 = vld [vmem:[%s728 + $0x6c] sm:$0xf]
        %v757 = vld [vmem:[%s728 + $0x70] sm:$0xf]
        %v758 = vld [vmem:[%s728 + $0x74] sm:$0xf]
        %v759 = vld [vmem:[%s728 + $0x78] sm:$0xf]
        %v760 = vld [vmem:[%s728 + $0x7c] sm:$0xf]
        %v761 = vunpack.c.l.bf16 %v729
        %v762 = vunpack.c.l.bf16 %v730
        %v763 = vunpack.c.l.bf16 %v731
        %v764 = vunpack.c.l.bf16 %v732
        %v765 = vunpack.c.l.bf16 %v733
        %v766 = vunpack.c.l.bf16 %v734
        %v767 = vunpack.c.l.bf16 %v735
        %v768 = vunpack.c.l.bf16 %v736
        %v769 = vunpack.c.l.bf16 %v737
        %v770 = vunpack.c.l.bf16 %v738
        %v771 = vunpack.c.l.bf16 %v739
        %v772 = vunpack.c.l.bf16 %v740
        %v773 = vunpack.c.l.bf16 %v741
        %v774 = vunpack.c.l.bf16 %v742
        %v775 = vunpack.c.l.bf16 %v743
        %v776 = vunpack.c.l.bf16 %v744
        %v777 = vunpack.c.l.bf16 %v745
        %v778 = vunpack.c.l.bf16 %v746
        %v779 = vunpack.c.l.bf16 %v747
        %v780 = vunpack.c.l.bf16 %v748
        %v781 = vunpack.c.l.bf16 %v749
        %v782 = vunpack.c.l.bf16 %v750
        %v783 = vunpack.c.l.bf16 %v751
        %v784 = vunpack.c.l.bf16 %v752
        %v785 = vunpack.c.l.bf16 %v753
        %v786 = vunpack.c.l.bf16 %v754
        %v787 = vunpack.c.l.bf16 %v755
        %v788 = vunpack.c.l.bf16 %v756
        %v789 = vunpack.c.l.bf16 %v757
        %v790 = vunpack.c.l.bf16 %v758
        %v791 = vunpack.c.l.bf16 %v759
        %v792 = vunpack.c.l.bf16 %v760
        %794 = vset.pattern.permute.xlu0 0
        %795 = vperm.xlu0 %794, %v761
        %v796 = vpop.permute.xlu0 %795
        %799 = vset.pattern.permute.xlu0 0
        %800 = vperm.xlu0 %799, %v762
        %v801 = vpop.permute.xlu0 %800
        %804 = vset.pattern.permute.xlu0 0
        %805 = vperm.xlu0 %804, %v763
        %v806 = vpop.permute.xlu0 %805
        %809 = vset.pattern.permute.xlu0 0
        %810 = vperm.xlu0 %809, %v764
        %v811 = vpop.permute.xlu0 %810
        %814 = vset.pattern.permute.xlu0 0
        %815 = vperm.xlu0 %814, %v765
        %v816 = vpop.permute.xlu0 %815
        %819 = vset.pattern.permute.xlu0 0
        %820 = vperm.xlu0 %819, %v766
        %v821 = vpop.permute.xlu0 %820
        %824 = vset.pattern.permute.xlu0 0
        %825 = vperm.xlu0 %824, %v767
        %v826 = vpop.permute.xlu0 %825
        %829 = vset.pattern.permute.xlu0 0
        %830 = vperm.xlu0 %829, %v768
        %v831 = vpop.permute.xlu0 %830
        %834 = vset.pattern.permute.xlu0 0
        %835 = vperm.xlu0 %834, %v769
        %v836 = vpop.permute.xlu0 %835
        %839 = vset.pattern.permute.xlu0 0
        %840 = vperm.xlu0 %839, %v770
        %v841 = vpop.permute.xlu0 %840
        %844 = vset.pattern.permute.xlu0 0
        %845 = vperm.xlu0 %844, %v771
        %v846 = vpop.permute.xlu0 %845
        %849 = vset.pattern.permute.xlu0 0
        %850 = vperm.xlu0 %849, %v772
        %v851 = vpop.permute.xlu0 %850
        %854 = vset.pattern.permute.xlu0 0
        %855 = vperm.xlu0 %854, %v773
        %v856 = vpop.permute.xlu0 %855
        %859 = vset.pattern.permute.xlu0 0
        %860 = vperm.xlu0 %859, %v774
        %v861 = vpop.permute.xlu0 %860
        %864 = vset.pattern.permute.xlu0 0
        %865 = vperm.xlu0 %864, %v775
        %v866 = vpop.permute.xlu0 %865
        %869 = vset.pattern.permute.xlu0 0
        %870 = vperm.xlu0 %869, %v776
        %v871 = vpop.permute.xlu0 %870
        %874 = vset.pattern.permute.xlu0 0
        %875 = vperm.xlu0 %874, %v777
        %v876 = vpop.permute.xlu0 %875
        %879 = vset.pattern.permute.xlu0 0
        %880 = vperm.xlu0 %879, %v778
        %v881 = vpop.permute.xlu0 %880
        %884 = vset.pattern.permute.xlu0 0
        %885 = vperm.xlu0 %884, %v779
        %v886 = vpop.permute.xlu0 %885
        %889 = vset.pattern.permute.xlu0 0
        %890 = vperm.xlu0 %889, %v780
        %v891 = vpop.permute.xlu0 %890
        %894 = vset.pattern.permute.xlu0 0
        %895 = vperm.xlu0 %894, %v781
        %v896 = vpop.permute.xlu0 %895
        %899 = vset.pattern.permute.xlu0 0
        %900 = vperm.xlu0 %899, %v782
        %v901 = vpop.permute.xlu0 %900
        %904 = vset.pattern.permute.xlu0 0
        %905 = vperm.xlu0 %904, %v783
        %v906 = vpop.permute.xlu0 %905
        %909 = vset.pattern.permute.xlu0 0
        %910 = vperm.xlu0 %909, %v784
        %v911 = vpop.permute.xlu0 %910
        %914 = vset.pattern.permute.xlu0 0
        %915 = vperm.xlu0 %914, %v785
        %v916 = vpop.permute.xlu0 %915
        %919 = vset.pattern.permute.xlu0 0
        %920 = vperm.xlu0 %919, %v786
        %v921 = vpop.permute.xlu0 %920
        %924 = vset.pattern.permute.xlu0 0
        %925 = vperm.xlu0 %924, %v787
        %v926 = vpop.permute.xlu0 %925
        %929 = vset.pattern.permute.xlu0 0
        %930 = vperm.xlu0 %929, %v788
        %v931 = vpop.permute.xlu0 %930
        %934 = vset.pattern.permute.xlu0 0
        %935 = vperm.xlu0 %934, %v789
        %v936 = vpop.permute.xlu0 %935
        %939 = vset.pattern.permute.xlu0 0
        %940 = vperm.xlu0 %939, %v790
        %v941 = vpop.permute.xlu0 %940
        %944 = vset.pattern.permute.xlu0 0
        %945 = vperm.xlu0 %944, %v791
        %v946 = vpop.permute.xlu0 %945
        %949 = vset.pattern.permute.xlu0 0
        %950 = vperm.xlu0 %949, %v792
        %v951 = vpop.permute.xlu0 %950
        %v953 = vmul.f32 %v727, %v796
        %v954 = vmul.f32 %v726, %v801
        %v955 = vmul.f32 %v725, %v806
        %v956 = vmul.f32 %v724, %v811
        %v957 = vmul.f32 %v723, %v816
        %v958 = vmul.f32 %v722, %v821
        %v959 = vmul.f32 %v721, %v826
        %v960 = vmul.f32 %v720, %v831
        %v961 = vmul.f32 %v719, %v836
        %v962 = vmul.f32 %v718, %v841
        %v963 = vmul.f32 %v717, %v846
        %v964 = vmul.f32 %v716, %v851
        %v965 = vmul.f32 %v715, %v856
        %v966 = vmul.f32 %v714, %v861
        %v967 = vmul.f32 %v713, %v866
        %v968 = vmul.f32 %v712, %v871
        %v969 = vmul.f32 %v711, %v876
        %v970 = vmul.f32 %v710, %v881
        %v971 = vmul.f32 %v709, %v886
        %v972 = vmul.f32 %v708, %v891
        %v973 = vmul.f32 %v707, %v896
        %v974 = vmul.f32 %v706, %v901
        %v975 = vmul.f32 %v705, %v906
        %v976 = vmul.f32 %v704, %v911
        %v977 = vmul.f32 %v703, %v916
        %v978 = vmul.f32 %v702, %v921
        %v979 = vmul.f32 %v701, %v926
        %v980 = vmul.f32 %v700, %v931
        %v981 = vmul.f32 %v699, %v936
        %v982 = vmul.f32 %v698, %v941
        %v983 = vmul.f32 %v697, %v946
        %v984 = vmul.f32 %v696, %v951
        %v985 = vrot.slane %v629, 1
        %v986 = vrot.slane %v630, 1
        %v987 = vrot.slane %v631, 1
        %v988 = vrot.slane %v632, 1
        %v989 = vrot.slane %v633, 1
        %v990 = vrot.slane %v634, 1
        %v991 = vrot.slane %v635, 1
        %v992 = vrot.slane %v636, 1
        %v993 = vrot.slane %v637, 1
        %v994 = vrot.slane %v638, 1
        %v995 = vrot.slane %v639, 1
        %v996 = vrot.slane %v640, 1
        %v997 = vrot.slane %v641, 1
        %v998 = vrot.slane %v642, 1
        %v999 = vrot.slane %v643, 1
        %v1000 = vrot.slane %v644, 1
        %v1001 = vrot.slane %v645, 1
        %v1002 = vrot.slane %v646, 1
        %v1003 = vrot.slane %v647, 1
        %v1004 = vrot.slane %v648, 1
        %v1005 = vrot.slane %v649, 1
        %v1006 = vrot.slane %v650, 1
        %v1007 = vrot.slane %v651, 1
        %v1008 = vrot.slane %v652, 1
        %v1009 = vrot.slane %v653, 1
        %v1010 = vrot.slane %v654, 1
        %v1011 = vrot.slane %v655, 1
        %v1012 = vrot.slane %v656, 1
        %v1013 = vrot.slane %v657, 1
        %v1014 = vrot.slane %v658, 1
        %v1015 = vrot.slane %v659, 1
        %v1016 = vrot.slane %v660, 1
        %vm1017 = vcmp.lt.s32.totalorder %v694, 7
        %v1018 = vsel %vm1017, %v1015, %v1016
        %v1019 = vsel %vm1017, %v1014, %v1015
        %v1020 = vsel %vm1017, %v1013, %v1014
        %v1021 = vsel %vm1017, %v1012, %v1013
        %v1022 = vsel %vm1017, %v1011, %v1012
        %v1023 = vsel %vm1017, %v1010, %v1011
        %v1024 = vsel %vm1017, %v1009, %v1010
        %v1025 = vsel %vm1017, %v1008, %v1009
        %v1026 = vsel %vm1017, %v1007, %v1008
        %v1027 = vsel %vm1017, %v1006, %v1007
        %v1028 = vsel %vm1017, %v1005, %v1006
        %v1029 = vsel %vm1017, %v1004, %v1005
        %v1030 = vsel %vm1017, %v1003, %v1004
        %v1031 = vsel %vm1017, %v1002, %v1003
        %v1032 = vsel %vm1017, %v1001, %v1002
        %v1033 = vsel %vm1017, %v1000, %v1001
        %v1034 = vsel %vm1017, %v999, %v1000
        %v1035 = vsel %vm1017, %v998, %v999
        %v1036 = vsel %vm1017, %v997, %v998
        %v1037 = vsel %vm1017, %v996, %v997
        %v1038 = vsel %vm1017, %v995, %v996
        %v1039 = vsel %vm1017, %v994, %v995
        %v1040 = vsel %vm1017, %v993, %v994
        %v1041 = vsel %vm1017, %v992, %v993
        %v1042 = vsel %vm1017, %v991, %v992
        %v1043 = vsel %vm1017, %v990, %v991
        %v1044 = vsel %vm1017, %v989, %v990
        %v1045 = vsel %vm1017, %v988, %v989
        %v1046 = vsel %vm1017, %v987, %v988
        %v1047 = vsel %vm1017, %v986, %v987
        %v1048 = vsel %vm1017, %v985, %v986
        %v1049 = vsel %vm1017, %v1016, %v985
        %s1050 = scalar_lea.vmem %s1, 384
        %v1051 = vld [vmem:[%s1050] sm:$0xf]
        %v1052 = vld [vmem:[%s1050 + $0x4] sm:$0xf]
        %v1053 = vld [vmem:[%s1050 + $0x8] sm:$0xf]
        %v1054 = vld [vmem:[%s1050 + $0xc] sm:$0xf]
        %v1055 = vld [vmem:[%s1050 + $0x10] sm:$0xf]
        %v1056 = vld [vmem:[%s1050 + $0x14] sm:$0xf]
        %v1057 = vld [vmem:[%s1050 + $0x18] sm:$0xf]
        %v1058 = vld [vmem:[%s1050 + $0x1c] sm:$0xf]
        %v1059 = vld [vmem:[%s1050 + $0x20] sm:$0xf]
        %v1060 = vld [vmem:[%s1050 + $0x24] sm:$0xf]
        %v1061 = vld [vmem:[%s1050 + $0x28] sm:$0xf]
        %v1062 = vld [vmem:[%s1050 + $0x2c] sm:$0xf]
        %v1063 = vld [vmem:[%s1050 + $0x30] sm:$0xf]
        %v1064 = vld [vmem:[%s1050 + $0x34] sm:$0xf]
        %v1065 = vld [vmem:[%s1050 + $0x38] sm:$0xf]
        %v1066 = vld [vmem:[%s1050 + $0x3c] sm:$0xf]
        %v1067 = vld [vmem:[%s1050 + $0x40] sm:$0xf]
        %v1068 = vld [vmem:[%s1050 + $0x44] sm:$0xf]
        %v1069 = vld [vmem:[%s1050 + $0x48] sm:$0xf]
        %v1070 = vld [vmem:[%s1050 + $0x4c] sm:$0xf]
        %v1071 = vld [vmem:[%s1050 + $0x50] sm:$0xf]
        %v1072 = vld [vmem:[%s1050 + $0x54] sm:$0xf]
        %v1073 = vld [vmem:[%s1050 + $0x58] sm:$0xf]
        %v1074 = vld [vmem:[%s1050 + $0x5c] sm:$0xf]
        %v1075 = vld [vmem:[%s1050 + $0x60] sm:$0xf]
        %v1076 = vld [vmem:[%s1050 + $0x64] sm:$0xf]
        %v1077 = vld [vmem:[%s1050 + $0x68] sm:$0xf]
        %v1078 = vld [vmem:[%s1050 + $0x6c] sm:$0xf]
        %v1079 = vld [vmem:[%s1050 + $0x70] sm:$0xf]
        %v1080 = vld [vmem:[%s1050 + $0x74] sm:$0xf]
        %v1081 = vld [vmem:[%s1050 + $0x78] sm:$0xf]
        %v1082 = vld [vmem:[%s1050 + $0x7c] sm:$0xf]
        %v1083 = vunpack.c.l.bf16 %v1051
        %v1084 = vunpack.c.l.bf16 %v1052
        %v1085 = vunpack.c.l.bf16 %v1053
        %v1086 = vunpack.c.l.bf16 %v1054
        %v1087 = vunpack.c.l.bf16 %v1055
        %v1088 = vunpack.c.l.bf16 %v1056
        %v1089 = vunpack.c.l.bf16 %v1057
        %v1090 = vunpack.c.l.bf16 %v1058
        %v1091 = vunpack.c.l.bf16 %v1059
        %v1092 = vunpack.c.l.bf16 %v1060
        %v1093 = vunpack.c.l.bf16 %v1061
        %v1094 = vunpack.c.l.bf16 %v1062
        %v1095 = vunpack.c.l.bf16 %v1063
        %v1096 = vunpack.c.l.bf16 %v1064
        %v1097 = vunpack.c.l.bf16 %v1065
        %v1098 = vunpack.c.l.bf16 %v1066
        %v1099 = vunpack.c.l.bf16 %v1067
        %v1100 = vunpack.c.l.bf16 %v1068
        %v1101 = vunpack.c.l.bf16 %v1069
        %v1102 = vunpack.c.l.bf16 %v1070
        %v1103 = vunpack.c.l.bf16 %v1071
        %v1104 = vunpack.c.l.bf16 %v1072
        %v1105 = vunpack.c.l.bf16 %v1073
        %v1106 = vunpack.c.l.bf16 %v1074
        %v1107 = vunpack.c.l.bf16 %v1075
        %v1108 = vunpack.c.l.bf16 %v1076
        %v1109 = vunpack.c.l.bf16 %v1077
        %v1110 = vunpack.c.l.bf16 %v1078
        %v1111 = vunpack.c.l.bf16 %v1079
        %v1112 = vunpack.c.l.bf16 %v1080
        %v1113 = vunpack.c.l.bf16 %v1081
        %v1114 = vunpack.c.l.bf16 %v1082
        %1116 = vset.pattern.permute.xlu0 0
        %1117 = vperm.xlu0 %1116, %v1083
        %v1118 = vpop.permute.xlu0 %1117
        %1121 = vset.pattern.permute.xlu0 0
        %1122 = vperm.xlu0 %1121, %v1084
        %v1123 = vpop.permute.xlu0 %1122
        %1126 = vset.pattern.permute.xlu0 0
        %1127 = vperm.xlu0 %1126, %v1085
        %v1128 = vpop.permute.xlu0 %1127
        %1131 = vset.pattern.permute.xlu0 0
        %1132 = vperm.xlu0 %1131, %v1086
        %v1133 = vpop.permute.xlu0 %1132
        %1136 = vset.pattern.permute.xlu0 0
        %1137 = vperm.xlu0 %1136, %v1087
        %v1138 = vpop.permute.xlu0 %1137
        %1141 = vset.pattern.permute.xlu0 0
        %1142 = vperm.xlu0 %1141, %v1088
        %v1143 = vpop.permute.xlu0 %1142
        %1146 = vset.pattern.permute.xlu0 0
        %1147 = vperm.xlu0 %1146, %v1089
        %v1148 = vpop.permute.xlu0 %1147
        %1151 = vset.pattern.permute.xlu0 0
        %1152 = vperm.xlu0 %1151, %v1090
        %v1153 = vpop.permute.xlu0 %1152
        %1156 = vset.pattern.permute.xlu0 0
        %1157 = vperm.xlu0 %1156, %v1091
        %v1158 = vpop.permute.xlu0 %1157
        %1161 = vset.pattern.permute.xlu0 0
        %1162 = vperm.xlu0 %1161, %v1092
        %v1163 = vpop.permute.xlu0 %1162
        %1166 = vset.pattern.permute.xlu0 0
        %1167 = vperm.xlu0 %1166, %v1093
        %v1168 = vpop.permute.xlu0 %1167
        %1171 = vset.pattern.permute.xlu0 0
        %1172 = vperm.xlu0 %1171, %v1094
        %v1173 = vpop.permute.xlu0 %1172
        %1176 = vset.pattern.permute.xlu0 0
        %1177 = vperm.xlu0 %1176, %v1095
        %v1178 = vpop.permute.xlu0 %1177
        %1181 = vset.pattern.permute.xlu0 0
        %1182 = vperm.xlu0 %1181, %v1096
        %v1183 = vpop.permute.xlu0 %1182
        %1186 = vset.pattern.permute.xlu0 0
        %1187 = vperm.xlu0 %1186, %v1097
        %v1188 = vpop.permute.xlu0 %1187
        %1191 = vset.pattern.permute.xlu0 0
        %1192 = vperm.xlu0 %1191, %v1098
        %v1193 = vpop.permute.xlu0 %1192
        %1196 = vset.pattern.permute.xlu0 0
        %1197 = vperm.xlu0 %1196, %v1099
        %v1198 = vpop.permute.xlu0 %1197
        %1201 = vset.pattern.permute.xlu0 0
        %1202 = vperm.xlu0 %1201, %v1100
        %v1203 = vpop.permute.xlu0 %1202
        %1206 = vset.pattern.permute.xlu0 0
        %1207 = vperm.xlu0 %1206, %v1101
        %v1208 = vpop.permute.xlu0 %1207
        %1211 = vset.pattern.permute.xlu0 0
        %1212 = vperm.xlu0 %1211, %v1102
        %v1213 = vpop.permute.xlu0 %1212
        %1216 = vset.pattern.permute.xlu0 0
        %1217 = vperm.xlu0 %1216, %v1103
        %v1218 = vpop.permute.xlu0 %1217
        %1221 = vset.pattern.permute.xlu0 0
        %1222 = vperm.xlu0 %1221, %v1104
        %v1223 = vpop.permute.xlu0 %1222
        %1226 = vset.pattern.permute.xlu0 0
        %1227 = vperm.xlu0 %1226, %v1105
        %v1228 = vpop.permute.xlu0 %1227
        %1231 = vset.pattern.permute.xlu0 0
        %1232 = vperm.xlu0 %1231, %v1106
        %v1233 = vpop.permute.xlu0 %1232
        %1236 = vset.pattern.permute.xlu0 0
        %1237 = vperm.xlu0 %1236, %v1107
        %v1238 = vpop.permute.xlu0 %1237
        %1241 = vset.pattern.permute.xlu0 0
        %1242 = vperm.xlu0 %1241, %v1108
        %v1243 = vpop.permute.xlu0 %1242
        %1246 = vset.pattern.permute.xlu0 0
        %1247 = vperm.xlu0 %1246, %v1109
        %v1248 = vpop.permute.xlu0 %1247
        %1251 = vset.pattern.permute.xlu0 0
        %1252 = vperm.xlu0 %1251, %v1110
        %v1253 = vpop.permute.xlu0 %1252
        %1256 = vset.pattern.permute.xlu0 0
        %1257 = vperm.xlu0 %1256, %v1111
        %v1258 = vpop.permute.xlu0 %1257
        %1261 = vset.pattern.permute.xlu0 0
        %1262 = vperm.xlu0 %1261, %v1112
        %v1263 = vpop.permute.xlu0 %1262
        %1266 = vset.pattern.permute.xlu0 0
        %1267 = vperm.xlu0 %1266, %v1113
        %v1268 = vpop.permute.xlu0 %1267
        %1271 = vset.pattern.permute.xlu0 0
        %1272 = vperm.xlu0 %1271, %v1114
        %v1273 = vpop.permute.xlu0 %1272
        %v1275 = vmul.f32 %v1048, %v1118
        %v1276 = vmul.f32 %v1047, %v1123
        %v1277 = vmul.f32 %v1046, %v1128
        %v1278 = vmul.f32 %v1045, %v1133
        %v1279 = vmul.f32 %v1044, %v1138
        %v1280 = vmul.f32 %v1043, %v1143
        %v1281 = vmul.f32 %v1042, %v1148
        %v1282 = vmul.f32 %v1041, %v1153
        %v1283 = vmul.f32 %v1040, %v1158
        %v1284 = vmul.f32 %v1039, %v1163
        %v1285 = vmul.f32 %v1038, %v1168
        %v1286 = vmul.f32 %v1037, %v1173
        %v1287 = vmul.f32 %v1036, %v1178
        %v1288 = vmul.f32 %v1035, %v1183
        %v1289 = vmul.f32 %v1034, %v1188
        %v1290 = vmul.f32 %v1033, %v1193
        %v1291 = vmul.f32 %v1032, %v1198
        %v1292 = vmul.f32 %v1031, %v1203
        %v1293 = vmul.f32 %v1030, %v1208
        %v1294 = vmul.f32 %v1029, %v1213
        %v1295 = vmul.f32 %v1028, %v1218
        %v1296 = vmul.f32 %v1027, %v1223
        %v1297 = vmul.f32 %v1026, %v1228
        %v1298 = vmul.f32 %v1025, %v1233
        %v1299 = vmul.f32 %v1024, %v1238
        %v1300 = vmul.f32 %v1023, %v1243
        %v1301 = vmul.f32 %v1022, %v1248
        %v1302 = vmul.f32 %v1021, %v1253
        %v1303 = vmul.f32 %v1020, %v1258
        %v1304 = vmul.f32 %v1019, %v1263
        %v1305 = vmul.f32 %v1018, %v1268
        %v1306 = vmul.f32 %v1049, %v1273
        %v1307 = vld [vmem:[%s1] sm:$0xf]
        %v1308 = vld [vmem:[%s1 + $0x4] sm:$0xf]
        %v1309 = vld [vmem:[%s1 + $0x8] sm:$0xf]
        %v1310 = vld [vmem:[%s1 + $0xc] sm:$0xf]
        %v1311 = vld [vmem:[%s1 + $0x10] sm:$0xf]
        %v1312 = vld [vmem:[%s1 + $0x14] sm:$0xf]
        %v1313 = vld [vmem:[%s1 + $0x18] sm:$0xf]
        %v1314 = vld [vmem:[%s1 + $0x1c] sm:$0xf]
        %v1315 = vld [vmem:[%s1 + $0x20] sm:$0xf]
        %v1316 = vld [vmem:[%s1 + $0x24] sm:$0xf]
        %v1317 = vld [vmem:[%s1 + $0x28] sm:$0xf]
        %v1318 = vld [vmem:[%s1 + $0x2c] sm:$0xf]
        %v1319 = vld [vmem:[%s1 + $0x30] sm:$0xf]
        %v1320 = vld [vmem:[%s1 + $0x34] sm:$0xf]
        %v1321 = vld [vmem:[%s1 + $0x38] sm:$0xf]
        %v1322 = vld [vmem:[%s1 + $0x3c] sm:$0xf]
        %v1323 = vld [vmem:[%s1 + $0x40] sm:$0xf]
        %v1324 = vld [vmem:[%s1 + $0x44] sm:$0xf]
        %v1325 = vld [vmem:[%s1 + $0x48] sm:$0xf]
        %v1326 = vld [vmem:[%s1 + $0x4c] sm:$0xf]
        %v1327 = vld [vmem:[%s1 + $0x50] sm:$0xf]
        %v1328 = vld [vmem:[%s1 + $0x54] sm:$0xf]
        %v1329 = vld [vmem:[%s1 + $0x58] sm:$0xf]
        %v1330 = vld [vmem:[%s1 + $0x5c] sm:$0xf]
        %v1331 = vld [vmem:[%s1 + $0x60] sm:$0xf]
        %v1332 = vld [vmem:[%s1 + $0x64] sm:$0xf]
        %v1333 = vld [vmem:[%s1 + $0x68] sm:$0xf]
        %v1334 = vld [vmem:[%s1 + $0x6c] sm:$0xf]
        %v1335 = vld [vmem:[%s1 + $0x70] sm:$0xf]
        %v1336 = vld [vmem:[%s1 + $0x74] sm:$0xf]
        %v1337 = vld [vmem:[%s1 + $0x78] sm:$0xf]
        %v1338 = vld [vmem:[%s1 + $0x7c] sm:$0xf]
        %v1339 = vunpack.c.l.bf16 %v1307
        %v1340 = vunpack.c.l.bf16 %v1308
        %v1341 = vunpack.c.l.bf16 %v1309
        %v1342 = vunpack.c.l.bf16 %v1310
        %v1343 = vunpack.c.l.bf16 %v1311
        %v1344 = vunpack.c.l.bf16 %v1312
        %v1345 = vunpack.c.l.bf16 %v1313
        %v1346 = vunpack.c.l.bf16 %v1314
        %v1347 = vunpack.c.l.bf16 %v1315
        %v1348 = vunpack.c.l.bf16 %v1316
        %v1349 = vunpack.c.l.bf16 %v1317
        %v1350 = vunpack.c.l.bf16 %v1318
        %v1351 = vunpack.c.l.bf16 %v1319
        %v1352 = vunpack.c.l.bf16 %v1320
        %v1353 = vunpack.c.l.bf16 %v1321
        %v1354 = vunpack.c.l.bf16 %v1322
        %v1355 = vunpack.c.l.bf16 %v1323
        %v1356 = vunpack.c.l.bf16 %v1324
        %v1357 = vunpack.c.l.bf16 %v1325
        %v1358 = vunpack.c.l.bf16 %v1326
        %v1359 = vunpack.c.l.bf16 %v1327
        %v1360 = vunpack.c.l.bf16 %v1328
        %v1361 = vunpack.c.l.bf16 %v1329
        %v1362 = vunpack.c.l.bf16 %v1330
        %v1363 = vunpack.c.l.bf16 %v1331
        %v1364 = vunpack.c.l.bf16 %v1332
        %v1365 = vunpack.c.l.bf16 %v1333
        %v1366 = vunpack.c.l.bf16 %v1334
        %v1367 = vunpack.c.l.bf16 %v1335
        %v1368 = vunpack.c.l.bf16 %v1336
        %v1369 = vunpack.c.l.bf16 %v1337
        %v1370 = vunpack.c.l.bf16 %v1338
        %1372 = vset.pattern.permute.xlu0 0
        %1373 = vperm.xlu0 %1372, %v1339
        %v1374 = vpop.permute.xlu0 %1373
        %1377 = vset.pattern.permute.xlu0 0
        %1378 = vperm.xlu0 %1377, %v1340
        %v1379 = vpop.permute.xlu0 %1378
        %1382 = vset.pattern.permute.xlu0 0
        %1383 = vperm.xlu0 %1382, %v1341
        %v1384 = vpop.permute.xlu0 %1383
        %1387 = vset.pattern.permute.xlu0 0
        %1388 = vperm.xlu0 %1387, %v1342
        %v1389 = vpop.permute.xlu0 %1388
        %1392 = vset.pattern.permute.xlu0 0
        %1393 = vperm.xlu0 %1392, %v1343
        %v1394 = vpop.permute.xlu0 %1393
        %1397 = vset.pattern.permute.xlu0 0
        %1398 = vperm.xlu0 %1397, %v1344
        %v1399 = vpop.permute.xlu0 %1398
        %1402 = vset.pattern.permute.xlu0 0
        %1403 = vperm.xlu0 %1402, %v1345
        %v1404 = vpop.permute.xlu0 %1403
        %1407 = vset.pattern.permute.xlu0 0
        %1408 = vperm.xlu0 %1407, %v1346
        %v1409 = vpop.permute.xlu0 %1408
        %1412 = vset.pattern.permute.xlu0 0
        %1413 = vperm.xlu0 %1412, %v1347
        %v1414 = vpop.permute.xlu0 %1413
        %1417 = vset.pattern.permute.xlu0 0
        %1418 = vperm.xlu0 %1417, %v1348
        %v1419 = vpop.permute.xlu0 %1418
        %1422 = vset.pattern.permute.xlu0 0
        %1423 = vperm.xlu0 %1422, %v1349
        %v1424 = vpop.permute.xlu0 %1423
        %1427 = vset.pattern.permute.xlu0 0
        %1428 = vperm.xlu0 %1427, %v1350
        %v1429 = vpop.permute.xlu0 %1428
        %1432 = vset.pattern.permute.xlu0 0
        %1433 = vperm.xlu0 %1432, %v1351
        %v1434 = vpop.permute.xlu0 %1433
        %1437 = vset.pattern.permute.xlu0 0
        %1438 = vperm.xlu0 %1437, %v1352
        %v1439 = vpop.permute.xlu0 %1438
        %1442 = vset.pattern.permute.xlu0 0
        %1443 = vperm.xlu0 %1442, %v1353
        %v1444 = vpop.permute.xlu0 %1443
        %1447 = vset.pattern.permute.xlu0 0
        %1448 = vperm.xlu0 %1447, %v1354
        %v1449 = vpop.permute.xlu0 %1448
        %1452 = vset.pattern.permute.xlu0 0
        %1453 = vperm.xlu0 %1452, %v1355
        %v1454 = vpop.permute.xlu0 %1453
        %1457 = vset.pattern.permute.xlu0 0
        %1458 = vperm.xlu0 %1457, %v1356
        %v1459 = vpop.permute.xlu0 %1458
        %1462 = vset.pattern.permute.xlu0 0
        %1463 = vperm.xlu0 %1462, %v1357
        %v1464 = vpop.permute.xlu0 %1463
        %1467 = vset.pattern.permute.xlu0 0
        %1468 = vperm.xlu0 %1467, %v1358
        %v1469 = vpop.permute.xlu0 %1468
        %1472 = vset.pattern.permute.xlu0 0
        %1473 = vperm.xlu0 %1472, %v1359
        %v1474 = vpop.permute.xlu0 %1473
        %1477 = vset.pattern.permute.xlu0 0
        %1478 = vperm.xlu0 %1477, %v1360
        %v1479 = vpop.permute.xlu0 %1478
        %1482 = vset.pattern.permute.xlu0 0
        %1483 = vperm.xlu0 %1482, %v1361
        %v1484 = vpop.permute.xlu0 %1483
        %1487 = vset.pattern.permute.xlu0 0
        %1488 = vperm.xlu0 %1487, %v1362
        %v1489 = vpop.permute.xlu0 %1488
        %1492 = vset.pattern.permute.xlu0 0
        %1493 = vperm.xlu0 %1492, %v1363
        %v1494 = vpop.permute.xlu0 %1493
        %1497 = vset.pattern.permute.xlu0 0
        %1498 = vperm.xlu0 %1497, %v1364
        %v1499 = vpop.permute.xlu0 %1498
        %1502 = vset.pattern.permute.xlu0 0
        %1503 = vperm.xlu0 %1502, %v1365
        %v1504 = vpop.permute.xlu0 %1503
        %1507 = vset.pattern.permute.xlu0 0
        %1508 = vperm.xlu0 %1507, %v1366
        %v1509 = vpop.permute.xlu0 %1508
        %1512 = vset.pattern.permute.xlu0 0
        %1513 = vperm.xlu0 %1512, %v1367
        %v1514 = vpop.permute.xlu0 %1513
        %1517 = vset.pattern.permute.xlu0 0
        %1518 = vperm.xlu0 %1517, %v1368
        %v1519 = vpop.permute.xlu0 %1518
        %1522 = vset.pattern.permute.xlu0 0
        %1523 = vperm.xlu0 %1522, %v1369
        %v1524 = vpop.permute.xlu0 %1523
        %1527 = vset.pattern.permute.xlu0 0
        %1528 = vperm.xlu0 %1527, %v1370
        %v1529 = vpop.permute.xlu0 %1528
        %v1531 = vmul.f32 %v983, %v1374
        %v1532 = vmul.f32 %v984, %v1379
        %v1533 = vmul.f32 %v953, %v1384
        %v1534 = vmul.f32 %v954, %v1389
        %v1535 = vmul.f32 %v955, %v1394
        %v1536 = vmul.f32 %v956, %v1399
        %v1537 = vmul.f32 %v957, %v1404
        %v1538 = vmul.f32 %v958, %v1409
        %v1539 = vmul.f32 %v959, %v1414
        %v1540 = vmul.f32 %v960, %v1419
        %v1541 = vmul.f32 %v961, %v1424
        %v1542 = vmul.f32 %v962, %v1429
        %v1543 = vmul.f32 %v963, %v1434
        %v1544 = vmul.f32 %v964, %v1439
        %v1545 = vmul.f32 %v965, %v1444
        %v1546 = vmul.f32 %v966, %v1449
        %v1547 = vmul.f32 %v967, %v1454
        %v1548 = vmul.f32 %v968, %v1459
        %v1549 = vmul.f32 %v969, %v1464
        %v1550 = vmul.f32 %v970, %v1469
        %v1551 = vmul.f32 %v971, %v1474
        %v1552 = vmul.f32 %v972, %v1479
        %v1553 = vmul.f32 %v973, %v1484
        %v1554 = vmul.f32 %v974, %v1489
        %v1555 = vmul.f32 %v975, %v1494
        %v1556 = vmul.f32 %v976, %v1499
        %v1557 = vmul.f32 %v977, %v1504
        %v1558 = vmul.f32 %v978, %v1509
        %v1559 = vmul.f32 %v979, %v1514
        %v1560 = vmul.f32 %v980, %v1519
        %v1561 = vmul.f32 %v981, %v1524
        %v1562 = vmul.f32 %v982, %v1529
        %v1563 = vpack.c.bf16 %v1532, %v1531
        %v1564 = vpack.c.bf16 %v1534, %v1533
        %v1565 = vpack.c.bf16 %v1536, %v1535
        %v1566 = vpack.c.bf16 %v1538, %v1537
        %v1567 = vpack.c.bf16 %v1540, %v1539
        %v1568 = vpack.c.bf16 %v1542, %v1541
        %v1569 = vpack.c.bf16 %v1544, %v1543
        %v1570 = vpack.c.bf16 %v1546, %v1545
        %v1571 = vpack.c.bf16 %v1548, %v1547
        %v1572 = vpack.c.bf16 %v1550, %v1549
        %v1573 = vpack.c.bf16 %v1552, %v1551
        %v1574 = vpack.c.bf16 %v1554, %v1553
        %v1575 = vpack.c.bf16 %v1556, %v1555
        %v1576 = vpack.c.bf16 %v1558, %v1557
        %v1577 = vpack.c.bf16 %v1560, %v1559
        %v1578 = vpack.c.bf16 %v1562, %v1561
        %v1579 = vmul.f32 %v659, %v1374
        %v1580 = vmul.f32 %v660, %v1379
        %v1581 = vmul.f32 %v629, %v1384
        %v1582 = vmul.f32 %v630, %v1389
        %v1583 = vmul.f32 %v631, %v1394
        %v1584 = vmul.f32 %v632, %v1399
        %v1585 = vmul.f32 %v633, %v1404
        %v1586 = vmul.f32 %v634, %v1409
        %v1587 = vmul.f32 %v635, %v1414
        %v1588 = vmul.f32 %v636, %v1419
        %v1589 = vmul.f32 %v637, %v1424
        %v1590 = vmul.f32 %v638, %v1429
        %v1591 = vmul.f32 %v639, %v1434
        %v1592 = vmul.f32 %v640, %v1439
        %v1593 = vmul.f32 %v641, %v1444
        %v1594 = vmul.f32 %v642, %v1449
        %v1595 = vmul.f32 %v643, %v1454
        %v1596 = vmul.f32 %v644, %v1459
        %v1597 = vmul.f32 %v645, %v1464
        %v1598 = vmul.f32 %v646, %v1469
        %v1599 = vmul.f32 %v647, %v1474
        %v1600 = vmul.f32 %v648, %v1479
        %v1601 = vmul.f32 %v649, %v1484
        %v1602 = vmul.f32 %v650, %v1489
        %v1603 = vmul.f32 %v651, %v1494
        %v1604 = vmul.f32 %v652, %v1499
        %v1605 = vmul.f32 %v653, %v1504
        %v1606 = vmul.f32 %v654, %v1509
        %v1607 = vmul.f32 %v655, %v1514
        %v1608 = vmul.f32 %v656, %v1519
        %v1609 = vmul.f32 %v657, %v1524
        %v1610 = vmul.f32 %v658, %v1529
        %v1611 = vpack.c.bf16 %v1580, %v1579
        %v1612 = vpack.c.bf16 %v1582, %v1581
        %v1613 = vpack.c.bf16 %v1584, %v1583
        %v1614 = vpack.c.bf16 %v1586, %v1585
        %v1615 = vpack.c.bf16 %v1588, %v1587
        %v1616 = vpack.c.bf16 %v1590, %v1589
        %v1617 = vpack.c.bf16 %v1592, %v1591
        %v1618 = vpack.c.bf16 %v1594, %v1593
        %v1619 = vpack.c.bf16 %v1596, %v1595
        %v1620 = vpack.c.bf16 %v1598, %v1597
        %v1621 = vpack.c.bf16 %v1600, %v1599
        %v1622 = vpack.c.bf16 %v1602, %v1601
        %v1623 = vpack.c.bf16 %v1604, %v1603
        %v1624 = vpack.c.bf16 %v1606, %v1605
        %v1625 = vpack.c.bf16 %v1608, %v1607
        %v1626 = vpack.c.bf16 %v1610, %v1609
        %v1627 = vld [vmem:[#allocation5] sm:$0xf]
        %v1628 = vld [vmem:[#allocation5 + $0x4] sm:$0xf]
        %v1629 = vld [vmem:[#allocation5 + $0x8] sm:$0xf]
        %v1630 = vld [vmem:[#allocation5 + $0xc] sm:$0xf]
        %v1631 = vld [vmem:[#allocation5 + $0x10] sm:$0xf]
        %v1632 = vld [vmem:[#allocation5 + $0x14] sm:$0xf]
        %v1633 = vld [vmem:[#allocation5 + $0x18] sm:$0xf]
        %v1634 = vld [vmem:[#allocation5 + $0x1c] sm:$0xf]
        %v1635 = vld [vmem:[#allocation5 + $0x20] sm:$0xf]
        %v1636 = vld [vmem:[#allocation5 + $0x24] sm:$0xf]
        %v1637 = vld [vmem:[#allocation5 + $0x28] sm:$0xf]
        %v1638 = vld [vmem:[#allocation5 + $0x2c] sm:$0xf]
        %v1639 = vld [vmem:[#allocation5 + $0x30] sm:$0xf]
        %v1640 = vld [vmem:[#allocation5 + $0x34] sm:$0xf]
        %v1641 = vld [vmem:[#allocation5 + $0x38] sm:$0xf]
        %v1642 = vld [vmem:[#allocation5 + $0x3c] sm:$0xf]
        %v1643 = vld [vmem:[#allocation5 + $0x40] sm:$0xf]
        %v1644 = vld [vmem:[#allocation5 + $0x44] sm:$0xf]
        %v1645 = vld [vmem:[#allocation5 + $0x48] sm:$0xf]
        %v1646 = vld [vmem:[#allocation5 + $0x4c] sm:$0xf]
        %v1647 = vld [vmem:[#allocation5 + $0x50] sm:$0xf]
        %v1648 = vld [vmem:[#allocation5 + $0x54] sm:$0xf]
        %v1649 = vld [vmem:[#allocation5 + $0x58] sm:$0xf]
        %v1650 = vld [vmem:[#allocation5 + $0x5c] sm:$0xf]
        %v1651 = vld [vmem:[#allocation5 + $0x60] sm:$0xf]
        %v1652 = vld [vmem:[#allocation5 + $0x64] sm:$0xf]
        %v1653 = vld [vmem:[#allocation5 + $0x68] sm:$0xf]
        %v1654 = vld [vmem:[#allocation5 + $0x6c] sm:$0xf]
        %v1655 = vld [vmem:[#allocation5 + $0x70] sm:$0xf]
        %v1656 = vld [vmem:[#allocation5 + $0x74] sm:$0xf]
        %v1657 = vld [vmem:[#allocation5 + $0x78] sm:$0xf]
        %v1658 = vld [vmem:[#allocation5 + $0x7c] sm:$0xf]
        %v1659 = vmul.f32 %v1305, %v1374
        %v1660 = vmul.f32 %v1306, %v1379
        %v1661 = vmul.f32 %v1275, %v1384
        %v1662 = vmul.f32 %v1276, %v1389
        %v1663 = vmul.f32 %v1277, %v1394
        %v1664 = vmul.f32 %v1278, %v1399
        %v1665 = vmul.f32 %v1279, %v1404
        %v1666 = vmul.f32 %v1280, %v1409
        %v1667 = vmul.f32 %v1281, %v1414
        %v1668 = vmul.f32 %v1282, %v1419
        %v1669 = vmul.f32 %v1283, %v1424
        %v1670 = vmul.f32 %v1284, %v1429
        %v1671 = vmul.f32 %v1285, %v1434
        %v1672 = vmul.f32 %v1286, %v1439
        %v1673 = vmul.f32 %v1287, %v1444
        %v1674 = vmul.f32 %v1288, %v1449
        %v1675 = vmul.f32 %v1289, %v1454
        %v1676 = vmul.f32 %v1290, %v1459
        %v1677 = vmul.f32 %v1291, %v1464
        %v1678 = vmul.f32 %v1292, %v1469
        %v1679 = vmul.f32 %v1293, %v1474
        %v1680 = vmul.f32 %v1294, %v1479
        %v1681 = vmul.f32 %v1295, %v1484
        %v1682 = vmul.f32 %v1296, %v1489
        %v1683 = vmul.f32 %v1297, %v1494
        %v1684 = vmul.f32 %v1298, %v1499
        %v1685 = vmul.f32 %v1299, %v1504
        %v1686 = vmul.f32 %v1300, %v1509
        %v1687 = vmul.f32 %v1301, %v1514
        %v1688 = vmul.f32 %v1302, %v1519
        %v1689 = vmul.f32 %v1303, %v1524
        %v1690 = vmul.f32 %v1304, %v1529
        %v1691 = vpack.c.bf16 %v1660, %v1659
        %v1692 = vpack.c.bf16 %v1662, %v1661
        %v1693 = vpack.c.bf16 %v1664, %v1663
        %v1694 = vpack.c.bf16 %v1666, %v1665
        %v1695 = vpack.c.bf16 %v1668, %v1667
        %v1696 = vpack.c.bf16 %v1670, %v1669
        %v1697 = vpack.c.bf16 %v1672, %v1671
        %v1698 = vpack.c.bf16 %v1674, %v1673
        %v1699 = vpack.c.bf16 %v1676, %v1675
        %v1700 = vpack.c.bf16 %v1678, %v1677
        %v1701 = vpack.c.bf16 %v1680, %v1679
        %v1702 = vpack.c.bf16 %v1682, %v1681
        %v1703 = vpack.c.bf16 %v1684, %v1683
        %v1704 = vpack.c.bf16 %v1686, %v1685
        %v1705 = vpack.c.bf16 %v1688, %v1687
        %v1706 = vpack.c.bf16 %v1690, %v1689
        %v1707 = vpack.c.bf16 %v954, %v953
        %v1708 = vpack.c.bf16 %v956, %v955
        %v1709 = vpack.c.bf16 %v958, %v957
        %v1710 = vpack.c.bf16 %v960, %v959
        %v1711 = vpack.c.bf16 %v962, %v961
        %v1712 = vpack.c.bf16 %v964, %v963
        %v1713 = vpack.c.bf16 %v966, %v965
        %v1714 = vpack.c.bf16 %v968, %v967
        %v1715 = vpack.c.bf16 %v970, %v969
        %v1716 = vpack.c.bf16 %v972, %v971
        %v1717 = vpack.c.bf16 %v974, %v973
        %v1718 = vpack.c.bf16 %v976, %v975
        %v1719 = vpack.c.bf16 %v978, %v977
        %v1720 = vpack.c.bf16 %v980, %v979
        %v1721 = vpack.c.bf16 %v982, %v981
        %v1722 = vpack.c.bf16 %v984, %v983
        %v1723 = vld [vmem:[#allocation5 + $0x80] sm:$0xf]
        %v1724 = vld [vmem:[#allocation5 + $0x84] sm:$0xf]
        %v1725 = vld [vmem:[#allocation5 + $0x88] sm:$0xf]
        %v1726 = vld [vmem:[#allocation5 + $0x8c] sm:$0xf]
        %v1727 = vld [vmem:[#allocation5 + $0x90] sm:$0xf]
        %v1728 = vld [vmem:[#allocation5 + $0x94] sm:$0xf]
        %v1729 = vld [vmem:[#allocation5 + $0x98] sm:$0xf]
        %v1730 = vld [vmem:[#allocation5 + $0x9c] sm:$0xf]
        %v1731 = vld [vmem:[#allocation5 + $0xa0] sm:$0xf]
        %v1732 = vld [vmem:[#allocation5 + $0xa4] sm:$0xf]
        %v1733 = vld [vmem:[#allocation5 + $0xa8] sm:$0xf]
        %v1734 = vld [vmem:[#allocation5 + $0xac] sm:$0xf]
        %v1735 = vld [vmem:[#allocation5 + $0xb0] sm:$0xf]
        %v1736 = vld [vmem:[#allocation5 + $0xb4] sm:$0xf]
        %v1737 = vld [vmem:[#allocation5 + $0xb8] sm:$0xf]
        %v1738 = vld [vmem:[#allocation5 + $0xbc] sm:$0xf]
        %v1739 = vld [vmem:[#allocation5 + $0xc0] sm:$0xf]
        %v1740 = vld [vmem:[#allocation5 + $0xc4] sm:$0xf]
        %v1741 = vld [vmem:[#allocation5 + $0xc8] sm:$0xf]
        %v1742 = vld [vmem:[#allocation5 + $0xcc] sm:$0xf]
        %v1743 = vld [vmem:[#allocation5 + $0xd0] sm:$0xf]
        %v1744 = vld [vmem:[#allocation5 + $0xd4] sm:$0xf]
        %v1745 = vld [vmem:[#allocation5 + $0xd8] sm:$0xf]
        %v1746 = vld [vmem:[#allocation5 + $0xdc] sm:$0xf]
        %v1747 = vld [vmem:[#allocation5 + $0xe0] sm:$0xf]
        %v1748 = vld [vmem:[#allocation5 + $0xe4] sm:$0xf]
        %v1749 = vld [vmem:[#allocation5 + $0xe8] sm:$0xf]
        %v1750 = vld [vmem:[#allocation5 + $0xec] sm:$0xf]
        %v1751 = vld [vmem:[#allocation5 + $0xf0] sm:$0xf]
        %v1752 = vld [vmem:[#allocation5 + $0xf4] sm:$0xf]
        %v1753 = vld [vmem:[#allocation5 + $0xf8] sm:$0xf]
        %v1754 = vld [vmem:[#allocation5 + $0xfc] sm:$0xf]
        %v1787 = vunpack.c.l.b16 %v1723
        %v1788 = vunpack.c.l.b16 %v1724
        %v1789 = vunpack.c.l.b16 %v1725
        %v1790 = vunpack.c.l.b16 %v1726
        %v1791 = vunpack.c.l.b16 %v1727
        %v1792 = vunpack.c.l.b16 %v1728
        %v1793 = vunpack.c.l.b16 %v1729
        %v1794 = vunpack.c.l.b16 %v1730
        %v1795 = vunpack.c.l.b16 %v1731
        %v1796 = vunpack.c.l.b16 %v1732
        %v1797 = vunpack.c.l.b16 %v1733
        %v1798 = vunpack.c.l.b16 %v1734
        %v1799 = vunpack.c.l.b16 %v1735
        %v1800 = vunpack.c.l.b16 %v1736
        %v1801 = vunpack.c.l.b16 %v1737
        %v1802 = vunpack.c.l.b16 %v1738
        %v1803 = vunpack.c.l.b16 %v1739
        %v1804 = vunpack.c.l.b16 %v1740
        %v1805 = vunpack.c.l.b16 %v1741
        %v1806 = vunpack.c.l.b16 %v1742
        %v1807 = vunpack.c.l.b16 %v1743
        %v1808 = vunpack.c.l.b16 %v1744
        %v1809 = vunpack.c.l.b16 %v1745
        %v1810 = vunpack.c.l.b16 %v1746
        %v1811 = vunpack.c.l.b16 %v1747
        %v1812 = vunpack.c.l.b16 %v1748
        %v1813 = vunpack.c.l.b16 %v1749
        %v1814 = vunpack.c.l.b16 %v1750
        %v1815 = vunpack.c.l.b16 %v1751
        %v1816 = vunpack.c.l.b16 %v1752
        %v1817 = vunpack.c.l.b16 %v1753
        %v1818 = vunpack.c.l.b16 %v1754
        %v1819 = vpack.c.b16 %v1788, %v1787
        %v1820 = vpack.c.b16 %v1790, %v1789
        %v1821 = vpack.c.b16 %v1792, %v1791
        %v1822 = vpack.c.b16 %v1794, %v1793
        %v1823 = vpack.c.b16 %v1796, %v1795
        %v1824 = vpack.c.b16 %v1798, %v1797
        %v1825 = vpack.c.b16 %v1800, %v1799
        %v1826 = vpack.c.b16 %v1802, %v1801
        %v1827 = vpack.c.b16 %v1804, %v1803
        %v1828 = vpack.c.b16 %v1806, %v1805
        %v1829 = vpack.c.b16 %v1808, %v1807
        %v1830 = vpack.c.b16 %v1810, %v1809
        %v1831 = vpack.c.b16 %v1812, %v1811
        %v1832 = vpack.c.b16 %v1814, %v1813
        %v1833 = vpack.c.b16 %v1816, %v1815
        %v1834 = vpack.c.b16 %v1818, %v1817
        %1851 = vmatprep.subr.bf16.mxu0 0
        %1852 = vmatpush1.bf16.msra.mxu0 %v1819
        %1853 = vmatprep.subr.bf16.mxu0 0
        %1854 = vmatpush1.bf16.msra.mxu0 %v1820
        %1855 = vmatprep.subr.bf16.mxu0 0
        %1856 = vmatpush1.bf16.msra.mxu0 %v1821
        %1857 = vmatprep.subr.bf16.mxu0 0
        %1858 = vmatpush1.bf16.msra.mxu0 %v1822
        %1859 = vmatprep.subr.bf16.mxu0 0
        %1860 = vmatpush1.bf16.msra.mxu0 %v1823
        %1861 = vmatprep.subr.bf16.mxu0 0
        %1862 = vmatpush1.bf16.msra.mxu0 %v1824
        %1863 = vmatprep.subr.bf16.mxu0 0
        %1864 = vmatpush1.bf16.msra.mxu0 %v1825
        %1865 = vmatprep.subr.bf16.mxu0 0
        %1866 = vmatpush1.bf16.msra.mxu0 %v1826
        %1867 = vmatprep.subr.bf16.mxu0 0
        %1868 = vmatpush1.bf16.msra.mxu0 %v1827
        %1869 = vmatprep.subr.bf16.mxu0 0
        %1870 = vmatpush1.bf16.msra.mxu0 %v1828
        %1871 = vmatprep.subr.bf16.mxu0 0
        %1872 = vmatpush1.bf16.msra.mxu0 %v1829
        %1873 = vmatprep.subr.bf16.mxu0 0
        %1874 = vmatpush1.bf16.msra.mxu0 %v1830
        %1875 = vmatprep.subr.bf16.mxu0 0
        %1876 = vmatpush1.bf16.msra.mxu0 %v1831
        %1877 = vmatprep.subr.bf16.mxu0 0
        %1878 = vmatpush1.bf16.msra.mxu0 %v1832
        %1879 = vmatprep.subr.bf16.mxu0 0
        %1880 = vmatpush1.bf16.msra.mxu0 %v1833
        %1881 = vmatprep.subr.bf16.mxu0 0
        %1882 = vmatpush1.bf16.msra.mxu0 %v1834
        %1883 = vmatprep.mubr.bf16.mxu0 %v1707
        %1884 = vmatmul.mubr.bf16.gmra.mrb[0].mxu0 %v1691
        %v1885 = vpop.f32.mrb[0].mxu0
        %v1886 = vadd.f32 0.0, %v1885
        %v1887 = vpop.f32.mrb[0].mxu0
        %v1888 = vpop.f32.mrb[0].mxu0
        %v1889 = vadd.f32 0.0, %v1888
        %v1890 = vpop.f32.mrb[0].mxu0
        %1891 = vmatprep.mubr.bf16.mxu0 %v1708
        %1892 = vmatmul.mubr.bf16.gmra.mrb[0].mxu0 %v1692
        %v1893 = vpop.f32.mrb[0].mxu0
        %v1894 = vadd.f32 0.0, %v1893
        %v1895 = vpop.f32.mrb[0].mxu0
        %v1896 = vpop.f32.mrb[0].mxu0
        %v1897 = vadd.f32 0.0, %v1896
        %v1898 = vpop.f32.mrb[0].mxu0
        %1899 = vmatprep.mubr.bf16.mxu0 %v1709
        %1900 = vmatmul.mubr.bf16.gmra.mrb[0].mxu0 %v1693
        %v1901 = vpop.f32.mrb[0].mxu0
        %v1902 = vadd.f32 0.0, %v1901
        %v1903 = vpop.f32.mrb[0].mxu0
        %v1904 = vpop.f32.mrb[0].mxu0
        %v1905 = vadd.f32 0.0, %v1904
        %v1906 = vpop.f32.mrb[0].mxu0
        %1907 = vmatprep.mubr.bf16.mxu0 %v1710
        %1908 = vmatmul.mubr.bf16.gmra.mrb[0].mxu0 %v1694
        %v1909 = vpop.f32.mrb[0].mxu0
        %v1910 = vadd.f32 0.0, %v1909
        %v1911 = vpop.f32.mrb[0].mxu0
        %v1912 = vpop.f32.mrb[0].mxu0
        %v1913 = vadd.f32 0.0, %v1912
        %v1914 = vpop.f32.mrb[0].mxu0
        %1915 = vmatprep.mubr.bf16.mxu0 %v1711
        %1916 = vmatmul.mubr.bf16.gmra.mrb[0].mxu0 %v1695
        %v1917 = vpop.f32.mrb[0].mxu0
        %v1918 = vadd.f32 0.0, %v1917
        %v1919 = vpop.f32.mrb[0].mxu0
        %v1920 = vpop.f32.mrb[0].mxu0
        %v1921 = vadd.f32 0.0, %v1920
        %v1922 = vpop.f32.mrb[0].mxu0
        %1923 = vmatprep.mubr.bf16.mxu0 %v1712
        %1924 = vmatmul.mubr.bf16.gmra.mrb[0].mxu0 %v1696
        %v1925 = vpop.f32.mrb[0].mxu0
        %v1926 = vadd.f32 0.0, %v1925
        %v1927 = vpop.f32.mrb[0].mxu0
        %v1928 = vpop.f32.mrb[0].mxu0
        %v1929 = vadd.f32 0.0, %v1928
        %v1930 = vpop.f32.mrb[0].mxu0
        %1931 = vmatprep.mubr.bf16.mxu0 %v1713
        %1932 = vmatmul.mubr.bf16.gmra.mrb[0].mxu0 %v1697
        %v1933 = vpop.f32.mrb[0].mxu0
        %v1934 = vadd.f32 0.0, %v1933
        %v1935 = vpop.f32.mrb[0].mxu0
        %v1936 = vpop.f32.mrb[0].mxu0
        %v1937 = vadd.f32 0.0, %v1936
        %v1938 = vpop.f32.mrb[0].mxu0
        %1939 = vmatprep.mubr.bf16.mxu0 %v1714
        %1940 = vmatmul.mubr.bf16.gmra.mrb[0].mxu0 %v1698
        %v1941 = vpop.f32.mrb[0].mxu0
        %v1942 = vadd.f32 0.0, %v1941
        %v1943 = vpop.f32.mrb[0].mxu0
        %v1944 = vpop.f32.mrb[0].mxu0
        %v1945 = vadd.f32 0.0, %v1944
        %v1946 = vpop.f32.mrb[0].mxu0
        %1947 = vmatprep.mubr.bf16.mxu0 %v1715
        %1948 = vmatmul.mubr.bf16.gmra.mrb[0].mxu0 %v1699
        %v1949 = vpop.f32.mrb[0].mxu0
        %v1950 = vadd.f32 0.0, %v1949
        %v1951 = vpop.f32.mrb[0].mxu0
        %v1952 = vpop.f32.mrb[0].mxu0
        %v1953 = vadd.f32 0.0, %v1952
        %v1954 = vpop.f32.mrb[0].mxu0
        %1955 = vmatprep.mubr.bf16.mxu0 %v1716
        %1956 = vmatmul.mubr.bf16.gmra.mrb[0].mxu0 %v1700
        %v1957 = vpop.f32.mrb[0].mxu0
        %v1958 = vadd.f32 0.0, %v1957
        %v1959 = vpop.f32.mrb[0].mxu0
        %v1960 = vpop.f32.mrb[0].mxu0
        %v1961 = vadd.f32 0.0, %v1960
        %v1962 = vpop.f32.mrb[0].mxu0
        %1963 = vmatprep.mubr.bf16.mxu0 %v1717
        %1964 = vmatmul.mubr.bf16.gmra.mrb[0].mxu0 %v1701
        %v1965 = vpop.f32.mrb[0].mxu0
        %v1966 = vadd.f32 0.0, %v1965
        %v1967 = vpop.f32.mrb[0].mxu0
        %v1968 = vpop.f32.mrb[0].mxu0
        %v1969 = vadd.f32 0.0, %v1968
        %v1970 = vpop.f32.mrb[0].mxu0
        %1971 = vmatprep.mubr.bf16.mxu0 %v1718
        %1972 = vmatmul.mubr.bf16.gmra.mrb[0].mxu0 %v1702
        %v1973 = vpop.f32.mrb[0].mxu0
        %v1974 = vadd.f32 0.0, %v1973
        %v1975 = vpop.f32.mrb[0].mxu0
        %v1976 = vpop.f32.mrb[0].mxu0
        %v1977 = vadd.f32 0.0, %v1976
        %v1978 = vpop.f32.mrb[0].mxu0
        %1979 = vmatprep.mubr.bf16.mxu0 %v1719
        %1980 = vmatmul.mubr.bf16.gmra.mrb[0].mxu0 %v1703
        %v1981 = vpop.f32.mrb[0].mxu0
        %v1982 = vadd.f32 0.0, %v1981
        %v1983 = vpop.f32.mrb[0].mxu0
        %v1984 = vpop.f32.mrb[0].mxu0
        %v1985 = vadd.f32 0.0, %v1984
        %v1986 = vpop.f32.mrb[0].mxu0
        %1987 = vmatprep.mubr.bf16.mxu0 %v1720
        %1988 = vmatmul.mubr.bf16.gmra.mrb[0].mxu0 %v1704
        %v1989 = vpop.f32.mrb[0].mxu0
        %v1990 = vadd.f32 0.0, %v1989
        %v1991 = vpop.f32.mrb[0].mxu0
        %v1992 = vpop.f32.mrb[0].mxu0
        %v1993 = vadd.f32 0.0, %v1992
        %v1994 = vpop.f32.mrb[0].mxu0
        %1995 = vmatprep.mubr.bf16.mxu0 %v1721
        %1996 = vmatmul.mubr.bf16.gmra.mrb[0].mxu0 %v1705
        %v1997 = vpop.f32.mrb[0].mxu0
        %v1998 = vadd.f32 0.0, %v1997
        %v1999 = vpop.f32.mrb[0].mxu0
        %v2000 = vpop.f32.mrb[0].mxu0
        %v2001 = vadd.f32 0.0, %v2000
        %v2002 = vpop.f32.mrb[0].mxu0
        %2003 = vmatprep.mubr.bf16.mxu0 %v1722
        %2004 = vmatmul.mubr.bf16.gmra.mrb[0].mxu0 %v1706
        %v2005 = vpop.f32.mrb[0].mxu0
        %v2006 = vadd.f32 0.0, %v2005
        %v2007 = vpop.f32.mrb[0].mxu0
        %v2008 = vpop.f32.mrb[0].mxu0
        %v2009 = vadd.f32 0.0, %v2008
        %v2010 = vpop.f32.mrb[0].mxu0
        %2011 = vdwg.mxu0
        %v2044 = vunpack.c.l.b16 %v1627
        %v2045 = vunpack.c.l.b16 %v1628
        %v2046 = vunpack.c.l.b16 %v1629
        %v2047 = vunpack.c.l.b16 %v1630
        %v2048 = vunpack.c.l.b16 %v1631
        %v2049 = vunpack.c.l.b16 %v1632
        %v2050 = vunpack.c.l.b16 %v1633
        %v2051 = vunpack.c.l.b16 %v1634
        %v2052 = vunpack.c.l.b16 %v1635
        %v2053 = vunpack.c.l.b16 %v1636
        %v2054 = vunpack.c.l.b16 %v1637
        %v2055 = vunpack.c.l.b16 %v1638
        %v2056 = vunpack.c.l.b16 %v1639
        %v2057 = vunpack.c.l.b16 %v1640
        %v2058 = vunpack.c.l.b16 %v1641
        %v2059 = vunpack.c.l.b16 %v1642
        %v2060 = vunpack.c.l.b16 %v1643
        %v2061 = vunpack.c.l.b16 %v1644
        %v2062 = vunpack.c.l.b16 %v1645
        %v2063 = vunpack.c.l.b16 %v1646
        %v2064 = vunpack.c.l.b16 %v1647
        %v2065 = vunpack.c.l.b16 %v1648
        %v2066 = vunpack.c.l.b16 %v1649
        %v2067 = vunpack.c.l.b16 %v1650
        %v2068 = vunpack.c.l.b16 %v1651
        %v2069 = vunpack.c.l.b16 %v1652
        %v2070 = vunpack.c.l.b16 %v1653
        %v2071 = vunpack.c.l.b16 %v1654
        %v2072 = vunpack.c.l.b16 %v1655
        %v2073 = vunpack.c.l.b16 %v1656
        %v2074 = vunpack.c.l.b16 %v1657
        %v2075 = vunpack.c.l.b16 %v1658
        %v2076 = vpack.c.b16 %v2045, %v2044
        %v2077 = vpack.c.b16 %v2047, %v2046
        %v2078 = vpack.c.b16 %v2049, %v2048
        %v2079 = vpack.c.b16 %v2051, %v2050
        %v2080 = vpack.c.b16 %v2053, %v2052
        %v2081 = vpack.c.b16 %v2055, %v2054
        %v2082 = vpack.c.b16 %v2057, %v2056
        %v2083 = vpack.c.b16 %v2059, %v2058
        %v2084 = vpack.c.b16 %v2061, %v2060
        %v2085 = vpack.c.b16 %v2063, %v2062
        %v2086 = vpack.c.b16 %v2065, %v2064
        %v2087 = vpack.c.b16 %v2067, %v2066
        %v2088 = vpack.c.b16 %v2069, %v2068
        %v2089 = vpack.c.b16 %v2071, %v2070
        %v2090 = vpack.c.b16 %v2073, %v2072
        %v2091 = vpack.c.b16 %v2075, %v2074
        %2108 = vmatprep.subr.bf16.mxu0 0
        %2109 = vmatpush1.bf16.msra.mxu0 %v2076
        %2110 = vmatprep.subr.bf16.mxu0 0
        %2111 = vmatpush1.bf16.msra.mxu0 %v2077
        %2112 = vmatprep.subr.bf16.mxu0 0
        %2113 = vmatpush1.bf16.msra.mxu0 %v2078
        %2114 = vmatprep.subr.bf16.mxu0 0
        %2115 = vmatpush1.bf16.msra.mxu0 %v2079
        %2116 = vmatprep.subr.bf16.mxu0 0
        %2117 = vmatpush1.bf16.msra.mxu0 %v2080
        %2118 = vmatprep.subr.bf16.mxu0 0
        %2119 = vmatpush1.bf16.msra.mxu0 %v2081
        %2120 = vmatprep.subr.bf16.mxu0 0
        %2121 = vmatpush1.bf16.msra.mxu0 %v2082
        %2122 = vmatprep.subr.bf16.mxu0 0
        %2123 = vmatpush1.bf16.msra.mxu0 %v2083
        %2124 = vmatprep.subr.bf16.mxu0 0
        %2125 = vmatpush1.bf16.msra.mxu0 %v2084
        %2126 = vmatprep.subr.bf16.mxu0 0
        %2127 = vmatpush1.bf16.msra.mxu0 %v2085
        %2128 = vmatprep.subr.bf16.mxu0 0
        %2129 = vmatpush1.bf16.msra.mxu0 %v2086
        %2130 = vmatprep.subr.bf16.mxu0 0
        %2131 = vmatpush1.bf16.msra.mxu0 %v2087
        %2132 = vmatprep.subr.bf16.mxu0 0
        %2133 = vmatpush1.bf16.msra.mxu0 %v2088
        %2134 = vmatprep.subr.bf16.mxu0 0
        %2135 = vmatpush1.bf16.msra.mxu0 %v2089
        %2136 = vmatprep.subr.bf16.mxu0 0
        %2137 = vmatpush1.bf16.msra.mxu0 %v2090
        %2138 = vmatprep.subr.bf16.mxu0 0
        %2139 = vmatpush1.bf16.msra.mxu0 %v2091
        %2140 = vmatprep.mubr.bf16.mxu0 %v1611
        %2141 = vmatmul.mubr.bf16.gmra.mrb[0].mxu0 %v1563
        %v2142 = vpop.f32.mrb[0].mxu0
        %v2143 = vadd.f32 %v1886, %v2142
        %v2144 = vpop.f32.mrb[0].mxu0
        %v2145 = vpop.f32.mrb[0].mxu0
        %v2146 = vadd.f32 %v1889, %v2145
        %v2147 = vpop.f32.mrb[0].mxu0
        %2148 = vmatprep.mubr.bf16.mxu0 %v1612
        %2149 = vmatmul.mubr.bf16.gmra.mrb[0].mxu0 %v1564
        %v2150 = vpop.f32.mrb[0].mxu0
        %v2151 = vadd.f32 %v1894, %v2150
        %v2152 = vpop.f32.mrb[0].mxu0
        %v2153 = vpop.f32.mrb[0].mxu0
        %v2154 = vadd.f32 %v1897, %v2153
        %v2155 = vpop.f32.mrb[0].mxu0
        %2156 = vmatprep.mubr.bf16.mxu0 %v1613
        %2157 = vmatmul.mubr.bf16.gmra.mrb[0].mxu0 %v1565
        %v2158 = vpop.f32.mrb[0].mxu0
        %v2159 = vadd.f32 %v1902, %v2158
        %v2160 = vpop.f32.mrb[0].mxu0
        %v2161 = vpop.f32.mrb[0].mxu0
        %v2162 = vadd.f32 %v1905, %v2161
        %v2163 = vpop.f32.mrb[0].mxu0
        %2164 = vmatprep.mubr.bf16.mxu0 %v1614
        %2165 = vmatmul.mubr.bf16.gmra.mrb[0].mxu0 %v1566
        %v2166 = vpop.f32.mrb[0].mxu0
        %v2167 = vadd.f32 %v1910, %v2166
        %v2168 = vpop.f32.mrb[0].mxu0
        %v2169 = vpop.f32.mrb[0].mxu0
        %v2170 = vadd.f32 %v1913, %v2169
        %v2171 = vpop.f32.mrb[0].mxu0
        %2172 = vmatprep.mubr.bf16.mxu0 %v1615
        %2173 = vmatmul.mubr.bf16.gmra.mrb[0].mxu0 %v1567
        %v2174 = vpop.f32.mrb[0].mxu0
        %v2175 = vadd.f32 %v1918, %v2174
        %v2176 = vpop.f32.mrb[0].mxu0
        %v2177 = vpop.f32.mrb[0].mxu0
        %v2178 = vadd.f32 %v1921, %v2177
        %v2179 = vpop.f32.mrb[0].mxu0
        %2180 = vmatprep.mubr.bf16.mxu0 %v1616
        %2181 = vmatmul.mubr.bf16.gmra.mrb[0].mxu0 %v1568
        %v2182 = vpop.f32.mrb[0].mxu0
        %v2183 = vadd.f32 %v1926, %v2182
        %v2184 = vpop.f32.mrb[0].mxu0
        %v2185 = vpop.f32.mrb[0].mxu0
        %v2186 = vadd.f32 %v1929, %v2185
        %v2187 = vpop.f32.mrb[0].mxu0
        %2188 = vmatprep.mubr.bf16.mxu0 %v1617
        %2189 = vmatmul.mubr.bf16.gmra.mrb[0].mxu0 %v1569
        %v2190 = vpop.f32.mrb[0].mxu0
        %v2191 = vadd.f32 %v1934, %v2190
        %v2192 = vpop.f32.mrb[0].mxu0
        %v2193 = vpop.f32.mrb[0].mxu0
        %v2194 = vadd.f32 %v1937, %v2193
        %v2195 = vpop.f32.mrb[0].mxu0
        %2196 = vmatprep.mubr.bf16.mxu0 %v1618
        %2197 = vmatmul.mubr.bf16.gmra.mrb[0].mxu0 %v1570
        %v2198 = vpop.f32.mrb[0].mxu0
        %v2199 = vadd.f32 %v1942, %v2198
        %v2200 = vpop.f32.mrb[0].mxu0
        %v2201 = vpop.f32.mrb[0].mxu0
        %v2202 = vadd.f32 %v1945, %v2201
        %v2203 = vpop.f32.mrb[0].mxu0
        %2204 = vmatprep.mubr.bf16.mxu0 %v1619
        %2205 = vmatmul.mubr.bf16.gmra.mrb[0].mxu0 %v1571
        %v2206 = vpop.f32.mrb[0].mxu0
        %v2207 = vadd.f32 %v1950, %v2206
        %v2208 = vpop.f32.mrb[0].mxu0
        %v2209 = vpop.f32.mrb[0].mxu0
        %v2210 = vadd.f32 %v1953, %v2209
        %v2211 = vpop.f32.mrb[0].mxu0
        %2212 = vmatprep.mubr.bf16.mxu0 %v1620
        %2213 = vmatmul.mubr.bf16.gmra.mrb[0].mxu0 %v1572
        %v2214 = vpop.f32.mrb[0].mxu0
        %v2215 = vadd.f32 %v1958, %v2214
        %v2216 = vpop.f32.mrb[0].mxu0
        %v2217 = vpop.f32.mrb[0].mxu0
        %v2218 = vadd.f32 %v1961, %v2217
        %v2219 = vpop.f32.mrb[0].mxu0
        %2220 = vmatprep.mubr.bf16.mxu0 %v1621
        %2221 = vmatmul.mubr.bf16.gmra.mrb[0].mxu0 %v1573
        %v2222 = vpop.f32.mrb[0].mxu0
        %v2223 = vadd.f32 %v1966, %v2222
        %v2224 = vpop.f32.mrb[0].mxu0
        %v2225 = vpop.f32.mrb[0].mxu0
        %v2226 = vadd.f32 %v1969, %v2225
        %v2227 = vpop.f32.mrb[0].mxu0
        %2228 = vmatprep.mubr.bf16.mxu0 %v1622
        %2229 = vmatmul.mubr.bf16.gmra.mrb[0].mxu0 %v1574
        %v2230 = vpop.f32.mrb[0].mxu0
        %v2231 = vadd.f32 %v1974, %v2230
        %v2232 = vpop.f32.mrb[0].mxu0
        %v2233 = vpop.f32.mrb[0].mxu0
        %v2234 = vadd.f32 %v1977, %v2233
        %v2235 = vpop.f32.mrb[0].mxu0
        %2236 = vmatprep.mubr.bf16.mxu0 %v1623
        %2237 = vmatmul.mubr.bf16.gmra.mrb[0].mxu0 %v1575
        %v2238 = vpop.f32.mrb[0].mxu0
        %v2239 = vadd.f32 %v1982, %v2238
        %v2240 = vpop.f32.mrb[0].mxu0
        %v2241 = vpop.f32.mrb[0].mxu0
        %v2242 = vadd.f32 %v1985, %v2241
        %v2243 = vpop.f32.mrb[0].mxu0
        %2244 = vmatprep.mubr.bf16.mxu0 %v1624
        %2245 = vmatmul.mubr.bf16.gmra.mrb[0].mxu0 %v1576
        %v2246 = vpop.f32.mrb[0].mxu0
        %v2247 = vadd.f32 %v1990, %v2246
        %v2248 = vpop.f32.mrb[0].mxu0
        %v2249 = vpop.f32.mrb[0].mxu0
        %v2250 = vadd.f32 %v1993, %v2249
        %v2251 = vpop.f32.mrb[0].mxu0
        %2252 = vmatprep.mubr.bf16.mxu0 %v1625
        %2253 = vmatmul.mubr.bf16.gmra.mrb[0].mxu0 %v1577
        %v2254 = vpop.f32.mrb[0].mxu0
        %v2255 = vadd.f32 %v1998, %v2254
        %v2256 = vpop.f32.mrb[0].mxu0
        %v2257 = vpop.f32.mrb[0].mxu0
        %v2258 = vadd.f32 %v2001, %v2257
        %v2259 = vpop.f32.mrb[0].mxu0
        %2260 = vmatprep.mubr.bf16.mxu0 %v1626
        %2261 = vmatmul.mubr.bf16.gmra.mrb[0].mxu0 %v1578
        %v2262 = vpop.f32.mrb[0].mxu0
        %v2263 = vadd.f32 %v2006, %v2262
        %v2264 = vpop.f32.mrb[0].mxu0
        %v2265 = vpop.f32.mrb[0].mxu0
        %v2266 = vadd.f32 %v2009, %v2265
        %v2267 = vpop.f32.mrb[0].mxu0
        %2268 = vdwg.mxu0
        %v2269 = vpack.c.bf16 %v630, %v629
        %v2270 = vpack.c.bf16 %v632, %v631
        %v2271 = vpack.c.bf16 %v634, %v633
        %v2272 = vpack.c.bf16 %v636, %v635
        %v2273 = vpack.c.bf16 %v638, %v637
        %v2274 = vpack.c.bf16 %v640, %v639
        %v2275 = vpack.c.bf16 %v642, %v641
        %v2276 = vpack.c.bf16 %v644, %v643
        %v2277 = vpack.c.bf16 %v646, %v645
        %v2278 = vpack.c.bf16 %v648, %v647
        %v2279 = vpack.c.bf16 %v650, %v649
        %v2280 = vpack.c.bf16 %v652, %v651
        %v2281 = vpack.c.bf16 %v654, %v653
        %v2282 = vpack.c.bf16 %v656, %v655
        %v2283 = vpack.c.bf16 %v658, %v657
        %v2284 = vpack.c.bf16 %v660, %v659
        %v2285 = vpack.c.bf16 %v1276, %v1275
        %v2286 = vpack.c.bf16 %v1278, %v1277
        %v2287 = vpack.c.bf16 %v1280, %v1279
        %v2288 = vpack.c.bf16 %v1282, %v1281
        %v2289 = vpack.c.bf16 %v1284, %v1283
        %v2290 = vpack.c.bf16 %v1286, %v1285
        %v2291 = vpack.c.bf16 %v1288, %v1287
        %v2292 = vpack.c.bf16 %v1290, %v1289
        %v2293 = vpack.c.bf16 %v1292, %v1291
        %v2294 = vpack.c.bf16 %v1294, %v1293
        %v2295 = vpack.c.bf16 %v1296, %v1295
        %v2296 = vpack.c.bf16 %v1298, %v1297
        %v2297 = vpack.c.bf16 %v1300, %v1299
        %v2298 = vpack.c.bf16 %v1302, %v1301
        %v2299 = vpack.c.bf16 %v1304, %v1303
        %v2300 = vpack.c.bf16 %v1306, %v1305
        %v2301 = vld [vmem:[#allocation5 + $0x100] sm:$0xf]
        %v2302 = vld [vmem:[#allocation5 + $0x104] sm:$0xf]
        %v2303 = vld [vmem:[#allocation5 + $0x108] sm:$0xf]
        %v2304 = vld [vmem:[#allocation5 + $0x10c] sm:$0xf]
        %v2305 = vld [vmem:[#allocation5 + $0x110] sm:$0xf]
        %v2306 = vld [vmem:[#allocation5 + $0x114] sm:$0xf]
        %v2307 = vld [vmem:[#allocation5 + $0x118] sm:$0xf]
        %v2308 = vld [vmem:[#allocation5 + $0x11c] sm:$0xf]
        %v2309 = vld [vmem:[#allocation5 + $0x120] sm:$0xf]
        %v2310 = vld [vmem:[#allocation5 + $0x124] sm:$0xf]
        %v2311 = vld [vmem:[#allocation5 + $0x128] sm:$0xf]
        %v2312 = vld [vmem:[#allocation5 + $0x12c] sm:$0xf]
        %v2313 = vld [vmem:[#allocation5 + $0x130] sm:$0xf]
        %v2314 = vld [vmem:[#allocation5 + $0x134] sm:$0xf]
        %v2315 = vld [vmem:[#allocation5 + $0x138] sm:$0xf]
        %v2316 = vld [vmem:[#allocation5 + $0x13c] sm:$0xf]
        %v2317 = vld [vmem:[#allocation5 + $0x140] sm:$0xf]
        %v2318 = vld [vmem:[#allocation5 + $0x144] sm:$0xf]
        %v2319 = vld [vmem:[#allocation5 + $0x148] sm:$0xf]
        %v2320 = vld [vmem:[#allocation5 + $0x14c] sm:$0xf]
        %v2321 = vld [vmem:[#allocation5 + $0x150] sm:$0xf]
        %v2322 = vld [vmem:[#allocation5 + $0x154] sm:$0xf]
        %v2323 = vld [vmem:[#allocation5 + $0x158] sm:$0xf]
        %v2324 = vld [vmem:[#allocation5 + $0x15c] sm:$0xf]
        %v2325 = vld [vmem:[#allocation5 + $0x160] sm:$0xf]
        %v2326 = vld [vmem:[#allocation5 + $0x164] sm:$0xf]
        %v2327 = vld [vmem:[#allocation5 + $0x168] sm:$0xf]
        %v2328 = vld [vmem:[#allocation5 + $0x16c] sm:$0xf]
        %v2329 = vld [vmem:[#allocation5 + $0x170] sm:$0xf]
        %v2330 = vld [vmem:[#allocation5 + $0x174] sm:$0xf]
        %v2331 = vld [vmem:[#allocation5 + $0x178] sm:$0xf]
        %v2332 = vld [vmem:[#allocation5 + $0x17c] sm:$0xf]
        %v2365 = vunpack.c.l.b16 %v2301
        %v2366 = vunpack.c.l.b16 %v2302
        %v2367 = vunpack.c.l.b16 %v2303
        %v2368 = vunpack.c.l.b16 %v2304
        %v2369 = vunpack.c.l.b16 %v2305
        %v2370 = vunpack.c.l.b16 %v2306
        %v2371 = vunpack.c.l.b16 %v2307
        %v2372 = vunpack.c.l.b16 %v2308
        %v2373 = vunpack.c.l.b16 %v2309
        %v2374 = vunpack.c.l.b16 %v2310
        %v2375 = vunpack.c.l.b16 %v2311
        %v2376 = vunpack.c.l.b16 %v2312
        %v2377 = vunpack.c.l.b16 %v2313
        %v2378 = vunpack.c.l.b16 %v2314
        %v2379 = vunpack.c.l.b16 %v2315
        %v2380 = vunpack.c.l.b16 %v2316
        %v2381 = vunpack.c.l.b16 %v2317
        %v2382 = vunpack.c.l.b16 %v2318
        %v2383 = vunpack.c.l.b16 %v2319
        %v2384 = vunpack.c.l.b16 %v2320
        %v2385 = vunpack.c.l.b16 %v2321
        %v2386 = vunpack.c.l.b16 %v2322
        %v2387 = vunpack.c.l.b16 %v2323
        %v2388 = vunpack.c.l.b16 %v2324
        %v2389 = vunpack.c.l.b16 %v2325
        %v2390 = vunpack.c.l.b16 %v2326
        %v2391 = vunpack.c.l.b16 %v2327
        %v2392 = vunpack.c.l.b16 %v2328
        %v2393 = vunpack.c.l.b16 %v2329
        %v2394 = vunpack.c.l.b16 %v2330
        %v2395 = vunpack.c.l.b16 %v2331
        %v2396 = vunpack.c.l.b16 %v2332
        %v2397 = vpack.c.b16 %v2366, %v2365
        %v2398 = vpack.c.b16 %v2368, %v2367
        %v2399 = vpack.c.b16 %v2370, %v2369
        %v2400 = vpack.c.b16 %v2372, %v2371
        %v2401 = vpack.c.b16 %v2374, %v2373
        %v2402 = vpack.c.b16 %v2376, %v2375
        %v2403 = vpack.c.b16 %v2378, %v2377
        %v2404 = vpack.c.b16 %v2380, %v2379
        %v2405 = vpack.c.b16 %v2382, %v2381
        %v2406 = vpack.c.b16 %v2384, %v2383
        %v2407 = vpack.c.b16 %v2386, %v2385
        %v2408 = vpack.c.b16 %v2388, %v2387
        %v2409 = vpack.c.b16 %v2390, %v2389
        %v2410 = vpack.c.b16 %v2392, %v2391
        %v2411 = vpack.c.b16 %v2394, %v2393
        %v2412 = vpack.c.b16 %v2396, %v2395
        %2429 = vmatprep.subr.bf16.mxu0 0
        %2430 = vmatpush1.bf16.msra.mxu0 %v2397
        %2431 = vmatprep.subr.bf16.mxu0 0
        %2432 = vmatpush1.bf16.msra.mxu0 %v2398
        %2433 = vmatprep.subr.bf16.mxu0 0
        %2434 = vmatpush1.bf16.msra.mxu0 %v2399
        %2435 = vmatprep.subr.bf16.mxu0 0
        %2436 = vmatpush1.bf16.msra.mxu0 %v2400
        %2437 = vmatprep.subr.bf16.mxu0 0
        %2438 = vmatpush1.bf16.msra.mxu0 %v2401
        %2439 = vmatprep.subr.bf16.mxu0 0
        %2440 = vmatpush1.bf16.msra.mxu0 %v2402
        %2441 = vmatprep.subr.bf16.mxu0 0
        %2442 = vmatpush1.bf16.msra.mxu0 %v2403
        %2443 = vmatprep.subr.bf16.mxu0 0
        %2444 = vmatpush1.bf16.msra.mxu0 %v2404
        %2445 = vmatprep.subr.bf16.mxu0 0
        %2446 = vmatpush1.bf16.msra.mxu0 %v2405
        %2447 = vmatprep.subr.bf16.mxu0 0
        %2448 = vmatpush1.bf16.msra.mxu0 %v2406
        %2449 = vmatprep.subr.bf16.mxu0 0
        %2450 = vmatpush1.bf16.msra.mxu0 %v2407
        %2451 = vmatprep.subr.bf16.mxu0 0
        %2452 = vmatpush1.bf16.msra.mxu0 %v2408
        %2453 = vmatprep.subr.bf16.mxu0 0
        %2454 = vmatpush1.bf16.msra.mxu0 %v2409
        %2455 = vmatprep.subr.bf16.mxu0 0
        %2456 = vmatpush1.bf16.msra.mxu0 %v2410
        %2457 = vmatprep.subr.bf16.mxu0 0
        %2458 = vmatpush1.bf16.msra.mxu0 %v2411
        %2459 = vmatprep.subr.bf16.mxu0 0
        %2460 = vmatpush1.bf16.msra.mxu0 %v2412
        %2461 = vmatprep.mubr.bf16.mxu0 %v2285
        %2462 = vmatmul.mubr.bf16.gmra.mrb[0].mxu0 %v2269
        %v2463 = vpop.f32.mrb[0].mxu0
        %v2464 = vadd.f32 0.0, %v2463
        %v2465 = vpop.f32.mrb[0].mxu0
        %v2466 = vpop.f32.mrb[0].mxu0
        %v2467 = vadd.f32 0.0, %v2466
        %v2468 = vpop.f32.mrb[0].mxu0
        %2469 = vmatprep.mubr.bf16.mxu0 %v2286
        %2470 = vmatmul.mubr.bf16.gmra.mrb[0].mxu0 %v2270
        %v2471 = vpop.f32.mrb[0].mxu0
        %v2472 = vadd.f32 0.0, %v2471
        %v2473 = vpop.f32.mrb[0].mxu0
        %v2474 = vpop.f32.mrb[0].mxu0
        %v2475 = vadd.f32 0.0, %v2474
        %v2476 = vpop.f32.mrb[0].mxu0
        %2477 = vmatprep.mubr.bf16.mxu0 %v2287
        %2478 = vmatmul.mubr.bf16.gmra.mrb[0].mxu0 %v2271
        %v2479 = vpop.f32.mrb[0].mxu0
        %v2480 = vadd.f32 0.0, %v2479
        %v2481 = vpop.f32.mrb[0].mxu0
        %v2482 = vpop.f32.mrb[0].mxu0
        %v2483 = vadd.f32 0.0, %v2482
        %v2484 = vpop.f32.mrb[0].mxu0
        %2485 = vmatprep.mubr.bf16.mxu0 %v2288
        %2486 = vmatmul.mubr.bf16.gmra.mrb[0].mxu0 %v2272
        %v2487 = vpop.f32.mrb[0].mxu0
        %v2488 = vadd.f32 0.0, %v2487
        %v2489 = vpop.f32.mrb[0].mxu0
        %v2490 = vpop.f32.mrb[0].mxu0
        %v2491 = vadd.f32 0.0, %v2490
        %v2492 = vpop.f32.mrb[0].mxu0
        %2493 = vmatprep.mubr.bf16.mxu0 %v2289
        %2494 = vmatmul.mubr.bf16.gmra.mrb[0].mxu0 %v2273
        %v2495 = vpop.f32.mrb[0].mxu0
        %v2496 = vadd.f32 0.0, %v2495
        %v2497 = vpop.f32.mrb[0].mxu0
        %v2498 = vpop.f32.mrb[0].mxu0
        %v2499 = vadd.f32 0.0, %v2498
        %v2500 = vpop.f32.mrb[0].mxu0
        %2501 = vmatprep.mubr.bf16.mxu0 %v2290
        %2502 = vmatmul.mubr.bf16.gmra.mrb[0].mxu0 %v2274
        %v2503 = vpop.f32.mrb[0].mxu0
        %v2504 = vadd.f32 0.0, %v2503
        %v2505 = vpop.f32.mrb[0].mxu0
        %v2506 = vpop.f32.mrb[0].mxu0
        %v2507 = vadd.f32 0.0, %v2506
        %v2508 = vpop.f32.mrb[0].mxu0
        %2509 = vmatprep.mubr.bf16.mxu0 %v2291
        %2510 = vmatmul.mubr.bf16.gmra.mrb[0].mxu0 %v2275
        %v2511 = vpop.f32.mrb[0].mxu0
        %v2512 = vadd.f32 0.0, %v2511
        %v2513 = vpop.f32.mrb[0].mxu0
        %v2514 = vpop.f32.mrb[0].mxu0
        %v2515 = vadd.f32 0.0, %v2514
        %v2516 = vpop.f32.mrb[0].mxu0
        %2517 = vmatprep.mubr.bf16.mxu0 %v2292
        %2518 = vmatmul.mubr.bf16.gmra.mrb[0].mxu0 %v2276
        %v2519 = vpop.f32.mrb[0].mxu0
        %v2520 = vadd.f32 0.0, %v2519
        %v2521 = vpop.f32.mrb[0].mxu0
        %v2522 = vpop.f32.mrb[0].mxu0
        %v2523 = vadd.f32 0.0, %v2522
        %v2524 = vpop.f32.mrb[0].mxu0
        %2525 = vmatprep.mubr.bf16.mxu0 %v2293
        %2526 = vmatmul.mubr.bf16.gmra.mrb[0].mxu0 %v2277
        %v2527 = vpop.f32.mrb[0].mxu0
        %v2528 = vadd.f32 0.0, %v2527
        %v2529 = vpop.f32.mrb[0].mxu0
        %v2530 = vpop.f32.mrb[0].mxu0
        %v2531 = vadd.f32 0.0, %v2530
        %v2532 = vpop.f32.mrb[0].mxu0
        %2533 = vmatprep.mubr.bf16.mxu0 %v2294
        %2534 = vmatmul.mubr.bf16.gmra.mrb[0].mxu0 %v2278
        %v2535 = vpop.f32.mrb[0].mxu0
        %v2536 = vadd.f32 0.0, %v2535
        %v2537 = vpop.f32.mrb[0].mxu0
        %v2538 = vpop.f32.mrb[0].mxu0
        %v2539 = vadd.f32 0.0, %v2538
        %v2540 = vpop.f32.mrb[0].mxu0
        %2541 = vmatprep.mubr.bf16.mxu0 %v2295
        %2542 = vmatmul.mubr.bf16.gmra.mrb[0].mxu0 %v2279
        %v2543 = vpop.f32.mrb[0].mxu0
        %v2544 = vadd.f32 0.0, %v2543
        %v2545 = vpop.f32.mrb[0].mxu0
        %v2546 = vpop.f32.mrb[0].mxu0
        %v2547 = vadd.f32 0.0, %v2546
        %v2548 = vpop.f32.mrb[0].mxu0
        %2549 = vmatprep.mubr.bf16.mxu0 %v2296
        %2550 = vmatmul.mubr.bf16.gmra.mrb[0].mxu0 %v2280
        %v2551 = vpop.f32.mrb[0].mxu0
        %v2552 = vadd.f32 0.0, %v2551
        %v2553 = vpop.f32.mrb[0].mxu0
        %v2554 = vpop.f32.mrb[0].mxu0
        %v2555 = vadd.f32 0.0, %v2554
        %v2556 = vpop.f32.mrb[0].mxu0
        %2557 = vmatprep.mubr.bf16.mxu0 %v2297
        %2558 = vmatmul.mubr.bf16.gmra.mrb[0].mxu0 %v2281
        %v2559 = vpop.f32.mrb[0].mxu0
        %v2560 = vadd.f32 0.0, %v2559
        %v2561 = vpop.f32.mrb[0].mxu0
        %v2562 = vpop.f32.mrb[0].mxu0
        %v2563 = vadd.f32 0.0, %v2562
        %v2564 = vpop.f32.mrb[0].mxu0
        %2565 = vmatprep.mubr.bf16.mxu0 %v2298
        %2566 = vmatmul.mubr.bf16.gmra.mrb[0].mxu0 %v2282
        %v2567 = vpop.f32.mrb[0].mxu0
        %v2568 = vadd.f32 0.0, %v2567
        %v2569 = vpop.f32.mrb[0].mxu0
        %v2570 = vpop.f32.mrb[0].mxu0
        %v2571 = vadd.f32 0.0, %v2570
        %v2572 = vpop.f32.mrb[0].mxu0
        %2573 = vmatprep.mubr.bf16.mxu0 %v2299
        %2574 = vmatmul.mubr.bf16.gmra.mrb[0].mxu0 %v2283
        %v2575 = vpop.f32.mrb[0].mxu0
        %v2576 = vadd.f32 0.0, %v2575
        %v2577 = vpop.f32.mrb[0].mxu0
        %v2578 = vpop.f32.mrb[0].mxu0
        %v2579 = vadd.f32 0.0, %v2578
        %v2580 = vpop.f32.mrb[0].mxu0
        %2581 = vmatprep.mubr.bf16.mxu0 %v2300
        %2582 = vmatmul.mubr.bf16.gmra.mrb[0].mxu0 %v2284
        %v2583 = vpop.f32.mrb[0].mxu0
        %v2584 = vadd.f32 0.0, %v2583
        %v2585 = vpop.f32.mrb[0].mxu0
        %v2586 = vpop.f32.mrb[0].mxu0
        %v2587 = vadd.f32 0.0, %v2586
        %v2588 = vpop.f32.mrb[0].mxu0
        %2589 = vdwg.mxu0
        %v2590 = vadd.f32 %v2143, %v2464
        %v2591 = vadd.f32 %v2146, %v2467
        %v2592 = vadd.f32 %v2151, %v2472
        %v2593 = vadd.f32 %v2154, %v2475
        %v2594 = vadd.f32 %v2159, %v2480
        %v2595 = vadd.f32 %v2162, %v2483
        %v2596 = vadd.f32 %v2167, %v2488
        %v2597 = vadd.f32 %v2170, %v2491
        %v2598 = vadd.f32 %v2175, %v2496
        %v2599 = vadd.f32 %v2178, %v2499
        %v2600 = vadd.f32 %v2183, %v2504
        %v2601 = vadd.f32 %v2186, %v2507
        %v2602 = vadd.f32 %v2191, %v2512
        %v2603 = vadd.f32 %v2194, %v2515
        %v2604 = vadd.f32 %v2199, %v2520
        %v2605 = vadd.f32 %v2202, %v2523
        %v2606 = vadd.f32 %v2207, %v2528
        %v2607 = vadd.f32 %v2210, %v2531
        %v2608 = vadd.f32 %v2215, %v2536
        %v2609 = vadd.f32 %v2218, %v2539
        %v2610 = vadd.f32 %v2223, %v2544
        %v2611 = vadd.f32 %v2226, %v2547
        %v2612 = vadd.f32 %v2231, %v2552
        %v2613 = vadd.f32 %v2234, %v2555
        %v2614 = vadd.f32 %v2239, %v2560
        %v2615 = vadd.f32 %v2242, %v2563
        %v2616 = vadd.f32 %v2247, %v2568
        %v2617 = vadd.f32 %v2250, %v2571
        %v2618 = vadd.f32 %v2255, %v2576
        %v2619 = vadd.f32 %v2258, %v2579
        %v2620 = vadd.f32 %v2263, %v2584
        %v2621 = vadd.f32 %v2266, %v2587
        %s2622 = scalar_lea.vmem %s1, 128
        %v2623 = vld [vmem:[%s2622] sm:$0xf]
        %v2624 = vld [vmem:[%s2622 + $0x4] sm:$0xf]
        %v2625 = vld [vmem:[%s2622 + $0x8] sm:$0xf]
        %v2626 = vld [vmem:[%s2622 + $0xc] sm:$0xf]
        %v2627 = vld [vmem:[%s2622 + $0x10] sm:$0xf]
        %v2628 = vld [vmem:[%s2622 + $0x14] sm:$0xf]
        %v2629 = vld [vmem:[%s2622 + $0x18] sm:$0xf]
        %v2630 = vld [vmem:[%s2622 + $0x1c] sm:$0xf]
        %v2631 = vld [vmem:[%s2622 + $0x20] sm:$0xf]
        %v2632 = vld [vmem:[%s2622 + $0x24] sm:$0xf]
        %v2633 = vld [vmem:[%s2622 + $0x28] sm:$0xf]
        %v2634 = vld [vmem:[%s2622 + $0x2c] sm:$0xf]
        %v2635 = vld [vmem:[%s2622 + $0x30] sm:$0xf]
        %v2636 = vld [vmem:[%s2622 + $0x34] sm:$0xf]
        %v2637 = vld [vmem:[%s2622 + $0x38] sm:$0xf]
        %v2638 = vld [vmem:[%s2622 + $0x3c] sm:$0xf]
        %v2639 = vld [vmem:[%s2622 + $0x40] sm:$0xf]
        %v2640 = vld [vmem:[%s2622 + $0x44] sm:$0xf]
        %v2641 = vld [vmem:[%s2622 + $0x48] sm:$0xf]
        %v2642 = vld [vmem:[%s2622 + $0x4c] sm:$0xf]
        %v2643 = vld [vmem:[%s2622 + $0x50] sm:$0xf]
        %v2644 = vld [vmem:[%s2622 + $0x54] sm:$0xf]
        %v2645 = vld [vmem:[%s2622 + $0x58] sm:$0xf]
        %v2646 = vld [vmem:[%s2622 + $0x5c] sm:$0xf]
        %v2647 = vld [vmem:[%s2622 + $0x60] sm:$0xf]
        %v2648 = vld [vmem:[%s2622 + $0x64] sm:$0xf]
        %v2649 = vld [vmem:[%s2622 + $0x68] sm:$0xf]
        %v2650 = vld [vmem:[%s2622 + $0x6c] sm:$0xf]
        %v2651 = vld [vmem:[%s2622 + $0x70] sm:$0xf]
        %v2652 = vld [vmem:[%s2622 + $0x74] sm:$0xf]
        %v2653 = vld [vmem:[%s2622 + $0x78] sm:$0xf]
        %v2654 = vld [vmem:[%s2622 + $0x7c] sm:$0xf]
        %v2655 = vunpack.c.l.bf16 %v2623
        %v2656 = vunpack.c.l.bf16 %v2624
        %v2657 = vunpack.c.l.bf16 %v2625
        %v2658 = vunpack.c.l.bf16 %v2626
        %v2659 = vunpack.c.l.bf16 %v2627
        %v2660 = vunpack.c.l.bf16 %v2628
        %v2661 = vunpack.c.l.bf16 %v2629
        %v2662 = vunpack.c.l.bf16 %v2630
        %v2663 = vunpack.c.l.bf16 %v2631
        %v2664 = vunpack.c.l.bf16 %v2632
        %v2665 = vunpack.c.l.bf16 %v2633
        %v2666 = vunpack.c.l.bf16 %v2634
        %v2667 = vunpack.c.l.bf16 %v2635
        %v2668 = vunpack.c.l.bf16 %v2636
        %v2669 = vunpack.c.l.bf16 %v2637
        %v2670 = vunpack.c.l.bf16 %v2638
        %v2671 = vunpack.c.l.bf16 %v2639
        %v2672 = vunpack.c.l.bf16 %v2640
        %v2673 = vunpack.c.l.bf16 %v2641
        %v2674 = vunpack.c.l.bf16 %v2642
        %v2675 = vunpack.c.l.bf16 %v2643
        %v2676 = vunpack.c.l.bf16 %v2644
        %v2677 = vunpack.c.l.bf16 %v2645
        %v2678 = vunpack.c.l.bf16 %v2646
        %v2679 = vunpack.c.l.bf16 %v2647
        %v2680 = vunpack.c.l.bf16 %v2648
        %v2681 = vunpack.c.l.bf16 %v2649
        %v2682 = vunpack.c.l.bf16 %v2650
        %v2683 = vunpack.c.l.bf16 %v2651
        %v2684 = vunpack.c.l.bf16 %v2652
        %v2685 = vunpack.c.l.bf16 %v2653
        %v2686 = vunpack.c.l.bf16 %v2654
        %2688 = vset.pattern.permute.xlu0 0
        %2689 = vperm.xlu0 %2688, %v2655
        %v2690 = vpop.permute.xlu0 %2689
        %2693 = vset.pattern.permute.xlu0 0
        %2694 = vperm.xlu0 %2693, %v2656
        %v2695 = vpop.permute.xlu0 %2694
        %2698 = vset.pattern.permute.xlu0 0
        %2699 = vperm.xlu0 %2698, %v2657
        %v2700 = vpop.permute.xlu0 %2699
        %2703 = vset.pattern.permute.xlu0 0
        %2704 = vperm.xlu0 %2703, %v2658
        %v2705 = vpop.permute.xlu0 %2704
        %2708 = vset.pattern.permute.xlu0 0
        %2709 = vperm.xlu0 %2708, %v2659
        %v2710 = vpop.permute.xlu0 %2709
        %2713 = vset.pattern.permute.xlu0 0
        %2714 = vperm.xlu0 %2713, %v2660
        %v2715 = vpop.permute.xlu0 %2714
        %2718 = vset.pattern.permute.xlu0 0
        %2719 = vperm.xlu0 %2718, %v2661
        %v2720 = vpop.permute.xlu0 %2719
        %2723 = vset.pattern.permute.xlu0 0
        %2724 = vperm.xlu0 %2723, %v2662
        %v2725 = vpop.permute.xlu0 %2724
        %2728 = vset.pattern.permute.xlu0 0
        %2729 = vperm.xlu0 %2728, %v2663
        %v2730 = vpop.permute.xlu0 %2729
        %2733 = vset.pattern.permute.xlu0 0
        %2734 = vperm.xlu0 %2733, %v2664
        %v2735 = vpop.permute.xlu0 %2734
        %2738 = vset.pattern.permute.xlu0 0
        %2739 = vperm.xlu0 %2738, %v2665
        %v2740 = vpop.permute.xlu0 %2739
        %2743 = vset.pattern.permute.xlu0 0
        %2744 = vperm.xlu0 %2743, %v2666
        %v2745 = vpop.permute.xlu0 %2744
        %2748 = vset.pattern.permute.xlu0 0
        %2749 = vperm.xlu0 %2748, %v2667
        %v2750 = vpop.permute.xlu0 %2749
        %2753 = vset.pattern.permute.xlu0 0
        %2754 = vperm.xlu0 %2753, %v2668
        %v2755 = vpop.permute.xlu0 %2754
        %2758 = vset.pattern.permute.xlu0 0
        %2759 = vperm.xlu0 %2758, %v2669
        %v2760 = vpop.permute.xlu0 %2759
        %2763 = vset.pattern.permute.xlu0 0
        %2764 = vperm.xlu0 %2763, %v2670
        %v2765 = vpop.permute.xlu0 %2764
        %2768 = vset.pattern.permute.xlu0 0
        %2769 = vperm.xlu0 %2768, %v2671
        %v2770 = vpop.permute.xlu0 %2769
        %2773 = vset.pattern.permute.xlu0 0
        %2774 = vperm.xlu0 %2773, %v2672
        %v2775 = vpop.permute.xlu0 %2774
        %2778 = vset.pattern.permute.xlu0 0
        %2779 = vperm.xlu0 %2778, %v2673
        %v2780 = vpop.permute.xlu0 %2779
        %2783 = vset.pattern.permute.xlu0 0
        %2784 = vperm.xlu0 %2783, %v2674
        %v2785 = vpop.permute.xlu0 %2784
        %2788 = vset.pattern.permute.xlu0 0
        %2789 = vperm.xlu0 %2788, %v2675
        %v2790 = vpop.permute.xlu0 %2789
        %2793 = vset.pattern.permute.xlu0 0
        %2794 = vperm.xlu0 %2793, %v2676
        %v2795 = vpop.permute.xlu0 %2794
        %2798 = vset.pattern.permute.xlu0 0
        %2799 = vperm.xlu0 %2798, %v2677
        %v2800 = vpop.permute.xlu0 %2799
        %2803 = vset.pattern.permute.xlu0 0
        %2804 = vperm.xlu0 %2803, %v2678
        %v2805 = vpop.permute.xlu0 %2804
        %2808 = vset.pattern.permute.xlu0 0
        %2809 = vperm.xlu0 %2808, %v2679
        %v2810 = vpop.permute.xlu0 %2809
        %2813 = vset.pattern.permute.xlu0 0
        %2814 = vperm.xlu0 %2813, %v2680
        %v2815 = vpop.permute.xlu0 %2814
        %2818 = vset.pattern.permute.xlu0 0
        %2819 = vperm.xlu0 %2818, %v2681
        %v2820 = vpop.permute.xlu0 %2819
        %2823 = vset.pattern.permute.xlu0 0
        %2824 = vperm.xlu0 %2823, %v2682
        %v2825 = vpop.permute.xlu0 %2824
        %2828 = vset.pattern.permute.xlu0 0
        %2829 = vperm.xlu0 %2828, %v2683
        %v2830 = vpop.permute.xlu0 %2829
        %2833 = vset.pattern.permute.xlu0 0
        %2834 = vperm.xlu0 %2833, %v2684
        %v2835 = vpop.permute.xlu0 %2834
        %2838 = vset.pattern.permute.xlu0 0
        %2839 = vperm.xlu0 %2838, %v2685
        %v2840 = vpop.permute.xlu0 %2839
        %2843 = vset.pattern.permute.xlu0 0
        %2844 = vperm.xlu0 %2843, %v2686
        %v2845 = vpop.permute.xlu0 %2844
        %v2847 = vmul.f32 %v955, %v2690
        %v2848 = vmul.f32 %v956, %v2695
        %v2849 = vmul.f32 %v957, %v2700
        %v2850 = vmul.f32 %v958, %v2705
        %v2851 = vmul.f32 %v959, %v2710
        %v2852 = vmul.f32 %v960, %v2715
        %v2853 = vmul.f32 %v961, %v2720
        %v2854 = vmul.f32 %v962, %v2725
        %v2855 = vmul.f32 %v963, %v2730
        %v2856 = vmul.f32 %v964, %v2735
        %v2857 = vmul.f32 %v965, %v2740
        %v2858 = vmul.f32 %v966, %v2745
        %v2859 = vmul.f32 %v967, %v2750
        %v2860 = vmul.f32 %v968, %v2755
        %v2861 = vmul.f32 %v969, %v2760
        %v2862 = vmul.f32 %v970, %v2765
        %v2863 = vmul.f32 %v971, %v2770
        %v2864 = vmul.f32 %v972, %v2775
        %v2865 = vmul.f32 %v973, %v2780
        %v2866 = vmul.f32 %v974, %v2785
        %v2867 = vmul.f32 %v975, %v2790
        %v2868 = vmul.f32 %v976, %v2795
        %v2869 = vmul.f32 %v977, %v2800
        %v2870 = vmul.f32 %v978, %v2805
        %v2871 = vmul.f32 %v979, %v2810
        %v2872 = vmul.f32 %v980, %v2815
        %v2873 = vmul.f32 %v981, %v2820
        %v2874 = vmul.f32 %v982, %v2825
        %v2875 = vmul.f32 %v983, %v2830
        %v2876 = vmul.f32 %v984, %v2835
        %v2877 = vmul.f32 %v953, %v2840
        %v2878 = vmul.f32 %v954, %v2845
        %v2879 = vpack.c.bf16 %v2848, %v2847
        %v2880 = vpack.c.bf16 %v2850, %v2849
        %v2881 = vpack.c.bf16 %v2852, %v2851
        %v2882 = vpack.c.bf16 %v2854, %v2853
        %v2883 = vpack.c.bf16 %v2856, %v2855
        %v2884 = vpack.c.bf16 %v2858, %v2857
        %v2885 = vpack.c.bf16 %v2860, %v2859
        %v2886 = vpack.c.bf16 %v2862, %v2861
        %v2887 = vpack.c.bf16 %v2864, %v2863
        %v2888 = vpack.c.bf16 %v2866, %v2865
        %v2889 = vpack.c.bf16 %v2868, %v2867
        %v2890 = vpack.c.bf16 %v2870, %v2869
        %v2891 = vpack.c.bf16 %v2872, %v2871
        %v2892 = vpack.c.bf16 %v2874, %v2873
        %v2893 = vpack.c.bf16 %v2876, %v2875
        %v2894 = vpack.c.bf16 %v2878, %v2877
        %v2895 = vmul.f32 %v631, %v2690
        %v2896 = vmul.f32 %v632, %v2695
        %v2897 = vmul.f32 %v633, %v2700
        %v2898 = vmul.f32 %v634, %v2705
        %v2899 = vmul.f32 %v635, %v2710
        %v2900 = vmul.f32 %v636, %v2715
        %v2901 = vmul.f32 %v637, %v2720
        %v2902 = vmul.f32 %v638, %v2725
        %v2903 = vmul.f32 %v639, %v2730
        %v2904 = vmul.f32 %v640, %v2735
        %v2905 = vmul.f32 %v641, %v2740
        %v2906 = vmul.f32 %v642, %v2745
        %v2907 = vmul.f32 %v643, %v2750
        %v2908 = vmul.f32 %v644, %v2755
        %v2909 = vmul.f32 %v645, %v2760
        %v2910 = vmul.f32 %v646, %v2765
        %v2911 = vmul.f32 %v647, %v2770
        %v2912 = vmul.f32 %v648, %v2775
        %v2913 = vmul.f32 %v649, %v2780
        %v2914 = vmul.f32 %v650, %v2785
        %v2915 = vmul.f32 %v651, %v2790
        %v2916 = vmul.f32 %v652, %v2795
        %v2917 = vmul.f32 %v653, %v2800
        %v2918 = vmul.f32 %v654, %v2805
        %v2919 = vmul.f32 %v655, %v2810
        %v2920 = vmul.f32 %v656, %v2815
        %v2921 = vmul.f32 %v657, %v2820
        %v2922 = vmul.f32 %v658, %v2825
        %v2923 = vmul.f32 %v659, %v2830
        %v2924 = vmul.f32 %v660, %v2835
        %v2925 = vmul.f32 %v629, %v2840
        %v2926 = vmul.f32 %v630, %v2845
        %v2927 = vpack.c.bf16 %v2896, %v2895
        %v2928 = vpack.c.bf16 %v2898, %v2897
        %v2929 = vpack.c.bf16 %v2900, %v2899
        %v2930 = vpack.c.bf16 %v2902, %v2901
        %v2931 = vpack.c.bf16 %v2904, %v2903
        %v2932 = vpack.c.bf16 %v2906, %v2905
        %v2933 = vpack.c.bf16 %v2908, %v2907
        %v2934 = vpack.c.bf16 %v2910, %v2909
        %v2935 = vpack.c.bf16 %v2912, %v2911
        %v2936 = vpack.c.bf16 %v2914, %v2913
        %v2937 = vpack.c.bf16 %v2916, %v2915
        %v2938 = vpack.c.bf16 %v2918, %v2917
        %v2939 = vpack.c.bf16 %v2920, %v2919
        %v2940 = vpack.c.bf16 %v2922, %v2921
        %v2941 = vpack.c.bf16 %v2924, %v2923
        %v2942 = vpack.c.bf16 %v2926, %v2925
        %v2943 = vld [vmem:[#allocation5 + $0x180] sm:$0xf]
        %v2944 = vld [vmem:[#allocation5 + $0x184] sm:$0xf]
        %v2945 = vld [vmem:[#allocation5 + $0x188] sm:$0xf]
        %v2946 = vld [vmem:[#allocation5 + $0x18c] sm:$0xf]
        %v2947 = vld [vmem:[#allocation5 + $0x190] sm:$0xf]
        %v2948 = vld [vmem:[#allocation5 + $0x194] sm:$0xf]
        %v2949 = vld [vmem:[#allocation5 + $0x198] sm:$0xf]
        %v2950 = vld [vmem:[#allocation5 + $0x19c] sm:$0xf]
        %v2951 = vld [vmem:[#allocation5 + $0x1a0] sm:$0xf]
        %v2952 = vld [vmem:[#allocation5 + $0x1a4] sm:$0xf]
        %v2953 = vld [vmem:[#allocation5 + $0x1a8] sm:$0xf]
        %v2954 = vld [vmem:[#allocation5 + $0x1ac] sm:$0xf]
        %v2955 = vld [vmem:[#allocation5 + $0x1b0] sm:$0xf]
        %v2956 = vld [vmem:[#allocation5 + $0x1b4] sm:$0xf]
        %v2957 = vld [vmem:[#allocation5 + $0x1b8] sm:$0xf]
        %v2958 = vld [vmem:[#allocation5 + $0x1bc] sm:$0xf]
        %v2959 = vld [vmem:[#allocation5 + $0x1c0] sm:$0xf]
        %v2960 = vld [vmem:[#allocation5 + $0x1c4] sm:$0xf]
        %v2961 = vld [vmem:[#allocation5 + $0x1c8] sm:$0xf]
        %v2962 = vld [vmem:[#allocation5 + $0x1cc] sm:$0xf]
        %v2963 = vld [vmem:[#allocation5 + $0x1d0] sm:$0xf]
        %v2964 = vld [vmem:[#allocation5 + $0x1d4] sm:$0xf]
        %v2965 = vld [vmem:[#allocation5 + $0x1d8] sm:$0xf]
        %v2966 = vld [vmem:[#allocation5 + $0x1dc] sm:$0xf]
        %v2967 = vld [vmem:[#allocation5 + $0x1e0] sm:$0xf]
        %v2968 = vld [vmem:[#allocation5 + $0x1e4] sm:$0xf]
        %v2969 = vld [vmem:[#allocation5 + $0x1e8] sm:$0xf]
        %v2970 = vld [vmem:[#allocation5 + $0x1ec] sm:$0xf]
        %v2971 = vld [vmem:[#allocation5 + $0x1f0] sm:$0xf]
        %v2972 = vld [vmem:[#allocation5 + $0x1f4] sm:$0xf]
        %v2973 = vld [vmem:[#allocation5 + $0x1f8] sm:$0xf]
        %v2974 = vld [vmem:[#allocation5 + $0x1fc] sm:$0xf]
        %v3007 = vunpack.c.l.b16 %v2943
        %v3008 = vunpack.c.l.b16 %v2944
        %v3009 = vunpack.c.l.b16 %v2945
        %v3010 = vunpack.c.l.b16 %v2946
        %v3011 = vunpack.c.l.b16 %v2947
        %v3012 = vunpack.c.l.b16 %v2948
        %v3013 = vunpack.c.l.b16 %v2949
        %v3014 = vunpack.c.l.b16 %v2950
        %v3015 = vunpack.c.l.b16 %v2951
        %v3016 = vunpack.c.l.b16 %v2952
        %v3017 = vunpack.c.l.b16 %v2953
        %v3018 = vunpack.c.l.b16 %v2954
        %v3019 = vunpack.c.l.b16 %v2955
        %v3020 = vunpack.c.l.b16 %v2956
        %v3021 = vunpack.c.l.b16 %v2957
        %v3022 = vunpack.c.l.b16 %v2958
        %v3023 = vunpack.c.l.b16 %v2959
        %v3024 = vunpack.c.l.b16 %v2960
        %v3025 = vunpack.c.l.b16 %v2961
        %v3026 = vunpack.c.l.b16 %v2962
        %v3027 = vunpack.c.l.b16 %v2963
        %v3028 = vunpack.c.l.b16 %v2964
        %v3029 = vunpack.c.l.b16 %v2965
        %v3030 = vunpack.c.l.b16 %v2966
        %v3031 = vunpack.c.l.b16 %v2967
        %v3032 = vunpack.c.l.b16 %v2968
        %v3033 = vunpack.c.l.b16 %v2969
        %v3034 = vunpack.c.l.b16 %v2970
        %v3035 = vunpack.c.l.b16 %v2971
        %v3036 = vunpack.c.l.b16 %v2972
        %v3037 = vunpack.c.l.b16 %v2973
        %v3038 = vunpack.c.l.b16 %v2974
        %v3039 = vpack.c.b16 %v3008, %v3007
        %v3040 = vpack.c.b16 %v3010, %v3009
        %v3041 = vpack.c.b16 %v3012, %v3011
        %v3042 = vpack.c.b16 %v3014, %v3013
        %v3043 = vpack.c.b16 %v3016, %v3015
        %v3044 = vpack.c.b16 %v3018, %v3017
        %v3045 = vpack.c.b16 %v3020, %v3019
        %v3046 = vpack.c.b16 %v3022, %v3021
        %v3047 = vpack.c.b16 %v3024, %v3023
        %v3048 = vpack.c.b16 %v3026, %v3025
        %v3049 = vpack.c.b16 %v3028, %v3027
        %v3050 = vpack.c.b16 %v3030, %v3029
        %v3051 = vpack.c.b16 %v3032, %v3031
        %v3052 = vpack.c.b16 %v3034, %v3033
        %v3053 = vpack.c.b16 %v3036, %v3035
        %v3054 = vpack.c.b16 %v3038, %v3037
        %3071 = vmatprep.subr.bf16.mxu0 0
        %3072 = vmatpush1.bf16.msra.mxu0 %v3039
        %3073 = vmatprep.subr.bf16.mxu0 0
        %3074 = vmatpush1.bf16.msra.mxu0 %v3040
        %3075 = vmatprep.subr.bf16.mxu0 0
        %3076 = vmatpush1.bf16.msra.mxu0 %v3041
        %3077 = vmatprep.subr.bf16.mxu0 0
        %3078 = vmatpush1.bf16.msra.mxu0 %v3042
        %3079 = vmatprep.subr.bf16.mxu0 0
        %3080 = vmatpush1.bf16.msra.mxu0 %v3043
        %3081 = vmatprep.subr.bf16.mxu0 0
        %3082 = vmatpush1.bf16.msra.mxu0 %v3044
        %3083 = vmatprep.subr.bf16.mxu0 0
        %3084 = vmatpush1.bf16.msra.mxu0 %v3045
        %3085 = vmatprep.subr.bf16.mxu0 0
        %3086 = vmatpush1.bf16.msra.mxu0 %v3046
        %3087 = vmatprep.subr.bf16.mxu0 0
        %3088 = vmatpush1.bf16.msra.mxu0 %v3047
        %3089 = vmatprep.subr.bf16.mxu0 0
        %3090 = vmatpush1.bf16.msra.mxu0 %v3048
        %3091 = vmatprep.subr.bf16.mxu0 0
        %3092 = vmatpush1.bf16.msra.mxu0 %v3049
        %3093 = vmatprep.subr.bf16.mxu0 0
        %3094 = vmatpush1.bf16.msra.mxu0 %v3050
        %3095 = vmatprep.subr.bf16.mxu0 0
        %3096 = vmatpush1.bf16.msra.mxu0 %v3051
        %3097 = vmatprep.subr.bf16.mxu0 0
        %3098 = vmatpush1.bf16.msra.mxu0 %v3052
        %3099 = vmatprep.subr.bf16.mxu0 0
        %3100 = vmatpush1.bf16.msra.mxu0 %v3053
        %3101 = vmatprep.subr.bf16.mxu0 0
        %3102 = vmatpush1.bf16.msra.mxu0 %v3054
        %3103 = vmatprep.mubr.bf16.mxu0 %v2927
        %3104 = vmatmul.mubr.bf16.gmra.mrb[0].mxu0 %v2879
        %v3105 = vpop.f32.mrb[0].mxu0
        %v3106 = vadd.f32 0.0, %v3105
        %v3107 = vpop.f32.mrb[0].mxu0
        %v3108 = vpop.f32.mrb[0].mxu0
        %v3109 = vadd.f32 0.0, %v3108
        %v3110 = vpop.f32.mrb[0].mxu0
        %3111 = vmatprep.mubr.bf16.mxu0 %v2928
        %3112 = vmatmul.mubr.bf16.gmra.mrb[0].mxu0 %v2880
        %v3113 = vpop.f32.mrb[0].mxu0
        %v3114 = vadd.f32 0.0, %v3113
        %v3115 = vpop.f32.mrb[0].mxu0
        %v3116 = vpop.f32.mrb[0].mxu0
        %v3117 = vadd.f32 0.0, %v3116
        %v3118 = vpop.f32.mrb[0].mxu0
        %3119 = vmatprep.mubr.bf16.mxu0 %v2929
        %3120 = vmatmul.mubr.bf16.gmra.mrb[0].mxu0 %v2881
        %v3121 = vpop.f32.mrb[0].mxu0
        %v3122 = vadd.f32 0.0, %v3121
        %v3123 = vpop.f32.mrb[0].mxu0
        %v3124 = vpop.f32.mrb[0].mxu0
        %v3125 = vadd.f32 0.0, %v3124
        %v3126 = vpop.f32.mrb[0].mxu0
        %3127 = vmatprep.mubr.bf16.mxu0 %v2930
        %3128 = vmatmul.mubr.bf16.gmra.mrb[0].mxu0 %v2882
        %v3129 = vpop.f32.mrb[0].mxu0
        %v3130 = vadd.f32 0.0, %v3129
        %v3131 = vpop.f32.mrb[0].mxu0
        %v3132 = vpop.f32.mrb[0].mxu0
        %v3133 = vadd.f32 0.0, %v3132
        %v3134 = vpop.f32.mrb[0].mxu0
        %3135 = vmatprep.mubr.bf16.mxu0 %v2931
        %3136 = vmatmul.mubr.bf16.gmra.mrb[0].mxu0 %v2883
        %v3137 = vpop.f32.mrb[0].mxu0
        %v3138 = vadd.f32 0.0, %v3137
        %v3139 = vpop.f32.mrb[0].mxu0
        %v3140 = vpop.f32.mrb[0].mxu0
        %v3141 = vadd.f32 0.0, %v3140
        %v3142 = vpop.f32.mrb[0].mxu0
        %3143 = vmatprep.mubr.bf16.mxu0 %v2932
        %3144 = vmatmul.mubr.bf16.gmra.mrb[0].mxu0 %v2884
        %v3145 = vpop.f32.mrb[0].mxu0
        %v3146 = vadd.f32 0.0, %v3145
        %v3147 = vpop.f32.mrb[0].mxu0
        %v3148 = vpop.f32.mrb[0].mxu0
        %v3149 = vadd.f32 0.0, %v3148
        %v3150 = vpop.f32.mrb[0].mxu0
        %3151 = vmatprep.mubr.bf16.mxu0 %v2933
        %3152 = vmatmul.mubr.bf16.gmra.mrb[0].mxu0 %v2885
        %v3153 = vpop.f32.mrb[0].mxu0
        %v3154 = vadd.f32 0.0, %v3153
        %v3155 = vpop.f32.mrb[0].mxu0
        %v3156 = vpop.f32.mrb[0].mxu0
        %v3157 = vadd.f32 0.0, %v3156
        %v3158 = vpop.f32.mrb[0].mxu0
        %3159 = vmatprep.mubr.bf16.mxu0 %v2934
        %3160 = vmatmul.mubr.bf16.gmra.mrb[0].mxu0 %v2886
        %v3161 = vpop.f32.mrb[0].mxu0
        %v3162 = vadd.f32 0.0, %v3161
        %v3163 = vpop.f32.mrb[0].mxu0
        %v3164 = vpop.f32.mrb[0].mxu0
        %v3165 = vadd.f32 0.0, %v3164
        %v3166 = vpop.f32.mrb[0].mxu0
        %3167 = vmatprep.mubr.bf16.mxu0 %v2935
        %3168 = vmatmul.mubr.bf16.gmra.mrb[0].mxu0 %v2887
        %v3169 = vpop.f32.mrb[0].mxu0
        %v3170 = vadd.f32 0.0, %v3169
        %v3171 = vpop.f32.mrb[0].mxu0
        %v3172 = vpop.f32.mrb[0].mxu0
        %v3173 = vadd.f32 0.0, %v3172
        %v3174 = vpop.f32.mrb[0].mxu0
        %3175 = vmatprep.mubr.bf16.mxu0 %v2936
        %3176 = vmatmul.mubr.bf16.gmra.mrb[0].mxu0 %v2888
        %v3177 = vpop.f32.mrb[0].mxu0
        %v3178 = vadd.f32 0.0, %v3177
        %v3179 = vpop.f32.mrb[0].mxu0
        %v3180 = vpop.f32.mrb[0].mxu0
        %v3181 = vadd.f32 0.0, %v3180
        %v3182 = vpop.f32.mrb[0].mxu0
        %3183 = vmatprep.mubr.bf16.mxu0 %v2937
        %3184 = vmatmul.mubr.bf16.gmra.mrb[0].mxu0 %v2889
        %v3185 = vpop.f32.mrb[0].mxu0
        %v3186 = vadd.f32 0.0, %v3185
        %v3187 = vpop.f32.mrb[0].mxu0
        %v3188 = vpop.f32.mrb[0].mxu0
        %v3189 = vadd.f32 0.0, %v3188
        %v3190 = vpop.f32.mrb[0].mxu0
        %3191 = vmatprep.mubr.bf16.mxu0 %v2938
        %3192 = vmatmul.mubr.bf16.gmra.mrb[0].mxu0 %v2890
        %v3193 = vpop.f32.mrb[0].mxu0
        %v3194 = vadd.f32 0.0, %v3193
        %v3195 = vpop.f32.mrb[0].mxu0
        %v3196 = vpop.f32.mrb[0].mxu0
        %v3197 = vadd.f32 0.0, %v3196
        %v3198 = vpop.f32.mrb[0].mxu0
        %3199 = vmatprep.mubr.bf16.mxu0 %v2939
        %3200 = vmatmul.mubr.bf16.gmra.mrb[0].mxu0 %v2891
        %v3201 = vpop.f32.mrb[0].mxu0
        %v3202 = vadd.f32 0.0, %v3201
        %v3203 = vpop.f32.mrb[0].mxu0
        %v3204 = vpop.f32.mrb[0].mxu0
        %v3205 = vadd.f32 0.0, %v3204
        %v3206 = vpop.f32.mrb[0].mxu0
        %3207 = vmatprep.mubr.bf16.mxu0 %v2940
        %3208 = vmatmul.mubr.bf16.gmra.mrb[0].mxu0 %v2892
        %v3209 = vpop.f32.mrb[0].mxu0
        %v3210 = vadd.f32 0.0, %v3209
        %v3211 = vpop.f32.mrb[0].mxu0
        %v3212 = vpop.f32.mrb[0].mxu0
        %v3213 = vadd.f32 0.0, %v3212
        %v3214 = vpop.f32.mrb[0].mxu0
        %3215 = vmatprep.mubr.bf16.mxu0 %v2941
        %3216 = vmatmul.mubr.bf16.gmra.mrb[0].mxu0 %v2893
        %v3217 = vpop.f32.mrb[0].mxu0
        %v3218 = vadd.f32 0.0, %v3217
        %v3219 = vpop.f32.mrb[0].mxu0
        %v3220 = vpop.f32.mrb[0].mxu0
        %v3221 = vadd.f32 0.0, %v3220
        %v3222 = vpop.f32.mrb[0].mxu0
        %3223 = vmatprep.mubr.bf16.mxu0 %v2942
        %3224 = vmatmul.mubr.bf16.gmra.mrb[0].mxu0 %v2894
        %v3225 = vpop.f32.mrb[0].mxu0
        %v3226 = vadd.f32 0.0, %v3225
        %v3227 = vpop.f32.mrb[0].mxu0
        %v3228 = vpop.f32.mrb[0].mxu0
        %v3229 = vadd.f32 0.0, %v3228
        %v3230 = vpop.f32.mrb[0].mxu0
        %3231 = vdwg.mxu0
        %v3232 = vadd.f32 %v2590, %v3106
        %v3233 = vadd.f32 %v2591, %v3109
        %v3234 = vadd.f32 %v2592, %v3114
        %v3235 = vadd.f32 %v2593, %v3117
        %v3236 = vadd.f32 %v2594, %v3122
        %v3237 = vadd.f32 %v2595, %v3125
        %v3238 = vadd.f32 %v2596, %v3130
        %v3239 = vadd.f32 %v2597, %v3133
        %v3240 = vadd.f32 %v2598, %v3138
        %v3241 = vadd.f32 %v2599, %v3141
        %v3242 = vadd.f32 %v2600, %v3146
        %v3243 = vadd.f32 %v2601, %v3149
        %v3244 = vadd.f32 %v2602, %v3154
        %v3245 = vadd.f32 %v2603, %v3157
        %v3246 = vadd.f32 %v2604, %v3162
        %v3247 = vadd.f32 %v2605, %v3165
        %v3248 = vadd.f32 %v2606, %v3170
        %v3249 = vadd.f32 %v2607, %v3173
        %v3250 = vadd.f32 %v2608, %v3178
        %v3251 = vadd.f32 %v2609, %v3181
        %v3252 = vadd.f32 %v2610, %v3186
        %v3253 = vadd.f32 %v2611, %v3189
        %v3254 = vadd.f32 %v2612, %v3194
        %v3255 = vadd.f32 %v2613, %v3197
        %v3256 = vadd.f32 %v2614, %v3202
        %v3257 = vadd.f32 %v2615, %v3205
        %v3258 = vadd.f32 %v2616, %v3210
        %v3259 = vadd.f32 %v2617, %v3213
        %v3260 = vadd.f32 %v2618, %v3218
        %v3261 = vadd.f32 %v2619, %v3221
        %v3262 = vadd.f32 %v2620, %v3226
        %v3263 = vadd.f32 %v2621, %v3229
        %v3264 = vmul.f32 %v1277, %v2690
        %v3265 = vmul.f32 %v1278, %v2695
        %v3266 = vmul.f32 %v1279, %v2700
        %v3267 = vmul.f32 %v1280, %v2705
        %v3268 = vmul.f32 %v1281, %v2710
        %v3269 = vmul.f32 %v1282, %v2715
        %v3270 = vmul.f32 %v1283, %v2720
        %v3271 = vmul.f32 %v1284, %v2725
        %v3272 = vmul.f32 %v1285, %v2730
        %v3273 = vmul.f32 %v1286, %v2735
        %v3274 = vmul.f32 %v1287, %v2740
        %v3275 = vmul.f32 %v1288, %v2745
        %v3276 = vmul.f32 %v1289, %v2750
        %v3277 = vmul.f32 %v1290, %v2755
        %v3278 = vmul.f32 %v1291, %v2760
        %v3279 = vmul.f32 %v1292, %v2765
        %v3280 = vmul.f32 %v1293, %v2770
        %v3281 = vmul.f32 %v1294, %v2775
        %v3282 = vmul.f32 %v1295, %v2780
        %v3283 = vmul.f32 %v1296, %v2785
        %v3284 = vmul.f32 %v1297, %v2790
        %v3285 = vmul.f32 %v1298, %v2795
        %v3286 = vmul.f32 %v1299, %v2800
        %v3287 = vmul.f32 %v1300, %v2805
        %v3288 = vmul.f32 %v1301, %v2810
        %v3289 = vmul.f32 %v1302, %v2815
        %v3290 = vmul.f32 %v1303, %v2820
        %v3291 = vmul.f32 %v1304, %v2825
        %v3292 = vmul.f32 %v1305, %v2830
        %v3293 = vmul.f32 %v1306, %v2835
        %v3294 = vmul.f32 %v1275, %v2840
        %v3295 = vmul.f32 %v1276, %v2845
        %v3296 = vpack.c.bf16 %v3265, %v3264
        %v3297 = vpack.c.bf16 %v3267, %v3266
        %v3298 = vpack.c.bf16 %v3269, %v3268
        %v3299 = vpack.c.bf16 %v3271, %v3270
        %v3300 = vpack.c.bf16 %v3273, %v3272
        %v3301 = vpack.c.bf16 %v3275, %v3274
        %v3302 = vpack.c.bf16 %v3277, %v3276
        %v3303 = vpack.c.bf16 %v3279, %v3278
        %v3304 = vpack.c.bf16 %v3281, %v3280
        %v3305 = vpack.c.bf16 %v3283, %v3282
        %v3306 = vpack.c.bf16 %v3285, %v3284
        %v3307 = vpack.c.bf16 %v3287, %v3286
        %v3308 = vpack.c.bf16 %v3289, %v3288
        %v3309 = vpack.c.bf16 %v3291, %v3290
        %v3310 = vpack.c.bf16 %v3293, %v3292
        %v3311 = vpack.c.bf16 %v3295, %v3294
        %v3312 = vld [vmem:[#allocation5 + $0x200] sm:$0xf]
        %v3313 = vld [vmem:[#allocation5 + $0x204] sm:$0xf]
        %v3314 = vld [vmem:[#allocation5 + $0x208] sm:$0xf]
        %v3315 = vld [vmem:[#allocation5 + $0x20c] sm:$0xf]
        %v3316 = vld [vmem:[#allocation5 + $0x210] sm:$0xf]
        %v3317 = vld [vmem:[#allocation5 + $0x214] sm:$0xf]
        %v3318 = vld [vmem:[#allocation5 + $0x218] sm:$0xf]
        %v3319 = vld [vmem:[#allocation5 + $0x21c] sm:$0xf]
        %v3320 = vld [vmem:[#allocation5 + $0x220] sm:$0xf]
        %v3321 = vld [vmem:[#allocation5 + $0x224] sm:$0xf]
        %v3322 = vld [vmem:[#allocation5 + $0x228] sm:$0xf]
        %v3323 = vld [vmem:[#allocation5 + $0x22c] sm:$0xf]
        %v3324 = vld [vmem:[#allocation5 + $0x230] sm:$0xf]
        %v3325 = vld [vmem:[#allocation5 + $0x234] sm:$0xf]
        %v3326 = vld [vmem:[#allocation5 + $0x238] sm:$0xf]
        %v3327 = vld [vmem:[#allocation5 + $0x23c] sm:$0xf]
        %v3344 = vunpack.c.l.b16 %v3312
        %v3345 = vunpack.c.l.b16 %v3313
        %v3346 = vunpack.c.l.b16 %v3314
        %v3347 = vunpack.c.l.b16 %v3315
        %v3348 = vunpack.c.l.b16 %v3316
        %v3349 = vunpack.c.l.b16 %v3317
        %v3350 = vunpack.c.l.b16 %v3318
        %v3351 = vunpack.c.l.b16 %v3319
        %v3352 = vunpack.c.l.b16 %v3320
        %v3353 = vunpack.c.l.b16 %v3321
        %v3354 = vunpack.c.l.b16 %v3322
        %v3355 = vunpack.c.l.b16 %v3323
        %v3356 = vunpack.c.l.b16 %v3324
        %v3357 = vunpack.c.l.b16 %v3325
        %v3358 = vunpack.c.l.b16 %v3326
        %v3359 = vunpack.c.l.b16 %v3327
        %v3360 = vpack.c.b16 %v3345, %v3344
        %v3361 = vpack.c.b16 %v3347, %v3346
        %v3362 = vpack.c.b16 %v3349, %v3348
        %v3363 = vpack.c.b16 %v3351, %v3350
        %v3364 = vpack.c.b16 %v3353, %v3352
        %v3365 = vpack.c.b16 %v3355, %v3354
        %v3366 = vpack.c.b16 %v3357, %v3356
        %v3367 = vpack.c.b16 %v3359, %v3358
        %3376 = vmatprep.subr.bf16.mxu0 0
        %3377 = vmatpush1.bf16.msra.mxu0 %v3360
        %3378 = vmatprep.subr.bf16.mxu0 0
        %3379 = vmatpush1.bf16.msra.mxu0 %v3361
        %3380 = vmatprep.subr.bf16.mxu0 0
        %3381 = vmatpush1.bf16.msra.mxu0 %v3362
        %3382 = vmatprep.subr.bf16.mxu0 0
        %3383 = vmatpush1.bf16.msra.mxu0 %v3363
        %3384 = vmatprep.subr.bf16.mxu0 0
        %3385 = vmatpush1.bf16.msra.mxu0 %v3364
        %3386 = vmatprep.subr.bf16.mxu0 0
        %3387 = vmatpush1.bf16.msra.mxu0 %v3365
        %3388 = vmatprep.subr.bf16.mxu0 0
        %3389 = vmatpush1.bf16.msra.mxu0 %v3366
        %3390 = vmatprep.subr.bf16.mxu0 0
        %3391 = vmatpush1.bf16.msra.mxu0 %v3367
        %3392 = vmatprep.subr.bf16.mxu0 0
        %3393 = vmatpush1.bf16.msra.mxu0 0
        %3394 = vmatprep.subr.bf16.mxu0 0
        %3395 = vmatpush1.bf16.msra.mxu0 0
        %3396 = vmatprep.subr.bf16.mxu0 0
        %3397 = vmatpush1.bf16.msra.mxu0 0
        %3398 = vmatprep.subr.bf16.mxu0 0
        %3399 = vmatpush1.bf16.msra.mxu0 0
        %3400 = vmatprep.subr.bf16.mxu0 0
        %3401 = vmatpush1.bf16.msra.mxu0 0
        %3402 = vmatprep.subr.bf16.mxu0 0
        %3403 = vmatpush1.bf16.msra.mxu0 0
        %3404 = vmatprep.subr.bf16.mxu0 0
        %3405 = vmatpush1.bf16.msra.mxu0 0
        %3406 = vmatprep.subr.bf16.mxu0 0
        %3407 = vmatpush1.bf16.msra.mxu0 0
        %3408 = vmatprep.mubr.bf16.mxu0 0
        %3409 = vmatmul.mubr.bf16.gmra.mrb[0].mxu0 %v3296
        %v3410 = vpop.f32.mrb[0].mxu0
        %v3411 = vadd.f32 0.0, %v3410
        %v3412 = vpop.f32.mrb[0].mxu0
        %v3413 = vpop.f32.mrb[0].mxu0
        %v3414 = vadd.f32 0.0, %v3413
        %v3415 = vpop.f32.mrb[0].mxu0
        %3416 = vmatprep.mubr.bf16.mxu0 0
        %3417 = vmatmul.mubr.bf16.gmra.mrb[0].mxu0 %v3297
        %v3418 = vpop.f32.mrb[0].mxu0
        %v3419 = vadd.f32 0.0, %v3418
        %v3420 = vpop.f32.mrb[0].mxu0
        %v3421 = vpop.f32.mrb[0].mxu0
        %v3422 = vadd.f32 0.0, %v3421
        %v3423 = vpop.f32.mrb[0].mxu0
        %3424 = vmatprep.mubr.bf16.mxu0 0
        %3425 = vmatmul.mubr.bf16.gmra.mrb[0].mxu0 %v3298
        %v3426 = vpop.f32.mrb[0].mxu0
        %v3427 = vadd.f32 0.0, %v3426
        %v3428 = vpop.f32.mrb[0].mxu0
        %v3429 = vpop.f32.mrb[0].mxu0
        %v3430 = vadd.f32 0.0, %v3429
        %v3431 = vpop.f32.mrb[0].mxu0
        %3432 = vmatprep.mubr.bf16.mxu0 0
        %3433 = vmatmul.mubr.bf16.gmra.mrb[0].mxu0 %v3299
        %v3434 = vpop.f32.mrb[0].mxu0
        %v3435 = vadd.f32 0.0, %v3434
        %v3436 = vpop.f32.mrb[0].mxu0
        %v3437 = vpop.f32.mrb[0].mxu0
        %v3438 = vadd.f32 0.0, %v3437
        %v3439 = vpop.f32.mrb[0].mxu0
        %3440 = vmatprep.mubr.bf16.mxu0 0
        %3441 = vmatmul.mubr.bf16.gmra.mrb[0].mxu0 %v3300
        %v3442 = vpop.f32.mrb[0].mxu0
        %v3443 = vadd.f32 0.0, %v3442
        %v3444 = vpop.f32.mrb[0].mxu0
        %v3445 = vpop.f32.mrb[0].mxu0
        %v3446 = vadd.f32 0.0, %v3445
        %v3447 = vpop.f32.mrb[0].mxu0
        %3448 = vmatprep.mubr.bf16.mxu0 0
        %3449 = vmatmul.mubr.bf16.gmra.mrb[0].mxu0 %v3301
        %v3450 = vpop.f32.mrb[0].mxu0
        %v3451 = vadd.f32 0.0, %v3450
        %v3452 = vpop.f32.mrb[0].mxu0
        %v3453 = vpop.f32.mrb[0].mxu0
        %v3454 = vadd.f32 0.0, %v3453
        %v3455 = vpop.f32.mrb[0].mxu0
        %3456 = vmatprep.mubr.bf16.mxu0 0
        %3457 = vmatmul.mubr.bf16.gmra.mrb[0].mxu0 %v3302
        %v3458 = vpop.f32.mrb[0].mxu0
        %v3459 = vadd.f32 0.0, %v3458
        %v3460 = vpop.f32.mrb[0].mxu0
        %v3461 = vpop.f32.mrb[0].mxu0
        %v3462 = vadd.f32 0.0, %v3461
        %v3463 = vpop.f32.mrb[0].mxu0
        %3464 = vmatprep.mubr.bf16.mxu0 0
        %3465 = vmatmul.mubr.bf16.gmra.mrb[0].mxu0 %v3303
        %v3466 = vpop.f32.mrb[0].mxu0
        %v3467 = vadd.f32 0.0, %v3466
        %v3468 = vpop.f32.mrb[0].mxu0
        %v3469 = vpop.f32.mrb[0].mxu0
        %v3470 = vadd.f32 0.0, %v3469
        %v3471 = vpop.f32.mrb[0].mxu0
        %3472 = vmatprep.mubr.bf16.mxu0 0
        %3473 = vmatmul.mubr.bf16.gmra.mrb[0].mxu0 %v3304
        %v3474 = vpop.f32.mrb[0].mxu0
        %v3475 = vadd.f32 0.0, %v3474
        %v3476 = vpop.f32.mrb[0].mxu0
        %v3477 = vpop.f32.mrb[0].mxu0
        %v3478 = vadd.f32 0.0, %v3477
        %v3479 = vpop.f32.mrb[0].mxu0
        %3480 = vmatprep.mubr.bf16.mxu0 0
        %3481 = vmatmul.mubr.bf16.gmra.mrb[0].mxu0 %v3305
        %v3482 = vpop.f32.mrb[0].mxu0
        %v3483 = vadd.f32 0.0, %v3482
        %v3484 = vpop.f32.mrb[0].mxu0
        %v3485 = vpop.f32.mrb[0].mxu0
        %v3486 = vadd.f32 0.0, %v3485
        %v3487 = vpop.f32.mrb[0].mxu0
        %3488 = vmatprep.mubr.bf16.mxu0 0
        %3489 = vmatmul.mubr.bf16.gmra.mrb[0].mxu0 %v3306
        %v3490 = vpop.f32.mrb[0].mxu0
        %v3491 = vadd.f32 0.0, %v3490
        %v3492 = vpop.f32.mrb[0].mxu0
        %v3493 = vpop.f32.mrb[0].mxu0
        %v3494 = vadd.f32 0.0, %v3493
        %v3495 = vpop.f32.mrb[0].mxu0
        %3496 = vmatprep.mubr.bf16.mxu0 0
        %3497 = vmatmul.mubr.bf16.gmra.mrb[0].mxu0 %v3307
        %v3498 = vpop.f32.mrb[0].mxu0
        %v3499 = vadd.f32 0.0, %v3498
        %v3500 = vpop.f32.mrb[0].mxu0
        %v3501 = vpop.f32.mrb[0].mxu0
        %v3502 = vadd.f32 0.0, %v3501
        %v3503 = vpop.f32.mrb[0].mxu0
        %3504 = vmatprep.mubr.bf16.mxu0 0
        %3505 = vmatmul.mubr.bf16.gmra.mrb[0].mxu0 %v3308
        %v3506 = vpop.f32.mrb[0].mxu0
        %v3507 = vadd.f32 0.0, %v3506
        %v3508 = vpop.f32.mrb[0].mxu0
        %v3509 = vpop.f32.mrb[0].mxu0
        %v3510 = vadd.f32 0.0, %v3509
        %v3511 = vpop.f32.mrb[0].mxu0
        %3512 = vmatprep.mubr.bf16.mxu0 0
        %3513 = vmatmul.mubr.bf16.gmra.mrb[0].mxu0 %v3309
        %v3514 = vpop.f32.mrb[0].mxu0
        %v3515 = vadd.f32 0.0, %v3514
        %v3516 = vpop.f32.mrb[0].mxu0
        %v3517 = vpop.f32.mrb[0].mxu0
        %v3518 = vadd.f32 0.0, %v3517
        %v3519 = vpop.f32.mrb[0].mxu0
        %3520 = vmatprep.mubr.bf16.mxu0 0
        %3521 = vmatmul.mubr.bf16.gmra.mrb[0].mxu0 %v3310
        %v3522 = vpop.f32.mrb[0].mxu0
        %v3523 = vadd.f32 0.0, %v3522
        %v3524 = vpop.f32.mrb[0].mxu0
        %v3525 = vpop.f32.mrb[0].mxu0
        %v3526 = vadd.f32 0.0, %v3525
        %v3527 = vpop.f32.mrb[0].mxu0
        %3528 = vmatprep.mubr.bf16.mxu0 0
        %3529 = vmatmul.mubr.bf16.gmra.mrb[0].mxu0 %v3311
        %v3530 = vpop.f32.mrb[0].mxu0
        %v3531 = vadd.f32 0.0, %v3530
        %v3532 = vpop.f32.mrb[0].mxu0
        %v3533 = vpop.f32.mrb[0].mxu0
        %v3534 = vadd.f32 0.0, %v3533
        %v3535 = vpop.f32.mrb[0].mxu0
        %3536 = vdwg.mxu0
        %v3537 = vadd.f32 %v3232, %v3411
        %v3538 = vadd.f32 %v3233, %v3414
        %v3539 = vadd.f32 %v3234, %v3419
        %v3540 = vadd.f32 %v3235, %v3422
        %v3541 = vadd.f32 %v3236, %v3427
        %v3542 = vadd.f32 %v3237, %v3430
        %v3543 = vadd.f32 %v3238, %v3435
        %v3544 = vadd.f32 %v3239, %v3438
        %v3545 = vadd.f32 %v3240, %v3443
        %v3546 = vadd.f32 %v3241, %v3446
        %v3547 = vadd.f32 %v3242, %v3451
        %v3548 = vadd.f32 %v3243, %v3454
        %v3549 = vadd.f32 %v3244, %v3459
        %v3550 = vadd.f32 %v3245, %v3462
        %v3551 = vadd.f32 %v3246, %v3467
        %v3552 = vadd.f32 %v3247, %v3470
        %v3553 = vadd.f32 %v3248, %v3475
        %v3554 = vadd.f32 %v3249, %v3478
        %v3555 = vadd.f32 %v3250, %v3483
        %v3556 = vadd.f32 %v3251, %v3486
        %v3557 = vadd.f32 %v3252, %v3491
        %v3558 = vadd.f32 %v3253, %v3494
        %v3559 = vadd.f32 %v3254, %v3499
        %v3560 = vadd.f32 %v3255, %v3502
        %v3561 = vadd.f32 %v3256, %v3507
        %v3562 = vadd.f32 %v3257, %v3510
        %v3563 = vadd.f32 %v3258, %v3515
        %v3564 = vadd.f32 %v3259, %v3518
        %v3565 = vadd.f32 %v3260, %v3523
        %v3566 = vadd.f32 %v3261, %v3526
        %v3567 = vadd.f32 %v3262, %v3531
        %v3568 = vadd.f32 %v3263, %v3534
        %v3569 = vld [vmem:[%s5] sm:$0x1]
        %v3571 = vlaneseq
        %v3572 = vshrl.u32 %v3571, 7
        %v3573 = vsub.s32 0, %v3572
        %v3574 = vrot.slane %v3569, %v3573
        %v3576 = vadd.f32 %v3537, %v3574
        %v3577 = vadd.f32 %v3538, %v3574
        %v3578 = vadd.f32 %v3539, %v3574
        %v3579 = vadd.f32 %v3540, %v3574
        %v3580 = vadd.f32 %v3541, %v3574
        %v3581 = vadd.f32 %v3542, %v3574
        %v3582 = vadd.f32 %v3543, %v3574
        %v3583 = vadd.f32 %v3544, %v3574
        %v3584 = vadd.f32 %v3545, %v3574
        %v3585 = vadd.f32 %v3546, %v3574
        %v3586 = vadd.f32 %v3547, %v3574
        %v3587 = vadd.f32 %v3548, %v3574
        %v3588 = vadd.f32 %v3549, %v3574
        %v3589 = vadd.f32 %v3550, %v3574
        %v3590 = vadd.f32 %v3551, %v3574
        %v3591 = vadd.f32 %v3552, %v3574
        %v3592 = vadd.f32 %v3553, %v3574
        %v3593 = vadd.f32 %v3554, %v3574
        %v3594 = vadd.f32 %v3555, %v3574
        %v3595 = vadd.f32 %v3556, %v3574
        %v3596 = vadd.f32 %v3557, %v3574
        %v3597 = vadd.f32 %v3558, %v3574
        %v3598 = vadd.f32 %v3559, %v3574
        %v3599 = vadd.f32 %v3560, %v3574
        %v3600 = vadd.f32 %v3561, %v3574
        %v3601 = vadd.f32 %v3562, %v3574
        %v3602 = vadd.f32 %v3563, %v3574
        %v3603 = vadd.f32 %v3564, %v3574
        %v3604 = vadd.f32 %v3565, %v3574
        %v3605 = vadd.f32 %v3566, %v3574
        %v3606 = vadd.f32 %v3567, %v3574
        %v3607 = vadd.f32 %v3568, %v3574
        %v3608 = vmax.f32 %v3576, 0.0
        %v3609 = vmax.f32 %v3577, 0.0
        %v3610 = vmax.f32 %v3578, 0.0
        %v3611 = vmax.f32 %v3579, 0.0
        %v3612 = vmax.f32 %v3580, 0.0
        %v3613 = vmax.f32 %v3581, 0.0
        %v3614 = vmax.f32 %v3582, 0.0
        %v3615 = vmax.f32 %v3583, 0.0
        %v3616 = vmax.f32 %v3584, 0.0
        %v3617 = vmax.f32 %v3585, 0.0
        %v3618 = vmax.f32 %v3586, 0.0
        %v3619 = vmax.f32 %v3587, 0.0
        %v3620 = vmax.f32 %v3588, 0.0
        %v3621 = vmax.f32 %v3589, 0.0
        %v3622 = vmax.f32 %v3590, 0.0
        %v3623 = vmax.f32 %v3591, 0.0
        %v3624 = vmax.f32 %v3592, 0.0
        %v3625 = vmax.f32 %v3593, 0.0
        %v3626 = vmax.f32 %v3594, 0.0
        %v3627 = vmax.f32 %v3595, 0.0
        %v3628 = vmax.f32 %v3596, 0.0
        %v3629 = vmax.f32 %v3597, 0.0
        %v3630 = vmax.f32 %v3598, 0.0
        %v3631 = vmax.f32 %v3599, 0.0
        %v3632 = vmax.f32 %v3600, 0.0
        %v3633 = vmax.f32 %v3601, 0.0
        %v3634 = vmax.f32 %v3602, 0.0
        %v3635 = vmax.f32 %v3603, 0.0
        %v3636 = vmax.f32 %v3604, 0.0
        %v3637 = vmax.f32 %v3605, 0.0
        %v3638 = vmax.f32 %v3606, 0.0
        %v3639 = vmax.f32 %v3607, 0.0
        %v3640 = vpack.c.bf16 %v3609, %v3608
        %v3641 = vpack.c.bf16 %v3611, %v3610
        %v3642 = vpack.c.bf16 %v3613, %v3612
        %v3643 = vpack.c.bf16 %v3615, %v3614
        %v3644 = vpack.c.bf16 %v3617, %v3616
        %v3645 = vpack.c.bf16 %v3619, %v3618
        %v3646 = vpack.c.bf16 %v3621, %v3620
        %v3647 = vpack.c.bf16 %v3623, %v3622
        %v3648 = vpack.c.bf16 %v3625, %v3624
        %v3649 = vpack.c.bf16 %v3627, %v3626
        %v3650 = vpack.c.bf16 %v3629, %v3628
        %v3651 = vpack.c.bf16 %v3631, %v3630
        %v3652 = vpack.c.bf16 %v3633, %v3632
        %v3653 = vpack.c.bf16 %v3635, %v3634
        %v3654 = vpack.c.bf16 %v3637, %v3636
        %v3655 = vpack.c.bf16 %v3639, %v3638
        %v3656 = vld [vmem:[#allocation7] sm:$0xf]
        %v3657 = vld [vmem:[#allocation7 + $0x4] sm:$0xf]
        %v3658 = vld [vmem:[#allocation7 + $0x8] sm:$0xf]
        %v3659 = vld [vmem:[#allocation7 + $0xc] sm:$0xf]
        %v3660 = vld [vmem:[#allocation7 + $0x10] sm:$0xf]
        %v3661 = vld [vmem:[#allocation7 + $0x14] sm:$0xf]
        %v3662 = vld [vmem:[#allocation7 + $0x18] sm:$0xf]
        %v3663 = vld [vmem:[#allocation7 + $0x1c] sm:$0xf]
        %v3664 = vld [vmem:[#allocation7 + $0x20] sm:$0xf]
        %v3665 = vld [vmem:[#allocation7 + $0x24] sm:$0xf]
        %v3666 = vld [vmem:[#allocation7 + $0x28] sm:$0xf]
        %v3667 = vld [vmem:[#allocation7 + $0x2c] sm:$0xf]
        %v3668 = vld [vmem:[#allocation7 + $0x30] sm:$0xf]
        %v3669 = vld [vmem:[#allocation7 + $0x34] sm:$0xf]
        %v3670 = vld [vmem:[#allocation7 + $0x38] sm:$0xf]
        %v3671 = vld [vmem:[#allocation7 + $0x3c] sm:$0xf]
        %v3672 = vld [vmem:[%s7] sm:$0x1]
        %v3674 = vlaneseq
        %v3675 = vshrl.u32 %v3674, 7
        %v3676 = vsub.s32 0, %v3675
        %v3677 = vrot.slane %v3672, %v3676
        %v3695 = vunpack.c.l.b16 %v3656
        %v3696 = vunpack.c.l.b16 %v3657
        %v3697 = vunpack.c.l.b16 %v3658
        %v3698 = vunpack.c.l.b16 %v3659
        %v3699 = vunpack.c.l.b16 %v3660
        %v3700 = vunpack.c.l.b16 %v3661
        %v3701 = vunpack.c.l.b16 %v3662
        %v3702 = vunpack.c.l.b16 %v3663
        %v3703 = vunpack.c.l.b16 %v3664
        %v3704 = vunpack.c.l.b16 %v3665
        %v3705 = vunpack.c.l.b16 %v3666
        %v3706 = vunpack.c.l.b16 %v3667
        %v3707 = vunpack.c.l.b16 %v3668
        %v3708 = vunpack.c.l.b16 %v3669
        %v3709 = vunpack.c.l.b16 %v3670
        %v3710 = vunpack.c.l.b16 %v3671
        %v3711 = vpack.c.b16 %v3696, %v3695
        %v3712 = vpack.c.b16 %v3698, %v3697
        %v3713 = vpack.c.b16 %v3700, %v3699
        %v3714 = vpack.c.b16 %v3702, %v3701
        %v3715 = vpack.c.b16 %v3704, %v3703
        %v3716 = vpack.c.b16 %v3706, %v3705
        %v3717 = vpack.c.b16 %v3708, %v3707
        %v3718 = vpack.c.b16 %v3710, %v3709
        %3727 = vmatprep.subr.bf16.mxu0 0
        %3728 = vmatpush1.bf16.msra.mxu0 %v3711
        %3729 = vmatprep.subr.bf16.mxu0 0
        %3730 = vmatpush1.bf16.msra.mxu0 %v3712
        %3731 = vmatprep.subr.bf16.mxu0 0
        %3732 = vmatpush1.bf16.msra.mxu0 %v3713
        %3733 = vmatprep.subr.bf16.mxu0 0
        %3734 = vmatpush1.bf16.msra.mxu0 %v3714
        %3735 = vmatprep.subr.bf16.mxu0 0
        %3736 = vmatpush1.bf16.msra.mxu0 %v3715
        %3737 = vmatprep.subr.bf16.mxu0 0
        %3738 = vmatpush1.bf16.msra.mxu0 %v3716
        %3739 = vmatprep.subr.bf16.mxu0 0
        %3740 = vmatpush1.bf16.msra.mxu0 %v3717
        %3741 = vmatprep.subr.bf16.mxu0 0
        %3742 = vmatpush1.bf16.msra.mxu0 %v3718
        %3743 = vmatprep.subr.bf16.mxu0 0
        %3744 = vmatpush1.bf16.msra.mxu0 0
        %3745 = vmatprep.subr.bf16.mxu0 0
        %3746 = vmatpush1.bf16.msra.mxu0 0
        %3747 = vmatprep.subr.bf16.mxu0 0
        %3748 = vmatpush1.bf16.msra.mxu0 0
        %3749 = vmatprep.subr.bf16.mxu0 0
        %3750 = vmatpush1.bf16.msra.mxu0 0
        %3751 = vmatprep.subr.bf16.mxu0 0
        %3752 = vmatpush1.bf16.msra.mxu0 0
        %3753 = vmatprep.subr.bf16.mxu0 0
        %3754 = vmatpush1.bf16.msra.mxu0 0
        %3755 = vmatprep.subr.bf16.mxu0 0
        %3756 = vmatpush1.bf16.msra.mxu0 0
        %3757 = vmatprep.subr.bf16.mxu0 0
        %3758 = vmatpush1.bf16.msra.mxu0 0
        %3759 = vmatprep.mubr.bf16.mxu0 0
        %3760 = vmatmul.mubr.bf16.gmra.mrb[0].mxu0 %v3640
        %v3761 = vpop.f32.mrb[0].mxu0
        %v3762 = vadd.f32 %v3677, %v3761
        %v3763 = vpop.f32.mrb[0].mxu0
        %v3764 = vpop.f32.mrb[0].mxu0
        %v3765 = vadd.f32 %v3677, %v3764
        %v3766 = vpop.f32.mrb[0].mxu0
        %3767 = vmatprep.mubr.bf16.mxu0 0
        %3768 = vmatmul.mubr.bf16.gmra.mrb[0].mxu0 %v3641
        %v3769 = vpop.f32.mrb[0].mxu0
        %v3770 = vadd.f32 %v3677, %v3769
        %v3771 = vpop.f32.mrb[0].mxu0
        %v3772 = vpop.f32.mrb[0].mxu0
        %v3773 = vadd.f32 %v3677, %v3772
        %v3774 = vpop.f32.mrb[0].mxu0
        %3775 = vmatprep.mubr.bf16.mxu0 0
        %3776 = vmatmul.mubr.bf16.gmra.mrb[0].mxu0 %v3642
        %v3777 = vpop.f32.mrb[0].mxu0
        %v3778 = vadd.f32 %v3677, %v3777
        %v3779 = vpop.f32.mrb[0].mxu0
        %v3780 = vpop.f32.mrb[0].mxu0
        %v3781 = vadd.f32 %v3677, %v3780
        %v3782 = vpop.f32.mrb[0].mxu0
        %3783 = vmatprep.mubr.bf16.mxu0 0
        %3784 = vmatmul.mubr.bf16.gmra.mrb[0].mxu0 %v3643
        %v3785 = vpop.f32.mrb[0].mxu0
        %v3786 = vadd.f32 %v3677, %v3785
        %v3787 = vpop.f32.mrb[0].mxu0
        %v3788 = vpop.f32.mrb[0].mxu0
        %v3789 = vadd.f32 %v3677, %v3788
        %v3790 = vpop.f32.mrb[0].mxu0
        %3791 = vmatprep.mubr.bf16.mxu0 0
        %3792 = vmatmul.mubr.bf16.gmra.mrb[0].mxu0 %v3644
        %v3793 = vpop.f32.mrb[0].mxu0
        %v3794 = vadd.f32 %v3677, %v3793
        %v3795 = vpop.f32.mrb[0].mxu0
        %v3796 = vpop.f32.mrb[0].mxu0
        %v3797 = vadd.f32 %v3677, %v3796
        %v3798 = vpop.f32.mrb[0].mxu0
        %3799 = vmatprep.mubr.bf16.mxu0 0
        %3800 = vmatmul.mubr.bf16.gmra.mrb[0].mxu0 %v3645
        %v3801 = vpop.f32.mrb[0].mxu0
        %v3802 = vadd.f32 %v3677, %v3801
        %v3803 = vpop.f32.mrb[0].mxu0
        %v3804 = vpop.f32.mrb[0].mxu0
        %v3805 = vadd.f32 %v3677, %v3804
        %v3806 = vpop.f32.mrb[0].mxu0
        %3807 = vmatprep.mubr.bf16.mxu0 0
        %3808 = vmatmul.mubr.bf16.gmra.mrb[0].mxu0 %v3646
        %v3809 = vpop.f32.mrb[0].mxu0
        %v3810 = vadd.f32 %v3677, %v3809
        %v3811 = vpop.f32.mrb[0].mxu0
        %v3812 = vpop.f32.mrb[0].mxu0
        %v3813 = vadd.f32 %v3677, %v3812
        %v3814 = vpop.f32.mrb[0].mxu0
        %3815 = vmatprep.mubr.bf16.mxu0 0
        %3816 = vmatmul.mubr.bf16.gmra.mrb[0].mxu0 %v3647
        %v3817 = vpop.f32.mrb[0].mxu0
        %v3818 = vadd.f32 %v3677, %v3817
        %v3819 = vpop.f32.mrb[0].mxu0
        %v3820 = vpop.f32.mrb[0].mxu0
        %v3821 = vadd.f32 %v3677, %v3820
        %v3822 = vpop.f32.mrb[0].mxu0
        %3823 = vmatprep.mubr.bf16.mxu0 0
        %3824 = vmatmul.mubr.bf16.gmra.mrb[0].mxu0 %v3648
        %v3825 = vpop.f32.mrb[0].mxu0
        %v3826 = vadd.f32 %v3677, %v3825
        %v3827 = vpop.f32.mrb[0].mxu0
        %v3828 = vpop.f32.mrb[0].mxu0
        %v3829 = vadd.f32 %v3677, %v3828
        %v3830 = vpop.f32.mrb[0].mxu0
        %3831 = vmatprep.mubr.bf16.mxu0 0
        %3832 = vmatmul.mubr.bf16.gmra.mrb[0].mxu0 %v3649
        %v3833 = vpop.f32.mrb[0].mxu0
        %v3834 = vadd.f32 %v3677, %v3833
        %v3835 = vpop.f32.mrb[0].mxu0
        %v3836 = vpop.f32.mrb[0].mxu0
        %v3837 = vadd.f32 %v3677, %v3836
        %v3838 = vpop.f32.mrb[0].mxu0
        %3839 = vmatprep.mubr.bf16.mxu0 0
        %3840 = vmatmul.mubr.bf16.gmra.mrb[0].mxu0 %v3650
        %v3841 = vpop.f32.mrb[0].mxu0
        %v3842 = vadd.f32 %v3677, %v3841
        %v3843 = vpop.f32.mrb[0].mxu0
        %v3844 = vpop.f32.mrb[0].mxu0
        %v3845 = vadd.f32 %v3677, %v3844
        %v3846 = vpop.f32.mrb[0].mxu0
        %3847 = vmatprep.mubr.bf16.mxu0 0
        %3848 = vmatmul.mubr.bf16.gmra.mrb[0].mxu0 %v3651
        %v3849 = vpop.f32.mrb[0].mxu0
        %v3850 = vadd.f32 %v3677, %v3849
        %v3851 = vpop.f32.mrb[0].mxu0
        %v3852 = vpop.f32.mrb[0].mxu0
        %v3853 = vadd.f32 %v3677, %v3852
        %v3854 = vpop.f32.mrb[0].mxu0
        %3855 = vmatprep.mubr.bf16.mxu0 0
        %3856 = vmatmul.mubr.bf16.gmra.mrb[0].mxu0 %v3652
        %v3857 = vpop.f32.mrb[0].mxu0
        %v3858 = vadd.f32 %v3677, %v3857
        %v3859 = vpop.f32.mrb[0].mxu0
        %v3860 = vpop.f32.mrb[0].mxu0
        %v3861 = vadd.f32 %v3677, %v3860
        %v3862 = vpop.f32.mrb[0].mxu0
        %3863 = vmatprep.mubr.bf16.mxu0 0
        %3864 = vmatmul.mubr.bf16.gmra.mrb[0].mxu0 %v3653
        %v3865 = vpop.f32.mrb[0].mxu0
        %v3866 = vadd.f32 %v3677, %v3865
        %v3867 = vpop.f32.mrb[0].mxu0
        %v3868 = vpop.f32.mrb[0].mxu0
        %v3869 = vadd.f32 %v3677, %v3868
        %v3870 = vpop.f32.mrb[0].mxu0
        %3871 = vmatprep.mubr.bf16.mxu0 0
        %3872 = vmatmul.mubr.bf16.gmra.mrb[0].mxu0 %v3654
        %v3873 = vpop.f32.mrb[0].mxu0
        %v3874 = vadd.f32 %v3677, %v3873
        %v3875 = vpop.f32.mrb[0].mxu0
        %v3876 = vpop.f32.mrb[0].mxu0
        %v3877 = vadd.f32 %v3677, %v3876
        %v3878 = vpop.f32.mrb[0].mxu0
        %3879 = vmatprep.mubr.bf16.mxu0 0
        %3880 = vmatmul.mubr.bf16.gmra.mrb[0].mxu0 %v3655
        %v3881 = vpop.f32.mrb[0].mxu0
        %v3882 = vadd.f32 %v3677, %v3881
        %v3883 = vpop.f32.mrb[0].mxu0
        %v3884 = vpop.f32.mrb[0].mxu0
        %v3885 = vadd.f32 %v3677, %v3884
        %v3886 = vpop.f32.mrb[0].mxu0
        %3887 = vdwg.mxu0
        %v3888 = vadd.f32 %v3762, %v349
        %v3889 = vadd.f32 %v3765, %v350
        %v3890 = vadd.f32 %v3770, %v351
        %v3891 = vadd.f32 %v3773, %v352
        %v3892 = vadd.f32 %v3778, %v353
        %v3893 = vadd.f32 %v3781, %v354
        %v3894 = vadd.f32 %v3786, %v355
        %v3895 = vadd.f32 %v3789, %v356
        %v3896 = vadd.f32 %v3794, %v357
        %v3897 = vadd.f32 %v3797, %v358
        %v3898 = vadd.f32 %v3802, %v359
        %v3899 = vadd.f32 %v3805, %v360
        %v3900 = vadd.f32 %v3810, %v361
        %v3901 = vadd.f32 %v3813, %v362
        %v3902 = vadd.f32 %v3818, %v363
        %v3903 = vadd.f32 %v3821, %v364
        %v3904 = vadd.f32 %v3826, %v365
        %v3905 = vadd.f32 %v3829, %v366
        %v3906 = vadd.f32 %v3834, %v367
        %v3907 = vadd.f32 %v3837, %v368
        %v3908 = vadd.f32 %v3842, %v369
        %v3909 = vadd.f32 %v3845, %v370
        %v3910 = vadd.f32 %v3850, %v371
        %v3911 = vadd.f32 %v3853, %v372
        %v3912 = vadd.f32 %v3858, %v373
        %v3913 = vadd.f32 %v3861, %v374
        %v3914 = vadd.f32 %v3866, %v375
        %v3915 = vadd.f32 %v3869, %v376
        %v3916 = vadd.f32 %v3874, %v377
        %v3917 = vadd.f32 %v3877, %v378
        %v3918 = vadd.f32 %v3882, %v379
        %v3919 = vadd.f32 %v3885, %v380
        %v3920 = vmax.f32 %v3888, 0.0
        %v3921 = vmax.f32 %v3889, 0.0
        %v3922 = vmax.f32 %v3890, 0.0
        %v3923 = vmax.f32 %v3891, 0.0
        %v3924 = vmax.f32 %v3892, 0.0
        %v3925 = vmax.f32 %v3893, 0.0
        %v3926 = vmax.f32 %v3894, 0.0
        %v3927 = vmax.f32 %v3895, 0.0
        %v3928 = vmax.f32 %v3896, 0.0
        %v3929 = vmax.f32 %v3897, 0.0
        %v3930 = vmax.f32 %v3898, 0.0
        %v3931 = vmax.f32 %v3899, 0.0
        %v3932 = vmax.f32 %v3900, 0.0
        %v3933 = vmax.f32 %v3901, 0.0
        %v3934 = vmax.f32 %v3902, 0.0
        %v3935 = vmax.f32 %v3903, 0.0
        %v3936 = vmax.f32 %v3904, 0.0
        %v3937 = vmax.f32 %v3905, 0.0
        %v3938 = vmax.f32 %v3906, 0.0
        %v3939 = vmax.f32 %v3907, 0.0
        %v3940 = vmax.f32 %v3908, 0.0
        %v3941 = vmax.f32 %v3909, 0.0
        %v3942 = vmax.f32 %v3910, 0.0
        %v3943 = vmax.f32 %v3911, 0.0
        %v3944 = vmax.f32 %v3912, 0.0
        %v3945 = vmax.f32 %v3913, 0.0
        %v3946 = vmax.f32 %v3914, 0.0
        %v3947 = vmax.f32 %v3915, 0.0
        %v3948 = vmax.f32 %v3916, 0.0
        %v3949 = vmax.f32 %v3917, 0.0
        %v3950 = vmax.f32 %v3918, 0.0
        %v3951 = vmax.f32 %v3919, 0.0
        %3952 = vst [vmem:[%s342] sm:$0xff] %v3920
        %3953 = vst [vmem:[%s342 + $0x8] sm:$0xff] %v3921
        %3954 = vst [vmem:[%s342 + $0x10] sm:$0xff] %v3922
        %3955 = vst [vmem:[%s342 + $0x18] sm:$0xff] %v3923
        %3956 = vst [vmem:[%s342 + $0x20] sm:$0xff] %v3924
        %3957 = vst [vmem:[%s342 + $0x28] sm:$0xff] %v3925
        %3958 = vst [vmem:[%s342 + $0x30] sm:$0xff] %v3926
        %3959 = vst [vmem:[%s342 + $0x38] sm:$0xff] %v3927
        %3960 = vst [vmem:[%s342 + $0x40] sm:$0xff] %v3928
        %3961 = vst [vmem:[%s342 + $0x48] sm:$0xff] %v3929
        %3962 = vst [vmem:[%s342 + $0x50] sm:$0xff] %v3930
        %3963 = vst [vmem:[%s342 + $0x58] sm:$0xff] %v3931
        %3964 = vst [vmem:[%s342 + $0x60] sm:$0xff] %v3932
        %3965 = vst [vmem:[%s342 + $0x68] sm:$0xff] %v3933
        %3966 = vst [vmem:[%s342 + $0x70] sm:$0xff] %v3934
        %3967 = vst [vmem:[%s342 + $0x78] sm:$0xff] %v3935
        %3968 = vst [vmem:[%s342 + $0x80] sm:$0xff] %v3936
        %3969 = vst [vmem:[%s342 + $0x88] sm:$0xff] %v3937
        %3970 = vst [vmem:[%s342 + $0x90] sm:$0xff] %v3938
        %3971 = vst [vmem:[%s342 + $0x98] sm:$0xff] %v3939
        %3972 = vst [vmem:[%s342 + $0xa0] sm:$0xff] %v3940
        %3973 = vst [vmem:[%s342 + $0xa8] sm:$0xff] %v3941
        %3974 = vst [vmem:[%s342 + $0xb0] sm:$0xff] %v3942
        %3975 = vst [vmem:[%s342 + $0xb8] sm:$0xff] %v3943
        %3976 = vst [vmem:[%s342 + $0xc0] sm:$0xff] %v3944
        %3977 = vst [vmem:[%s342 + $0xc8] sm:$0xff] %v3945
        %3978 = vst [vmem:[%s342 + $0xd0] sm:$0xff] %v3946
        %3979 = vst [vmem:[%s342 + $0xd8] sm:$0xff] %v3947
        %3980 = vst [vmem:[%s342 + $0xe0] sm:$0xff] %v3948
        %3981 = vst [vmem:[%s342 + $0xe8] sm:$0xff] %v3949
        %3982 = vst [vmem:[%s342 + $0xf0] sm:$0xff] %v3950
        %3983 = vst [vmem:[%s342 + $0xf8] sm:$0xff] %v3951
        %s3984 = sand.u32 %s205, 1
        %s3985 = scalar_lea.sflag [#allocation4], %s3984
        %s3986 = sand.u32 %s205, 1
        %s3987 = smul.addr %s3986, 256
        %s3988 = scalar_lea.vmem [#allocation8], %s3987
        // Predicated region
        $region65: #{tpu_custom_call.1} parent=51 // pred_check
          %p3989 = pneg %p215
        $region66: #{tpu_custom_call.1} parent=51 // pred_check_branch
          %3991 = sbr.rel (%p3989) target = $region68
        $region67: #{tpu_custom_call.1} parent=51 // pred_region
          %s3993 = ssub.s32 4096, 4096
          %3994 = vsyncadd %s3985, %s3993
          %s3995 = smul.addr %s24, 32
          %s3996 = smul.addr %s3995, 128
          %s3997 = scalar_lea.hbm %s8, %s3996
          %s3998 = sshll.u32 %s3988, 4
          %s3999 = int_to_ptr.vmem [resolvable:$true] %s3998
          %4004 = dma.vmem_to_hbm [thread:$0]  %s3999, 4096, %s3997, %s3985, 128, 128, 8
        $region68: #{tpu_custom_call.1} parent=51 // pred_fallthru
          _
      $region52: #{tpu_custom_call.1} parent=5 // pred_fallthru
        _
      %p4005 = scmp.le.s32.totalorder 2, %s19
      // Predicated region
      $region69: #{tpu_custom_call.1} parent=5 // pred_check
        %p4006 = pneg %p4005
      $region70: #{tpu_custom_call.1} parent=5 // pred_check_branch
        %4008 = sbr.rel (%p4006) target = $region72
      $region71: #{tpu_custom_call.1} parent=5 // pred_region
        %s4009 = ssub.s32 %s19, 2
        // Predicated region
        $region73: #{tpu_custom_call.1} parent=71 // pred_check
          %p4010 = pneg %p221
        $region74: #{tpu_custom_call.1} parent=71 // pred_check_branch
          %4012 = sbr.rel (%p4010) target = $region76
        $region75: #{tpu_custom_call.1} parent=71 // pred_region
          %s4013 = sand.u32 %s206, 1
          %s4014 = scalar_lea.sflag [#allocation4], %s4013
          %s4015 = sand.u32 %s206, 1
          %s4016 = smul.addr %s4015, 256
          %s4017 = scalar_lea.vmem [#allocation8], %s4016
          %4018 = dma.done %s4014, 4096
        $region76: #{tpu_custom_call.1} parent=71 // pred_fallthru
          _
      $region72: #{tpu_custom_call.1} parent=5 // pred_fallthru
        _
    $region6: #{tpu_custom_call.1} parent=1 // loop_footer
      %s23 = sadd.s32 1, %s19
    $region7: #{tpu_custom_call.1} parent=1 // loop_footer_branch
      %18 = sbr.rel target = $region3
    $region8: #{tpu_custom_call.1} parent=1 // loop_exit
      _
    %4019 = vsyncpa [#allocation3], 1
    %s4020 = scalar_lea.sflag [#allocation3], 1
    %4021 = vsyncpa %s4020, 1
    %4022 = vsyncpa [#allocation6], 1
    %4023 = vsyncpa [#allocation4], 1
    %s4024 = scalar_lea.sflag [#allocation4], 1
    %4025 = vsyncpa %s4024, 1

// kernel: tpu_custom_call.1
$region0: #{tpu_custom_call.1}
  #allocation0 [shape = 'u32[]', space=smem, size = 0x4, offset = 0x4, fixed_abs, tag = 'smem constant byte address 0x4 - core index']
  #allocation1 [shape = 'u32[144,128]{1,0:T(1,128)}', space=vmem, size = 0x12000, scoped, tag = 'internal scratch']
  %s0 = inlined_call_operand.vmem [shape: f32[2,256,128], index: 0, kind: input, shape index: {}]
  %s1 = inlined_call_operand.vmem [shape: bf16[4,256,1], index: 1, kind: input, shape index: {}]
  %s2 = inlined_call_operand.hbm [shape: bf16[128,128], index: 2, kind: input, shape index: {}]
  %s3 = inlined_call_operand.vmem [shape: f32[1,128], index: 3, kind: input, shape index: {}]
  %s4 = inlined_call_operand.hbm [shape: bf16[1152,128], index: 4, kind: input, shape index: {}]
  %s5 = inlined_call_operand.vmem [shape: f32[1,128], index: 5, kind: input, shape index: {}]
  %s6 = inlined_call_operand.hbm [shape: bf16[128,128], index: 6, kind: input, shape index: {}]
  %s7 = inlined_call_operand.vmem [shape: f32[1,128], index: 7, kind: input, shape index: {}]
  %s8 = inlined_call_operand.hbm [shape: f32[2,256,128], index: 8, kind: output, shape index: {}]
  %s9 = sld [smem:[#allocation0]]
  $region77: #{tpu_custom_call.1} parent=0
    _
  %s11 = ssub.s32 1, %s9
  %s12 = scalar_select 0, %s11, %s9
  $region1: #{tpu_custom_call.1} parent=0
    #allocation2 [shape = 'u8[32768]{0}', space=vmem, size = 0x8000, scoped, tag = 'input window, operand 2, single buffered']
    #allocation3 [shape = 's32[2]{0}', space=sflag, size = 0x8, scoped, tag = 'scoped memory for tpu_custom_call.1']
    #allocation4 [shape = 's32[2]{0}', space=sflag, size = 0x8, scoped, tag = 'scoped memory for tpu_custom_call.1']
    #allocation5 [shape = 'u8[294912]{0}', space=vmem, size = 0x48000, scoped, tag = 'input window, operand 4, single buffered']
    #allocation6 [shape = 's32[1]{0}', space=sflag, size = 0x4, scoped, tag = 'scoped memory for tpu_custom_call.1']
    #allocation7 [shape = 'u8[32768]{0}', space=vmem, size = 0x8000, scoped, tag = 'input window, operand 6, single buffered']
    #allocation8 [shape = 'u8[262144]{0}', space=vmem, size = 0x40000, scoped, tag = 'output window, operand 0']
    %13 = vsyncpa [#allocation3], 0
    %14 = vsyncpa [#allocation6], 0
    %15 = vsyncpa [#allocation4], 0
    %s16 = scalar_lea.sflag [#allocation4], 1
    %17 = vsyncpa %s16, 0
    loop: start=0, step=1, limit=4
    $region2: #{tpu_custom_call.1} parent=1 // loop_pre_header
      _
    $region3: #{tpu_custom_call.1} parent=1 // loop_header
      %s19 = sphi 0, %s23
      %p20 = scmp.ge.s32.totalorder %s19, 4
      %s29 = sphi 0, %s31
      %s32 = sphi 0, %s29
      %s33 = sphi 0, %s32
      %s49 = sphi 0, %s33
      %s53 = sphi 0, %s53
      %s55 = sphi 0, %s53
      %s56 = sphi 0, %s55
      %s70 = sphi 0, %s56
      %s74 = sphi 0, %s74
      %s76 = sphi 0, %s74
      %s77 = sphi 0, %s76
      %s91 = sphi 0, %s77
      %s95 = sphi 0, %s95
      %s97 = sphi 0, %s95
      %s98 = sphi 0, %s97
      %s112 = sphi 0, %s98
      %s116 = sphi 0, %s116
      %s118 = sphi 0, %s116
      %s119 = sphi 0, %s118
      %s133 = sphi 0, %s119
      %s137 = sphi 0, %s137
      %s139 = sphi 0, %s137
      %s140 = sphi 0, %s139
      %s154 = sphi 0, %s140
      %s158 = sphi 0, %s158
      %s160 = sphi 0, %s158
      %s161 = sphi 0, %s160
      %s175 = sphi 0, %s161
      %s179 = sphi 0, %s179
      %s181 = sphi 0, %s179
      %s182 = sphi 0, %s181
      %s196 = sphi 0, %s182
      %s202 = sphi 0, %s204
      %s205 = sphi 0, %s202
      %s206 = sphi 0, %s205
      %s222 = sphi 0, %s206
    $region4: #{tpu_custom_call.1} parent=1 // loop_header_branch
      %22 = sbr.rel (%p20) target = $region8
    $region5: #{tpu_custom_call.1} parent=1 // loop_body
      %s24 = ssub.s32 %s19, 1
      %s25 = ssub.s32 %s19, 2
      %s26 = sadd.s32 %s19, 1
      %s27 = ssub.s32 %s19, %s26
      %p28 = scmp.eq.s32.totalorder %s27, 0
      %s30 = sadd.s32 %s29, 1
      %s31 = scalar_select %p28, %s29, %s30
      %p34 = pneg %p28
      %p35 = scmp.eq.s32.totalorder %s19, 1
      %p36 = por %p34, %p35
      %p37 = scmp.ne.s32.totalorder %s29, %s32
      %p38 = scmp.eq.s32.totalorder %s19, 0
      %p39 = por %p37, %p38
      %p40 = scmp.ne.s32.totalorder %s29, %s32
      %p41 = scmp.eq.s32.totalorder %s24, 1
      %p42 = por %p40, %p41
      %p43 = scmp.ne.s32.totalorder %s32, %s33
      %p44 = scmp.eq.s32.totalorder %s24, 0
      %p45 = por %p43, %p44
      %p46 = scmp.ne.s32.totalorder %s32, %s33
      %p47 = scmp.eq.s32.totalorder %s25, 1
      %p48 = por %p46, %p47
      %p50 = scmp.ne.s32.totalorder %s33, %s49
      %p51 = scmp.eq.s32.totalorder %s25, 0
      %p52 = por %p50, %p51
      %s54 = sadd.s32 %s53, 1
      %p57 = scmp.eq.s32.totalorder %s19, 1
      %p58 = scmp.ne.s32.totalorder %s53, %s55
      %p59 = scmp.eq.s32.totalorder %s19, 0
      %p60 = por %p58, %p59
      %p61 = scmp.ne.s32.totalorder %s53, %s55
      %p62 = scmp.eq.s32.totalorder %s24, 1
      %p63 = por %p61, %p62
      %p64 = scmp.ne.s32.totalorder %s55, %s56
      %p65 = scmp.eq.s32.totalorder %s24, 0
      %p66 = por %p64, %p65
      %p67 = scmp.ne.s32.totalorder %s55, %s56
      %p68 = scmp.eq.s32.totalorder %s25, 1
      %p69 = por %p67, %p68
      %p71 = scmp.ne.s32.totalorder %s56, %s70
      %p72 = scmp.eq.s32.totalorder %s25, 0
      %p73 = por %p71, %p72
      %s75 = sadd.s32 %s74, 1
      %p78 = scmp.eq.s32.totalorder %s19, 1
      %p79 = scmp.ne.s32.totalorder %s74, %s76
      %p80 = scmp.eq.s32.totalorder %s19, 0
      %p81 = por %p79, %p80
      %p82 = scmp.ne.s32.totalorder %s74, %s76
      %p83 = scmp.eq.s32.totalorder %s24, 1
      %p84 = por %p82, %p83
      %p85 = scmp.ne.s32.totalorder %s76, %s77
      %p86 = scmp.eq.s32.totalorder %s24, 0
      %p87 = por %p85, %p86
      %p88 = scmp.ne.s32.totalorder %s76, %s77
      %p89 = scmp.eq.s32.totalorder %s25, 1
      %p90 = por %p88, %p89
      %p92 = scmp.ne.s32.totalorder %s77, %s91
      %p93 = scmp.eq.s32.totalorder %s25, 0
      %p94 = por %p92, %p93
      %s96 = sadd.s32 %s95, 1
      %p99 = scmp.eq.s32.totalorder %s19, 1
      %p100 = scmp.ne.s32.totalorder %s95, %s97
      %p101 = scmp.eq.s32.totalorder %s19, 0
      %p102 = por %p100, %p101
      %p103 = scmp.ne.s32.totalorder %s95, %s97
      %p104 = scmp.eq.s32.totalorder %s24, 1
      %p105 = por %p103, %p104
      %p106 = scmp.ne.s32.totalorder %s97, %s98
      %p107 = scmp.eq.s32.totalorder %s24, 0
      %p108 = por %p106, %p107
      %p109 = scmp.ne.s32.totalorder %s97, %s98
      %p110 = scmp.eq.s32.totalorder %s25, 1
      %p111 = por %p109, %p110
      %p113 = scmp.ne.s32.totalorder %s98, %s112
      %p114 = scmp.eq.s32.totalorder %s25, 0
      %p115 = por %p113, %p114
      %s117 = sadd.s32 %s116, 1
      %p120 = scmp.eq.s32.totalorder %s19, 1
      %p121 = scmp.ne.s32.totalorder %s116, %s118
      %p122 = scmp.eq.s32.totalorder %s19, 0
      %p123 = por %p121, %p122
      %p124 = scmp.ne.s32.totalorder %s116, %s118
      %p125 = scmp.eq.s32.totalorder %s24, 1
      %p126 = por %p124, %p125
      %p127 = scmp.ne.s32.totalorder %s118, %s119
      %p128 = scmp.eq.s32.totalorder %s24, 0
      %p129 = por %p127, %p128
      %p130 = scmp.ne.s32.totalorder %s118, %s119
      %p131 = scmp.eq.s32.totalorder %s25, 1
      %p132 = por %p130, %p131
      %p134 = scmp.ne.s32.totalorder %s119, %s133
      %p135 = scmp.eq.s32.totalorder %s25, 0
      %p136 = por %p134, %p135
      %s138 = sadd.s32 %s137, 1
      %p141 = scmp.eq.s32.totalorder %s19, 1
      %p142 = scmp.ne.s32.totalorder %s137, %s139
      %p143 = scmp.eq.s32.totalorder %s19, 0
      %p144 = por %p142, %p143
      %p145 = scmp.ne.s32.totalorder %s137, %s139
      %p146 = scmp.eq.s32.totalorder %s24, 1
      %p147 = por %p145, %p146
      %p148 = scmp.ne.s32.totalorder %s139, %s140
      %p149 = scmp.eq.s32.totalorder %s24, 0
      %p150 = por %p148, %p149
      %p151 = scmp.ne.s32.totalorder %s139, %s140
      %p152 = scmp.eq.s32.totalorder %s25, 1
      %p153 = por %p151, %p152
      %p155 = scmp.ne.s32.totalorder %s140, %s154
      %p156 = scmp.eq.s32.totalorder %s25, 0
      %p157 = por %p155, %p156
      %s159 = sadd.s32 %s158, 1
      %p162 = scmp.eq.s32.totalorder %s19, 1
      %p163 = scmp.ne.s32.totalorder %s158, %s160
      %p164 = scmp.eq.s32.totalorder %s19, 0
      %p165 = por %p163, %p164
      %p166 = scmp.ne.s32.totalorder %s158, %s160
      %p167 = scmp.eq.s32.totalorder %s24, 1
      %p168 = por %p166, %p167
      %p169 = scmp.ne.s32.totalorder %s160, %s161
      %p170 = scmp.eq.s32.totalorder %s24, 0
      %p171 = por %p169, %p170
      %p172 = scmp.ne.s32.totalorder %s160, %s161
      %p173 = scmp.eq.s32.totalorder %s25, 1
      %p174 = por %p172, %p173
      %p176 = scmp.ne.s32.totalorder %s161, %s175
      %p177 = scmp.eq.s32.totalorder %s25, 0
      %p178 = por %p176, %p177
      %s180 = sadd.s32 %s179, 1
      %p183 = scmp.eq.s32.totalorder %s19, 1
      %p184 = scmp.ne.s32.totalorder %s179, %s181
      %p185 = scmp.eq.s32.totalorder %s19, 0
      %p186 = por %p184, %p185
      %p187 = scmp.ne.s32.totalorder %s179, %s181
      %p188 = scmp.eq.s32.totalorder %s24, 1
      %p189 = por %p187, %p188
      %p190 = scmp.ne.s32.totalorder %s181, %s182
      %p191 = scmp.eq.s32.totalorder %s24, 0
      %p192 = por %p190, %p191
      %p193 = scmp.ne.s32.totalorder %s181, %s182
      %p194 = scmp.eq.s32.totalorder %s25, 1
      %p195 = por %p193, %p194
      %p197 = scmp.ne.s32.totalorder %s182, %s196
      %p198 = scmp.eq.s32.totalorder %s25, 0
      %p199 = por %p197, %p198
      %s200 = ssub.s32 %s19, %s26
      %p201 = scmp.eq.s32.totalorder %s200, 0
      %s203 = sadd.s32 %s202, 1
      %s204 = scalar_select %p201, %s202, %s203
      %p207 = pneg %p201
      %p208 = scmp.eq.s32.totalorder %s19, 1
      %p209 = por %p207, %p208
      %p210 = scmp.ne.s32.totalorder %s202, %s205
      %p211 = scmp.eq.s32.totalorder %s19, 0
      %p212 = por %p210, %p211
      %p213 = scmp.ne.s32.totalorder %s202, %s205
      %p214 = scmp.eq.s32.totalorder %s24, 1
      %p215 = por %p213, %p214
      %p216 = scmp.ne.s32.totalorder %s205, %s206
      %p217 = scmp.eq.s32.totalorder %s24, 0
      %p218 = por %p216, %p217
      %p219 = scmp.ne.s32.totalorder %s205, %s206
      %p220 = scmp.eq.s32.totalorder %s25, 1
      %p221 = por %p219, %p220
      %p223 = scmp.ne.s32.totalorder %s206, %s222
      %p224 = scmp.eq.s32.totalorder %s25, 0
      %p225 = por %p223, %p224
      %p226 = scmp.le.s32.totalorder 1, %s19
      %p227 = scmp.lt.s32.totalorder %s19, 3
      %p228 = pnand %p226, %p227
      %p229 = pneg %p228
      // Predicated region
      $region9: #{tpu_custom_call.1} parent=5 // pred_check
        _
      $region10: #{tpu_custom_call.1} parent=5 // pred_check_branch
        %231 = sbr.rel (%p228) target = $region12
      $region11: #{tpu_custom_call.1} parent=5 // pred_region
        %s232 = ssub.s32 %s19, 1
        // Predicated region
        $region13: #{tpu_custom_call.1} parent=11 // pred_check
          %p233 = pneg %p66
        $region14: #{tpu_custom_call.1} parent=11 // pred_check_branch
          %235 = sbr.rel (%p233) target = $region16
        $region15: #{tpu_custom_call.1} parent=11 // pred_region
          _
        $region16: #{tpu_custom_call.1} parent=11 // pred_fallthru
          _
        // Predicated region
        $region17: #{tpu_custom_call.1} parent=11 // pred_check
          %p236 = pneg %p87
        $region18: #{tpu_custom_call.1} parent=11 // pred_check_branch
          %238 = sbr.rel (%p236) target = $region20
        $region19: #{tpu_custom_call.1} parent=11 // pred_region
          %s240 = ssub.s32 1024, 1024
          %241 = vsyncadd [#allocation3], %s240
          %s242 = sshll.u32 [#allocation2], 4
          %s243 = int_to_ptr.vmem [resolvable:$true] %s242
          %248 = dma.hbm_to_vmem [thread:$0]  %s2, 1024, %s243, [#allocation3], 64, 64, 4
        $region20: #{tpu_custom_call.1} parent=11 // pred_fallthru
          _
        // Predicated region
        $region21: #{tpu_custom_call.1} parent=11 // pred_check
          %p249 = pneg %p108
        $region22: #{tpu_custom_call.1} parent=11 // pred_check_branch
          %251 = sbr.rel (%p249) target = $region24
        $region23: #{tpu_custom_call.1} parent=11 // pred_region
          _
        $region24: #{tpu_custom_call.1} parent=11 // pred_fallthru
          _
        // Predicated region
        $region25: #{tpu_custom_call.1} parent=11 // pred_check
          %p252 = pneg %p129
        $region26: #{tpu_custom_call.1} parent=11 // pred_check_branch
          %254 = sbr.rel (%p252) target = $region28
        $region27: #{tpu_custom_call.1} parent=11 // pred_region
          %s256 = ssub.s32 9216, 9216
          %257 = vsyncadd [#allocation6], %s256
          %s258 = sshll.u32 [#allocation5], 4
          %s259 = int_to_ptr.vmem [resolvable:$true] %s258
          %264 = dma.hbm_to_vmem [thread:$0]  %s4, 9216, %s259, [#allocation6], 64, 64, 4
        $region28: #{tpu_custom_call.1} parent=11 // pred_fallthru
          _
        // Predicated region
        $region29: #{tpu_custom_call.1} parent=11 // pred_check
          %p265 = pneg %p150
        $region30: #{tpu_custom_call.1} parent=11 // pred_check_branch
          %267 = sbr.rel (%p265) target = $region32
        $region31: #{tpu_custom_call.1} parent=11 // pred_region
          _
        $region32: #{tpu_custom_call.1} parent=11 // pred_fallthru
          _
        // Predicated region
        $region33: #{tpu_custom_call.1} parent=11 // pred_check
          %p268 = pneg %p171
        $region34: #{tpu_custom_call.1} parent=11 // pred_check_branch
          %270 = sbr.rel (%p268) target = $region36
        $region35: #{tpu_custom_call.1} parent=11 // pred_region
          %s272 = ssub.s32 1024, 1024
          %273 = vsyncadd [#allocation6], %s272
          %s274 = sshll.u32 [#allocation7], 4
          %s275 = int_to_ptr.vmem [resolvable:$true] %s274
          %280 = dma.hbm_to_vmem [thread:$0]  %s6, 1024, %s275, [#allocation6], 64, 64, 4
        $region36: #{tpu_custom_call.1} parent=11 // pred_fallthru
          _
        // Predicated region
        $region37: #{tpu_custom_call.1} parent=11 // pred_check
          %p281 = pneg %p192
        $region38: #{tpu_custom_call.1} parent=11 // pred_check_branch
          %283 = sbr.rel (%p281) target = $region40
        $region39: #{tpu_custom_call.1} parent=11 // pred_region
          _
        $region40: #{tpu_custom_call.1} parent=11 // pred_fallthru
          _
      $region12: #{tpu_custom_call.1} parent=5 // pred_fallthru
        _
      %p284 = scmp.lt.s32.totalorder %s19, 2
      // Predicated region
      $region41: #{tpu_custom_call.1} parent=5 // pred_check
        %p285 = pneg %p284
      $region42: #{tpu_custom_call.1} parent=5 // pred_check_branch
        %287 = sbr.rel (%p285) target = $region44
      $region43: #{tpu_custom_call.1} parent=5 // pred_region
        // Predicated region
        $region45: #{tpu_custom_call.1} parent=43 // pred_check
          %p288 = pneg %p39
        $region46: #{tpu_custom_call.1} parent=43 // pred_check_branch
          %290 = sbr.rel (%p288) target = $region48
        $region47: #{tpu_custom_call.1} parent=43 // pred_region
          %p291 = scmp.lt.s32.totalorder %s19, 1
          %s292 = scalar_select %p291, %s19, 1
          %s293 = smul.addr %s292, 32
          %s294 = smul.addr %s293, 8
          %s295 = scalar_lea.vmem %s0, %s294
        $region48: #{tpu_custom_call.1} parent=43 // pred_fallthru
          _
      $region44: #{tpu_custom_call.1} parent=5 // pred_fallthru
        _
      %p296 = scmp.le.s32.totalorder 1, %s19
      %p297 = scmp.lt.s32.totalorder %s19, 3
      %p298 = pnand %p296, %p297
      %p299 = pneg %p298
      // Predicated region
      $region49: #{tpu_custom_call.1} parent=5 // pred_check
        _
      $region50: #{tpu_custom_call.1} parent=5 // pred_check_branch
        %301 = sbr.rel (%p298) target = $region52
      $region51: #{tpu_custom_call.1} parent=5 // pred_region
        %s302 = ssub.s32 %s19, 1
        // Predicated region
        $region53: #{tpu_custom_call.1} parent=51 // pred_check
          %p303 = pneg %p87
        $region54: #{tpu_custom_call.1} parent=51 // pred_check_branch
          %305 = sbr.rel (%p303) target = $region56
        $region55: #{tpu_custom_call.1} parent=51 // pred_region
          %306 = dma.done [#allocation3], 1024
        $region56: #{tpu_custom_call.1} parent=51 // pred_fallthru
          _
        // Predicated region
        $region57: #{tpu_custom_call.1} parent=51 // pred_check
          %p307 = pneg %p129
        $region58: #{tpu_custom_call.1} parent=51 // pred_check_branch
          %309 = sbr.rel (%p307) target = $region60
        $region59: #{tpu_custom_call.1} parent=51 // pred_region
          %310 = dma.done [#allocation6], 9216
        $region60: #{tpu_custom_call.1} parent=51 // pred_fallthru
          _
        // Predicated region
        $region61: #{tpu_custom_call.1} parent=51 // pred_check
          %p311 = pneg %p171
        $region62: #{tpu_custom_call.1} parent=51 // pred_check_branch
          %313 = sbr.rel (%p311) target = $region64
        $region63: #{tpu_custom_call.1} parent=51 // pred_region
          %314 = dma.done [#allocation6], 1024
        $region64: #{tpu_custom_call.1} parent=51 // pred_fallthru
          _
        %p315 = scmp.lt.s32.totalorder %s24, 1
        %s316 = scalar_select %p315, %s24, 1
        %s317 = smul.addr %s316, 32
        %s318 = smul.addr %s317, 8
        %s319 = scalar_lea.vmem %s0, %s318
        %p320 = pneg %p45
        %p321 = pneg %p42
        %p322 = pneg %p66
        %p323 = pneg %p63
        %p324 = pneg %p87
        %p325 = pneg %p84
        %p326 = pneg %p108
        %p327 = pneg %p105
        %p328 = pneg %p129
        %p329 = pneg %p126
        %p330 = pneg %p150
        %p331 = pneg %p147
        %p332 = pneg %p171
        %p333 = pneg %p168
        %p334 = pneg %p192
        %p335 = pneg %p189
        %p336 = pneg %p218
        %p337 = pneg %p215
        %s338 = sand.u32 %s205, 1
        %s339 = scalar_lea.sflag [#allocation4], %s338
        %s340 = sand.u32 %s205, 1
        %s341 = smul.addr %s340, 256
        %s342 = scalar_lea.vmem [#allocation8], %s341
        %p343 = scmp.lt.s32.totalorder %s24, 1
        %s344 = scalar_select %p343, %s24, 1
        %s345 = smul.addr %s344, 32
        %s346 = smul.addr %s345, 8
        %s347 = scalar_lea.vmem %s0, %s346
        %v349 = vld [vmem:[%s347] sm:$0xff]
        %v350 = vld [vmem:[%s347 + $0x8] sm:$0xff]
        %v351 = vld [vmem:[%s347 + $0x10] sm:$0xff]
        %v352 = vld [vmem:[%s347 + $0x18] sm:$0xff]
        %v353 = vld [vmem:[%s347 + $0x20] sm:$0xff]
        %v354 = vld [vmem:[%s347 + $0x28] sm:$0xff]
        %v355 = vld [vmem:[%s347 + $0x30] sm:$0xff]
        %v356 = vld [vmem:[%s347 + $0x38] sm:$0xff]
        %v357 = vld [vmem:[%s347 + $0x40] sm:$0xff]
        %v358 = vld [vmem:[%s347 + $0x48] sm:$0xff]
        %v359 = vld [vmem:[%s347 + $0x50] sm:$0xff]
        %v360 = vld [vmem:[%s347 + $0x58] sm:$0xff]
        %v361 = vld [vmem:[%s347 + $0x60] sm:$0xff]
        %v362 = vld [vmem:[%s347 + $0x68] sm:$0xff]
        %v363 = vld [vmem:[%s347 + $0x70] sm:$0xff]
        %v364 = vld [vmem:[%s347 + $0x78] sm:$0xff]
        %v365 = vld [vmem:[%s347 + $0x80] sm:$0xff]
        %v366 = vld [vmem:[%s347 + $0x88] sm:$0xff]
        %v367 = vld [vmem:[%s347 + $0x90] sm:$0xff]
        %v368 = vld [vmem:[%s347 + $0x98] sm:$0xff]
        %v369 = vld [vmem:[%s347 + $0xa0] sm:$0xff]
        %v370 = vld [vmem:[%s347 + $0xa8] sm:$0xff]
        %v371 = vld [vmem:[%s347 + $0xb0] sm:$0xff]
        %v372 = vld [vmem:[%s347 + $0xb8] sm:$0xff]
        %v373 = vld [vmem:[%s347 + $0xc0] sm:$0xff]
        %v374 = vld [vmem:[%s347 + $0xc8] sm:$0xff]
        %v375 = vld [vmem:[%s347 + $0xd0] sm:$0xff]
        %v376 = vld [vmem:[%s347 + $0xd8] sm:$0xff]
        %v377 = vld [vmem:[%s347 + $0xe0] sm:$0xff]
        %v378 = vld [vmem:[%s347 + $0xe8] sm:$0xff]
        %v379 = vld [vmem:[%s347 + $0xf0] sm:$0xff]
        %v380 = vld [vmem:[%s347 + $0xf8] sm:$0xff]
        %v381 = vpack.c.bf16 %v350, %v349
        %v382 = vpack.c.bf16 %v352, %v351
        %v383 = vpack.c.bf16 %v354, %v353
        %v384 = vpack.c.bf16 %v356, %v355
        %v385 = vpack.c.bf16 %v358, %v357
        %v386 = vpack.c.bf16 %v360, %v359
        %v387 = vpack.c.bf16 %v362, %v361
        %v388 = vpack.c.bf16 %v364, %v363
        %v389 = vpack.c.bf16 %v366, %v365
        %v390 = vpack.c.bf16 %v368, %v367
        %v391 = vpack.c.bf16 %v370, %v369
        %v392 = vpack.c.bf16 %v372, %v371
        %v393 = vpack.c.bf16 %v374, %v373
        %v394 = vpack.c.bf16 %v376, %v375
        %v395 = vpack.c.bf16 %v378, %v377
        %v396 = vpack.c.bf16 %v380, %v379
        %v397 = vld [vmem:[#allocation2] sm:$0xf]
        %v398 = vld [vmem:[#allocation2 + $0x4] sm:$0xf]
        %v399 = vld [vmem:[#allocation2 + $0x8] sm:$0xf]
        %v400 = vld [vmem:[#allocation2 + $0xc] sm:$0xf]
        %v401 = vld [vmem:[#allocation2 + $0x10] sm:$0xf]
        %v402 = vld [vmem:[#allocation2 + $0x14] sm:$0xf]
        %v403 = vld [vmem:[#allocation2 + $0x18] sm:$0xf]
        %v404 = vld [vmem:[#allocation2 + $0x1c] sm:$0xf]
        %v405 = vld [vmem:[#allocation2 + $0x20] sm:$0xf]
        %v406 = vld [vmem:[#allocation2 + $0x24] sm:$0xf]
        %v407 = vld [vmem:[#allocation2 + $0x28] sm:$0xf]
        %v408 = vld [vmem:[#allocation2 + $0x2c] sm:$0xf]
        %v409 = vld [vmem:[#allocation2 + $0x30] sm:$0xf]
        %v410 = vld [vmem:[#allocation2 + $0x34] sm:$0xf]
        %v411 = vld [vmem:[#allocation2 + $0x38] sm:$0xf]
        %v412 = vld [vmem:[#allocation2 + $0x3c] sm:$0xf]
        %v413 = vld [vmem:[%s3] sm:$0x1]
        %v415 = vlaneseq
        %v416 = vshrl.u32 %v415, 7
        %v417 = vsub.s32 0, %v416
        %v418 = vrot.slane %v413, %v417
        %v436 = vunpack.c.l.b16 %v397
        %v437 = vunpack.c.l.b16 %v398
        %v438 = vunpack.c.l.b16 %v399
        %v439 = vunpack.c.l.b16 %v400
        %v440 = vunpack.c.l.b16 %v401
        %v441 = vunpack.c.l.b16 %v402
        %v442 = vunpack.c.l.b16 %v403
        %v443 = vunpack.c.l.b16 %v404
        %v444 = vunpack.c.l.b16 %v405
        %v445 = vunpack.c.l.b16 %v406
        %v446 = vunpack.c.l.b16 %v407
        %v447 = vunpack.c.l.b16 %v408
        %v448 = vunpack.c.l.b16 %v409
        %v449 = vunpack.c.l.b16 %v410
        %v450 = vunpack.c.l.b16 %v411
        %v451 = vunpack.c.l.b16 %v412
        %v452 = vpack.c.b16 %v437, %v436
        %v453 = vpack.c.b16 %v439, %v438
        %v454 = vpack.c.b16 %v441, %v440
        %v455 = vpack.c.b16 %v443, %v442
        %v456 = vpack.c.b16 %v445, %v444
        %v457 = vpack.c.b16 %v447, %v446
        %v458 = vpack.c.b16 %v449, %v448
        %v459 = vpack.c.b16 %v451, %v450
        %468 = vmatprep.subr.bf16.mxu0 0
        %469 = vmatpush1.bf16.msra.mxu0 %v452
        %470 = vmatprep.subr.bf16.mxu0 0
        %471 = vmatpush1.bf16.msra.mxu0 %v453
        %472 = vmatprep.subr.bf16.mxu0 0
        %473 = vmatpush1.bf16.msra.mxu0 %v454
        %474 = vmatprep.subr.bf16.mxu0 0
        %475 = vmatpush1.bf16.msra.mxu0 %v455
        %476 = vmatprep.subr.bf16.mxu0 0
        %477 = vmatpush1.bf16.msra.mxu0 %v456
        %478 = vmatprep.subr.bf16.mxu0 0
        %479 = vmatpush1.bf16.msra.mxu0 %v457
        %480 = vmatprep.subr.bf16.mxu0 0
        %481 = vmatpush1.bf16.msra.mxu0 %v458
        %482 = vmatprep.subr.bf16.mxu0 0
        %483 = vmatpush1.bf16.msra.mxu0 %v459
        %484 = vmatprep.subr.bf16.mxu0 0
        %485 = vmatpush1.bf16.msra.mxu0 0
        %486 = vmatprep.subr.bf16.mxu0 0
        %487 = vmatpush1.bf16.msra.mxu0 0
        %488 = vmatprep.subr.bf16.mxu0 0
        %489 = vmatpush1.bf16.msra.mxu0 0
        %490 = vmatprep.subr.bf16.mxu0 0
        %491 = vmatpush1.bf16.msra.mxu0 0
        %492 = vmatprep.subr.bf16.mxu0 0
        %493 = vmatpush1.bf16.msra.mxu0 0
        %494 = vmatprep.subr.bf16.mxu0 0
        %495 = vmatpush1.bf16.msra.mxu0 0
        %496 = vmatprep.subr.bf16.mxu0 0
        %497 = vmatpush1.bf16.msra.mxu0 0
        %498 = vmatprep.subr.bf16.mxu0 0
        %499 = vmatpush1.bf16.msra.mxu0 0
        %500 = vmatprep.mubr.bf16.mxu0 0
        %501 = vmatmul.mubr.bf16.gmra.mrb[0].mxu0 %v381
        %v502 = vpop.f32.mrb[0].mxu0
        %v503 = vadd.f32 %v418, %v502
        %v504 = vpop.f32.mrb[0].mxu0
        %v505 = vpop.f32.mrb[0].mxu0
        %v506 = vadd.f32 %v418, %v505
        %v507 = vpop.f32.mrb[0].mxu0
        %508 = vmatprep.mubr.bf16.mxu0 0
        %509 = vmatmul.mubr.bf16.gmra.mrb[0].mxu0 %v382
        %v510 = vpop.f32.mrb[0].mxu0
        %v511 = vadd.f32 %v418, %v510
        %v512 = vpop.f32.mrb[0].mxu0
        %v513 = vpop.f32.mrb[0].mxu0
        %v514 = vadd.f32 %v418, %v513
        %v515 = vpop.f32.mrb[0].mxu0
        %516 = vmatprep.mubr.bf16.mxu0 0
        %517 = vmatmul.mubr.bf16.gmra.mrb[0].mxu0 %v383
        %v518 = vpop.f32.mrb[0].mxu0
        %v519 = vadd.f32 %v418, %v518
        %v520 = vpop.f32.mrb[0].mxu0
        %v521 = vpop.f32.mrb[0].mxu0
        %v522 = vadd.f32 %v418, %v521
        %v523 = vpop.f32.mrb[0].mxu0
        %524 = vmatprep.mubr.bf16.mxu0 0
        %525 = vmatmul.mubr.bf16.gmra.mrb[0].mxu0 %v384
        %v526 = vpop.f32.mrb[0].mxu0
        %v527 = vadd.f32 %v418, %v526
        %v528 = vpop.f32.mrb[0].mxu0
        %v529 = vpop.f32.mrb[0].mxu0
        %v530 = vadd.f32 %v418, %v529
        %v531 = vpop.f32.mrb[0].mxu0
        %532 = vmatprep.mubr.bf16.mxu0 0
        %533 = vmatmul.mubr.bf16.gmra.mrb[0].mxu0 %v385
        %v534 = vpop.f32.mrb[0].mxu0
        %v535 = vadd.f32 %v418, %v534
        %v536 = vpop.f32.mrb[0].mxu0
        %v537 = vpop.f32.mrb[0].mxu0
        %v538 = vadd.f32 %v418, %v537
        %v539 = vpop.f32.mrb[0].mxu0
        %540 = vmatprep.mubr.bf16.mxu0 0
        %541 = vmatmul.mubr.bf16.gmra.mrb[0].mxu0 %v386
        %v542 = vpop.f32.mrb[0].mxu0
        %v543 = vadd.f32 %v418, %v542
        %v544 = vpop.f32.mrb[0].mxu0
        %v545 = vpop.f32.mrb[0].mxu0
        %v546 = vadd.f32 %v418, %v545
        %v547 = vpop.f32.mrb[0].mxu0
        %548 = vmatprep.mubr.bf16.mxu0 0
        %549 = vmatmul.mubr.bf16.gmra.mrb[0].mxu0 %v387
        %v550 = vpop.f32.mrb[0].mxu0
        %v551 = vadd.f32 %v418, %v550
        %v552 = vpop.f32.mrb[0].mxu0
        %v553 = vpop.f32.mrb[0].mxu0
        %v554 = vadd.f32 %v418, %v553
        %v555 = vpop.f32.mrb[0].mxu0
        %556 = vmatprep.mubr.bf16.mxu0 0
        %557 = vmatmul.mubr.bf16.gmra.mrb[0].mxu0 %v388
        %v558 = vpop.f32.mrb[0].mxu0
        %v559 = vadd.f32 %v418, %v558
        %v560 = vpop.f32.mrb[0].mxu0
        %v561 = vpop.f32.mrb[0].mxu0
        %v562 = vadd.f32 %v418, %v561
        %v563 = vpop.f32.mrb[0].mxu0
        %564 = vmatprep.mubr.bf16.mxu0 0
        %565 = vmatmul.mubr.bf16.gmra.mrb[0].mxu0 %v389
        %v566 = vpop.f32.mrb[0].mxu0
        %v567 = vadd.f32 %v418, %v566
        %v568 = vpop.f32.mrb[0].mxu0
        %v569 = vpop.f32.mrb[0].mxu0
        %v570 = vadd.f32 %v418, %v569
        %v571 = vpop.f32.mrb[0].mxu0
        %572 = vmatprep.mubr.bf16.mxu0 0
        %573 = vmatmul.mubr.bf16.gmra.mrb[0].mxu0 %v390
        %v574 = vpop.f32.mrb[0].mxu0
        %v575 = vadd.f32 %v418, %v574
        %v576 = vpop.f32.mrb[0].mxu0
        %v577 = vpop.f32.mrb[0].mxu0
        %v578 = vadd.f32 %v418, %v577
        %v579 = vpop.f32.mrb[0].mxu0
        %580 = vmatprep.mubr.bf16.mxu0 0
        %581 = vmatmul.mubr.bf16.gmra.mrb[0].mxu0 %v391
        %v582 = vpop.f32.mrb[0].mxu0
        %v583 = vadd.f32 %v418, %v582
        %v584 = vpop.f32.mrb[0].mxu0
        %v585 = vpop.f32.mrb[0].mxu0
        %v586 = vadd.f32 %v418, %v585
        %v587 = vpop.f32.mrb[0].mxu0
        %588 = vmatprep.mubr.bf16.mxu0 0
        %589 = vmatmul.mubr.bf16.gmra.mrb[0].mxu0 %v392
        %v590 = vpop.f32.mrb[0].mxu0
        %v591 = vadd.f32 %v418, %v590
        %v592 = vpop.f32.mrb[0].mxu0
        %v593 = vpop.f32.mrb[0].mxu0
        %v594 = vadd.f32 %v418, %v593
        %v595 = vpop.f32.mrb[0].mxu0
        %596 = vmatprep.mubr.bf16.mxu0 0
        %597 = vmatmul.mubr.bf16.gmra.mrb[0].mxu0 %v393
        %v598 = vpop.f32.mrb[0].mxu0
        %v599 = vadd.f32 %v418, %v598
        %v600 = vpop.f32.mrb[0].mxu0
        %v601 = vpop.f32.mrb[0].mxu0
        %v602 = vadd.f32 %v418, %v601
        %v603 = vpop.f32.mrb[0].mxu0
        %604 = vmatprep.mubr.bf16.mxu0 0
        %605 = vmatmul.mubr.bf16.gmra.mrb[0].mxu0 %v394
        %v606 = vpop.f32.mrb[0].mxu0
        %v607 = vadd.f32 %v418, %v606
        %v608 = vpop.f32.mrb[0].mxu0
        %v609 = vpop.f32.mrb[0].mxu0
        %v610 = vadd.f32 %v418, %v609
        %v611 = vpop.f32.mrb[0].mxu0
        %612 = vmatprep.mubr.bf16.mxu0 0
        %613 = vmatmul.mubr.bf16.gmra.mrb[0].mxu0 %v395
        %v614 = vpop.f32.mrb[0].mxu0
        %v615 = vadd.f32 %v418, %v614
        %v616 = vpop.f32.mrb[0].mxu0
        %v617 = vpop.f32.mrb[0].mxu0
        %v618 = vadd.f32 %v418, %v617
        %v619 = vpop.f32.mrb[0].mxu0
        %620 = vmatprep.mubr.bf16.mxu0 0
        %621 = vmatmul.mubr.bf16.gmra.mrb[0].mxu0 %v396
        %v622 = vpop.f32.mrb[0].mxu0
        %v623 = vadd.f32 %v418, %v622
        %v624 = vpop.f32.mrb[0].mxu0
        %v625 = vpop.f32.mrb[0].mxu0
        %v626 = vadd.f32 %v418, %v625
        %v627 = vpop.f32.mrb[0].mxu0
        %628 = vdwg.mxu0
        %v629 = vmax.f32 %v503, 0.0
        %v630 = vmax.f32 %v506, 0.0
        %v631 = vmax.f32 %v511, 0.0
        %v632 = vmax.f32 %v514, 0.0
        %v633 = vmax.f32 %v519, 0.0
        %v634 = vmax.f32 %v522, 0.0
        %v635 = vmax.f32 %v527, 0.0
        %v636 = vmax.f32 %v530, 0.0
        %v637 = vmax.f32 %v535, 0.0
        %v638 = vmax.f32 %v538, 0.0
        %v639 = vmax.f32 %v543, 0.0
        %v640 = vmax.f32 %v546, 0.0
        %v641 = vmax.f32 %v551, 0.0
        %v642 = vmax.f32 %v554, 0.0
        %v643 = vmax.f32 %v559, 0.0
        %v644 = vmax.f32 %v562, 0.0
        %v645 = vmax.f32 %v567, 0.0
        %v646 = vmax.f32 %v570, 0.0
        %v647 = vmax.f32 %v575, 0.0
        %v648 = vmax.f32 %v578, 0.0
        %v649 = vmax.f32 %v583, 0.0
        %v650 = vmax.f32 %v586, 0.0
        %v651 = vmax.f32 %v591, 0.0
        %v652 = vmax.f32 %v594, 0.0
        %v653 = vmax.f32 %v599, 0.0
        %v654 = vmax.f32 %v602, 0.0
        %v655 = vmax.f32 %v607, 0.0
        %v656 = vmax.f32 %v610, 0.0
        %v657 = vmax.f32 %v615, 0.0
        %v658 = vmax.f32 %v618, 0.0
        %v659 = vmax.f32 %v623, 0.0
        %v660 = vmax.f32 %v626, 0.0
        %v661 = vrot.slane %v629, 7
        %v662 = vrot.slane %v630, 7
        %v663 = vrot.slane %v631, 7
        %v664 = vrot.slane %v632, 7
        %v665 = vrot.slane %v633, 7
        %v666 = vrot.slane %v634, 7
        %v667 = vrot.slane %v635, 7
        %v668 = vrot.slane %v636, 7
        %v669 = vrot.slane %v637, 7
        %v670 = vrot.slane %v638, 7
        %v671 = vrot.slane %v639, 7
        %v672 = vrot.slane %v640, 7
        %v673 = vrot.slane %v641, 7
        %v674 = vrot.slane %v642, 7
        %v675 = vrot.slane %v643, 7
        %v676 = vrot.slane %v644, 7
        %v677 = vrot.slane %v645, 7
        %v678 = vrot.slane %v646, 7
        %v679 = vrot.slane %v647, 7
        %v680 = vrot.slane %v648, 7
        %v681 = vrot.slane %v649, 7
        %v682 = vrot.slane %v650, 7
        %v683 = vrot.slane %v651, 7
        %v684 = vrot.slane %v652, 7
        %v685 = vrot.slane %v653, 7
        %v686 = vrot.slane %v654, 7
        %v687 = vrot.slane %v655, 7
        %v688 = vrot.slane %v656, 7
        %v689 = vrot.slane %v657, 7
        %v690 = vrot.slane %v658, 7
        %v691 = vrot.slane %v659, 7
        %v692 = vrot.slane %v660, 7
        %v693 = vlaneseq
        %v694 = vshrl.u32 %v693, 7
        %vm695 = vcmp.lt.s32.totalorder %v694, 1
        %v696 = vsel %vm695, %v691, %v692
        %v697 = vsel %vm695, %v690, %v691
        %v698 = vsel %vm695, %v689, %v690
        %v699 = vsel %vm695, %v688, %v689
        %v700 = vsel %vm695, %v687, %v688
        %v701 = vsel %vm695, %v686, %v687
        %v702 = vsel %vm695, %v685, %v686
        %v703 = vsel %vm695, %v684, %v685
        %v704 = vsel %vm695, %v683, %v684
        %v705 = vsel %vm695, %v682, %v683
        %v706 = vsel %vm695, %v681, %v682
        %v707 = vsel %vm695, %v680, %v681
        %v708 = vsel %vm695, %v679, %v680
        %v709 = vsel %vm695, %v678, %v679
        %v710 = vsel %vm695, %v677, %v678
        %v711 = vsel %vm695, %v676, %v677
        %v712 = vsel %vm695, %v675, %v676
        %v713 = vsel %vm695, %v674, %v675
        %v714 = vsel %vm695, %v673, %v674
        %v715 = vsel %vm695, %v672, %v673
        %v716 = vsel %vm695, %v671, %v672
        %v717 = vsel %vm695, %v670, %v671
        %v718 = vsel %vm695, %v669, %v670
        %v719 = vsel %vm695, %v668, %v669
        %v720 = vsel %vm695, %v667, %v668
        %v721 = vsel %vm695, %v666, %v667
        %v722 = vsel %vm695, %v665, %v666
        %v723 = vsel %vm695, %v664, %v665
        %v724 = vsel %vm695, %v663, %v664
        %v725 = vsel %vm695, %v662, %v663
        %v726 = vsel %vm695, %v661, %v662
        %v727 = vsel %vm695, %v692, %v661
        %s728 = scalar_lea.vmem %s1, 256
        %v729 = vld [vmem:[%s728] sm:$0xf]
        %v730 = vld [vmem:[%s728 + $0x4] sm:$0xf]
        %v731 = vld [vmem:[%s728 + $0x8] sm:$0xf]
        %v732 = vld [vmem:[%s728 + $0xc] sm:$0xf]
        %v733 = vld [vmem:[%s728 + $0x10] sm:$0xf]
        %v734 = vld [vmem:[%s728 + $0x14] sm:$0xf]
        %v735 = vld [vmem:[%s728 + $0x18] sm:$0xf]
        %v736 = vld [vmem:[%s728 + $0x1c] sm:$0xf]
        %v737 = vld [vmem:[%s728 + $0x20] sm:$0xf]
        %v738 = vld [vmem:[%s728 + $0x24] sm:$0xf]
        %v739 = vld [vmem:[%s728 + $0x28] sm:$0xf]
        %v740 = vld [vmem:[%s728 + $0x2c] sm:$0xf]
        %v741 = vld [vmem:[%s728 + $0x30] sm:$0xf]
        %v742 = vld [vmem:[%s728 + $0x34] sm:$0xf]
        %v743 = vld [vmem:[%s728 + $0x38] sm:$0xf]
        %v744 = vld [vmem:[%s728 + $0x3c] sm:$0xf]
        %v745 = vld [vmem:[%s728 + $0x40] sm:$0xf]
        %v746 = vld [vmem:[%s728 + $0x44] sm:$0xf]
        %v747 = vld [vmem:[%s728 + $0x48] sm:$0xf]
        %v748 = vld [vmem:[%s728 + $0x4c] sm:$0xf]
        %v749 = vld [vmem:[%s728 + $0x50] sm:$0xf]
        %v750 = vld [vmem:[%s728 + $0x54] sm:$0xf]
        %v751 = vld [vmem:[%s728 + $0x58] sm:$0xf]
        %v752 = vld [vmem:[%s728 + $0x5c] sm:$0xf]
        %v753 = vld [vmem:[%s728 + $0x60] sm:$0xf]
        %v754 = vld [vmem:[%s728 + $0x64] sm:$0xf]
        %v755 = vld [vmem:[%s728 + $0x68] sm:$0xf]
        %v756 = vld [vmem:[%s728 + $0x6c] sm:$0xf]
        %v757 = vld [vmem:[%s728 + $0x70] sm:$0xf]
        %v758 = vld [vmem:[%s728 + $0x74] sm:$0xf]
        %v759 = vld [vmem:[%s728 + $0x78] sm:$0xf]
        %v760 = vld [vmem:[%s728 + $0x7c] sm:$0xf]
        %v761 = vunpack.c.l.bf16 %v729
        %v762 = vunpack.c.l.bf16 %v730
        %v763 = vunpack.c.l.bf16 %v731
        %v764 = vunpack.c.l.bf16 %v732
        %v765 = vunpack.c.l.bf16 %v733
        %v766 = vunpack.c.l.bf16 %v734
        %v767 = vunpack.c.l.bf16 %v735
        %v768 = vunpack.c.l.bf16 %v736
        %v769 = vunpack.c.l.bf16 %v737
        %v770 = vunpack.c.l.bf16 %v738
        %v771 = vunpack.c.l.bf16 %v739
        %v772 = vunpack.c.l.bf16 %v740
        %v773 = vunpack.c.l.bf16 %v741
        %v774 = vunpack.c.l.bf16 %v742
        %v775 = vunpack.c.l.bf16 %v743
        %v776 = vunpack.c.l.bf16 %v744
        %v777 = vunpack.c.l.bf16 %v745
        %v778 = vunpack.c.l.bf16 %v746
        %v779 = vunpack.c.l.bf16 %v747
        %v780 = vunpack.c.l.bf16 %v748
        %v781 = vunpack.c.l.bf16 %v749
        %v782 = vunpack.c.l.bf16 %v750
        %v783 = vunpack.c.l.bf16 %v751
        %v784 = vunpack.c.l.bf16 %v752
        %v785 = vunpack.c.l.bf16 %v753
        %v786 = vunpack.c.l.bf16 %v754
        %v787 = vunpack.c.l.bf16 %v755
        %v788 = vunpack.c.l.bf16 %v756
        %v789 = vunpack.c.l.bf16 %v757
        %v790 = vunpack.c.l.bf16 %v758
        %v791 = vunpack.c.l.bf16 %v759
        %v792 = vunpack.c.l.bf16 %v760
        %794 = vset.pattern.permute.xlu0 0
        %795 = vperm.xlu0 %794, %v761
        %v796 = vpop.permute.xlu0 %795
        %799 = vset.pattern.permute.xlu0 0
        %800 = vperm.xlu0 %799, %v762
        %v801 = vpop.permute.xlu0 %800
        %804 = vset.pattern.permute.xlu0 0
        %805 = vperm.xlu0 %804, %v763
        %v806 = vpop.permute.xlu0 %805
        %809 = vset.pattern.permute.xlu0 0
        %810 = vperm.xlu0 %809, %v764
        %v811 = vpop.permute.xlu0 %810
        %814 = vset.pattern.permute.xlu0 0
        %815 = vperm.xlu0 %814, %v765
        %v816 = vpop.permute.xlu0 %815
        %819 = vset.pattern.permute.xlu0 0
        %820 = vperm.xlu0 %819, %v766
        %v821 = vpop.permute.xlu0 %820
        %824 = vset.pattern.permute.xlu0 0
        %825 = vperm.xlu0 %824, %v767
        %v826 = vpop.permute.xlu0 %825
        %829 = vset.pattern.permute.xlu0 0
        %830 = vperm.xlu0 %829, %v768
        %v831 = vpop.permute.xlu0 %830
        %834 = vset.pattern.permute.xlu0 0
        %835 = vperm.xlu0 %834, %v769
        %v836 = vpop.permute.xlu0 %835
        %839 = vset.pattern.permute.xlu0 0
        %840 = vperm.xlu0 %839, %v770
        %v841 = vpop.permute.xlu0 %840
        %844 = vset.pattern.permute.xlu0 0
        %845 = vperm.xlu0 %844, %v771
        %v846 = vpop.permute.xlu0 %845
        %849 = vset.pattern.permute.xlu0 0
        %850 = vperm.xlu0 %849, %v772
        %v851 = vpop.permute.xlu0 %850
        %854 = vset.pattern.permute.xlu0 0
        %855 = vperm.xlu0 %854, %v773
        %v856 = vpop.permute.xlu0 %855
        %859 = vset.pattern.permute.xlu0 0
        %860 = vperm.xlu0 %859, %v774
        %v861 = vpop.permute.xlu0 %860
        %864 = vset.pattern.permute.xlu0 0
        %865 = vperm.xlu0 %864, %v775
        %v866 = vpop.permute.xlu0 %865
        %869 = vset.pattern.permute.xlu0 0
        %870 = vperm.xlu0 %869, %v776
        %v871 = vpop.permute.xlu0 %870
        %874 = vset.pattern.permute.xlu0 0
        %875 = vperm.xlu0 %874, %v777
        %v876 = vpop.permute.xlu0 %875
        %879 = vset.pattern.permute.xlu0 0
        %880 = vperm.xlu0 %879, %v778
        %v881 = vpop.permute.xlu0 %880
        %884 = vset.pattern.permute.xlu0 0
        %885 = vperm.xlu0 %884, %v779
        %v886 = vpop.permute.xlu0 %885
        %889 = vset.pattern.permute.xlu0 0
        %890 = vperm.xlu0 %889, %v780
        %v891 = vpop.permute.xlu0 %890
        %894 = vset.pattern.permute.xlu0 0
        %895 = vperm.xlu0 %894, %v781
        %v896 = vpop.permute.xlu0 %895
        %899 = vset.pattern.permute.xlu0 0
        %900 = vperm.xlu0 %899, %v782
        %v901 = vpop.permute.xlu0 %900
        %904 = vset.pattern.permute.xlu0 0
        %905 = vperm.xlu0 %904, %v783
        %v906 = vpop.permute.xlu0 %905
        %909 = vset.pattern.permute.xlu0 0
        %910 = vperm.xlu0 %909, %v784
        %v911 = vpop.permute.xlu0 %910
        %914 = vset.pattern.permute.xlu0 0
        %915 = vperm.xlu0 %914, %v785
        %v916 = vpop.permute.xlu0 %915
        %919 = vset.pattern.permute.xlu0 0
        %920 = vperm.xlu0 %919, %v786
        %v921 = vpop.permute.xlu0 %920
        %924 = vset.pattern.permute.xlu0 0
        %925 = vperm.xlu0 %924, %v787
        %v926 = vpop.permute.xlu0 %925
        %929 = vset.pattern.permute.xlu0 0
        %930 = vperm.xlu0 %929, %v788
        %v931 = vpop.permute.xlu0 %930
        %934 = vset.pattern.permute.xlu0 0
        %935 = vperm.xlu0 %934, %v789
        %v936 = vpop.permute.xlu0 %935
        %939 = vset.pattern.permute.xlu0 0
        %940 = vperm.xlu0 %939, %v790
        %v941 = vpop.permute.xlu0 %940
        %944 = vset.pattern.permute.xlu0 0
        %945 = vperm.xlu0 %944, %v791
        %v946 = vpop.permute.xlu0 %945
        %949 = vset.pattern.permute.xlu0 0
        %950 = vperm.xlu0 %949, %v792
        %v951 = vpop.permute.xlu0 %950
        %v953 = vmul.f32 %v727, %v796
        %v954 = vmul.f32 %v726, %v801
        %v955 = vmul.f32 %v725, %v806
        %v956 = vmul.f32 %v724, %v811
        %v957 = vmul.f32 %v723, %v816
        %v958 = vmul.f32 %v722, %v821
        %v959 = vmul.f32 %v721, %v826
        %v960 = vmul.f32 %v720, %v831
        %v961 = vmul.f32 %v719, %v836
        %v962 = vmul.f32 %v718, %v841
        %v963 = vmul.f32 %v717, %v846
        %v964 = vmul.f32 %v716, %v851
        %v965 = vmul.f32 %v715, %v856
        %v966 = vmul.f32 %v714, %v861
        %v967 = vmul.f32 %v713, %v866
        %v968 = vmul.f32 %v712, %v871
        %v969 = vmul.f32 %v711, %v876
        %v970 = vmul.f32 %v710, %v881
        %v971 = vmul.f32 %v709, %v886
        %v972 = vmul.f32 %v708, %v891
        %v973 = vmul.f32 %v707, %v896
        %v974 = vmul.f32 %v706, %v901
        %v975 = vmul.f32 %v705, %v906
        %v976 = vmul.f32 %v704, %v911
        %v977 = vmul.f32 %v703, %v916
        %v978 = vmul.f32 %v702, %v921
        %v979 = vmul.f32 %v701, %v926
        %v980 = vmul.f32 %v700, %v931
        %v981 = vmul.f32 %v699, %v936
        %v982 = vmul.f32 %v698, %v941
        %v983 = vmul.f32 %v697, %v946
        %v984 = vmul.f32 %v696, %v951
        %v985 = vrot.slane %v629, 1
        %v986 = vrot.slane %v630, 1
        %v987 = vrot.slane %v631, 1
        %v988 = vrot.slane %v632, 1
        %v989 = vrot.slane %v633, 1
        %v990 = vrot.slane %v634, 1
        %v991 = vrot.slane %v635, 1
        %v992 = vrot.slane %v636, 1
        %v993 = vrot.slane %v637, 1
        %v994 = vrot.slane %v638, 1
        %v995 = vrot.slane %v639, 1
        %v996 = vrot.slane %v640, 1
        %v997 = vrot.slane %v641, 1
        %v998 = vrot.slane %v642, 1
        %v999 = vrot.slane %v643, 1
        %v1000 = vrot.slane %v644, 1
        %v1001 = vrot.slane %v645, 1
        %v1002 = vrot.slane %v646, 1
        %v1003 = vrot.slane %v647, 1
        %v1004 = vrot.slane %v648, 1
        %v1005 = vrot.slane %v649, 1
        %v1006 = vrot.slane %v650, 1
        %v1007 = vrot.slane %v651, 1
        %v1008 = vrot.slane %v652, 1
        %v1009 = vrot.slane %v653, 1
        %v1010 = vrot.slane %v654, 1
        %v1011 = vrot.slane %v655, 1
        %v1012 = vrot.slane %v656, 1
        %v1013 = vrot.slane %v657, 1
        %v1014 = vrot.slane %v658, 1
        %v1015 = vrot.slane %v659, 1
        %v1016 = vrot.slane %v660, 1
        %vm1017 = vcmp.lt.s32.totalorder %v694, 7
        %v1018 = vsel %vm1017, %v1015, %v1016
        %v1019 = vsel %vm1017, %v1014, %v1015
        %v1020 = vsel %vm1017, %v1013, %v1014
        %v1021 = vsel %vm1017, %v1012, %v1013
        %v1022 = vsel %vm1017, %v1011, %v1012
        %v1023 = vsel %vm1017, %v1010, %v1011
        %v1024 = vsel %vm1017, %v1009, %v1010
        %v1025 = vsel %vm1017, %v1008, %v1009
        %v1026 = vsel %vm1017, %v1007, %v1008
        %v1027 = vsel %vm1017, %v1006, %v1007
        %v1028 = vsel %vm1017, %v1005, %v1006
        %v1029 = vsel %vm1017, %v1004, %v1005
        %v1030 = vsel %vm1017, %v1003, %v1004
        %v1031 = vsel %vm1017, %v1002, %v1003
        %v1032 = vsel %vm1017, %v1001, %v1002
        %v1033 = vsel %vm1017, %v1000, %v1001
        %v1034 = vsel %vm1017, %v999, %v1000
        %v1035 = vsel %vm1017, %v998, %v999
        %v1036 = vsel %vm1017, %v997, %v998
        %v1037 = vsel %vm1017, %v996, %v997
        %v1038 = vsel %vm1017, %v995, %v996
        %v1039 = vsel %vm1017, %v994, %v995
        %v1040 = vsel %vm1017, %v993, %v994
        %v1041 = vsel %vm1017, %v992, %v993
        %v1042 = vsel %vm1017, %v991, %v992
        %v1043 = vsel %vm1017, %v990, %v991
        %v1044 = vsel %vm1017, %v989, %v990
        %v1045 = vsel %vm1017, %v988, %v989
        %v1046 = vsel %vm1017, %v987, %v988
        %v1047 = vsel %vm1017, %v986, %v987
        %v1048 = vsel %vm1017, %v985, %v986
        %v1049 = vsel %vm1017, %v1016, %v985
        %s1050 = scalar_lea.vmem %s1, 384
        %v1051 = vld [vmem:[%s1050] sm:$0xf]
        %v1052 = vld [vmem:[%s1050 + $0x4] sm:$0xf]
        %v1053 = vld [vmem:[%s1050 + $0x8] sm:$0xf]
        %v1054 = vld [vmem:[%s1050 + $0xc] sm:$0xf]
        %v1055 = vld [vmem:[%s1050 + $0x10] sm:$0xf]
        %v1056 = vld [vmem:[%s1050 + $0x14] sm:$0xf]
        %v1057 = vld [vmem:[%s1050 + $0x18] sm:$0xf]
        %v1058 = vld [vmem:[%s1050 + $0x1c] sm:$0xf]
        %v1059 = vld [vmem:[%s1050 + $0x20] sm:$0xf]
        %v1060 = vld [vmem:[%s1050 + $0x24] sm:$0xf]
        %v1061 = vld [vmem:[%s1050 + $0x28] sm:$0xf]
        %v1062 = vld [vmem:[%s1050 + $0x2c] sm:$0xf]
        %v1063 = vld [vmem:[%s1050 + $0x30] sm:$0xf]
        %v1064 = vld [vmem:[%s1050 + $0x34] sm:$0xf]
        %v1065 = vld [vmem:[%s1050 + $0x38] sm:$0xf]
        %v1066 = vld [vmem:[%s1050 + $0x3c] sm:$0xf]
        %v1067 = vld [vmem:[%s1050 + $0x40] sm:$0xf]
        %v1068 = vld [vmem:[%s1050 + $0x44] sm:$0xf]
        %v1069 = vld [vmem:[%s1050 + $0x48] sm:$0xf]
        %v1070 = vld [vmem:[%s1050 + $0x4c] sm:$0xf]
        %v1071 = vld [vmem:[%s1050 + $0x50] sm:$0xf]
        %v1072 = vld [vmem:[%s1050 + $0x54] sm:$0xf]
        %v1073 = vld [vmem:[%s1050 + $0x58] sm:$0xf]
        %v1074 = vld [vmem:[%s1050 + $0x5c] sm:$0xf]
        %v1075 = vld [vmem:[%s1050 + $0x60] sm:$0xf]
        %v1076 = vld [vmem:[%s1050 + $0x64] sm:$0xf]
        %v1077 = vld [vmem:[%s1050 + $0x68] sm:$0xf]
        %v1078 = vld [vmem:[%s1050 + $0x6c] sm:$0xf]
        %v1079 = vld [vmem:[%s1050 + $0x70] sm:$0xf]
        %v1080 = vld [vmem:[%s1050 + $0x74] sm:$0xf]
        %v1081 = vld [vmem:[%s1050 + $0x78] sm:$0xf]
        %v1082 = vld [vmem:[%s1050 + $0x7c] sm:$0xf]
        %v1083 = vunpack.c.l.bf16 %v1051
        %v1084 = vunpack.c.l.bf16 %v1052
        %v1085 = vunpack.c.l.bf16 %v1053
        %v1086 = vunpack.c.l.bf16 %v1054
        %v1087 = vunpack.c.l.bf16 %v1055
        %v1088 = vunpack.c.l.bf16 %v1056
        %v1089 = vunpack.c.l.bf16 %v1057
        %v1090 = vunpack.c.l.bf16 %v1058
        %v1091 = vunpack.c.l.bf16 %v1059
        %v1092 = vunpack.c.l.bf16 %v1060
        %v1093 = vunpack.c.l.bf16 %v1061
        %v1094 = vunpack.c.l.bf16 %v1062
        %v1095 = vunpack.c.l.bf16 %v1063
        %v1096 = vunpack.c.l.bf16 %v1064
        %v1097 = vunpack.c.l.bf16 %v1065
        %v1098 = vunpack.c.l.bf16 %v1066
        %v1099 = vunpack.c.l.bf16 %v1067
        %v1100 = vunpack.c.l.bf16 %v1068
        %v1101 = vunpack.c.l.bf16 %v1069
        %v1102 = vunpack.c.l.bf16 %v1070
        %v1103 = vunpack.c.l.bf16 %v1071
        %v1104 = vunpack.c.l.bf16 %v1072
        %v1105 = vunpack.c.l.bf16 %v1073
        %v1106 = vunpack.c.l.bf16 %v1074
        %v1107 = vunpack.c.l.bf16 %v1075
        %v1108 = vunpack.c.l.bf16 %v1076
        %v1109 = vunpack.c.l.bf16 %v1077
        %v1110 = vunpack.c.l.bf16 %v1078
        %v1111 = vunpack.c.l.bf16 %v1079
        %v1112 = vunpack.c.l.bf16 %v1080
        %v1113 = vunpack.c.l.bf16 %v1081
        %v1114 = vunpack.c.l.bf16 %v1082
        %1116 = vset.pattern.permute.xlu0 0
        %1117 = vperm.xlu0 %1116, %v1083
        %v1118 = vpop.permute.xlu0 %1117
        %1121 = vset.pattern.permute.xlu0 0
        %1122 = vperm.xlu0 %1121, %v1084
        %v1123 = vpop.permute.xlu0 %1122
        %1126 = vset.pattern.permute.xlu0 0
        %1127 = vperm.xlu0 %1126, %v1085
        %v1128 = vpop.permute.xlu0 %1127
        %1131 = vset.pattern.permute.xlu0 0
        %1132 = vperm.xlu0 %1131, %v1086
        %v1133 = vpop.permute.xlu0 %1132
        %1136 = vset.pattern.permute.xlu0 0
        %1137 = vperm.xlu0 %1136, %v1087
        %v1138 = vpop.permute.xlu0 %1137
        %1141 = vset.pattern.permute.xlu0 0
        %1142 = vperm.xlu0 %1141, %v1088
        %v1143 = vpop.permute.xlu0 %1142
        %1146 = vset.pattern.permute.xlu0 0
        %1147 = vperm.xlu0 %1146, %v1089
        %v1148 = vpop.permute.xlu0 %1147
        %1151 = vset.pattern.permute.xlu0 0
        %1152 = vperm.xlu0 %1151, %v1090
        %v1153 = vpop.permute.xlu0 %1152
        %1156 = vset.pattern.permute.xlu0 0
        %1157 = vperm.xlu0 %1156, %v1091
        %v1158 = vpop.permute.xlu0 %1157
        %1161 = vset.pattern.permute.xlu0 0
        %1162 = vperm.xlu0 %1161, %v1092
        %v1163 = vpop.permute.xlu0 %1162
        %1166 = vset.pattern.permute.xlu0 0
        %1167 = vperm.xlu0 %1166, %v1093
        %v1168 = vpop.permute.xlu0 %1167
        %1171 = vset.pattern.permute.xlu0 0
        %1172 = vperm.xlu0 %1171, %v1094
        %v1173 = vpop.permute.xlu0 %1172
        %1176 = vset.pattern.permute.xlu0 0
        %1177 = vperm.xlu0 %1176, %v1095
        %v1178 = vpop.permute.xlu0 %1177
        %1181 = vset.pattern.permute.xlu0 0
        %1182 = vperm.xlu0 %1181, %v1096
        %v1183 = vpop.permute.xlu0 %1182
        %1186 = vset.pattern.permute.xlu0 0
        %1187 = vperm.xlu0 %1186, %v1097
        %v1188 = vpop.permute.xlu0 %1187
        %1191 = vset.pattern.permute.xlu0 0
        %1192 = vperm.xlu0 %1191, %v1098
        %v1193 = vpop.permute.xlu0 %1192
        %1196 = vset.pattern.permute.xlu0 0
        %1197 = vperm.xlu0 %1196, %v1099
        %v1198 = vpop.permute.xlu0 %1197
        %1201 = vset.pattern.permute.xlu0 0
        %1202 = vperm.xlu0 %1201, %v1100
        %v1203 = vpop.permute.xlu0 %1202
        %1206 = vset.pattern.permute.xlu0 0
        %1207 = vperm.xlu0 %1206, %v1101
        %v1208 = vpop.permute.xlu0 %1207
        %1211 = vset.pattern.permute.xlu0 0
        %1212 = vperm.xlu0 %1211, %v1102
        %v1213 = vpop.permute.xlu0 %1212
        %1216 = vset.pattern.permute.xlu0 0
        %1217 = vperm.xlu0 %1216, %v1103
        %v1218 = vpop.permute.xlu0 %1217
        %1221 = vset.pattern.permute.xlu0 0
        %1222 = vperm.xlu0 %1221, %v1104
        %v1223 = vpop.permute.xlu0 %1222
        %1226 = vset.pattern.permute.xlu0 0
        %1227 = vperm.xlu0 %1226, %v1105
        %v1228 = vpop.permute.xlu0 %1227
        %1231 = vset.pattern.permute.xlu0 0
        %1232 = vperm.xlu0 %1231, %v1106
        %v1233 = vpop.permute.xlu0 %1232
        %1236 = vset.pattern.permute.xlu0 0
        %1237 = vperm.xlu0 %1236, %v1107
        %v1238 = vpop.permute.xlu0 %1237
        %1241 = vset.pattern.permute.xlu0 0
        %1242 = vperm.xlu0 %1241, %v1108
        %v1243 = vpop.permute.xlu0 %1242
        %1246 = vset.pattern.permute.xlu0 0
        %1247 = vperm.xlu0 %1246, %v1109
        %v1248 = vpop.permute.xlu0 %1247
        %1251 = vset.pattern.permute.xlu0 0
        %1252 = vperm.xlu0 %1251, %v1110
        %v1253 = vpop.permute.xlu0 %1252
        %1256 = vset.pattern.permute.xlu0 0
        %1257 = vperm.xlu0 %1256, %v1111
        %v1258 = vpop.permute.xlu0 %1257
        %1261 = vset.pattern.permute.xlu0 0
        %1262 = vperm.xlu0 %1261, %v1112
        %v1263 = vpop.permute.xlu0 %1262
        %1266 = vset.pattern.permute.xlu0 0
        %1267 = vperm.xlu0 %1266, %v1113
        %v1268 = vpop.permute.xlu0 %1267
        %1271 = vset.pattern.permute.xlu0 0
        %1272 = vperm.xlu0 %1271, %v1114
        %v1273 = vpop.permute.xlu0 %1272
        %v1275 = vmul.f32 %v1048, %v1118
        %v1276 = vmul.f32 %v1047, %v1123
        %v1277 = vmul.f32 %v1046, %v1128
        %v1278 = vmul.f32 %v1045, %v1133
        %v1279 = vmul.f32 %v1044, %v1138
        %v1280 = vmul.f32 %v1043, %v1143
        %v1281 = vmul.f32 %v1042, %v1148
        %v1282 = vmul.f32 %v1041, %v1153
        %v1283 = vmul.f32 %v1040, %v1158
        %v1284 = vmul.f32 %v1039, %v1163
        %v1285 = vmul.f32 %v1038, %v1168
        %v1286 = vmul.f32 %v1037, %v1173
        %v1287 = vmul.f32 %v1036, %v1178
        %v1288 = vmul.f32 %v1035, %v1183
        %v1289 = vmul.f32 %v1034, %v1188
        %v1290 = vmul.f32 %v1033, %v1193
        %v1291 = vmul.f32 %v1032, %v1198
        %v1292 = vmul.f32 %v1031, %v1203
        %v1293 = vmul.f32 %v1030, %v1208
        %v1294 = vmul.f32 %v1029, %v1213
        %v1295 = vmul.f32 %v1028, %v1218
        %v1296 = vmul.f32 %v1027, %v1223
        %v1297 = vmul.f32 %v1026, %v1228
        %v1298 = vmul.f32 %v1025, %v1233
        %v1299 = vmul.f32 %v1024, %v1238
        %v1300 = vmul.f32 %v1023, %v1243
        %v1301 = vmul.f32 %v1022, %v1248
        %v1302 = vmul.f32 %v1021, %v1253
        %v1303 = vmul.f32 %v1020, %v1258
        %v1304 = vmul.f32 %v1019, %v1263
        %v1305 = vmul.f32 %v1018, %v1268
        %v1306 = vmul.f32 %v1049, %v1273
        %v1307 = vld [vmem:[%s1] sm:$0xf]
        %v1308 = vld [vmem:[%s1 + $0x4] sm:$0xf]
        %v1309 = vld [vmem:[%s1 + $0x8] sm:$0xf]
        %v1310 = vld [vmem:[%s1 + $0xc] sm:$0xf]
        %v1311 = vld [vmem:[%s1 + $0x10] sm:$0xf]
        %v1312 = vld [vmem:[%s1 + $0x14] sm:$0xf]
        %v1313 = vld [vmem:[%s1 + $0x18] sm:$0xf]
        %v1314 = vld [vmem:[%s1 + $0x1c] sm:$0xf]
        %v1315 = vld [vmem:[%s1 + $0x20] sm:$0xf]
        %v1316 = vld [vmem:[%s1 + $0x24] sm:$0xf]
        %v1317 = vld [vmem:[%s1 + $0x28] sm:$0xf]
        %v1318 = vld [vmem:[%s1 + $0x2c] sm:$0xf]
        %v1319 = vld [vmem:[%s1 + $0x30] sm:$0xf]
        %v1320 = vld [vmem:[%s1 + $0x34] sm:$0xf]
        %v1321 = vld [vmem:[%s1 + $0x38] sm:$0xf]
        %v1322 = vld [vmem:[%s1 + $0x3c] sm:$0xf]
        %v1323 = vld [vmem:[%s1 + $0x40] sm:$0xf]
        %v1324 = vld [vmem:[%s1 + $0x44] sm:$0xf]
        %v1325 = vld [vmem:[%s1 + $0x48] sm:$0xf]
        %v1326 = vld [vmem:[%s1 + $0x4c] sm:$0xf]
        %v1327 = vld [vmem:[%s1 + $0x50] sm:$0xf]
        %v1328 = vld [vmem:[%s1 + $0x54] sm:$0xf]
        %v1329 = vld [vmem:[%s1 + $0x58] sm:$0xf]
        %v1330 = vld [vmem:[%s1 + $0x5c] sm:$0xf]
        %v1331 = vld [vmem:[%s1 + $0x60] sm:$0xf]
        %v1332 = vld [vmem:[%s1 + $0x64] sm:$0xf]
        %v1333 = vld [vmem:[%s1 + $0x68] sm:$0xf]
        %v1334 = vld [vmem:[%s1 + $0x6c] sm:$0xf]
        %v1335 = vld [vmem:[%s1 + $0x70] sm:$0xf]
        %v1336 = vld [vmem:[%s1 + $0x74] sm:$0xf]
        %v1337 = vld [vmem:[%s1 + $0x78] sm:$0xf]
        %v1338 = vld [vmem:[%s1 + $0x7c] sm:$0xf]
        %v1339 = vunpack.c.l.bf16 %v1307
        %v1340 = vunpack.c.l.bf16 %v1308
        %v1341 = vunpack.c.l.bf16 %v1309
        %v1342 = vunpack.c.l.bf16 %v1310
        %v1343 = vunpack.c.l.bf16 %v1311
        %v1344 = vunpack.c.l.bf16 %v1312
        %v1345 = vunpack.c.l.bf16 %v1313
        %v1346 = vunpack.c.l.bf16 %v1314
        %v1347 = vunpack.c.l.bf16 %v1315
        %v1348 = vunpack.c.l.bf16 %v1316
        %v1349 = vunpack.c.l.bf16 %v1317
        %v1350 = vunpack.c.l.bf16 %v1318
        %v1351 = vunpack.c.l.bf16 %v1319
        %v1352 = vunpack.c.l.bf16 %v1320
        %v1353 = vunpack.c.l.bf16 %v1321
        %v1354 = vunpack.c.l.bf16 %v1322
        %v1355 = vunpack.c.l.bf16 %v1323
        %v1356 = vunpack.c.l.bf16 %v1324
        %v1357 = vunpack.c.l.bf16 %v1325
        %v1358 = vunpack.c.l.bf16 %v1326
        %v1359 = vunpack.c.l.bf16 %v1327
        %v1360 = vunpack.c.l.bf16 %v1328
        %v1361 = vunpack.c.l.bf16 %v1329
        %v1362 = vunpack.c.l.bf16 %v1330
        %v1363 = vunpack.c.l.bf16 %v1331
        %v1364 = vunpack.c.l.bf16 %v1332
        %v1365 = vunpack.c.l.bf16 %v1333
        %v1366 = vunpack.c.l.bf16 %v1334
        %v1367 = vunpack.c.l.bf16 %v1335
        %v1368 = vunpack.c.l.bf16 %v1336
        %v1369 = vunpack.c.l.bf16 %v1337
        %v1370 = vunpack.c.l.bf16 %v1338
        %1372 = vset.pattern.permute.xlu0 0
        %1373 = vperm.xlu0 %1372, %v1339
        %v1374 = vpop.permute.xlu0 %1373
        %1377 = vset.pattern.permute.xlu0 0
        %1378 = vperm.xlu0 %1377, %v1340
        %v1379 = vpop.permute.xlu0 %1378
        %1382 = vset.pattern.permute.xlu0 0
        %1383 = vperm.xlu0 %1382, %v1341
        %v1384 = vpop.permute.xlu0 %1383
        %1387 = vset.pattern.permute.xlu0 0
        %1388 = vperm.xlu0 %1387, %v1342
        %v1389 = vpop.permute.xlu0 %1388
        %1392 = vset.pattern.permute.xlu0 0
        %1393 = vperm.xlu0 %1392, %v1343
        %v1394 = vpop.permute.xlu0 %1393
        %1397 = vset.pattern.permute.xlu0 0
        %1398 = vperm.xlu0 %1397, %v1344
        %v1399 = vpop.permute.xlu0 %1398
        %1402 = vset.pattern.permute.xlu0 0
        %1403 = vperm.xlu0 %1402, %v1345
        %v1404 = vpop.permute.xlu0 %1403
        %1407 = vset.pattern.permute.xlu0 0
        %1408 = vperm.xlu0 %1407, %v1346
        %v1409 = vpop.permute.xlu0 %1408
        %1412 = vset.pattern.permute.xlu0 0
        %1413 = vperm.xlu0 %1412, %v1347
        %v1414 = vpop.permute.xlu0 %1413
        %1417 = vset.pattern.permute.xlu0 0
        %1418 = vperm.xlu0 %1417, %v1348
        %v1419 = vpop.permute.xlu0 %1418
        %1422 = vset.pattern.permute.xlu0 0
        %1423 = vperm.xlu0 %1422, %v1349
        %v1424 = vpop.permute.xlu0 %1423
        %1427 = vset.pattern.permute.xlu0 0
        %1428 = vperm.xlu0 %1427, %v1350
        %v1429 = vpop.permute.xlu0 %1428
        %1432 = vset.pattern.permute.xlu0 0
        %1433 = vperm.xlu0 %1432, %v1351
        %v1434 = vpop.permute.xlu0 %1433
        %1437 = vset.pattern.permute.xlu0 0
        %1438 = vperm.xlu0 %1437, %v1352
        %v1439 = vpop.permute.xlu0 %1438
        %1442 = vset.pattern.permute.xlu0 0
        %1443 = vperm.xlu0 %1442, %v1353
        %v1444 = vpop.permute.xlu0 %1443
        %1447 = vset.pattern.permute.xlu0 0
        %1448 = vperm.xlu0 %1447, %v1354
        %v1449 = vpop.permute.xlu0 %1448
        %1452 = vset.pattern.permute.xlu0 0
        %1453 = vperm.xlu0 %1452, %v1355
        %v1454 = vpop.permute.xlu0 %1453
        %1457 = vset.pattern.permute.xlu0 0
        %1458 = vperm.xlu0 %1457, %v1356
        %v1459 = vpop.permute.xlu0 %1458
        %1462 = vset.pattern.permute.xlu0 0
        %1463 = vperm.xlu0 %1462, %v1357
        %v1464 = vpop.permute.xlu0 %1463
        %1467 = vset.pattern.permute.xlu0 0
        %1468 = vperm.xlu0 %1467, %v1358
        %v1469 = vpop.permute.xlu0 %1468
        %1472 = vset.pattern.permute.xlu0 0
        %1473 = vperm.xlu0 %1472, %v1359
        %v1474 = vpop.permute.xlu0 %1473
        %1477 = vset.pattern.permute.xlu0 0
        %1478 = vperm.xlu0 %1477, %v1360
        %v1479 = vpop.permute.xlu0 %1478
        %1482 = vset.pattern.permute.xlu0 0
        %1483 = vperm.xlu0 %1482, %v1361
        %v1484 = vpop.permute.xlu0 %1483
        %1487 = vset.pattern.permute.xlu0 0
        %1488 = vperm.xlu0 %1487, %v1362
        %v1489 = vpop.permute.xlu0 %1488
        %1492 = vset.pattern.permute.xlu0 0
        %1493 = vperm.xlu0 %1492, %v1363
        %v1494 = vpop.permute.xlu0 %1493
        %1497 = vset.pattern.permute.xlu0 0
        %1498 = vperm.xlu0 %1497, %v1364
        %v1499 = vpop.permute.xlu0 %1498
        %1502 = vset.pattern.permute.xlu0 0
        %1503 = vperm.xlu0 %1502, %v1365
        %v1504 = vpop.permute.xlu0 %1503
        %1507 = vset.pattern.permute.xlu0 0
        %1508 = vperm.xlu0 %1507, %v1366
        %v1509 = vpop.permute.xlu0 %1508
        %1512 = vset.pattern.permute.xlu0 0
        %1513 = vperm.xlu0 %1512, %v1367
        %v1514 = vpop.permute.xlu0 %1513
        %1517 = vset.pattern.permute.xlu0 0
        %1518 = vperm.xlu0 %1517, %v1368
        %v1519 = vpop.permute.xlu0 %1518
        %1522 = vset.pattern.permute.xlu0 0
        %1523 = vperm.xlu0 %1522, %v1369
        %v1524 = vpop.permute.xlu0 %1523
        %1527 = vset.pattern.permute.xlu0 0
        %1528 = vperm.xlu0 %1527, %v1370
        %v1529 = vpop.permute.xlu0 %1528
        %v1531 = vmul.f32 %v983, %v1374
        %v1532 = vmul.f32 %v984, %v1379
        %v1533 = vmul.f32 %v953, %v1384
        %v1534 = vmul.f32 %v954, %v1389
        %v1535 = vmul.f32 %v955, %v1394
        %v1536 = vmul.f32 %v956, %v1399
        %v1537 = vmul.f32 %v957, %v1404
        %v1538 = vmul.f32 %v958, %v1409
        %v1539 = vmul.f32 %v959, %v1414
        %v1540 = vmul.f32 %v960, %v1419
        %v1541 = vmul.f32 %v961, %v1424
        %v1542 = vmul.f32 %v962, %v1429
        %v1543 = vmul.f32 %v963, %v1434
        %v1544 = vmul.f32 %v964, %v1439
        %v1545 = vmul.f32 %v965, %v1444
        %v1546 = vmul.f32 %v966, %v1449
        %v1547 = vmul.f32 %v967, %v1454
        %v1548 = vmul.f32 %v968, %v1459
        %v1549 = vmul.f32 %v969, %v1464
        %v1550 = vmul.f32 %v970, %v1469
        %v1551 = vmul.f32 %v971, %v1474
        %v1552 = vmul.f32 %v972, %v1479
        %v1553 = vmul.f32 %v973, %v1484
        %v1554 = vmul.f32 %v974, %v1489
        %v1555 = vmul.f32 %v975, %v1494
        %v1556 = vmul.f32 %v976, %v1499
        %v1557 = vmul.f32 %v977, %v1504
        %v1558 = vmul.f32 %v978, %v1509
        %v1559 = vmul.f32 %v979, %v1514
        %v1560 = vmul.f32 %v980, %v1519
        %v1561 = vmul.f32 %v981, %v1524
        %v1562 = vmul.f32 %v982, %v1529
        %v1563 = vpack.c.bf16 %v1532, %v1531
        %v1564 = vpack.c.bf16 %v1534, %v1533
        %v1565 = vpack.c.bf16 %v1536, %v1535
        %v1566 = vpack.c.bf16 %v1538, %v1537
        %v1567 = vpack.c.bf16 %v1540, %v1539
        %v1568 = vpack.c.bf16 %v1542, %v1541
        %v1569 = vpack.c.bf16 %v1544, %v1543
        %v1570 = vpack.c.bf16 %v1546, %v1545
        %v1571 = vpack.c.bf16 %v1548, %v1547
        %v1572 = vpack.c.bf16 %v1550, %v1549
        %v1573 = vpack.c.bf16 %v1552, %v1551
        %v1574 = vpack.c.bf16 %v1554, %v1553
        %v1575 = vpack.c.bf16 %v1556, %v1555
        %v1576 = vpack.c.bf16 %v1558, %v1557
        %v1577 = vpack.c.bf16 %v1560, %v1559
        %v1578 = vpack.c.bf16 %v1562, %v1561
        %v1579 = vmul.f32 %v659, %v1374
        %v1580 = vmul.f32 %v660, %v1379
        %v1581 = vmul.f32 %v629, %v1384
        %v1582 = vmul.f32 %v630, %v1389
        %v1583 = vmul.f32 %v631, %v1394
        %v1584 = vmul.f32 %v632, %v1399
        %v1585 = vmul.f32 %v633, %v1404
        %v1586 = vmul.f32 %v634, %v1409
        %v1587 = vmul.f32 %v635, %v1414
        %v1588 = vmul.f32 %v636, %v1419
        %v1589 = vmul.f32 %v637, %v1424
        %v1590 = vmul.f32 %v638, %v1429
        %v1591 = vmul.f32 %v639, %v1434
        %v1592 = vmul.f32 %v640, %v1439
        %v1593 = vmul.f32 %v641, %v1444
        %v1594 = vmul.f32 %v642, %v1449
        %v1595 = vmul.f32 %v643, %v1454
        %v1596 = vmul.f32 %v644, %v1459
        %v1597 = vmul.f32 %v645, %v1464
        %v1598 = vmul.f32 %v646, %v1469
        %v1599 = vmul.f32 %v647, %v1474
        %v1600 = vmul.f32 %v648, %v1479
        %v1601 = vmul.f32 %v649, %v1484
        %v1602 = vmul.f32 %v650, %v1489
        %v1603 = vmul.f32 %v651, %v1494
        %v1604 = vmul.f32 %v652, %v1499
        %v1605 = vmul.f32 %v653, %v1504
        %v1606 = vmul.f32 %v654, %v1509
        %v1607 = vmul.f32 %v655, %v1514
        %v1608 = vmul.f32 %v656, %v1519
        %v1609 = vmul.f32 %v657, %v1524
        %v1610 = vmul.f32 %v658, %v1529
        %v1611 = vpack.c.bf16 %v1580, %v1579
        %v1612 = vpack.c.bf16 %v1582, %v1581
        %v1613 = vpack.c.bf16 %v1584, %v1583
        %v1614 = vpack.c.bf16 %v1586, %v1585
        %v1615 = vpack.c.bf16 %v1588, %v1587
        %v1616 = vpack.c.bf16 %v1590, %v1589
        %v1617 = vpack.c.bf16 %v1592, %v1591
        %v1618 = vpack.c.bf16 %v1594, %v1593
        %v1619 = vpack.c.bf16 %v1596, %v1595
        %v1620 = vpack.c.bf16 %v1598, %v1597
        %v1621 = vpack.c.bf16 %v1600, %v1599
        %v1622 = vpack.c.bf16 %v1602, %v1601
        %v1623 = vpack.c.bf16 %v1604, %v1603
        %v1624 = vpack.c.bf16 %v1606, %v1605
        %v1625 = vpack.c.bf16 %v1608, %v1607
        %v1626 = vpack.c.bf16 %v1610, %v1609
        %v1627 = vld [vmem:[#allocation5] sm:$0xf]
        %v1628 = vld [vmem:[#allocation5 + $0x4] sm:$0xf]
        %v1629 = vld [vmem:[#allocation5 + $0x8] sm:$0xf]
        %v1630 = vld [vmem:[#allocation5 + $0xc] sm:$0xf]
        %v1631 = vld [vmem:[#allocation5 + $0x10] sm:$0xf]
        %v1632 = vld [vmem:[#allocation5 + $0x14] sm:$0xf]
        %v1633 = vld [vmem:[#allocation5 + $0x18] sm:$0xf]
        %v1634 = vld [vmem:[#allocation5 + $0x1c] sm:$0xf]
        %v1635 = vld [vmem:[#allocation5 + $0x20] sm:$0xf]
        %v1636 = vld [vmem:[#allocation5 + $0x24] sm:$0xf]
        %v1637 = vld [vmem:[#allocation5 + $0x28] sm:$0xf]
        %v1638 = vld [vmem:[#allocation5 + $0x2c] sm:$0xf]
        %v1639 = vld [vmem:[#allocation5 + $0x30] sm:$0xf]
        %v1640 = vld [vmem:[#allocation5 + $0x34] sm:$0xf]
        %v1641 = vld [vmem:[#allocation5 + $0x38] sm:$0xf]
        %v1642 = vld [vmem:[#allocation5 + $0x3c] sm:$0xf]
        %v1643 = vld [vmem:[#allocation5 + $0x40] sm:$0xf]
        %v1644 = vld [vmem:[#allocation5 + $0x44] sm:$0xf]
        %v1645 = vld [vmem:[#allocation5 + $0x48] sm:$0xf]
        %v1646 = vld [vmem:[#allocation5 + $0x4c] sm:$0xf]
        %v1647 = vld [vmem:[#allocation5 + $0x50] sm:$0xf]
        %v1648 = vld [vmem:[#allocation5 + $0x54] sm:$0xf]
        %v1649 = vld [vmem:[#allocation5 + $0x58] sm:$0xf]
        %v1650 = vld [vmem:[#allocation5 + $0x5c] sm:$0xf]
        %v1651 = vld [vmem:[#allocation5 + $0x60] sm:$0xf]
        %v1652 = vld [vmem:[#allocation5 + $0x64] sm:$0xf]
        %v1653 = vld [vmem:[#allocation5 + $0x68] sm:$0xf]
        %v1654 = vld [vmem:[#allocation5 + $0x6c] sm:$0xf]
        %v1655 = vld [vmem:[#allocation5 + $0x70] sm:$0xf]
        %v1656 = vld [vmem:[#allocation5 + $0x74] sm:$0xf]
        %v1657 = vld [vmem:[#allocation5 + $0x78] sm:$0xf]
        %v1658 = vld [vmem:[#allocation5 + $0x7c] sm:$0xf]
        %v1659 = vmul.f32 %v1305, %v1374
        %v1660 = vmul.f32 %v1306, %v1379
        %v1661 = vmul.f32 %v1275, %v1384
        %v1662 = vmul.f32 %v1276, %v1389
        %v1663 = vmul.f32 %v1277, %v1394
        %v1664 = vmul.f32 %v1278, %v1399
        %v1665 = vmul.f32 %v1279, %v1404
        %v1666 = vmul.f32 %v1280, %v1409
        %v1667 = vmul.f32 %v1281, %v1414
        %v1668 = vmul.f32 %v1282, %v1419
        %v1669 = vmul.f32 %v1283, %v1424
        %v1670 = vmul.f32 %v1284, %v1429
        %v1671 = vmul.f32 %v1285, %v1434
        %v1672 = vmul.f32 %v1286, %v1439
        %v1673 = vmul.f32 %v1287, %v1444
        %v1674 = vmul.f32 %v1288, %v1449
        %v1675 = vmul.f32 %v1289, %v1454
        %v1676 = vmul.f32 %v1290, %v1459
        %v1677 = vmul.f32 %v1291, %v1464
        %v1678 = vmul.f32 %v1292, %v1469
        %v1679 = vmul.f32 %v1293, %v1474
        %v1680 = vmul.f32 %v1294, %v1479
        %v1681 = vmul.f32 %v1295, %v1484
        %v1682 = vmul.f32 %v1296, %v1489
        %v1683 = vmul.f32 %v1297, %v1494
        %v1684 = vmul.f32 %v1298, %v1499
        %v1685 = vmul.f32 %v1299, %v1504
        %v1686 = vmul.f32 %v1300, %v1509
        %v1687 = vmul.f32 %v1301, %v1514
        %v1688 = vmul.f32 %v1302, %v1519
        %v1689 = vmul.f32 %v1303, %v1524
        %v1690 = vmul.f32 %v1304, %v1529
        %v1691 = vpack.c.bf16 %v1660, %v1659
        %v1692 = vpack.c.bf16 %v1662, %v1661
        %v1693 = vpack.c.bf16 %v1664, %v1663
        %v1694 = vpack.c.bf16 %v1666, %v1665
        %v1695 = vpack.c.bf16 %v1668, %v1667
        %v1696 = vpack.c.bf16 %v1670, %v1669
        %v1697 = vpack.c.bf16 %v1672, %v1671
        %v1698 = vpack.c.bf16 %v1674, %v1673
        %v1699 = vpack.c.bf16 %v1676, %v1675
        %v1700 = vpack.c.bf16 %v1678, %v1677
        %v1701 = vpack.c.bf16 %v1680, %v1679
        %v1702 = vpack.c.bf16 %v1682, %v1681
        %v1703 = vpack.c.bf16 %v1684, %v1683
        %v1704 = vpack.c.bf16 %v1686, %v1685
        %v1705 = vpack.c.bf16 %v1688, %v1687
        %v1706 = vpack.c.bf16 %v1690, %v1689
        %v1707 = vpack.c.bf16 %v954, %v953
        %v1708 = vpack.c.bf16 %v956, %v955
        %v1709 = vpack.c.bf16 %v958, %v957
        %v1710 = vpack.c.bf16 %v960, %v959
        %v1711 = vpack.c.bf16 %v962, %v961
        %v1712 = vpack.c.bf16 %v964, %v963
        %v1713 = vpack.c.bf16 %v966, %v965
        %v1714 = vpack.c.bf16 %v968, %v967
        %v1715 = vpack.c.bf16 %v970, %v969
        %v1716 = vpack.c.bf16 %v972, %v971
        %v1717 = vpack.c.bf16 %v974, %v973
        %v1718 = vpack.c.bf16 %v976, %v975
        %v1719 = vpack.c.bf16 %v978, %v977
        %v1720 = vpack.c.bf16 %v980, %v979
        %v1721 = vpack.c.bf16 %v982, %v981
        %v1722 = vpack.c.bf16 %v984, %v983
        %v1723 = vld [vmem:[#allocation5 + $0x80] sm:$0xf]
        %v1724 = vld [vmem:[#allocation5 + $0x84] sm:$0xf]
        %v1725 = vld [vmem:[#allocation5 + $0x88] sm:$0xf]
        %v1726 = vld [vmem:[#allocation5 + $0x8c] sm:$0xf]
        %v1727 = vld [vmem:[#allocation5 + $0x90] sm:$0xf]
        %v1728 = vld [vmem:[#allocation5 + $0x94] sm:$0xf]
        %v1729 = vld [vmem:[#allocation5 + $0x98] sm:$0xf]
        %v1730 = vld [vmem:[#allocation5 + $0x9c] sm:$0xf]
        %v1731 = vld [vmem:[#allocation5 + $0xa0] sm:$0xf]
        %v1732 = vld [vmem:[#allocation5 + $0xa4] sm:$0xf]
        %v1733 = vld [vmem:[#allocation5 + $0xa8] sm:$0xf]
        %v1734 = vld [vmem:[#allocation5 + $0xac] sm:$0xf]
        %v1735 = vld [vmem:[#allocation5 + $0xb0] sm:$0xf]
        %v1736 = vld [vmem:[#allocation5 + $0xb4] sm:$0xf]
        %v1737 = vld [vmem:[#allocation5 + $0xb8] sm:$0xf]
        %v1738 = vld [vmem:[#allocation5 + $0xbc] sm:$0xf]
        %v1739 = vld [vmem:[#allocation5 + $0xc0] sm:$0xf]
        %v1740 = vld [vmem:[#allocation5 + $0xc4] sm:$0xf]
        %v1741 = vld [vmem:[#allocation5 + $0xc8] sm:$0xf]
        %v1742 = vld [vmem:[#allocation5 + $0xcc] sm:$0xf]
        %v1743 = vld [vmem:[#allocation5 + $0xd0] sm:$0xf]
        %v1744 = vld [vmem:[#allocation5 + $0xd4] sm:$0xf]
        %v1745 = vld [vmem:[#allocation5 + $0xd8] sm:$0xf]
        %v1746 = vld [vmem:[#allocation5 + $0xdc] sm:$0xf]
        %v1747 = vld [vmem:[#allocation5 + $0xe0] sm:$0xf]
        %v1748 = vld [vmem:[#allocation5 + $0xe4] sm:$0xf]
        %v1749 = vld [vmem:[#allocation5 + $0xe8] sm:$0xf]
        %v1750 = vld [vmem:[#allocation5 + $0xec] sm:$0xf]
        %v1751 = vld [vmem:[#allocation5 + $0xf0] sm:$0xf]
        %v1752 = vld [vmem:[#allocation5 + $0xf4] sm:$0xf]
        %v1753 = vld [vmem:[#allocation5 + $0xf8] sm:$0xf]
        %v1754 = vld [vmem:[#allocation5 + $0xfc] sm:$0xf]
        %v1787 = vunpack.c.l.b16 %v1723
        %v1788 = vunpack.c.l.b16 %v1724
        %v1789 = vunpack.c.l.b16 %v1725
        %v1790 = vunpack.c.l.b16 %v1726
        %v1791 = vunpack.c.l.b16 %v1727
        %v1792 = vunpack.c.l.b16 %v1728
        %v1793 = vunpack.c.l.b16 %v1729
        %v1794 = vunpack.c.l.b16 %v1730
        %v1795 = vunpack.c.l.b16 %v1731
        %v1796 = vunpack.c.l.b16 %v1732
        %v1797 = vunpack.c.l.b16 %v1733
        %v1798 = vunpack.c.l.b16 %v1734
        %v1799 = vunpack.c.l.b16 %v1735
        %v1800 = vunpack.c.l.b16 %v1736
        %v1801 = vunpack.c.l.b16 %v1737
        %v1802 = vunpack.c.l.b16 %v1738
        %v1803 = vunpack.c.l.b16 %v1739
        %v1804 = vunpack.c.l.b16 %v1740
        %v1805 = vunpack.c.l.b16 %v1741
        %v1806 = vunpack.c.l.b16 %v1742
        %v1807 = vunpack.c.l.b16 %v1743
        %v1808 = vunpack.c.l.b16 %v1744
        %v1809 = vunpack.c.l.b16 %v1745
        %v1810 = vunpack.c.l.b16 %v1746
        %v1811 = vunpack.c.l.b16 %v1747
        %v1812 = vunpack.c.l.b16 %v1748
        %v1813 = vunpack.c.l.b16 %v1749
        %v1814 = vunpack.c.l.b16 %v1750
        %v1815 = vunpack.c.l.b16 %v1751
        %v1816 = vunpack.c.l.b16 %v1752
        %v1817 = vunpack.c.l.b16 %v1753
        %v1818 = vunpack.c.l.b16 %v1754
        %v1819 = vpack.c.b16 %v1788, %v1787
        %v1820 = vpack.c.b16 %v1790, %v1789
        %v1821 = vpack.c.b16 %v1792, %v1791
        %v1822 = vpack.c.b16 %v1794, %v1793
        %v1823 = vpack.c.b16 %v1796, %v1795
        %v1824 = vpack.c.b16 %v1798, %v1797
        %v1825 = vpack.c.b16 %v1800, %v1799
        %v1826 = vpack.c.b16 %v1802, %v1801
        %v1827 = vpack.c.b16 %v1804, %v1803
        %v1828 = vpack.c.b16 %v1806, %v1805
        %v1829 = vpack.c.b16 %v1808, %v1807
        %v1830 = vpack.c.b16 %v1810, %v1809
        %v1831 = vpack.c.b16 %v1812, %v1811
        %v1832 = vpack.c.b16 %v1814, %v1813
        %v1833 = vpack.c.b16 %v1816, %v1815
        %v1834 = vpack.c.b16 %v1818, %v1817
        %1851 = vmatprep.subr.bf16.mxu0 0
        %1852 = vmatpush1.bf16.msra.mxu0 %v1819
        %1853 = vmatprep.subr.bf16.mxu0 0
        %1854 = vmatpush1.bf16.msra.mxu0 %v1820
        %1855 = vmatprep.subr.bf16.mxu0 0
        %1856 = vmatpush1.bf16.msra.mxu0 %v1821
        %1857 = vmatprep.subr.bf16.mxu0 0
        %1858 = vmatpush1.bf16.msra.mxu0 %v1822
        %1859 = vmatprep.subr.bf16.mxu0 0
        %1860 = vmatpush1.bf16.msra.mxu0 %v1823
        %1861 = vmatprep.subr.bf16.mxu0 0
        %1862 = vmatpush1.bf16.msra.mxu0 %v1824
        %1863 = vmatprep.subr.bf16.mxu0 0
        %1864 = vmatpush1.bf16.msra.mxu0 %v1825
        %1865 = vmatprep.subr.bf16.mxu0 0
        %1866 = vmatpush1.bf16.msra.mxu0 %v1826
        %1867 = vmatprep.subr.bf16.mxu0 0
        %1868 = vmatpush1.bf16.msra.mxu0 %v1827
        %1869 = vmatprep.subr.bf16.mxu0 0
        %1870 = vmatpush1.bf16.msra.mxu0 %v1828
        %1871 = vmatprep.subr.bf16.mxu0 0
        %1872 = vmatpush1.bf16.msra.mxu0 %v1829
        %1873 = vmatprep.subr.bf16.mxu0 0
        %1874 = vmatpush1.bf16.msra.mxu0 %v1830
        %1875 = vmatprep.subr.bf16.mxu0 0
        %1876 = vmatpush1.bf16.msra.mxu0 %v1831
        %1877 = vmatprep.subr.bf16.mxu0 0
        %1878 = vmatpush1.bf16.msra.mxu0 %v1832
        %1879 = vmatprep.subr.bf16.mxu0 0
        %1880 = vmatpush1.bf16.msra.mxu0 %v1833
        %1881 = vmatprep.subr.bf16.mxu0 0
        %1882 = vmatpush1.bf16.msra.mxu0 %v1834
        %1883 = vmatprep.mubr.bf16.mxu0 %v1707
        %1884 = vmatmul.mubr.bf16.gmra.mrb[0].mxu0 %v1691
        %v1885 = vpop.f32.mrb[0].mxu0
        %v1886 = vadd.f32 0.0, %v1885
        %v1887 = vpop.f32.mrb[0].mxu0
        %v1888 = vpop.f32.mrb[0].mxu0
        %v1889 = vadd.f32 0.0, %v1888
        %v1890 = vpop.f32.mrb[0].mxu0
        %1891 = vmatprep.mubr.bf16.mxu0 %v1708
        %1892 = vmatmul.mubr.bf16.gmra.mrb[0].mxu0 %v1692
        %v1893 = vpop.f32.mrb[0].mxu0
        %v1894 = vadd.f32 0.0, %v1893
        %v1895 = vpop.f32.mrb[0].mxu0
        %v1896 = vpop.f32.mrb[0].mxu0
        %v1897 = vadd.f32 0.0, %v1896
        %v1898 = vpop.f32.mrb[0].mxu0
        %1899 = vmatprep.mubr.bf16.mxu0 %v1709
        %1900 = vmatmul.mubr.bf16.gmra.mrb[0].mxu0 %v1693
        %v1901 = vpop.f32.mrb[0].mxu0
        %v1902 = vadd.f32 0.0, %v1901
        %v1903 = vpop.f32.mrb[0].mxu0
        %v1904 = vpop.f32.mrb[0].mxu0
        %v1905 = vadd.f32 0.0, %v1904
        %v1906 = vpop.f32.mrb[0].mxu0
        %1907 = vmatprep.mubr.bf16.mxu0 %v1710
        %1908 = vmatmul.mubr.bf16.gmra.mrb[0].mxu0 %v1694
        %v1909 = vpop.f32.mrb[0].mxu0
        %v1910 = vadd.f32 0.0, %v1909
        %v1911 = vpop.f32.mrb[0].mxu0
        %v1912 = vpop.f32.mrb[0].mxu0
        %v1913 = vadd.f32 0.0, %v1912
        %v1914 = vpop.f32.mrb[0].mxu0
        %1915 = vmatprep.mubr.bf16.mxu0 %v1711
        %1916 = vmatmul.mubr.bf16.gmra.mrb[0].mxu0 %v1695
        %v1917 = vpop.f32.mrb[0].mxu0
        %v1918 = vadd.f32 0.0, %v1917
        %v1919 = vpop.f32.mrb[0].mxu0
        %v1920 = vpop.f32.mrb[0].mxu0
        %v1921 = vadd.f32 0.0, %v1920
        %v1922 = vpop.f32.mrb[0].mxu0
        %1923 = vmatprep.mubr.bf16.mxu0 %v1712
        %1924 = vmatmul.mubr.bf16.gmra.mrb[0].mxu0 %v1696
        %v1925 = vpop.f32.mrb[0].mxu0
        %v1926 = vadd.f32 0.0, %v1925
        %v1927 = vpop.f32.mrb[0].mxu0
        %v1928 = vpop.f32.mrb[0].mxu0
        %v1929 = vadd.f32 0.0, %v1928
        %v1930 = vpop.f32.mrb[0].mxu0
        %1931 = vmatprep.mubr.bf16.mxu0 %v1713
        %1932 = vmatmul.mubr.bf16.gmra.mrb[0].mxu0 %v1697
        %v1933 = vpop.f32.mrb[0].mxu0
        %v1934 = vadd.f32 0.0, %v1933
        %v1935 = vpop.f32.mrb[0].mxu0
        %v1936 = vpop.f32.mrb[0].mxu0
        %v1937 = vadd.f32 0.0, %v1936
        %v1938 = vpop.f32.mrb[0].mxu0
        %1939 = vmatprep.mubr.bf16.mxu0 %v1714
        %1940 = vmatmul.mubr.bf16.gmra.mrb[0].mxu0 %v1698
        %v1941 = vpop.f32.mrb[0].mxu0
        %v1942 = vadd.f32 0.0, %v1941
        %v1943 = vpop.f32.mrb[0].mxu0
        %v1944 = vpop.f32.mrb[0].mxu0
        %v1945 = vadd.f32 0.0, %v1944
        %v1946 = vpop.f32.mrb[0].mxu0
        %1947 = vmatprep.mubr.bf16.mxu0 %v1715
        %1948 = vmatmul.mubr.bf16.gmra.mrb[0].mxu0 %v1699
        %v1949 = vpop.f32.mrb[0].mxu0
        %v1950 = vadd.f32 0.0, %v1949
        %v1951 = vpop.f32.mrb[0].mxu0
        %v1952 = vpop.f32.mrb[0].mxu0
        %v1953 = vadd.f32 0.0, %v1952
        %v1954 = vpop.f32.mrb[0].mxu0
        %1955 = vmatprep.mubr.bf16.mxu0 %v1716
        %1956 = vmatmul.mubr.bf16.gmra.mrb[0].mxu0 %v1700
        %v1957 = vpop.f32.mrb[0].mxu0
        %v1958 = vadd.f32 0.0, %v1957
        %v1959 = vpop.f32.mrb[0].mxu0
        %v1960 = vpop.f32.mrb[0].mxu0
        %v1961 = vadd.f32 0.0, %v1960
        %v1962 = vpop.f32.mrb[0].mxu0
        %1963 = vmatprep.mubr.bf16.mxu0 %v1717
        %1964 = vmatmul.mubr.bf16.gmra.mrb[0].mxu0 %v1701
        %v1965 = vpop.f32.mrb[0].mxu0
        %v1966 = vadd.f32 0.0, %v1965
        %v1967 = vpop.f32.mrb[0].mxu0
        %v1968 = vpop.f32.mrb[0].mxu0
        %v1969 = vadd.f32 0.0, %v1968
        %v1970 = vpop.f32.mrb[0].mxu0
        %1971 = vmatprep.mubr.bf16.mxu0 %v1718
        %1972 = vmatmul.mubr.bf16.gmra.mrb[0].mxu0 %v1702
        %v1973 = vpop.f32.mrb[0].mxu0
        %v1974 = vadd.f32 0.0, %v1973
        %v1975 = vpop.f32.mrb[0].mxu0
        %v1976 = vpop.f32.mrb[0].mxu0
        %v1977 = vadd.f32 0.0, %v1976
        %v1978 = vpop.f32.mrb[0].mxu0
        %1979 = vmatprep.mubr.bf16.mxu0 %v1719
        %1980 = vmatmul.mubr.bf16.gmra.mrb[0].mxu0 %v1703
        %v1981 = vpop.f32.mrb[0].mxu0
        %v1982 = vadd.f32 0.0, %v1981
        %v1983 = vpop.f32.mrb[0].mxu0
        %v1984 = vpop.f32.mrb[0].mxu0
        %v1985 = vadd.f32 0.0, %v1984
        %v1986 = vpop.f32.mrb[0].mxu0
        %1987 = vmatprep.mubr.bf16.mxu0 %v1720
        %1988 = vmatmul.mubr.bf16.gmra.mrb[0].mxu0 %v1704
        %v1989 = vpop.f32.mrb[0].mxu0
        %v1990 = vadd.f32 0.0, %v1989
        %v1991 = vpop.f32.mrb[0].mxu0
        %v1992 = vpop.f32.mrb[0].mxu0
        %v1993 = vadd.f32 0.0, %v1992
        %v1994 = vpop.f32.mrb[0].mxu0
        %1995 = vmatprep.mubr.bf16.mxu0 %v1721
        %1996 = vmatmul.mubr.bf16.gmra.mrb[0].mxu0 %v1705
        %v1997 = vpop.f32.mrb[0].mxu0
        %v1998 = vadd.f32 0.0, %v1997
        %v1999 = vpop.f32.mrb[0].mxu0
        %v2000 = vpop.f32.mrb[0].mxu0
        %v2001 = vadd.f32 0.0, %v2000
        %v2002 = vpop.f32.mrb[0].mxu0
        %2003 = vmatprep.mubr.bf16.mxu0 %v1722
        %2004 = vmatmul.mubr.bf16.gmra.mrb[0].mxu0 %v1706
        %v2005 = vpop.f32.mrb[0].mxu0
        %v2006 = vadd.f32 0.0, %v2005
        %v2007 = vpop.f32.mrb[0].mxu0
        %v2008 = vpop.f32.mrb[0].mxu0
        %v2009 = vadd.f32 0.0, %v2008
        %v2010 = vpop.f32.mrb[0].mxu0
        %2011 = vdwg.mxu0
        %v2044 = vunpack.c.l.b16 %v1627
        %v2045 = vunpack.c.l.b16 %v1628
        %v2046 = vunpack.c.l.b16 %v1629
        %v2047 = vunpack.c.l.b16 %v1630
        %v2048 = vunpack.c.l.b16 %v1631
        %v2049 = vunpack.c.l.b16 %v1632
        %v2050 = vunpack.c.l.b16 %v1633
        %v2051 = vunpack.c.l.b16 %v1634
        %v2052 = vunpack.c.l.b16 %v1635
        %v2053 = vunpack.c.l.b16 %v1636
        %v2054 = vunpack.c.l.b16 %v1637
        %v2055 = vunpack.c.l.b16 %v1638
        %v2056 = vunpack.c.l.b16 %v1639
        %v2057 = vunpack.c.l.b16 %v1640
        %v2058 = vunpack.c.l.b16 %v1641
        %v2059 = vunpack.c.l.b16 %v1642
        %v2060 = vunpack.c.l.b16 %v1643
        %v2061 = vunpack.c.l.b16 %v1644
        %v2062 = vunpack.c.l.b16 %v1645
        %v2063 = vunpack.c.l.b16 %v1646
        %v2064 = vunpack.c.l.b16 %v1647
        %v2065 = vunpack.c.l.b16 %v1648
        %v2066 = vunpack.c.l.b16 %v1649
        %v2067 = vunpack.c.l.b16 %v1650
        %v2068 = vunpack.c.l.b16 %v1651
        %v2069 = vunpack.c.l.b16 %v1652
        %v2070 = vunpack.c.l.b16 %v1653
        %v2071 = vunpack.c.l.b16 %v1654
        %v2072 = vunpack.c.l.b16 %v1655
        %v2073 = vunpack.c.l.b16 %v1656
        %v2074 = vunpack.c.l.b16 %v1657
        %v2075 = vunpack.c.l.b16 %v1658
        %v2076 = vpack.c.b16 %v2045, %v2044
        %v2077 = vpack.c.b16 %v2047, %v2046
        %v2078 = vpack.c.b16 %v2049, %v2048
        %v2079 = vpack.c.b16 %v2051, %v2050
        %v2080 = vpack.c.b16 %v2053, %v2052
        %v2081 = vpack.c.b16 %v2055, %v2054
        %v2082 = vpack.c.b16 %v2057, %v2056
        %v2083 = vpack.c.b16 %v2059, %v2058
        %v2084 = vpack.c.b16 %v2061, %v2060
        %v2085 = vpack.c.b16 %v2063, %v2062
        %v2086 = vpack.c.b16 %v2065, %v2064
        %v2087 = vpack.c.b16 %v2067, %v2066
        %v2088 = vpack.c.b16 %v2069, %v2068
        %v2089 = vpack.c.b16 %v2071, %v2070
        %v2090 = vpack.c.b16 %v2073, %v2072
        %v2091 = vpack.c.b16 %v2075, %v2074
        %2108 = vmatprep.subr.bf16.mxu0 0
        %2109 = vmatpush1.bf16.msra.mxu0 %v2076
        %2110 = vmatprep.subr.bf16.mxu0 0
        %2111 = vmatpush1.bf16.msra.mxu0 %v2077
        %2112 = vmatprep.subr.bf16.mxu0 0
        %2113 = vmatpush1.bf16.msra.mxu0 %v2078
        %2114 = vmatprep.subr.bf16.mxu0 0
        %2115 = vmatpush1.bf16.msra.mxu0 %v2079
        %2116 = vmatprep.subr.bf16.mxu0 0
        %2117 = vmatpush1.bf16.msra.mxu0 %v2080
        %2118 = vmatprep.subr.bf16.mxu0 0
        %2119 = vmatpush1.bf16.msra.mxu0 %v2081
        %2120 = vmatprep.subr.bf16.mxu0 0
        %2121 = vmatpush1.bf16.msra.mxu0 %v2082
        %2122 = vmatprep.subr.bf16.mxu0 0
        %2123 = vmatpush1.bf16.msra.mxu0 %v2083
        %2124 = vmatprep.subr.bf16.mxu0 0
        %2125 = vmatpush1.bf16.msra.mxu0 %v2084
        %2126 = vmatprep.subr.bf16.mxu0 0
        %2127 = vmatpush1.bf16.msra.mxu0 %v2085
        %2128 = vmatprep.subr.bf16.mxu0 0
        %2129 = vmatpush1.bf16.msra.mxu0 %v2086
        %2130 = vmatprep.subr.bf16.mxu0 0
        %2131 = vmatpush1.bf16.msra.mxu0 %v2087
        %2132 = vmatprep.subr.bf16.mxu0 0
        %2133 = vmatpush1.bf16.msra.mxu0 %v2088
        %2134 = vmatprep.subr.bf16.mxu0 0
        %2135 = vmatpush1.bf16.msra.mxu0 %v2089
        %2136 = vmatprep.subr.bf16.mxu0 0
        %2137 = vmatpush1.bf16.msra.mxu0 %v2090
        %2138 = vmatprep.subr.bf16.mxu0 0
        %2139 = vmatpush1.bf16.msra.mxu0 %v2091
        %2140 = vmatprep.mubr.bf16.mxu0 %v1611
        %2141 = vmatmul.mubr.bf16.gmra.mrb[0].mxu0 %v1563
        %v2142 = vpop.f32.mrb[0].mxu0
        %v2143 = vadd.f32 %v1886, %v2142
        %v2144 = vpop.f32.mrb[0].mxu0
        %v2145 = vpop.f32.mrb[0].mxu0
        %v2146 = vadd.f32 %v1889, %v2145
        %v2147 = vpop.f32.mrb[0].mxu0
        %2148 = vmatprep.mubr.bf16.mxu0 %v1612
        %2149 = vmatmul.mubr.bf16.gmra.mrb[0].mxu0 %v1564
        %v2150 = vpop.f32.mrb[0].mxu0
        %v2151 = vadd.f32 %v1894, %v2150
        %v2152 = vpop.f32.mrb[0].mxu0
        %v2153 = vpop.f32.mrb[0].mxu0
        %v2154 = vadd.f32 %v1897, %v2153
        %v2155 = vpop.f32.mrb[0].mxu0
        %2156 = vmatprep.mubr.bf16.mxu0 %v1613
        %2157 = vmatmul.mubr.bf16.gmra.mrb[0].mxu0 %v1565
        %v2158 = vpop.f32.mrb[0].mxu0
        %v2159 = vadd.f32 %v1902, %v2158
        %v2160 = vpop.f32.mrb[0].mxu0
        %v2161 = vpop.f32.mrb[0].mxu0
        %v2162 = vadd.f32 %v1905, %v2161
        %v2163 = vpop.f32.mrb[0].mxu0
        %2164 = vmatprep.mubr.bf16.mxu0 %v1614
        %2165 = vmatmul.mubr.bf16.gmra.mrb[0].mxu0 %v1566
        %v2166 = vpop.f32.mrb[0].mxu0
        %v2167 = vadd.f32 %v1910, %v2166
        %v2168 = vpop.f32.mrb[0].mxu0
        %v2169 = vpop.f32.mrb[0].mxu0
        %v2170 = vadd.f32 %v1913, %v2169
        %v2171 = vpop.f32.mrb[0].mxu0
        %2172 = vmatprep.mubr.bf16.mxu0 %v1615
        %2173 = vmatmul.mubr.bf16.gmra.mrb[0].mxu0 %v1567
        %v2174 = vpop.f32.mrb[0].mxu0
        %v2175 = vadd.f32 %v1918, %v2174
        %v2176 = vpop.f32.mrb[0].mxu0
        %v2177 = vpop.f32.mrb[0].mxu0
        %v2178 = vadd.f32 %v1921, %v2177
        %v2179 = vpop.f32.mrb[0].mxu0
        %2180 = vmatprep.mubr.bf16.mxu0 %v1616
        %2181 = vmatmul.mubr.bf16.gmra.mrb[0].mxu0 %v1568
        %v2182 = vpop.f32.mrb[0].mxu0
        %v2183 = vadd.f32 %v1926, %v2182
        %v2184 = vpop.f32.mrb[0].mxu0
        %v2185 = vpop.f32.mrb[0].mxu0
        %v2186 = vadd.f32 %v1929, %v2185
        %v2187 = vpop.f32.mrb[0].mxu0
        %2188 = vmatprep.mubr.bf16.mxu0 %v1617
        %2189 = vmatmul.mubr.bf16.gmra.mrb[0].mxu0 %v1569
        %v2190 = vpop.f32.mrb[0].mxu0
        %v2191 = vadd.f32 %v1934, %v2190
        %v2192 = vpop.f32.mrb[0].mxu0
        %v2193 = vpop.f32.mrb[0].mxu0
        %v2194 = vadd.f32 %v1937, %v2193
        %v2195 = vpop.f32.mrb[0].mxu0
        %2196 = vmatprep.mubr.bf16.mxu0 %v1618
        %2197 = vmatmul.mubr.bf16.gmra.mrb[0].mxu0 %v1570
        %v2198 = vpop.f32.mrb[0].mxu0
        %v2199 = vadd.f32 %v1942, %v2198
        %v2200 = vpop.f32.mrb[0].mxu0
        %v2201 = vpop.f32.mrb[0].mxu0
        %v2202 = vadd.f32 %v1945, %v2201
        %v2203 = vpop.f32.mrb[0].mxu0
        %2204 = vmatprep.mubr.bf16.mxu0 %v1619
        %2205 = vmatmul.mubr.bf16.gmra.mrb[0].mxu0 %v1571
        %v2206 = vpop.f32.mrb[0].mxu0
        %v2207 = vadd.f32 %v1950, %v2206
        %v2208 = vpop.f32.mrb[0].mxu0
        %v2209 = vpop.f32.mrb[0].mxu0
        %v2210 = vadd.f32 %v1953, %v2209
        %v2211 = vpop.f32.mrb[0].mxu0
        %2212 = vmatprep.mubr.bf16.mxu0 %v1620
        %2213 = vmatmul.mubr.bf16.gmra.mrb[0].mxu0 %v1572
        %v2214 = vpop.f32.mrb[0].mxu0
        %v2215 = vadd.f32 %v1958, %v2214
        %v2216 = vpop.f32.mrb[0].mxu0
        %v2217 = vpop.f32.mrb[0].mxu0
        %v2218 = vadd.f32 %v1961, %v2217
        %v2219 = vpop.f32.mrb[0].mxu0
        %2220 = vmatprep.mubr.bf16.mxu0 %v1621
        %2221 = vmatmul.mubr.bf16.gmra.mrb[0].mxu0 %v1573
        %v2222 = vpop.f32.mrb[0].mxu0
        %v2223 = vadd.f32 %v1966, %v2222
        %v2224 = vpop.f32.mrb[0].mxu0
        %v2225 = vpop.f32.mrb[0].mxu0
        %v2226 = vadd.f32 %v1969, %v2225
        %v2227 = vpop.f32.mrb[0].mxu0
        %2228 = vmatprep.mubr.bf16.mxu0 %v1622
        %2229 = vmatmul.mubr.bf16.gmra.mrb[0].mxu0 %v1574
        %v2230 = vpop.f32.mrb[0].mxu0
        %v2231 = vadd.f32 %v1974, %v2230
        %v2232 = vpop.f32.mrb[0].mxu0
        %v2233 = vpop.f32.mrb[0].mxu0
        %v2234 = vadd.f32 %v1977, %v2233
        %v2235 = vpop.f32.mrb[0].mxu0
        %2236 = vmatprep.mubr.bf16.mxu0 %v1623
        %2237 = vmatmul.mubr.bf16.gmra.mrb[0].mxu0 %v1575
        %v2238 = vpop.f32.mrb[0].mxu0
        %v2239 = vadd.f32 %v1982, %v2238
        %v2240 = vpop.f32.mrb[0].mxu0
        %v2241 = vpop.f32.mrb[0].mxu0
        %v2242 = vadd.f32 %v1985, %v2241
        %v2243 = vpop.f32.mrb[0].mxu0
        %2244 = vmatprep.mubr.bf16.mxu0 %v1624
        %2245 = vmatmul.mubr.bf16.gmra.mrb[0].mxu0 %v1576
        %v2246 = vpop.f32.mrb[0].mxu0
        %v2247 = vadd.f32 %v1990, %v2246
        %v2248 = vpop.f32.mrb[0].mxu0
        %v2249 = vpop.f32.mrb[0].mxu0
        %v2250 = vadd.f32 %v1993, %v2249
        %v2251 = vpop.f32.mrb[0].mxu0
        %2252 = vmatprep.mubr.bf16.mxu0 %v1625
        %2253 = vmatmul.mubr.bf16.gmra.mrb[0].mxu0 %v1577
        %v2254 = vpop.f32.mrb[0].mxu0
        %v2255 = vadd.f32 %v1998, %v2254
        %v2256 = vpop.f32.mrb[0].mxu0
        %v2257 = vpop.f32.mrb[0].mxu0
        %v2258 = vadd.f32 %v2001, %v2257
        %v2259 = vpop.f32.mrb[0].mxu0
        %2260 = vmatprep.mubr.bf16.mxu0 %v1626
        %2261 = vmatmul.mubr.bf16.gmra.mrb[0].mxu0 %v1578
        %v2262 = vpop.f32.mrb[0].mxu0
        %v2263 = vadd.f32 %v2006, %v2262
        %v2264 = vpop.f32.mrb[0].mxu0
        %v2265 = vpop.f32.mrb[0].mxu0
        %v2266 = vadd.f32 %v2009, %v2265
        %v2267 = vpop.f32.mrb[0].mxu0
        %2268 = vdwg.mxu0
        %v2269 = vpack.c.bf16 %v630, %v629
        %v2270 = vpack.c.bf16 %v632, %v631
        %v2271 = vpack.c.bf16 %v634, %v633
        %v2272 = vpack.c.bf16 %v636, %v635
        %v2273 = vpack.c.bf16 %v638, %v637
        %v2274 = vpack.c.bf16 %v640, %v639
        %v2275 = vpack.c.bf16 %v642, %v641
        %v2276 = vpack.c.bf16 %v644, %v643
        %v2277 = vpack.c.bf16 %v646, %v645
        %v2278 = vpack.c.bf16 %v648, %v647
        %v2279 = vpack.c.bf16 %v650, %v649
        %v2280 = vpack.c.bf16 %v652, %v651
        %v2281 = vpack.c.bf16 %v654, %v653
        %v2282 = vpack.c.bf16 %v656, %v655
        %v2283 = vpack.c.bf16 %v658, %v657
        %v2284 = vpack.c.bf16 %v660, %v659
        %v2285 = vpack.c.bf16 %v1276, %v1275
        %v2286 = vpack.c.bf16 %v1278, %v1277
        %v2287 = vpack.c.bf16 %v1280, %v1279
        %v2288 = vpack.c.bf16 %v1282, %v1281
        %v2289 = vpack.c.bf16 %v1284, %v1283
        %v2290 = vpack.c.bf16 %v1286, %v1285
        %v2291 = vpack.c.bf16 %v1288, %v1287
        %v2292 = vpack.c.bf16 %v1290, %v1289
        %v2293 = vpack.c.bf16 %v1292, %v1291
        %v2294 = vpack.c.bf16 %v1294, %v1293
        %v2295 = vpack.c.bf16 %v1296, %v1295
        %v2296 = vpack.c.bf16 %v1298, %v1297
        %v2297 = vpack.c.bf16 %v1300, %v1299
        %v2298 = vpack.c.bf16 %v1302, %v1301
        %v2299 = vpack.c.bf16 %v1304, %v1303
        %v2300 = vpack.c.bf16 %v1306, %v1305
        %v2301 = vld [vmem:[#allocation5 + $0x100] sm:$0xf]
        %v2302 = vld [vmem:[#allocation5 + $0x104] sm:$0xf]
        %v2303 = vld [vmem:[#allocation5 + $0x108] sm:$0xf]
        %v2304 = vld [vmem:[#allocation5 + $0x10c] sm:$0xf]
        %v2305 = vld [vmem:[#allocation5 + $0x110] sm:$0xf]
        %v2306 = vld [vmem:[#allocation5 + $0x114] sm:$0xf]
        %v2307 = vld [vmem:[#allocation5 + $0x118] sm:$0xf]
        %v2308 = vld [vmem:[#allocation5 + $0x11c] sm:$0xf]
        %v2309 = vld [vmem:[#allocation5 + $0x120] sm:$0xf]
        %v2310 = vld [vmem:[#allocation5 + $0x124] sm:$0xf]
        %v2311 = vld [vmem:[#allocation5 + $0x128] sm:$0xf]
        %v2312 = vld [vmem:[#allocation5 + $0x12c] sm:$0xf]
        %v2313 = vld [vmem:[#allocation5 + $0x130] sm:$0xf]
        %v2314 = vld [vmem:[#allocation5 + $0x134] sm:$0xf]
        %v2315 = vld [vmem:[#allocation5 + $0x138] sm:$0xf]
        %v2316 = vld [vmem:[#allocation5 + $0x13c] sm:$0xf]
        %v2317 = vld [vmem:[#allocation5 + $0x140] sm:$0xf]
        %v2318 = vld [vmem:[#allocation5 + $0x144] sm:$0xf]
        %v2319 = vld [vmem:[#allocation5 + $0x148] sm:$0xf]
        %v2320 = vld [vmem:[#allocation5 + $0x14c] sm:$0xf]
        %v2321 = vld [vmem:[#allocation5 + $0x150] sm:$0xf]
        %v2322 = vld [vmem:[#allocation5 + $0x154] sm:$0xf]
        %v2323 = vld [vmem:[#allocation5 + $0x158] sm:$0xf]
        %v2324 = vld [vmem:[#allocation5 + $0x15c] sm:$0xf]
        %v2325 = vld [vmem:[#allocation5 + $0x160] sm:$0xf]
        %v2326 = vld [vmem:[#allocation5 + $0x164] sm:$0xf]
        %v2327 = vld [vmem:[#allocation5 + $0x168] sm:$0xf]
        %v2328 = vld [vmem:[#allocation5 + $0x16c] sm:$0xf]
        %v2329 = vld [vmem:[#allocation5 + $0x170] sm:$0xf]
        %v2330 = vld [vmem:[#allocation5 + $0x174] sm:$0xf]
        %v2331 = vld [vmem:[#allocation5 + $0x178] sm:$0xf]
        %v2332 = vld [vmem:[#allocation5 + $0x17c] sm:$0xf]
        %v2365 = vunpack.c.l.b16 %v2301
        %v2366 = vunpack.c.l.b16 %v2302
        %v2367 = vunpack.c.l.b16 %v2303
        %v2368 = vunpack.c.l.b16 %v2304
        %v2369 = vunpack.c.l.b16 %v2305
        %v2370 = vunpack.c.l.b16 %v2306
        %v2371 = vunpack.c.l.b16 %v2307
        %v2372 = vunpack.c.l.b16 %v2308
        %v2373 = vunpack.c.l.b16 %v2309
        %v2374 = vunpack.c.l.b16 %v2310
        %v2375 = vunpack.c.l.b16 %v2311
        %v2376 = vunpack.c.l.b16 %v2312
        %v2377 = vunpack.c.l.b16 %v2313
        %v2378 = vunpack.c.l.b16 %v2314
        %v2379 = vunpack.c.l.b16 %v2315
        %v2380 = vunpack.c.l.b16 %v2316
        %v2381 = vunpack.c.l.b16 %v2317
        %v2382 = vunpack.c.l.b16 %v2318
        %v2383 = vunpack.c.l.b16 %v2319
        %v2384 = vunpack.c.l.b16 %v2320
        %v2385 = vunpack.c.l.b16 %v2321
        %v2386 = vunpack.c.l.b16 %v2322
        %v2387 = vunpack.c.l.b16 %v2323
        %v2388 = vunpack.c.l.b16 %v2324
        %v2389 = vunpack.c.l.b16 %v2325
        %v2390 = vunpack.c.l.b16 %v2326
        %v2391 = vunpack.c.l.b16 %v2327
        %v2392 = vunpack.c.l.b16 %v2328
        %v2393 = vunpack.c.l.b16 %v2329
        %v2394 = vunpack.c.l.b16 %v2330
        %v2395 = vunpack.c.l.b16 %v2331
        %v2396 = vunpack.c.l.b16 %v2332
        %v2397 = vpack.c.b16 %v2366, %v2365
        %v2398 = vpack.c.b16 %v2368, %v2367
        %v2399 = vpack.c.b16 %v2370, %v2369
        %v2400 = vpack.c.b16 %v2372, %v2371
        %v2401 = vpack.c.b16 %v2374, %v2373
        %v2402 = vpack.c.b16 %v2376, %v2375
        %v2403 = vpack.c.b16 %v2378, %v2377
        %v2404 = vpack.c.b16 %v2380, %v2379
        %v2405 = vpack.c.b16 %v2382, %v2381
        %v2406 = vpack.c.b16 %v2384, %v2383
        %v2407 = vpack.c.b16 %v2386, %v2385
        %v2408 = vpack.c.b16 %v2388, %v2387
        %v2409 = vpack.c.b16 %v2390, %v2389
        %v2410 = vpack.c.b16 %v2392, %v2391
        %v2411 = vpack.c.b16 %v2394, %v2393
        %v2412 = vpack.c.b16 %v2396, %v2395
        %2429 = vmatprep.subr.bf16.mxu0 0
        %2430 = vmatpush1.bf16.msra.mxu0 %v2397
        %2431 = vmatprep.subr.bf16.mxu0 0
        %2432 = vmatpush1.bf16.msra.mxu0 %v2398
        %2433 = vmatprep.subr.bf16.mxu0 0
        %2434 = vmatpush1.bf16.msra.mxu0 %v2399
        %2435 = vmatprep.subr.bf16.mxu0 0
        %2436 = vmatpush1.bf16.msra.mxu0 %v2400
        %2437 = vmatprep.subr.bf16.mxu0 0
        %2438 = vmatpush1.bf16.msra.mxu0 %v2401
        %2439 = vmatprep.subr.bf16.mxu0 0
        %2440 = vmatpush1.bf16.msra.mxu0 %v2402
        %2441 = vmatprep.subr.bf16.mxu0 0
        %2442 = vmatpush1.bf16.msra.mxu0 %v2403
        %2443 = vmatprep.subr.bf16.mxu0 0
        %2444 = vmatpush1.bf16.msra.mxu0 %v2404
        %2445 = vmatprep.subr.bf16.mxu0 0
        %2446 = vmatpush1.bf16.msra.mxu0 %v2405
        %2447 = vmatprep.subr.bf16.mxu0 0
        %2448 = vmatpush1.bf16.msra.mxu0 %v2406
        %2449 = vmatprep.subr.bf16.mxu0 0
        %2450 = vmatpush1.bf16.msra.mxu0 %v2407
        %2451 = vmatprep.subr.bf16.mxu0 0
        %2452 = vmatpush1.bf16.msra.mxu0 %v2408
        %2453 = vmatprep.subr.bf16.mxu0 0
        %2454 = vmatpush1.bf16.msra.mxu0 %v2409
        %2455 = vmatprep.subr.bf16.mxu0 0
        %2456 = vmatpush1.bf16.msra.mxu0 %v2410
        %2457 = vmatprep.subr.bf16.mxu0 0
        %2458 = vmatpush1.bf16.msra.mxu0 %v2411
        %2459 = vmatprep.subr.bf16.mxu0 0
        %2460 = vmatpush1.bf16.msra.mxu0 %v2412
        %2461 = vmatprep.mubr.bf16.mxu0 %v2285
        %2462 = vmatmul.mubr.bf16.gmra.mrb[0].mxu0 %v2269
        %v2463 = vpop.f32.mrb[0].mxu0
        %v2464 = vadd.f32 0.0, %v2463
        %v2465 = vpop.f32.mrb[0].mxu0
        %v2466 = vpop.f32.mrb[0].mxu0
        %v2467 = vadd.f32 0.0, %v2466
        %v2468 = vpop.f32.mrb[0].mxu0
        %2469 = vmatprep.mubr.bf16.mxu0 %v2286
        %2470 = vmatmul.mubr.bf16.gmra.mrb[0].mxu0 %v2270
        %v2471 = vpop.f32.mrb[0].mxu0
        %v2472 = vadd.f32 0.0, %v2471
        %v2473 = vpop.f32.mrb[0].mxu0
        %v2474 = vpop.f32.mrb[0].mxu0
        %v2475 = vadd.f32 0.0, %v2474
        %v2476 = vpop.f32.mrb[0].mxu0
        %2477 = vmatprep.mubr.bf16.mxu0 %v2287
        %2478 = vmatmul.mubr.bf16.gmra.mrb[0].mxu0 %v2271
        %v2479 = vpop.f32.mrb[0].mxu0
        %v2480 = vadd.f32 0.0, %v2479
        %v2481 = vpop.f32.mrb[0].mxu0
        %v2482 = vpop.f32.mrb[0].mxu0
        %v2483 = vadd.f32 0.0, %v2482
        %v2484 = vpop.f32.mrb[0].mxu0
        %2485 = vmatprep.mubr.bf16.mxu0 %v2288
        %2486 = vmatmul.mubr.bf16.gmra.mrb[0].mxu0 %v2272
        %v2487 = vpop.f32.mrb[0].mxu0
        %v2488 = vadd.f32 0.0, %v2487
        %v2489 = vpop.f32.mrb[0].mxu0
        %v2490 = vpop.f32.mrb[0].mxu0
        %v2491 = vadd.f32 0.0, %v2490
        %v2492 = vpop.f32.mrb[0].mxu0
        %2493 = vmatprep.mubr.bf16.mxu0 %v2289
        %2494 = vmatmul.mubr.bf16.gmra.mrb[0].mxu0 %v2273
        %v2495 = vpop.f32.mrb[0].mxu0
        %v2496 = vadd.f32 0.0, %v2495
        %v2497 = vpop.f32.mrb[0].mxu0
        %v2498 = vpop.f32.mrb[0].mxu0
        %v2499 = vadd.f32 0.0, %v2498
        %v2500 = vpop.f32.mrb[0].mxu0
        %2501 = vmatprep.mubr.bf16.mxu0 %v2290
        %2502 = vmatmul.mubr.bf16.gmra.mrb[0].mxu0 %v2274
        %v2503 = vpop.f32.mrb[0].mxu0
        %v2504 = vadd.f32 0.0, %v2503
        %v2505 = vpop.f32.mrb[0].mxu0
        %v2506 = vpop.f32.mrb[0].mxu0
        %v2507 = vadd.f32 0.0, %v2506
        %v2508 = vpop.f32.mrb[0].mxu0
        %2509 = vmatprep.mubr.bf16.mxu0 %v2291
        %2510 = vmatmul.mubr.bf16.gmra.mrb[0].mxu0 %v2275
        %v2511 = vpop.f32.mrb[0].mxu0
        %v2512 = vadd.f32 0.0, %v2511
        %v2513 = vpop.f32.mrb[0].mxu0
        %v2514 = vpop.f32.mrb[0].mxu0
        %v2515 = vadd.f32 0.0, %v2514
        %v2516 = vpop.f32.mrb[0].mxu0
        %2517 = vmatprep.mubr.bf16.mxu0 %v2292
        %2518 = vmatmul.mubr.bf16.gmra.mrb[0].mxu0 %v2276
        %v2519 = vpop.f32.mrb[0].mxu0
        %v2520 = vadd.f32 0.0, %v2519
        %v2521 = vpop.f32.mrb[0].mxu0
        %v2522 = vpop.f32.mrb[0].mxu0
        %v2523 = vadd.f32 0.0, %v2522
        %v2524 = vpop.f32.mrb[0].mxu0
        %2525 = vmatprep.mubr.bf16.mxu0 %v2293
        %2526 = vmatmul.mubr.bf16.gmra.mrb[0].mxu0 %v2277
        %v2527 = vpop.f32.mrb[0].mxu0
        %v2528 = vadd.f32 0.0, %v2527
        %v2529 = vpop.f32.mrb[0].mxu0
        %v2530 = vpop.f32.mrb[0].mxu0
        %v2531 = vadd.f32 0.0, %v2530
        %v2532 = vpop.f32.mrb[0].mxu0
        %2533 = vmatprep.mubr.bf16.mxu0 %v2294
        %2534 = vmatmul.mubr.bf16.gmra.mrb[0].mxu0 %v2278
        %v2535 = vpop.f32.mrb[0].mxu0
        %v2536 = vadd.f32 0.0, %v2535
        %v2537 = vpop.f32.mrb[0].mxu0
        %v2538 = vpop.f32.mrb[0].mxu0
        %v2539 = vadd.f32 0.0, %v2538
        %v2540 = vpop.f32.mrb[0].mxu0
        %2541 = vmatprep.mubr.bf16.mxu0 %v2295
        %2542 = vmatmul.mubr.bf16.gmra.mrb[0].mxu0 %v2279
        %v2543 = vpop.f32.mrb[0].mxu0
        %v2544 = vadd.f32 0.0, %v2543
        %v2545 = vpop.f32.mrb[0].mxu0
        %v2546 = vpop.f32.mrb[0].mxu0
        %v2547 = vadd.f32 0.0, %v2546
        %v2548 = vpop.f32.mrb[0].mxu0
        %2549 = vmatprep.mubr.bf16.mxu0 %v2296
        %2550 = vmatmul.mubr.bf16.gmra.mrb[0].mxu0 %v2280
        %v2551 = vpop.f32.mrb[0].mxu0
        %v2552 = vadd.f32 0.0, %v2551
        %v2553 = vpop.f32.mrb[0].mxu0
        %v2554 = vpop.f32.mrb[0].mxu0
        %v2555 = vadd.f32 0.0, %v2554
        %v2556 = vpop.f32.mrb[0].mxu0
        %2557 = vmatprep.mubr.bf16.mxu0 %v2297
        %2558 = vmatmul.mubr.bf16.gmra.mrb[0].mxu0 %v2281
        %v2559 = vpop.f32.mrb[0].mxu0
        %v2560 = vadd.f32 0.0, %v2559
        %v2561 = vpop.f32.mrb[0].mxu0
        %v2562 = vpop.f32.mrb[0].mxu0
        %v2563 = vadd.f32 0.0, %v2562
        %v2564 = vpop.f32.mrb[0].mxu0
        %2565 = vmatprep.mubr.bf16.mxu0 %v2298
        %2566 = vmatmul.mubr.bf16.gmra.mrb[0].mxu0 %v2282
        %v2567 = vpop.f32.mrb[0].mxu0
        %v2568 = vadd.f32 0.0, %v2567
        %v2569 = vpop.f32.mrb[0].mxu0
        %v2570 = vpop.f32.mrb[0].mxu0
        %v2571 = vadd.f32 0.0, %v2570
        %v2572 = vpop.f32.mrb[0].mxu0
        %2573 = vmatprep.mubr.bf16.mxu0 %v2299
        %2574 = vmatmul.mubr.bf16.gmra.mrb[0].mxu0 %v2283
        %v2575 = vpop.f32.mrb[0].mxu0
        %v2576 = vadd.f32 0.0, %v2575
        %v2577 = vpop.f32.mrb[0].mxu0
        %v2578 = vpop.f32.mrb[0].mxu0
        %v2579 = vadd.f32 0.0, %v2578
        %v2580 = vpop.f32.mrb[0].mxu0
        %2581 = vmatprep.mubr.bf16.mxu0 %v2300
        %2582 = vmatmul.mubr.bf16.gmra.mrb[0].mxu0 %v2284
        %v2583 = vpop.f32.mrb[0].mxu0
        %v2584 = vadd.f32 0.0, %v2583
        %v2585 = vpop.f32.mrb[0].mxu0
        %v2586 = vpop.f32.mrb[0].mxu0
        %v2587 = vadd.f32 0.0, %v2586
        %v2588 = vpop.f32.mrb[0].mxu0
        %2589 = vdwg.mxu0
        %v2590 = vadd.f32 %v2143, %v2464
        %v2591 = vadd.f32 %v2146, %v2467
        %v2592 = vadd.f32 %v2151, %v2472
        %v2593 = vadd.f32 %v2154, %v2475
        %v2594 = vadd.f32 %v2159, %v2480
        %v2595 = vadd.f32 %v2162, %v2483
        %v2596 = vadd.f32 %v2167, %v2488
        %v2597 = vadd.f32 %v2170, %v2491
        %v2598 = vadd.f32 %v2175, %v2496
        %v2599 = vadd.f32 %v2178, %v2499
        %v2600 = vadd.f32 %v2183, %v2504
        %v2601 = vadd.f32 %v2186, %v2507
        %v2602 = vadd.f32 %v2191, %v2512
        %v2603 = vadd.f32 %v2194, %v2515
        %v2604 = vadd.f32 %v2199, %v2520
        %v2605 = vadd.f32 %v2202, %v2523
        %v2606 = vadd.f32 %v2207, %v2528
        %v2607 = vadd.f32 %v2210, %v2531
        %v2608 = vadd.f32 %v2215, %v2536
        %v2609 = vadd.f32 %v2218, %v2539
        %v2610 = vadd.f32 %v2223, %v2544
        %v2611 = vadd.f32 %v2226, %v2547
        %v2612 = vadd.f32 %v2231, %v2552
        %v2613 = vadd.f32 %v2234, %v2555
        %v2614 = vadd.f32 %v2239, %v2560
        %v2615 = vadd.f32 %v2242, %v2563
        %v2616 = vadd.f32 %v2247, %v2568
        %v2617 = vadd.f32 %v2250, %v2571
        %v2618 = vadd.f32 %v2255, %v2576
        %v2619 = vadd.f32 %v2258, %v2579
        %v2620 = vadd.f32 %v2263, %v2584
        %v2621 = vadd.f32 %v2266, %v2587
        %s2622 = scalar_lea.vmem %s1, 128
        %v2623 = vld [vmem:[%s2622] sm:$0xf]
        %v2624 = vld [vmem:[%s2622 + $0x4] sm:$0xf]
        %v2625 = vld [vmem:[%s2622 + $0x8] sm:$0xf]
        %v2626 = vld [vmem:[%s2622 + $0xc] sm:$0xf]
        %v2627 = vld [vmem:[%s2622 + $0x10] sm:$0xf]
        %v2628 = vld [vmem:[%s2622 + $0x14] sm:$0xf]
        %v2629 = vld [vmem:[%s2622 + $0x18] sm:$0xf]
        %v2630 = vld [vmem:[%s2622 + $0x1c] sm:$0xf]
        %v2631 = vld [vmem:[%s2622 + $0x20] sm:$0xf]
        %v2632 = vld [vmem:[%s2622 + $0x24] sm:$0xf]
        %v2633 = vld [vmem:[%s2622 + $0x28] sm:$0xf]
        %v2634 = vld [vmem:[%s2622 + $0x2c] sm:$0xf]
        %v2635 = vld [vmem:[%s2622 + $0x30] sm:$0xf]
        %v2636 = vld [vmem:[%s2622 + $0x34] sm:$0xf]
        %v2637 = vld [vmem:[%s2622 + $0x38] sm:$0xf]
        %v2638 = vld [vmem:[%s2622 + $0x3c] sm:$0xf]
        %v2639 = vld [vmem:[%s2622 + $0x40] sm:$0xf]
        %v2640 = vld [vmem:[%s2622 + $0x44] sm:$0xf]
        %v2641 = vld [vmem:[%s2622 + $0x48] sm:$0xf]
        %v2642 = vld [vmem:[%s2622 + $0x4c] sm:$0xf]
        %v2643 = vld [vmem:[%s2622 + $0x50] sm:$0xf]
        %v2644 = vld [vmem:[%s2622 + $0x54] sm:$0xf]
        %v2645 = vld [vmem:[%s2622 + $0x58] sm:$0xf]
        %v2646 = vld [vmem:[%s2622 + $0x5c] sm:$0xf]
        %v2647 = vld [vmem:[%s2622 + $0x60] sm:$0xf]
        %v2648 = vld [vmem:[%s2622 + $0x64] sm:$0xf]
        %v2649 = vld [vmem:[%s2622 + $0x68] sm:$0xf]
        %v2650 = vld [vmem:[%s2622 + $0x6c] sm:$0xf]
        %v2651 = vld [vmem:[%s2622 + $0x70] sm:$0xf]
        %v2652 = vld [vmem:[%s2622 + $0x74] sm:$0xf]
        %v2653 = vld [vmem:[%s2622 + $0x78] sm:$0xf]
        %v2654 = vld [vmem:[%s2622 + $0x7c] sm:$0xf]
        %v2655 = vunpack.c.l.bf16 %v2623
        %v2656 = vunpack.c.l.bf16 %v2624
        %v2657 = vunpack.c.l.bf16 %v2625
        %v2658 = vunpack.c.l.bf16 %v2626
        %v2659 = vunpack.c.l.bf16 %v2627
        %v2660 = vunpack.c.l.bf16 %v2628
        %v2661 = vunpack.c.l.bf16 %v2629
        %v2662 = vunpack.c.l.bf16 %v2630
        %v2663 = vunpack.c.l.bf16 %v2631
        %v2664 = vunpack.c.l.bf16 %v2632
        %v2665 = vunpack.c.l.bf16 %v2633
        %v2666 = vunpack.c.l.bf16 %v2634
        %v2667 = vunpack.c.l.bf16 %v2635
        %v2668 = vunpack.c.l.bf16 %v2636
        %v2669 = vunpack.c.l.bf16 %v2637
        %v2670 = vunpack.c.l.bf16 %v2638
        %v2671 = vunpack.c.l.bf16 %v2639
        %v2672 = vunpack.c.l.bf16 %v2640
        %v2673 = vunpack.c.l.bf16 %v2641
        %v2674 = vunpack.c.l.bf16 %v2642
        %v2675 = vunpack.c.l.bf16 %v2643
        %v2676 = vunpack.c.l.bf16 %v2644
        %v2677 = vunpack.c.l.bf16 %v2645
        %v2678 = vunpack.c.l.bf16 %v2646
        %v2679 = vunpack.c.l.bf16 %v2647
        %v2680 = vunpack.c.l.bf16 %v2648
        %v2681 = vunpack.c.l.bf16 %v2649
        %v2682 = vunpack.c.l.bf16 %v2650
        %v2683 = vunpack.c.l.bf16 %v2651
        %v2684 = vunpack.c.l.bf16 %v2652
        %v2685 = vunpack.c.l.bf16 %v2653
        %v2686 = vunpack.c.l.bf16 %v2654
        %2688 = vset.pattern.permute.xlu0 0
        %2689 = vperm.xlu0 %2688, %v2655
        %v2690 = vpop.permute.xlu0 %2689
        %2693 = vset.pattern.permute.xlu0 0
        %2694 = vperm.xlu0 %2693, %v2656
        %v2695 = vpop.permute.xlu0 %2694
        %2698 = vset.pattern.permute.xlu0 0
        %2699 = vperm.xlu0 %2698, %v2657
        %v2700 = vpop.permute.xlu0 %2699
        %2703 = vset.pattern.permute.xlu0 0
        %2704 = vperm.xlu0 %2703, %v2658
        %v2705 = vpop.permute.xlu0 %2704
        %2708 = vset.pattern.permute.xlu0 0
        %2709 = vperm.xlu0 %2708, %v2659
        %v2710 = vpop.permute.xlu0 %2709
        %2713 = vset.pattern.permute.xlu0 0
        %2714 = vperm.xlu0 %2713, %v2660
        %v2715 = vpop.permute.xlu0 %2714
        %2718 = vset.pattern.permute.xlu0 0
        %2719 = vperm.xlu0 %2718, %v2661
        %v2720 = vpop.permute.xlu0 %2719
        %2723 = vset.pattern.permute.xlu0 0
        %2724 = vperm.xlu0 %2723, %v2662
        %v2725 = vpop.permute.xlu0 %2724
        %2728 = vset.pattern.permute.xlu0 0
        %2729 = vperm.xlu0 %2728, %v2663
        %v2730 = vpop.permute.xlu0 %2729
        %2733 = vset.pattern.permute.xlu0 0
        %2734 = vperm.xlu0 %2733, %v2664
        %v2735 = vpop.permute.xlu0 %2734
        %2738 = vset.pattern.permute.xlu0 0
        %2739 = vperm.xlu0 %2738, %v2665
        %v2740 = vpop.permute.xlu0 %2739
        %2743 = vset.pattern.permute.xlu0 0
        %2744 = vperm.xlu0 %2743, %v2666
        %v2745 = vpop.permute.xlu0 %2744
        %2748 = vset.pattern.permute.xlu0 0
        %2749 = vperm.xlu0 %2748, %v2667
        %v2750 = vpop.permute.xlu0 %2749
        %2753 = vset.pattern.permute.xlu0 0
        %2754 = vperm.xlu0 %2753, %v2668
        %v2755 = vpop.permute.xlu0 %2754
        %2758 = vset.pattern.permute.xlu0 0
        %2759 = vperm.xlu0 %2758, %v2669
        %v2760 = vpop.permute.xlu0 %2759
        %2763 = vset.pattern.permute.xlu0 0
        %2764 = vperm.xlu0 %2763, %v2670
        %v2765 = vpop.permute.xlu0 %2764
        %2768 = vset.pattern.permute.xlu0 0
        %2769 = vperm.xlu0 %2768, %v2671
        %v2770 = vpop.permute.xlu0 %2769
        %2773 = vset.pattern.permute.xlu0 0
        %2774 = vperm.xlu0 %2773, %v2672
        %v2775 = vpop.permute.xlu0 %2774
        %2778 = vset.pattern.permute.xlu0 0
        %2779 = vperm.xlu0 %2778, %v2673
        %v2780 = vpop.permute.xlu0 %2779
        %2783 = vset.pattern.permute.xlu0 0
        %2784 = vperm.xlu0 %2783, %v2674
        %v2785 = vpop.permute.xlu0 %2784
        %2788 = vset.pattern.permute.xlu0 0
        %2789 = vperm.xlu0 %2788, %v2675
        %v2790 = vpop.permute.xlu0 %2789
        %2793 = vset.pattern.permute.xlu0 0
        %2794 = vperm.xlu0 %2793, %v2676
        %v2795 = vpop.permute.xlu0 %2794
        %2798 = vset.pattern.permute.xlu0 0
        %2799 = vperm.xlu0 %2798, %v2677
        %v2800 = vpop.permute.xlu0 %2799
        %2803 = vset.pattern.permute.xlu0 0
        %2804 = vperm.xlu0 %2803, %v2678
        %v2805 = vpop.permute.xlu0 %2804
        %2808 = vset.pattern.permute.xlu0 0
        %2809 = vperm.xlu0 %2808, %v2679
        %v2810 = vpop.permute.xlu0 %2809
        %2813 = vset.pattern.permute.xlu0 0
        %2814 = vperm.xlu0 %2813, %v2680
        %v2815 = vpop.permute.xlu0 %2814
        %2818 = vset.pattern.permute.xlu0 0
        %2819 = vperm.xlu0 %2818, %v2681
        %v2820 = vpop.permute.xlu0 %2819
        %2823 = vset.pattern.permute.xlu0 0
        %2824 = vperm.xlu0 %2823, %v2682
        %v2825 = vpop.permute.xlu0 %2824
        %2828 = vset.pattern.permute.xlu0 0
        %2829 = vperm.xlu0 %2828, %v2683
        %v2830 = vpop.permute.xlu0 %2829
        %2833 = vset.pattern.permute.xlu0 0
        %2834 = vperm.xlu0 %2833, %v2684
        %v2835 = vpop.permute.xlu0 %2834
        %2838 = vset.pattern.permute.xlu0 0
        %2839 = vperm.xlu0 %2838, %v2685
        %v2840 = vpop.permute.xlu0 %2839
        %2843 = vset.pattern.permute.xlu0 0
        %2844 = vperm.xlu0 %2843, %v2686
        %v2845 = vpop.permute.xlu0 %2844
        %v2847 = vmul.f32 %v955, %v2690
        %v2848 = vmul.f32 %v956, %v2695
        %v2849 = vmul.f32 %v957, %v2700
        %v2850 = vmul.f32 %v958, %v2705
        %v2851 = vmul.f32 %v959, %v2710
        %v2852 = vmul.f32 %v960, %v2715
        %v2853 = vmul.f32 %v961, %v2720
        %v2854 = vmul.f32 %v962, %v2725
        %v2855 = vmul.f32 %v963, %v2730
        %v2856 = vmul.f32 %v964, %v2735
        %v2857 = vmul.f32 %v965, %v2740
        %v2858 = vmul.f32 %v966, %v2745
        %v2859 = vmul.f32 %v967, %v2750
        %v2860 = vmul.f32 %v968, %v2755
        %v2861 = vmul.f32 %v969, %v2760
        %v2862 = vmul.f32 %v970, %v2765
        %v2863 = vmul.f32 %v971, %v2770
        %v2864 = vmul.f32 %v972, %v2775
        %v2865 = vmul.f32 %v973, %v2780
        %v2866 = vmul.f32 %v974, %v2785
        %v2867 = vmul.f32 %v975, %v2790
        %v2868 = vmul.f32 %v976, %v2795
        %v2869 = vmul.f32 %v977, %v2800
        %v2870 = vmul.f32 %v978, %v2805
        %v2871 = vmul.f32 %v979, %v2810
        %v2872 = vmul.f32 %v980, %v2815
        %v2873 = vmul.f32 %v981, %v2820
        %v2874 = vmul.f32 %v982, %v2825
        %v2875 = vmul.f32 %v983, %v2830
        %v2876 = vmul.f32 %v984, %v2835
        %v2877 = vmul.f32 %v953, %v2840
        %v2878 = vmul.f32 %v954, %v2845
        %v2879 = vpack.c.bf16 %v2848, %v2847
        %v2880 = vpack.c.bf16 %v2850, %v2849
        %v2881 = vpack.c.bf16 %v2852, %v2851
        %v2882 = vpack.c.bf16 %v2854, %v2853
        %v2883 = vpack.c.bf16 %v2856, %v2855
        %v2884 = vpack.c.bf16 %v2858, %v2857
        %v2885 = vpack.c.bf16 %v2860, %v2859
        %v2886 = vpack.c.bf16 %v2862, %v2861
        %v2887 = vpack.c.bf16 %v2864, %v2863
        %v2888 = vpack.c.bf16 %v2866, %v2865
        %v2889 = vpack.c.bf16 %v2868, %v2867
        %v2890 = vpack.c.bf16 %v2870, %v2869
        %v2891 = vpack.c.bf16 %v2872, %v2871
        %v2892 = vpack.c.bf16 %v2874, %v2873
        %v2893 = vpack.c.bf16 %v2876, %v2875
        %v2894 = vpack.c.bf16 %v2878, %v2877
        %v2895 = vmul.f32 %v631, %v2690
        %v2896 = vmul.f32 %v632, %v2695
        %v2897 = vmul.f32 %v633, %v2700
        %v2898 = vmul.f32 %v634, %v2705
        %v2899 = vmul.f32 %v635, %v2710
        %v2900 = vmul.f32 %v636, %v2715
        %v2901 = vmul.f32 %v637, %v2720
        %v2902 = vmul.f32 %v638, %v2725
        %v2903 = vmul.f32 %v639, %v2730
        %v2904 = vmul.f32 %v640, %v2735
        %v2905 = vmul.f32 %v641, %v2740
        %v2906 = vmul.f32 %v642, %v2745
        %v2907 = vmul.f32 %v643, %v2750
        %v2908 = vmul.f32 %v644, %v2755
        %v2909 = vmul.f32 %v645, %v2760
        %v2910 = vmul.f32 %v646, %v2765
        %v2911 = vmul.f32 %v647, %v2770
        %v2912 = vmul.f32 %v648, %v2775
        %v2913 = vmul.f32 %v649, %v2780
        %v2914 = vmul.f32 %v650, %v2785
        %v2915 = vmul.f32 %v651, %v2790
        %v2916 = vmul.f32 %v652, %v2795
        %v2917 = vmul.f32 %v653, %v2800
        %v2918 = vmul.f32 %v654, %v2805
        %v2919 = vmul.f32 %v655, %v2810
        %v2920 = vmul.f32 %v656, %v2815
        %v2921 = vmul.f32 %v657, %v2820
        %v2922 = vmul.f32 %v658, %v2825
        %v2923 = vmul.f32 %v659, %v2830
        %v2924 = vmul.f32 %v660, %v2835
        %v2925 = vmul.f32 %v629, %v2840
        %v2926 = vmul.f32 %v630, %v2845
        %v2927 = vpack.c.bf16 %v2896, %v2895
        %v2928 = vpack.c.bf16 %v2898, %v2897
        %v2929 = vpack.c.bf16 %v2900, %v2899
        %v2930 = vpack.c.bf16 %v2902, %v2901
        %v2931 = vpack.c.bf16 %v2904, %v2903
        %v2932 = vpack.c.bf16 %v2906, %v2905
        %v2933 = vpack.c.bf16 %v2908, %v2907
        %v2934 = vpack.c.bf16 %v2910, %v2909
        %v2935 = vpack.c.bf16 %v2912, %v2911
        %v2936 = vpack.c.bf16 %v2914, %v2913
        %v2937 = vpack.c.bf16 %v2916, %v2915
        %v2938 = vpack.c.bf16 %v2918, %v2917
        %v2939 = vpack.c.bf16 %v2920, %v2919
        %v2940 = vpack.c.bf16 %v2922, %v2921
        %v2941 = vpack.c.bf16 %v2924, %v2923
        %v2942 = vpack.c.bf16 %v2926, %v2925
        %v2943 = vld [vmem:[#allocation5 + $0x180] sm:$0xf]
        %v2944 = vld [vmem:[#allocation5 + $0x184] sm:$0xf]
        %v2945 = vld [vmem:[#allocation5 + $0x188] sm:$0xf]
        %v2946 = vld [vmem:[#allocation5 + $0x18c] sm:$0xf]
        %v2947 = vld [vmem:[#allocation5 + $0x190] sm:$0xf]
        %v2948 = vld [vmem:[#allocation5 + $0x194] sm:$0xf]
        %v2949 = vld [vmem:[#allocation5 + $0x198] sm:$0xf]
        %v2950 = vld [vmem:[#allocation5 + $0x19c] sm:$0xf]
        %v2951 = vld [vmem:[#allocation5 + $0x1a0] sm:$0xf]
        %v2952 = vld [vmem:[#allocation5 + $0x1a4] sm:$0xf]
        %v2953 = vld [vmem:[#allocation5 + $0x1a8] sm:$0xf]
        %v2954 = vld [vmem:[#allocation5 + $0x1ac] sm:$0xf]
        %v2955 = vld [vmem:[#allocation5 + $0x1b0] sm:$0xf]
        %v2956 = vld [vmem:[#allocation5 + $0x1b4] sm:$0xf]
        %v2957 = vld [vmem:[#allocation5 + $0x1b8] sm:$0xf]
        %v2958 = vld [vmem:[#allocation5 + $0x1bc] sm:$0xf]
        %v2959 = vld [vmem:[#allocation5 + $0x1c0] sm:$0xf]
        %v2960 = vld [vmem:[#allocation5 + $0x1c4] sm:$0xf]
        %v2961 = vld [vmem:[#allocation5 + $0x1c8] sm:$0xf]
        %v2962 = vld [vmem:[#allocation5 + $0x1cc] sm:$0xf]
        %v2963 = vld [vmem:[#allocation5 + $0x1d0] sm:$0xf]
        %v2964 = vld [vmem:[#allocation5 + $0x1d4] sm:$0xf]
        %v2965 = vld [vmem:[#allocation5 + $0x1d8] sm:$0xf]
        %v2966 = vld [vmem:[#allocation5 + $0x1dc] sm:$0xf]
        %v2967 = vld [vmem:[#allocation5 + $0x1e0] sm:$0xf]
        %v2968 = vld [vmem:[#allocation5 + $0x1e4] sm:$0xf]
        %v2969 = vld [vmem:[#allocation5 + $0x1e8] sm:$0xf]
        %v2970 = vld [vmem:[#allocation5 + $0x1ec] sm:$0xf]
        %v2971 = vld [vmem:[#allocation5 + $0x1f0] sm:$0xf]
        %v2972 = vld [vmem:[#allocation5 + $0x1f4] sm:$0xf]
        %v2973 = vld [vmem:[#allocation5 + $0x1f8] sm:$0xf]
        %v2974 = vld [vmem:[#allocation5 + $0x1fc] sm:$0xf]
        %v3007 = vunpack.c.l.b16 %v2943
        %v3008 = vunpack.c.l.b16 %v2944
        %v3009 = vunpack.c.l.b16 %v2945
        %v3010 = vunpack.c.l.b16 %v2946
        %v3011 = vunpack.c.l.b16 %v2947
        %v3012 = vunpack.c.l.b16 %v2948
        %v3013 = vunpack.c.l.b16 %v2949
        %v3014 = vunpack.c.l.b16 %v2950
        %v3015 = vunpack.c.l.b16 %v2951
        %v3016 = vunpack.c.l.b16 %v2952
        %v3017 = vunpack.c.l.b16 %v2953
        %v3018 = vunpack.c.l.b16 %v2954
        %v3019 = vunpack.c.l.b16 %v2955
        %v3020 = vunpack.c.l.b16 %v2956
        %v3021 = vunpack.c.l.b16 %v2957
        %v3022 = vunpack.c.l.b16 %v2958
        %v3023 = vunpack.c.l.b16 %v2959
        %v3024 = vunpack.c.l.b16 %v2960
        %v3025 = vunpack.c.l.b16 %v2961
        %v3026 = vunpack.c.l.b16 %v2962
        %v3027 = vunpack.c.l.b16 %v2963
        %v3028 = vunpack.c.l.b16 %v2964
        %v3029 = vunpack.c.l.b16 %v2965
        %v3030 = vunpack.c.l.b16 %v2966
        %v3031 = vunpack.c.l.b16 %v2967
        %v3032 = vunpack.c.l.b16 %v2968
        %v3033 = vunpack.c.l.b16 %v2969
        %v3034 = vunpack.c.l.b16 %v2970
        %v3035 = vunpack.c.l.b16 %v2971
        %v3036 = vunpack.c.l.b16 %v2972
        %v3037 = vunpack.c.l.b16 %v2973
        %v3038 = vunpack.c.l.b16 %v2974
        %v3039 = vpack.c.b16 %v3008, %v3007
        %v3040 = vpack.c.b16 %v3010, %v3009
        %v3041 = vpack.c.b16 %v3012, %v3011
        %v3042 = vpack.c.b16 %v3014, %v3013
        %v3043 = vpack.c.b16 %v3016, %v3015
        %v3044 = vpack.c.b16 %v3018, %v3017
        %v3045 = vpack.c.b16 %v3020, %v3019
        %v3046 = vpack.c.b16 %v3022, %v3021
        %v3047 = vpack.c.b16 %v3024, %v3023
        %v3048 = vpack.c.b16 %v3026, %v3025
        %v3049 = vpack.c.b16 %v3028, %v3027
        %v3050 = vpack.c.b16 %v3030, %v3029
        %v3051 = vpack.c.b16 %v3032, %v3031
        %v3052 = vpack.c.b16 %v3034, %v3033
        %v3053 = vpack.c.b16 %v3036, %v3035
        %v3054 = vpack.c.b16 %v3038, %v3037
        %3071 = vmatprep.subr.bf16.mxu0 0
        %3072 = vmatpush1.bf16.msra.mxu0 %v3039
        %3073 = vmatprep.subr.bf16.mxu0 0
        %3074 = vmatpush1.bf16.msra.mxu0 %v3040
        %3075 = vmatprep.subr.bf16.mxu0 0
        %3076 = vmatpush1.bf16.msra.mxu0 %v3041
        %3077 = vmatprep.subr.bf16.mxu0 0
        %3078 = vmatpush1.bf16.msra.mxu0 %v3042
        %3079 = vmatprep.subr.bf16.mxu0 0
        %3080 = vmatpush1.bf16.msra.mxu0 %v3043
        %3081 = vmatprep.subr.bf16.mxu0 0
        %3082 = vmatpush1.bf16.msra.mxu0 %v3044
        %3083 = vmatprep.subr.bf16.mxu0 0
        %3084 = vmatpush1.bf16.msra.mxu0 %v3045
        %3085 = vmatprep.subr.bf16.mxu0 0
        %3086 = vmatpush1.bf16.msra.mxu0 %v3046
        %3087 = vmatprep.subr.bf16.mxu0 0
        %3088 = vmatpush1.bf16.msra.mxu0 %v3047
        %3089 = vmatprep.subr.bf16.mxu0 0
        %3090 = vmatpush1.bf16.msra.mxu0 %v3048
        %3091 = vmatprep.subr.bf16.mxu0 0
        %3092 = vmatpush1.bf16.msra.mxu0 %v3049
        %3093 = vmatprep.subr.bf16.mxu0 0
        %3094 = vmatpush1.bf16.msra.mxu0 %v3050
        %3095 = vmatprep.subr.bf16.mxu0 0
        %3096 = vmatpush1.bf16.msra.mxu0 %v3051
        %3097 = vmatprep.subr.bf16.mxu0 0
        %3098 = vmatpush1.bf16.msra.mxu0 %v3052
        %3099 = vmatprep.subr.bf16.mxu0 0
        %3100 = vmatpush1.bf16.msra.mxu0 %v3053
        %3101 = vmatprep.subr.bf16.mxu0 0
        %3102 = vmatpush1.bf16.msra.mxu0 %v3054
        %3103 = vmatprep.mubr.bf16.mxu0 %v2927
        %3104 = vmatmul.mubr.bf16.gmra.mrb[0].mxu0 %v2879
        %v3105 = vpop.f32.mrb[0].mxu0
        %v3106 = vadd.f32 0.0, %v3105
        %v3107 = vpop.f32.mrb[0].mxu0
        %v3108 = vpop.f32.mrb[0].mxu0
        %v3109 = vadd.f32 0.0, %v3108
        %v3110 = vpop.f32.mrb[0].mxu0
        %3111 = vmatprep.mubr.bf16.mxu0 %v2928
        %3112 = vmatmul.mubr.bf16.gmra.mrb[0].mxu0 %v2880
        %v3113 = vpop.f32.mrb[0].mxu0
        %v3114 = vadd.f32 0.0, %v3113
        %v3115 = vpop.f32.mrb[0].mxu0
        %v3116 = vpop.f32.mrb[0].mxu0
        %v3117 = vadd.f32 0.0, %v3116
        %v3118 = vpop.f32.mrb[0].mxu0
        %3119 = vmatprep.mubr.bf16.mxu0 %v2929
        %3120 = vmatmul.mubr.bf16.gmra.mrb[0].mxu0 %v2881
        %v3121 = vpop.f32.mrb[0].mxu0
        %v3122 = vadd.f32 0.0, %v3121
        %v3123 = vpop.f32.mrb[0].mxu0
        %v3124 = vpop.f32.mrb[0].mxu0
        %v3125 = vadd.f32 0.0, %v3124
        %v3126 = vpop.f32.mrb[0].mxu0
        %3127 = vmatprep.mubr.bf16.mxu0 %v2930
        %3128 = vmatmul.mubr.bf16.gmra.mrb[0].mxu0 %v2882
        %v3129 = vpop.f32.mrb[0].mxu0
        %v3130 = vadd.f32 0.0, %v3129
        %v3131 = vpop.f32.mrb[0].mxu0
        %v3132 = vpop.f32.mrb[0].mxu0
        %v3133 = vadd.f32 0.0, %v3132
        %v3134 = vpop.f32.mrb[0].mxu0
        %3135 = vmatprep.mubr.bf16.mxu0 %v2931
        %3136 = vmatmul.mubr.bf16.gmra.mrb[0].mxu0 %v2883
        %v3137 = vpop.f32.mrb[0].mxu0
        %v3138 = vadd.f32 0.0, %v3137
        %v3139 = vpop.f32.mrb[0].mxu0
        %v3140 = vpop.f32.mrb[0].mxu0
        %v3141 = vadd.f32 0.0, %v3140
        %v3142 = vpop.f32.mrb[0].mxu0
        %3143 = vmatprep.mubr.bf16.mxu0 %v2932
        %3144 = vmatmul.mubr.bf16.gmra.mrb[0].mxu0 %v2884
        %v3145 = vpop.f32.mrb[0].mxu0
        %v3146 = vadd.f32 0.0, %v3145
        %v3147 = vpop.f32.mrb[0].mxu0
        %v3148 = vpop.f32.mrb[0].mxu0
        %v3149 = vadd.f32 0.0, %v3148
        %v3150 = vpop.f32.mrb[0].mxu0
        %3151 = vmatprep.mubr.bf16.mxu0 %v2933
        %3152 = vmatmul.mubr.bf16.gmra.mrb[0].mxu0 %v2885
        %v3153 = vpop.f32.mrb[0].mxu0
        %v3154 = vadd.f32 0.0, %v3153
        %v3155 = vpop.f32.mrb[0].mxu0
        %v3156 = vpop.f32.mrb[0].mxu0
        %v3157 = vadd.f32 0.0, %v3156
        %v3158 = vpop.f32.mrb[0].mxu0
        %3159 = vmatprep.mubr.bf16.mxu0 %v2934
        %3160 = vmatmul.mubr.bf16.gmra.mrb[0].mxu0 %v2886
        %v3161 = vpop.f32.mrb[0].mxu0
        %v3162 = vadd.f32 0.0, %v3161
        %v3163 = vpop.f32.mrb[0].mxu0
        %v3164 = vpop.f32.mrb[0].mxu0
        %v3165 = vadd.f32 0.0, %v3164
        %v3166 = vpop.f32.mrb[0].mxu0
        %3167 = vmatprep.mubr.bf16.mxu0 %v2935
        %3168 = vmatmul.mubr.bf16.gmra.mrb[0].mxu0 %v2887
        %v3169 = vpop.f32.mrb[0].mxu0
        %v3170 = vadd.f32 0.0, %v3169
        %v3171 = vpop.f32.mrb[0].mxu0
        %v3172 = vpop.f32.mrb[0].mxu0
        %v3173 = vadd.f32 0.0, %v3172
        %v3174 = vpop.f32.mrb[0].mxu0
        %3175 = vmatprep.mubr.bf16.mxu0 %v2936
        %3176 = vmatmul.mubr.bf16.gmra.mrb[0].mxu0 %v2888
        %v3177 = vpop.f32.mrb[0].mxu0
        %v3178 = vadd.f32 0.0, %v3177
        %v3179 = vpop.f32.mrb[0].mxu0
        %v3180 = vpop.f32.mrb[0].mxu0
        %v3181 = vadd.f32 0.0, %v3180
        %v3182 = vpop.f32.mrb[0].mxu0
        %3183 = vmatprep.mubr.bf16.mxu0 %v2937
        %3184 = vmatmul.mubr.bf16.gmra.mrb[0].mxu0 %v2889
        %v3185 = vpop.f32.mrb[0].mxu0
        %v3186 = vadd.f32 0.0, %v3185
        %v3187 = vpop.f32.mrb[0].mxu0
        %v3188 = vpop.f32.mrb[0].mxu0
        %v3189 = vadd.f32 0.0, %v3188
        %v3190 = vpop.f32.mrb[0].mxu0
        %3191 = vmatprep.mubr.bf16.mxu0 %v2938
        %3192 = vmatmul.mubr.bf16.gmra.mrb[0].mxu0 %v2890
        %v3193 = vpop.f32.mrb[0].mxu0
        %v3194 = vadd.f32 0.0, %v3193
        %v3195 = vpop.f32.mrb[0].mxu0
        %v3196 = vpop.f32.mrb[0].mxu0
        %v3197 = vadd.f32 0.0, %v3196
        %v3198 = vpop.f32.mrb[0].mxu0
        %3199 = vmatprep.mubr.bf16.mxu0 %v2939
        %3200 = vmatmul.mubr.bf16.gmra.mrb[0].mxu0 %v2891
        %v3201 = vpop.f32.mrb[0].mxu0
        %v3202 = vadd.f32 0.0, %v3201
        %v3203 = vpop.f32.mrb[0].mxu0
        %v3204 = vpop.f32.mrb[0].mxu0
        %v3205 = vadd.f32 0.0, %v3204
        %v3206 = vpop.f32.mrb[0].mxu0
        %3207 = vmatprep.mubr.bf16.mxu0 %v2940
        %3208 = vmatmul.mubr.bf16.gmra.mrb[0].mxu0 %v2892
        %v3209 = vpop.f32.mrb[0].mxu0
        %v3210 = vadd.f32 0.0, %v3209
        %v3211 = vpop.f32.mrb[0].mxu0
        %v3212 = vpop.f32.mrb[0].mxu0
        %v3213 = vadd.f32 0.0, %v3212
        %v3214 = vpop.f32.mrb[0].mxu0
        %3215 = vmatprep.mubr.bf16.mxu0 %v2941
        %3216 = vmatmul.mubr.bf16.gmra.mrb[0].mxu0 %v2893
        %v3217 = vpop.f32.mrb[0].mxu0
        %v3218 = vadd.f32 0.0, %v3217
        %v3219 = vpop.f32.mrb[0].mxu0
        %v3220 = vpop.f32.mrb[0].mxu0
        %v3221 = vadd.f32 0.0, %v3220
        %v3222 = vpop.f32.mrb[0].mxu0
        %3223 = vmatprep.mubr.bf16.mxu0 %v2942
        %3224 = vmatmul.mubr.bf16.gmra.mrb[0].mxu0 %v2894
        %v3225 = vpop.f32.mrb[0].mxu0
        %v3226 = vadd.f32 0.0, %v3225
        %v3227 = vpop.f32.mrb[0].mxu0
        %v3228 = vpop.f32.mrb[0].mxu0
        %v3229 = vadd.f32 0.0, %v3228
        %v3230 = vpop.f32.mrb[0].mxu0
        %3231 = vdwg.mxu0
        %v3232 = vadd.f32 %v2590, %v3106
        %v3233 = vadd.f32 %v2591, %v3109
        %v3234 = vadd.f32 %v2592, %v3114
        %v3235 = vadd.f32 %v2593, %v3117
        %v3236 = vadd.f32 %v2594, %v3122
        %v3237 = vadd.f32 %v2595, %v3125
        %v3238 = vadd.f32 %v2596, %v3130
        %v3239 = vadd.f32 %v2597, %v3133
        %v3240 = vadd.f32 %v2598, %v3138
        %v3241 = vadd.f32 %v2599, %v3141
        %v3242 = vadd.f32 %v2600, %v3146
        %v3243 = vadd.f32 %v2601, %v3149
        %v3244 = vadd.f32 %v2602, %v3154
        %v3245 = vadd.f32 %v2603, %v3157
        %v3246 = vadd.f32 %v2604, %v3162
        %v3247 = vadd.f32 %v2605, %v3165
        %v3248 = vadd.f32 %v2606, %v3170
        %v3249 = vadd.f32 %v2607, %v3173
        %v3250 = vadd.f32 %v2608, %v3178
        %v3251 = vadd.f32 %v2609, %v3181
        %v3252 = vadd.f32 %v2610, %v3186
        %v3253 = vadd.f32 %v2611, %v3189
        %v3254 = vadd.f32 %v2612, %v3194
        %v3255 = vadd.f32 %v2613, %v3197
        %v3256 = vadd.f32 %v2614, %v3202
        %v3257 = vadd.f32 %v2615, %v3205
        %v3258 = vadd.f32 %v2616, %v3210
        %v3259 = vadd.f32 %v2617, %v3213
        %v3260 = vadd.f32 %v2618, %v3218
        %v3261 = vadd.f32 %v2619, %v3221
        %v3262 = vadd.f32 %v2620, %v3226
        %v3263 = vadd.f32 %v2621, %v3229
        %v3264 = vmul.f32 %v1277, %v2690
        %v3265 = vmul.f32 %v1278, %v2695
        %v3266 = vmul.f32 %v1279, %v2700
        %v3267 = vmul.f32 %v1280, %v2705
        %v3268 = vmul.f32 %v1281, %v2710
        %v3269 = vmul.f32 %v1282, %v2715
        %v3270 = vmul.f32 %v1283, %v2720
        %v3271 = vmul.f32 %v1284, %v2725
        %v3272 = vmul.f32 %v1285, %v2730
        %v3273 = vmul.f32 %v1286, %v2735
        %v3274 = vmul.f32 %v1287, %v2740
        %v3275 = vmul.f32 %v1288, %v2745
        %v3276 = vmul.f32 %v1289, %v2750
        %v3277 = vmul.f32 %v1290, %v2755
        %v3278 = vmul.f32 %v1291, %v2760
        %v3279 = vmul.f32 %v1292, %v2765
        %v3280 = vmul.f32 %v1293, %v2770
        %v3281 = vmul.f32 %v1294, %v2775
        %v3282 = vmul.f32 %v1295, %v2780
        %v3283 = vmul.f32 %v1296, %v2785
        %v3284 = vmul.f32 %v1297, %v2790
        %v3285 = vmul.f32 %v1298, %v2795
        %v3286 = vmul.f32 %v1299, %v2800
        %v3287 = vmul.f32 %v1300, %v2805
        %v3288 = vmul.f32 %v1301, %v2810
        %v3289 = vmul.f32 %v1302, %v2815
        %v3290 = vmul.f32 %v1303, %v2820
        %v3291 = vmul.f32 %v1304, %v2825
        %v3292 = vmul.f32 %v1305, %v2830
        %v3293 = vmul.f32 %v1306, %v2835
        %v3294 = vmul.f32 %v1275, %v2840
        %v3295 = vmul.f32 %v1276, %v2845
        %v3296 = vpack.c.bf16 %v3265, %v3264
        %v3297 = vpack.c.bf16 %v3267, %v3266
        %v3298 = vpack.c.bf16 %v3269, %v3268
        %v3299 = vpack.c.bf16 %v3271, %v3270
        %v3300 = vpack.c.bf16 %v3273, %v3272
        %v3301 = vpack.c.bf16 %v3275, %v3274
        %v3302 = vpack.c.bf16 %v3277, %v3276
        %v3303 = vpack.c.bf16 %v3279, %v3278
        %v3304 = vpack.c.bf16 %v3281, %v3280
        %v3305 = vpack.c.bf16 %v3283, %v3282
        %v3306 = vpack.c.bf16 %v3285, %v3284
        %v3307 = vpack.c.bf16 %v3287, %v3286
        %v3308 = vpack.c.bf16 %v3289, %v3288
        %v3309 = vpack.c.bf16 %v3291, %v3290
        %v3310 = vpack.c.bf16 %v3293, %v3292
        %v3311 = vpack.c.bf16 %v3295, %v3294
        %v3312 = vld [vmem:[#allocation5 + $0x200] sm:$0xf]
        %v3313 = vld [vmem:[#allocation5 + $0x204] sm:$0xf]
        %v3314 = vld [vmem:[#allocation5 + $0x208] sm:$0xf]
        %v3315 = vld [vmem:[#allocation5 + $0x20c] sm:$0xf]
        %v3316 = vld [vmem:[#allocation5 + $0x210] sm:$0xf]
        %v3317 = vld [vmem:[#allocation5 + $0x214] sm:$0xf]
        %v3318 = vld [vmem:[#allocation5 + $0x218] sm:$0xf]
        %v3319 = vld [vmem:[#allocation5 + $0x21c] sm:$0xf]
        %v3320 = vld [vmem:[#allocation5 + $0x220] sm:$0xf]
        %v3321 = vld [vmem:[#allocation5 + $0x224] sm:$0xf]
        %v3322 = vld [vmem:[#allocation5 + $0x228] sm:$0xf]
        %v3323 = vld [vmem:[#allocation5 + $0x22c] sm:$0xf]
        %v3324 = vld [vmem:[#allocation5 + $0x230] sm:$0xf]
        %v3325 = vld [vmem:[#allocation5 + $0x234] sm:$0xf]
        %v3326 = vld [vmem:[#allocation5 + $0x238] sm:$0xf]
        %v3327 = vld [vmem:[#allocation5 + $0x23c] sm:$0xf]
        %v3344 = vunpack.c.l.b16 %v3312
        %v3345 = vunpack.c.l.b16 %v3313
        %v3346 = vunpack.c.l.b16 %v3314
        %v3347 = vunpack.c.l.b16 %v3315
        %v3348 = vunpack.c.l.b16 %v3316
        %v3349 = vunpack.c.l.b16 %v3317
        %v3350 = vunpack.c.l.b16 %v3318
        %v3351 = vunpack.c.l.b16 %v3319
        %v3352 = vunpack.c.l.b16 %v3320
        %v3353 = vunpack.c.l.b16 %v3321
        %v3354 = vunpack.c.l.b16 %v3322
        %v3355 = vunpack.c.l.b16 %v3323
        %v3356 = vunpack.c.l.b16 %v3324
        %v3357 = vunpack.c.l.b16 %v3325
        %v3358 = vunpack.c.l.b16 %v3326
        %v3359 = vunpack.c.l.b16 %v3327
        %v3360 = vpack.c.b16 %v3345, %v3344
        %v3361 = vpack.c.b16 %v3347, %v3346
        %v3362 = vpack.c.b16 %v3349, %v3348
        %v3363 = vpack.c.b16 %v3351, %v3350
        %v3364 = vpack.c.b16 %v3353, %v3352
        %v3365 = vpack.c.b16 %v3355, %v3354
        %v3366 = vpack.c.b16 %v3357, %v3356
        %v3367 = vpack.c.b16 %v3359, %v3358
        %3376 = vmatprep.subr.bf16.mxu0 0
        %3377 = vmatpush1.bf16.msra.mxu0 %v3360
        %3378 = vmatprep.subr.bf16.mxu0 0
        %3379 = vmatpush1.bf16.msra.mxu0 %v3361
        %3380 = vmatprep.subr.bf16.mxu0 0
        %3381 = vmatpush1.bf16.msra.mxu0 %v3362
        %3382 = vmatprep.subr.bf16.mxu0 0
        %3383 = vmatpush1.bf16.msra.mxu0 %v3363
        %3384 = vmatprep.subr.bf16.mxu0 0
        %3385 = vmatpush1.bf16.msra.mxu0 %v3364
        %3386 = vmatprep.subr.bf16.mxu0 0
        %3387 = vmatpush1.bf16.msra.mxu0 %v3365
        %3388 = vmatprep.subr.bf16.mxu0 0
        %3389 = vmatpush1.bf16.msra.mxu0 %v3366
        %3390 = vmatprep.subr.bf16.mxu0 0
        %3391 = vmatpush1.bf16.msra.mxu0 %v3367
        %3392 = vmatprep.subr.bf16.mxu0 0
        %3393 = vmatpush1.bf16.msra.mxu0 0
        %3394 = vmatprep.subr.bf16.mxu0 0
        %3395 = vmatpush1.bf16.msra.mxu0 0
        %3396 = vmatprep.subr.bf16.mxu0 0
        %3397 = vmatpush1.bf16.msra.mxu0 0
        %3398 = vmatprep.subr.bf16.mxu0 0
        %3399 = vmatpush1.bf16.msra.mxu0 0
        %3400 = vmatprep.subr.bf16.mxu0 0
        %3401 = vmatpush1.bf16.msra.mxu0 0
        %3402 = vmatprep.subr.bf16.mxu0 0
        %3403 = vmatpush1.bf16.msra.mxu0 0
        %3404 = vmatprep.subr.bf16.mxu0 0
        %3405 = vmatpush1.bf16.msra.mxu0 0
        %3406 = vmatprep.subr.bf16.mxu0 0
        %3407 = vmatpush1.bf16.msra.mxu0 0
        %3408 = vmatprep.mubr.bf16.mxu0 0
        %3409 = vmatmul.mubr.bf16.gmra.mrb[0].mxu0 %v3296
        %v3410 = vpop.f32.mrb[0].mxu0
        %v3411 = vadd.f32 0.0, %v3410
        %v3412 = vpop.f32.mrb[0].mxu0
        %v3413 = vpop.f32.mrb[0].mxu0
        %v3414 = vadd.f32 0.0, %v3413
        %v3415 = vpop.f32.mrb[0].mxu0
        %3416 = vmatprep.mubr.bf16.mxu0 0
        %3417 = vmatmul.mubr.bf16.gmra.mrb[0].mxu0 %v3297
        %v3418 = vpop.f32.mrb[0].mxu0
        %v3419 = vadd.f32 0.0, %v3418
        %v3420 = vpop.f32.mrb[0].mxu0
        %v3421 = vpop.f32.mrb[0].mxu0
        %v3422 = vadd.f32 0.0, %v3421
        %v3423 = vpop.f32.mrb[0].mxu0
        %3424 = vmatprep.mubr.bf16.mxu0 0
        %3425 = vmatmul.mubr.bf16.gmra.mrb[0].mxu0 %v3298
        %v3426 = vpop.f32.mrb[0].mxu0
        %v3427 = vadd.f32 0.0, %v3426
        %v3428 = vpop.f32.mrb[0].mxu0
        %v3429 = vpop.f32.mrb[0].mxu0
        %v3430 = vadd.f32 0.0, %v3429
        %v3431 = vpop.f32.mrb[0].mxu0
        %3432 = vmatprep.mubr.bf16.mxu0 0
        %3433 = vmatmul.mubr.bf16.gmra.mrb[0].mxu0 %v3299
        %v3434 = vpop.f32.mrb[0].mxu0
        %v3435 = vadd.f32 0.0, %v3434
        %v3436 = vpop.f32.mrb[0].mxu0
        %v3437 = vpop.f32.mrb[0].mxu0
        %v3438 = vadd.f32 0.0, %v3437
        %v3439 = vpop.f32.mrb[0].mxu0
        %3440 = vmatprep.mubr.bf16.mxu0 0
        %3441 = vmatmul.mubr.bf16.gmra.mrb[0].mxu0 %v3300
        %v3442 = vpop.f32.mrb[0].mxu0
        %v3443 = vadd.f32 0.0, %v3442
        %v3444 = vpop.f32.mrb[0].mxu0
        %v3445 = vpop.f32.mrb[0].mxu0
        %v3446 = vadd.f32 0.0, %v3445
        %v3447 = vpop.f32.mrb[0].mxu0
        %3448 = vmatprep.mubr.bf16.mxu0 0
        %3449 = vmatmul.mubr.bf16.gmra.mrb[0].mxu0 %v3301
        %v3450 = vpop.f32.mrb[0].mxu0
        %v3451 = vadd.f32 0.0, %v3450
        %v3452 = vpop.f32.mrb[0].mxu0
        %v3453 = vpop.f32.mrb[0].mxu0
        %v3454 = vadd.f32 0.0, %v3453
        %v3455 = vpop.f32.mrb[0].mxu0
        %3456 = vmatprep.mubr.bf16.mxu0 0
        %3457 = vmatmul.mubr.bf16.gmra.mrb[0].mxu0 %v3302
        %v3458 = vpop.f32.mrb[0].mxu0
        %v3459 = vadd.f32 0.0, %v3458
        %v3460 = vpop.f32.mrb[0].mxu0
        %v3461 = vpop.f32.mrb[0].mxu0
        %v3462 = vadd.f32 0.0, %v3461
        %v3463 = vpop.f32.mrb[0].mxu0
        %3464 = vmatprep.mubr.bf16.mxu0 0
        %3465 = vmatmul.mubr.bf16.gmra.mrb[0].mxu0 %v3303
        %v3466 = vpop.f32.mrb[0].mxu0
        %v3467 = vadd.f32 0.0, %v3466
        %v3468 = vpop.f32.mrb[0].mxu0
        %v3469 = vpop.f32.mrb[0].mxu0
        %v3470 = vadd.f32 0.0, %v3469
        %v3471 = vpop.f32.mrb[0].mxu0
        %3472 = vmatprep.mubr.bf16.mxu0 0
        %3473 = vmatmul.mubr.bf16.gmra.mrb[0].mxu0 %v3304
        %v3474 = vpop.f32.mrb[0].mxu0
        %v3475 = vadd.f32 0.0, %v3474
        %v3476 = vpop.f32.mrb[0].mxu0
        %v3477 = vpop.f32.mrb[0].mxu0
        %v3478 = vadd.f32 0.0, %v3477
        %v3479 = vpop.f32.mrb[0].mxu0
        %3480 = vmatprep.mubr.bf16.mxu0 0
        %3481 = vmatmul.mubr.bf16.gmra.mrb[0].mxu0 %v3305
        %v3482 = vpop.f32.mrb[0].mxu0
        %v3483 = vadd.f32 0.0, %v3482
        %v3484 = vpop.f32.mrb[0].mxu0
        %v3485 = vpop.f32.mrb[0].mxu0
        %v3486 = vadd.f32 0.0, %v3485
        %v3487 = vpop.f32.mrb[0].mxu0
        %3488 = vmatprep.mubr.bf16.mxu0 0
        %3489 = vmatmul.mubr.bf16.gmra.mrb[0].mxu0 %v3306
        %v3490 = vpop.f32.mrb[0].mxu0
        %v3491 = vadd.f32 0.0, %v3490
        %v3492 = vpop.f32.mrb[0].mxu0
        %v3493 = vpop.f32.mrb[0].mxu0
        %v3494 = vadd.f32 0.0, %v3493
        %v3495 = vpop.f32.mrb[0].mxu0
        %3496 = vmatprep.mubr.bf16.mxu0 0
        %3497 = vmatmul.mubr.bf16.gmra.mrb[0].mxu0 %v3307
        %v3498 = vpop.f32.mrb[0].mxu0
        %v3499 = vadd.f32 0.0, %v3498
        %v3500 = vpop.f32.mrb[0].mxu0
        %v3501 = vpop.f32.mrb[0].mxu0
        %v3502 = vadd.f32 0.0, %v3501
        %v3503 = vpop.f32.mrb[0].mxu0
        %3504 = vmatprep.mubr.bf16.mxu0 0
        %3505 = vmatmul.mubr.bf16.gmra.mrb[0].mxu0 %v3308
        %v3506 = vpop.f32.mrb[0].mxu0
        %v3507 = vadd.f32 0.0, %v3506
        %v3508 = vpop.f32.mrb[0].mxu0
        %v3509 = vpop.f32.mrb[0].mxu0
        %v3510 = vadd.f32 0.0, %v3509
        %v3511 = vpop.f32.mrb[0].mxu0
        %3512 = vmatprep.mubr.bf16.mxu0 0
        %3513 = vmatmul.mubr.bf16.gmra.mrb[0].mxu0 %v3309
        %v3514 = vpop.f32.mrb[0].mxu0
        %v3515 = vadd.f32 0.0, %v3514
        %v3516 = vpop.f32.mrb[0].mxu0
        %v3517 = vpop.f32.mrb[0].mxu0
        %v3518 = vadd.f32 0.0, %v3517
        %v3519 = vpop.f32.mrb[0].mxu0
        %3520 = vmatprep.mubr.bf16.mxu0 0
        %3521 = vmatmul.mubr.bf16.gmra.mrb[0].mxu0 %v3310
        %v3522 = vpop.f32.mrb[0].mxu0
        %v3523 = vadd.f32 0.0, %v3522
        %v3524 = vpop.f32.mrb[0].mxu0
        %v3525 = vpop.f32.mrb[0].mxu0
        %v3526 = vadd.f32 0.0, %v3525
        %v3527 = vpop.f32.mrb[0].mxu0
        %3528 = vmatprep.mubr.bf16.mxu0 0
        %3529 = vmatmul.mubr.bf16.gmra.mrb[0].mxu0 %v3311
        %v3530 = vpop.f32.mrb[0].mxu0
        %v3531 = vadd.f32 0.0, %v3530
        %v3532 = vpop.f32.mrb[0].mxu0
        %v3533 = vpop.f32.mrb[0].mxu0
        %v3534 = vadd.f32 0.0, %v3533
        %v3535 = vpop.f32.mrb[0].mxu0
        %3536 = vdwg.mxu0
        %v3537 = vadd.f32 %v3232, %v3411
        %v3538 = vadd.f32 %v3233, %v3414
        %v3539 = vadd.f32 %v3234, %v3419
        %v3540 = vadd.f32 %v3235, %v3422
        %v3541 = vadd.f32 %v3236, %v3427
        %v3542 = vadd.f32 %v3237, %v3430
        %v3543 = vadd.f32 %v3238, %v3435
        %v3544 = vadd.f32 %v3239, %v3438
        %v3545 = vadd.f32 %v3240, %v3443
        %v3546 = vadd.f32 %v3241, %v3446
        %v3547 = vadd.f32 %v3242, %v3451
        %v3548 = vadd.f32 %v3243, %v3454
        %v3549 = vadd.f32 %v3244, %v3459
        %v3550 = vadd.f32 %v3245, %v3462
        %v3551 = vadd.f32 %v3246, %v3467
        %v3552 = vadd.f32 %v3247, %v3470
        %v3553 = vadd.f32 %v3248, %v3475
        %v3554 = vadd.f32 %v3249, %v3478
        %v3555 = vadd.f32 %v3250, %v3483
        %v3556 = vadd.f32 %v3251, %v3486
        %v3557 = vadd.f32 %v3252, %v3491
        %v3558 = vadd.f32 %v3253, %v3494
        %v3559 = vadd.f32 %v3254, %v3499
        %v3560 = vadd.f32 %v3255, %v3502
        %v3561 = vadd.f32 %v3256, %v3507
        %v3562 = vadd.f32 %v3257, %v3510
        %v3563 = vadd.f32 %v3258, %v3515
        %v3564 = vadd.f32 %v3259, %v3518
        %v3565 = vadd.f32 %v3260, %v3523
        %v3566 = vadd.f32 %v3261, %v3526
        %v3567 = vadd.f32 %v3262, %v3531
        %v3568 = vadd.f32 %v3263, %v3534
        %v3569 = vld [vmem:[%s5] sm:$0x1]
        %v3571 = vlaneseq
        %v3572 = vshrl.u32 %v3571, 7
        %v3573 = vsub.s32 0, %v3572
        %v3574 = vrot.slane %v3569, %v3573
        %v3576 = vadd.f32 %v3537, %v3574
        %v3577 = vadd.f32 %v3538, %v3574
        %v3578 = vadd.f32 %v3539, %v3574
        %v3579 = vadd.f32 %v3540, %v3574
        %v3580 = vadd.f32 %v3541, %v3574
        %v3581 = vadd.f32 %v3542, %v3574
        %v3582 = vadd.f32 %v3543, %v3574
        %v3583 = vadd.f32 %v3544, %v3574
        %v3584 = vadd.f32 %v3545, %v3574
        %v3585 = vadd.f32 %v3546, %v3574
        %v3586 = vadd.f32 %v3547, %v3574
        %v3587 = vadd.f32 %v3548, %v3574
        %v3588 = vadd.f32 %v3549, %v3574
        %v3589 = vadd.f32 %v3550, %v3574
        %v3590 = vadd.f32 %v3551, %v3574
        %v3591 = vadd.f32 %v3552, %v3574
        %v3592 = vadd.f32 %v3553, %v3574
        %v3593 = vadd.f32 %v3554, %v3574
        %v3594 = vadd.f32 %v3555, %v3574
        %v3595 = vadd.f32 %v3556, %v3574
        %v3596 = vadd.f32 %v3557, %v3574
        %v3597 = vadd.f32 %v3558, %v3574
        %v3598 = vadd.f32 %v3559, %v3574
        %v3599 = vadd.f32 %v3560, %v3574
        %v3600 = vadd.f32 %v3561, %v3574
        %v3601 = vadd.f32 %v3562, %v3574
        %v3602 = vadd.f32 %v3563, %v3574
        %v3603 = vadd.f32 %v3564, %v3574
        %v3604 = vadd.f32 %v3565, %v3574
        %v3605 = vadd.f32 %v3566, %v3574
        %v3606 = vadd.f32 %v3567, %v3574
        %v3607 = vadd.f32 %v3568, %v3574
        %v3608 = vmax.f32 %v3576, 0.0
        %v3609 = vmax.f32 %v3577, 0.0
        %v3610 = vmax.f32 %v3578, 0.0
        %v3611 = vmax.f32 %v3579, 0.0
        %v3612 = vmax.f32 %v3580, 0.0
        %v3613 = vmax.f32 %v3581, 0.0
        %v3614 = vmax.f32 %v3582, 0.0
        %v3615 = vmax.f32 %v3583, 0.0
        %v3616 = vmax.f32 %v3584, 0.0
        %v3617 = vmax.f32 %v3585, 0.0
        %v3618 = vmax.f32 %v3586, 0.0
        %v3619 = vmax.f32 %v3587, 0.0
        %v3620 = vmax.f32 %v3588, 0.0
        %v3621 = vmax.f32 %v3589, 0.0
        %v3622 = vmax.f32 %v3590, 0.0
        %v3623 = vmax.f32 %v3591, 0.0
        %v3624 = vmax.f32 %v3592, 0.0
        %v3625 = vmax.f32 %v3593, 0.0
        %v3626 = vmax.f32 %v3594, 0.0
        %v3627 = vmax.f32 %v3595, 0.0
        %v3628 = vmax.f32 %v3596, 0.0
        %v3629 = vmax.f32 %v3597, 0.0
        %v3630 = vmax.f32 %v3598, 0.0
        %v3631 = vmax.f32 %v3599, 0.0
        %v3632 = vmax.f32 %v3600, 0.0
        %v3633 = vmax.f32 %v3601, 0.0
        %v3634 = vmax.f32 %v3602, 0.0
        %v3635 = vmax.f32 %v3603, 0.0
        %v3636 = vmax.f32 %v3604, 0.0
        %v3637 = vmax.f32 %v3605, 0.0
        %v3638 = vmax.f32 %v3606, 0.0
        %v3639 = vmax.f32 %v3607, 0.0
        %v3640 = vpack.c.bf16 %v3609, %v3608
        %v3641 = vpack.c.bf16 %v3611, %v3610
        %v3642 = vpack.c.bf16 %v3613, %v3612
        %v3643 = vpack.c.bf16 %v3615, %v3614
        %v3644 = vpack.c.bf16 %v3617, %v3616
        %v3645 = vpack.c.bf16 %v3619, %v3618
        %v3646 = vpack.c.bf16 %v3621, %v3620
        %v3647 = vpack.c.bf16 %v3623, %v3622
        %v3648 = vpack.c.bf16 %v3625, %v3624
        %v3649 = vpack.c.bf16 %v3627, %v3626
        %v3650 = vpack.c.bf16 %v3629, %v3628
        %v3651 = vpack.c.bf16 %v3631, %v3630
        %v3652 = vpack.c.bf16 %v3633, %v3632
        %v3653 = vpack.c.bf16 %v3635, %v3634
        %v3654 = vpack.c.bf16 %v3637, %v3636
        %v3655 = vpack.c.bf16 %v3639, %v3638
        %v3656 = vld [vmem:[#allocation7] sm:$0xf]
        %v3657 = vld [vmem:[#allocation7 + $0x4] sm:$0xf]
        %v3658 = vld [vmem:[#allocation7 + $0x8] sm:$0xf]
        %v3659 = vld [vmem:[#allocation7 + $0xc] sm:$0xf]
        %v3660 = vld [vmem:[#allocation7 + $0x10] sm:$0xf]
        %v3661 = vld [vmem:[#allocation7 + $0x14] sm:$0xf]
        %v3662 = vld [vmem:[#allocation7 + $0x18] sm:$0xf]
        %v3663 = vld [vmem:[#allocation7 + $0x1c] sm:$0xf]
        %v3664 = vld [vmem:[#allocation7 + $0x20] sm:$0xf]
        %v3665 = vld [vmem:[#allocation7 + $0x24] sm:$0xf]
        %v3666 = vld [vmem:[#allocation7 + $0x28] sm:$0xf]
        %v3667 = vld [vmem:[#allocation7 + $0x2c] sm:$0xf]
        %v3668 = vld [vmem:[#allocation7 + $0x30] sm:$0xf]
        %v3669 = vld [vmem:[#allocation7 + $0x34] sm:$0xf]
        %v3670 = vld [vmem:[#allocation7 + $0x38] sm:$0xf]
        %v3671 = vld [vmem:[#allocation7 + $0x3c] sm:$0xf]
        %v3672 = vld [vmem:[%s7] sm:$0x1]
        %v3674 = vlaneseq
        %v3675 = vshrl.u32 %v3674, 7
        %v3676 = vsub.s32 0, %v3675
        %v3677 = vrot.slane %v3672, %v3676
        %v3695 = vunpack.c.l.b16 %v3656
        %v3696 = vunpack.c.l.b16 %v3657
        %v3697 = vunpack.c.l.b16 %v3658
        %v3698 = vunpack.c.l.b16 %v3659
        %v3699 = vunpack.c.l.b16 %v3660
        %v3700 = vunpack.c.l.b16 %v3661
        %v3701 = vunpack.c.l.b16 %v3662
        %v3702 = vunpack.c.l.b16 %v3663
        %v3703 = vunpack.c.l.b16 %v3664
        %v3704 = vunpack.c.l.b16 %v3665
        %v3705 = vunpack.c.l.b16 %v3666
        %v3706 = vunpack.c.l.b16 %v3667
        %v3707 = vunpack.c.l.b16 %v3668
        %v3708 = vunpack.c.l.b16 %v3669
        %v3709 = vunpack.c.l.b16 %v3670
        %v3710 = vunpack.c.l.b16 %v3671
        %v3711 = vpack.c.b16 %v3696, %v3695
        %v3712 = vpack.c.b16 %v3698, %v3697
        %v3713 = vpack.c.b16 %v3700, %v3699
        %v3714 = vpack.c.b16 %v3702, %v3701
        %v3715 = vpack.c.b16 %v3704, %v3703
        %v3716 = vpack.c.b16 %v3706, %v3705
        %v3717 = vpack.c.b16 %v3708, %v3707
        %v3718 = vpack.c.b16 %v3710, %v3709
        %3727 = vmatprep.subr.bf16.mxu0 0
        %3728 = vmatpush1.bf16.msra.mxu0 %v3711
        %3729 = vmatprep.subr.bf16.mxu0 0
        %3730 = vmatpush1.bf16.msra.mxu0 %v3712
        %3731 = vmatprep.subr.bf16.mxu0 0
        %3732 = vmatpush1.bf16.msra.mxu0 %v3713
        %3733 = vmatprep.subr.bf16.mxu0 0
        %3734 = vmatpush1.bf16.msra.mxu0 %v3714
        %3735 = vmatprep.subr.bf16.mxu0 0
        %3736 = vmatpush1.bf16.msra.mxu0 %v3715
        %3737 = vmatprep.subr.bf16.mxu0 0
        %3738 = vmatpush1.bf16.msra.mxu0 %v3716
        %3739 = vmatprep.subr.bf16.mxu0 0
        %3740 = vmatpush1.bf16.msra.mxu0 %v3717
        %3741 = vmatprep.subr.bf16.mxu0 0
        %3742 = vmatpush1.bf16.msra.mxu0 %v3718
        %3743 = vmatprep.subr.bf16.mxu0 0
        %3744 = vmatpush1.bf16.msra.mxu0 0
        %3745 = vmatprep.subr.bf16.mxu0 0
        %3746 = vmatpush1.bf16.msra.mxu0 0
        %3747 = vmatprep.subr.bf16.mxu0 0
        %3748 = vmatpush1.bf16.msra.mxu0 0
        %3749 = vmatprep.subr.bf16.mxu0 0
        %3750 = vmatpush1.bf16.msra.mxu0 0
        %3751 = vmatprep.subr.bf16.mxu0 0
        %3752 = vmatpush1.bf16.msra.mxu0 0
        %3753 = vmatprep.subr.bf16.mxu0 0
        %3754 = vmatpush1.bf16.msra.mxu0 0
        %3755 = vmatprep.subr.bf16.mxu0 0
        %3756 = vmatpush1.bf16.msra.mxu0 0
        %3757 = vmatprep.subr.bf16.mxu0 0
        %3758 = vmatpush1.bf16.msra.mxu0 0
        %3759 = vmatprep.mubr.bf16.mxu0 0
        %3760 = vmatmul.mubr.bf16.gmra.mrb[0].mxu0 %v3640
        %v3761 = vpop.f32.mrb[0].mxu0
        %v3762 = vadd.f32 %v3677, %v3761
        %v3763 = vpop.f32.mrb[0].mxu0
        %v3764 = vpop.f32.mrb[0].mxu0
        %v3765 = vadd.f32 %v3677, %v3764
        %v3766 = vpop.f32.mrb[0].mxu0
        %3767 = vmatprep.mubr.bf16.mxu0 0
        %3768 = vmatmul.mubr.bf16.gmra.mrb[0].mxu0 %v3641
        %v3769 = vpop.f32.mrb[0].mxu0
        %v3770 = vadd.f32 %v3677, %v3769
        %v3771 = vpop.f32.mrb[0].mxu0
        %v3772 = vpop.f32.mrb[0].mxu0
        %v3773 = vadd.f32 %v3677, %v3772
        %v3774 = vpop.f32.mrb[0].mxu0
        %3775 = vmatprep.mubr.bf16.mxu0 0
        %3776 = vmatmul.mubr.bf16.gmra.mrb[0].mxu0 %v3642
        %v3777 = vpop.f32.mrb[0].mxu0
        %v3778 = vadd.f32 %v3677, %v3777
        %v3779 = vpop.f32.mrb[0].mxu0
        %v3780 = vpop.f32.mrb[0].mxu0
        %v3781 = vadd.f32 %v3677, %v3780
        %v3782 = vpop.f32.mrb[0].mxu0
        %3783 = vmatprep.mubr.bf16.mxu0 0
        %3784 = vmatmul.mubr.bf16.gmra.mrb[0].mxu0 %v3643
        %v3785 = vpop.f32.mrb[0].mxu0
        %v3786 = vadd.f32 %v3677, %v3785
        %v3787 = vpop.f32.mrb[0].mxu0
        %v3788 = vpop.f32.mrb[0].mxu0
        %v3789 = vadd.f32 %v3677, %v3788
        %v3790 = vpop.f32.mrb[0].mxu0
        %3791 = vmatprep.mubr.bf16.mxu0 0
        %3792 = vmatmul.mubr.bf16.gmra.mrb[0].mxu0 %v3644
        %v3793 = vpop.f32.mrb[0].mxu0
        %v3794 = vadd.f32 %v3677, %v3793
        %v3795 = vpop.f32.mrb[0].mxu0
        %v3796 = vpop.f32.mrb[0].mxu0
        %v3797 = vadd.f32 %v3677, %v3796
        %v3798 = vpop.f32.mrb[0].mxu0
        %3799 = vmatprep.mubr.bf16.mxu0 0
        %3800 = vmatmul.mubr.bf16.gmra.mrb[0].mxu0 %v3645
        %v3801 = vpop.f32.mrb[0].mxu0
        %v3802 = vadd.f32 %v3677, %v3801
        %v3803 = vpop.f32.mrb[0].mxu0
        %v3804 = vpop.f32.mrb[0].mxu0
        %v3805 = vadd.f32 %v3677, %v3804
        %v3806 = vpop.f32.mrb[0].mxu0
        %3807 = vmatprep.mubr.bf16.mxu0 0
        %3808 = vmatmul.mubr.bf16.gmra.mrb[0].mxu0 %v3646
        %v3809 = vpop.f32.mrb[0].mxu0
        %v3810 = vadd.f32 %v3677, %v3809
        %v3811 = vpop.f32.mrb[0].mxu0
        %v3812 = vpop.f32.mrb[0].mxu0
        %v3813 = vadd.f32 %v3677, %v3812
        %v3814 = vpop.f32.mrb[0].mxu0
        %3815 = vmatprep.mubr.bf16.mxu0 0
        %3816 = vmatmul.mubr.bf16.gmra.mrb[0].mxu0 %v3647
        %v3817 = vpop.f32.mrb[0].mxu0
        %v3818 = vadd.f32 %v3677, %v3817
        %v3819 = vpop.f32.mrb[0].mxu0
        %v3820 = vpop.f32.mrb[0].mxu0
        %v3821 = vadd.f32 %v3677, %v3820
        %v3822 = vpop.f32.mrb[0].mxu0
        %3823 = vmatprep.mubr.bf16.mxu0 0
        %3824 = vmatmul.mubr.bf16.gmra.mrb[0].mxu0 %v3648
        %v3825 = vpop.f32.mrb[0].mxu0
        %v3826 = vadd.f32 %v3677, %v3825
        %v3827 = vpop.f32.mrb[0].mxu0
        %v3828 = vpop.f32.mrb[0].mxu0
        %v3829 = vadd.f32 %v3677, %v3828
        %v3830 = vpop.f32.mrb[0].mxu0
        %3831 = vmatprep.mubr.bf16.mxu0 0
        %3832 = vmatmul.mubr.bf16.gmra.mrb[0].mxu0 %v3649
        %v3833 = vpop.f32.mrb[0].mxu0
        %v3834 = vadd.f32 %v3677, %v3833
        %v3835 = vpop.f32.mrb[0].mxu0
        %v3836 = vpop.f32.mrb[0].mxu0
        %v3837 = vadd.f32 %v3677, %v3836
        %v3838 = vpop.f32.mrb[0].mxu0
        %3839 = vmatprep.mubr.bf16.mxu0 0
        %3840 = vmatmul.mubr.bf16.gmra.mrb[0].mxu0 %v3650
        %v3841 = vpop.f32.mrb[0].mxu0
        %v3842 = vadd.f32 %v3677, %v3841
        %v3843 = vpop.f32.mrb[0].mxu0
        %v3844 = vpop.f32.mrb[0].mxu0
        %v3845 = vadd.f32 %v3677, %v3844
        %v3846 = vpop.f32.mrb[0].mxu0
        %3847 = vmatprep.mubr.bf16.mxu0 0
        %3848 = vmatmul.mubr.bf16.gmra.mrb[0].mxu0 %v3651
        %v3849 = vpop.f32.mrb[0].mxu0
        %v3850 = vadd.f32 %v3677, %v3849
        %v3851 = vpop.f32.mrb[0].mxu0
        %v3852 = vpop.f32.mrb[0].mxu0
        %v3853 = vadd.f32 %v3677, %v3852
        %v3854 = vpop.f32.mrb[0].mxu0
        %3855 = vmatprep.mubr.bf16.mxu0 0
        %3856 = vmatmul.mubr.bf16.gmra.mrb[0].mxu0 %v3652
        %v3857 = vpop.f32.mrb[0].mxu0
        %v3858 = vadd.f32 %v3677, %v3857
        %v3859 = vpop.f32.mrb[0].mxu0
        %v3860 = vpop.f32.mrb[0].mxu0
        %v3861 = vadd.f32 %v3677, %v3860
        %v3862 = vpop.f32.mrb[0].mxu0
        %3863 = vmatprep.mubr.bf16.mxu0 0
        %3864 = vmatmul.mubr.bf16.gmra.mrb[0].mxu0 %v3653
        %v3865 = vpop.f32.mrb[0].mxu0
        %v3866 = vadd.f32 %v3677, %v3865
        %v3867 = vpop.f32.mrb[0].mxu0
        %v3868 = vpop.f32.mrb[0].mxu0
        %v3869 = vadd.f32 %v3677, %v3868
        %v3870 = vpop.f32.mrb[0].mxu0
        %3871 = vmatprep.mubr.bf16.mxu0 0
        %3872 = vmatmul.mubr.bf16.gmra.mrb[0].mxu0 %v3654
        %v3873 = vpop.f32.mrb[0].mxu0
        %v3874 = vadd.f32 %v3677, %v3873
        %v3875 = vpop.f32.mrb[0].mxu0
        %v3876 = vpop.f32.mrb[0].mxu0
        %v3877 = vadd.f32 %v3677, %v3876
        %v3878 = vpop.f32.mrb[0].mxu0
        %3879 = vmatprep.mubr.bf16.mxu0 0
        %3880 = vmatmul.mubr.bf16.gmra.mrb[0].mxu0 %v3655
        %v3881 = vpop.f32.mrb[0].mxu0
        %v3882 = vadd.f32 %v3677, %v3881
        %v3883 = vpop.f32.mrb[0].mxu0
        %v3884 = vpop.f32.mrb[0].mxu0
        %v3885 = vadd.f32 %v3677, %v3884
        %v3886 = vpop.f32.mrb[0].mxu0
        %3887 = vdwg.mxu0
        %v3888 = vadd.f32 %v3762, %v349
        %v3889 = vadd.f32 %v3765, %v350
        %v3890 = vadd.f32 %v3770, %v351
        %v3891 = vadd.f32 %v3773, %v352
        %v3892 = vadd.f32 %v3778, %v353
        %v3893 = vadd.f32 %v3781, %v354
        %v3894 = vadd.f32 %v3786, %v355
        %v3895 = vadd.f32 %v3789, %v356
        %v3896 = vadd.f32 %v3794, %v357
        %v3897 = vadd.f32 %v3797, %v358
        %v3898 = vadd.f32 %v3802, %v359
        %v3899 = vadd.f32 %v3805, %v360
        %v3900 = vadd.f32 %v3810, %v361
        %v3901 = vadd.f32 %v3813, %v362
        %v3902 = vadd.f32 %v3818, %v363
        %v3903 = vadd.f32 %v3821, %v364
        %v3904 = vadd.f32 %v3826, %v365
        %v3905 = vadd.f32 %v3829, %v366
        %v3906 = vadd.f32 %v3834, %v367
        %v3907 = vadd.f32 %v3837, %v368
        %v3908 = vadd.f32 %v3842, %v369
        %v3909 = vadd.f32 %v3845, %v370
        %v3910 = vadd.f32 %v3850, %v371
        %v3911 = vadd.f32 %v3853, %v372
        %v3912 = vadd.f32 %v3858, %v373
        %v3913 = vadd.f32 %v3861, %v374
        %v3914 = vadd.f32 %v3866, %v375
        %v3915 = vadd.f32 %v3869, %v376
        %v3916 = vadd.f32 %v3874, %v377
        %v3917 = vadd.f32 %v3877, %v378
        %v3918 = vadd.f32 %v3882, %v379
        %v3919 = vadd.f32 %v3885, %v380
        %v3920 = vmax.f32 %v3888, 0.0
        %v3921 = vmax.f32 %v3889, 0.0
        %v3922 = vmax.f32 %v3890, 0.0
        %v3923 = vmax.f32 %v3891, 0.0
        %v3924 = vmax.f32 %v3892, 0.0
        %v3925 = vmax.f32 %v3893, 0.0
        %v3926 = vmax.f32 %v3894, 0.0
        %v3927 = vmax.f32 %v3895, 0.0
        %v3928 = vmax.f32 %v3896, 0.0
        %v3929 = vmax.f32 %v3897, 0.0
        %v3930 = vmax.f32 %v3898, 0.0
        %v3931 = vmax.f32 %v3899, 0.0
        %v3932 = vmax.f32 %v3900, 0.0
        %v3933 = vmax.f32 %v3901, 0.0
        %v3934 = vmax.f32 %v3902, 0.0
        %v3935 = vmax.f32 %v3903, 0.0
        %v3936 = vmax.f32 %v3904, 0.0
        %v3937 = vmax.f32 %v3905, 0.0
        %v3938 = vmax.f32 %v3906, 0.0
        %v3939 = vmax.f32 %v3907, 0.0
        %v3940 = vmax.f32 %v3908, 0.0
        %v3941 = vmax.f32 %v3909, 0.0
        %v3942 = vmax.f32 %v3910, 0.0
        %v3943 = vmax.f32 %v3911, 0.0
        %v3944 = vmax.f32 %v3912, 0.0
        %v3945 = vmax.f32 %v3913, 0.0
        %v3946 = vmax.f32 %v3914, 0.0
        %v3947 = vmax.f32 %v3915, 0.0
        %v3948 = vmax.f32 %v3916, 0.0
        %v3949 = vmax.f32 %v3917, 0.0
        %v3950 = vmax.f32 %v3918, 0.0
        %v3951 = vmax.f32 %v3919, 0.0
        %3952 = vst [vmem:[%s342] sm:$0xff] %v3920
        %3953 = vst [vmem:[%s342 + $0x8] sm:$0xff] %v3921
        %3954 = vst [vmem:[%s342 + $0x10] sm:$0xff] %v3922
        %3955 = vst [vmem:[%s342 + $0x18] sm:$0xff] %v3923
        %3956 = vst [vmem:[%s342 + $0x20] sm:$0xff] %v3924
        %3957 = vst [vmem:[%s342 + $0x28] sm:$0xff] %v3925
        %3958 = vst [vmem:[%s342 + $0x30] sm:$0xff] %v3926
        %3959 = vst [vmem:[%s342 + $0x38] sm:$0xff] %v3927
        %3960 = vst [vmem:[%s342 + $0x40] sm:$0xff] %v3928
        %3961 = vst [vmem:[%s342 + $0x48] sm:$0xff] %v3929
        %3962 = vst [vmem:[%s342 + $0x50] sm:$0xff] %v3930
        %3963 = vst [vmem:[%s342 + $0x58] sm:$0xff] %v3931
        %3964 = vst [vmem:[%s342 + $0x60] sm:$0xff] %v3932
        %3965 = vst [vmem:[%s342 + $0x68] sm:$0xff] %v3933
        %3966 = vst [vmem:[%s342 + $0x70] sm:$0xff] %v3934
        %3967 = vst [vmem:[%s342 + $0x78] sm:$0xff] %v3935
        %3968 = vst [vmem:[%s342 + $0x80] sm:$0xff] %v3936
        %3969 = vst [vmem:[%s342 + $0x88] sm:$0xff] %v3937
        %3970 = vst [vmem:[%s342 + $0x90] sm:$0xff] %v3938
        %3971 = vst [vmem:[%s342 + $0x98] sm:$0xff] %v3939
        %3972 = vst [vmem:[%s342 + $0xa0] sm:$0xff] %v3940
        %3973 = vst [vmem:[%s342 + $0xa8] sm:$0xff] %v3941
        %3974 = vst [vmem:[%s342 + $0xb0] sm:$0xff] %v3942
        %3975 = vst [vmem:[%s342 + $0xb8] sm:$0xff] %v3943
        %3976 = vst [vmem:[%s342 + $0xc0] sm:$0xff] %v3944
        %3977 = vst [vmem:[%s342 + $0xc8] sm:$0xff] %v3945
        %3978 = vst [vmem:[%s342 + $0xd0] sm:$0xff] %v3946
        %3979 = vst [vmem:[%s342 + $0xd8] sm:$0xff] %v3947
        %3980 = vst [vmem:[%s342 + $0xe0] sm:$0xff] %v3948
        %3981 = vst [vmem:[%s342 + $0xe8] sm:$0xff] %v3949
        %3982 = vst [vmem:[%s342 + $0xf0] sm:$0xff] %v3950
        %3983 = vst [vmem:[%s342 + $0xf8] sm:$0xff] %v3951
        %s3984 = sand.u32 %s205, 1
        %s3985 = scalar_lea.sflag [#allocation4], %s3984
        %s3986 = sand.u32 %s205, 1
        %s3987 = smul.addr %s3986, 256
        %s3988 = scalar_lea.vmem [#allocation8], %s3987
        // Predicated region
        $region65: #{tpu_custom_call.1} parent=51 // pred_check
          %p3989 = pneg %p215
        $region66: #{tpu_custom_call.1} parent=51 // pred_check_branch
          %3991 = sbr.rel (%p3989) target = $region68
        $region67: #{tpu_custom_call.1} parent=51 // pred_region
          %s3993 = ssub.s32 4096, 4096
          %3994 = vsyncadd %s3985, %s3993
          %s3995 = smul.addr %s24, 32
          %s3996 = smul.addr %s3995, 128
          %s3997 = scalar_lea.hbm %s8, %s3996
          %s3998 = sshll.u32 %s3988, 4
          %s3999 = int_to_ptr.vmem [resolvable:$true] %s3998
          %4004 = dma.vmem_to_hbm [thread:$0]  %s3999, 4096, %s3997, %s3985, 128, 128, 8
        $region68: #{tpu_custom_call.1} parent=51 // pred_fallthru
          _
      $region52: #{tpu_custom_call.1} parent=5 // pred_fallthru
        _
      %p4005 = scmp.le.s32.totalorder 2, %s19
      // Predicated region
      $region69: #{tpu_custom_call.1} parent=5 // pred_check
        %p4006 = pneg %p4005
      $region70: #{tpu_custom_call.1} parent=5 // pred_check_branch
        %4008 = sbr.rel (%p4006) target = $region72
      $region71: #{tpu_custom_call.1} parent=5 // pred_region
        %s4009 = ssub.s32 %s19, 2
        // Predicated region
        $region73: #{tpu_custom_call.1} parent=71 // pred_check
          %p4010 = pneg %p221
        $region74: #{tpu_custom_call.1} parent=71 // pred_check_branch
          %4012 = sbr.rel (%p4010) target = $region76
        $region75: #{tpu_custom_call.1} parent=71 // pred_region
          %s4013 = sand.u32 %s206, 1
          %s4014 = scalar_lea.sflag [#allocation4], %s4013
          %s4015 = sand.u32 %s206, 1
          %s4016 = smul.addr %s4015, 256
          %s4017 = scalar_lea.vmem [#allocation8], %s4016
          %4018 = dma.done %s4014, 4096
        $region76: #{tpu_custom_call.1} parent=71 // pred_fallthru
          _
      $region72: #{tpu_custom_call.1} parent=5 // pred_fallthru
        _
    $region6: #{tpu_custom_call.1} parent=1 // loop_footer
      %s23 = sadd.s32 1, %s19
    $region7: #{tpu_custom_call.1} parent=1 // loop_footer_branch
      %18 = sbr.rel target = $region3
    $region8: #{tpu_custom_call.1} parent=1 // loop_exit
      _
    %4019 = vsyncpa [#allocation3], 1
    %s4020 = scalar_lea.sflag [#allocation3], 1
    %4021 = vsyncpa %s4020, 1
    %4022 = vsyncpa [#allocation6], 1
    %4023 = vsyncpa [#allocation4], 1
    %s4024 = scalar_lea.sflag [#allocation4], 1
    %4025 = vsyncpa %s4024, 1

</llo_original>
